<compile_context>
chip_gen: v5e
topology: v5e:2x2
jax: 0.10.0
libtpu: 0.0.40
codegen_flags: <defaults>
</compile_context>

<pallas_src>
import jax
import jax.numpy as jnp
from jax.experimental import pallas as pl
from jax.experimental.pallas import tpu as pltpu

_CIN_PAD = 32   # in_chans=30 padded to a 32-aligned K


# ------------------------------ fused kernel --------------------------------

def _rsna24_fused_kernel(xph_ref, w1_ref, b1_ref, w2_ref, b2_ref,
                         wf_ref, bf_ref, o_ref, f1p_ref):
    """conv1 -> conv2 -> GAP -> head for one batch tile; intermediates in VMEM."""
    bt, _, ph, pw, cin = xph_ref.shape        # (Bt, 16, Ph, Pw, Cin) bf16 phases
    qh, qw = ph - 1, pw - 1                   # conv1 quarter-res == conv2 output res
    c1 = w1_ref.shape[2]
    c2 = w2_ref.shape[2]
    m = bt * qh * qw                          # matmul M (batch folded in)

    # ---- zero only the pad border of the conv1-feature phase scratch --------
    # (re-done every step so "parallel" grid sharding across cores stays safe;
    # the interior is fully rewritten by the conv1 stores below)
    for qi in range(2):
        for qj in range(2):
            q = 2 * qi + qj
            rb = 0 if qi == 0 else qh
            cb = 0 if qj == 0 else qw
            f1p_ref[:, q, rb, :, :] = jnp.zeros((bt, pw, c1), jnp.bfloat16)
            f1p_ref[:, q, :, cb, :] = jnp.zeros((bt, ph, c1), jnp.bfloat16)

    # ---- conv1 (3x3 / stride 2 / pad 1): shift-and-accumulate, no concats ----
    # Computed per output-pixel parity class (pr, pc) so both the tap reads
    # (from the mod-4 input phases) and the feature stores (into the mod-2
    # padded-feature phases) are contiguous static block slices.
    for pr in range(2):
        for pc in range(2):
            acc = None
            for di in range(3):
                for dj in range(3):
                    tr, tc = 2 * pr + di, 2 * pc + dj
                    tap = xph_ref[:, 4 * (tr % 4) + (tc % 4),
                                  tr // 4:tr // 4 + qh,
                                  tc // 4:tc // 4 + qw, :]       # (Bt,qh,qw,Cin) bf16
                    d = jnp.dot(tap.reshape(m, cin), w1_ref[3 * di + dj],
                                preferred_element_type=jnp.float32)
                    acc = d if acc is None else acc + d
            f1c = jnp.maximum(acc + b1_ref[...], 0.0).astype(jnp.bfloat16)
            qi, qj = (pr + 1) % 2, (pc + 1) % 2
            ro, co = (pr + 1) // 2, (pc + 1) // 2
            f1p_ref[:, 2 * qi + qj, ro:ro + qh, co:co + qw, :] = \
                f1c.reshape(bt, qh, qw, c1)

    # ---- conv2 (3x3 / stride 2 / pad 1) on the VMEM-resident bf16 features ---
    acc2 = None
    for di in range(3):
        for dj in range(3):
            tap = f1p_ref[:, 2 * (di % 2) + (dj % 2),
                          di // 2:di // 2 + qh,
                          dj // 2:dj // 2 + qw, :]               # (Bt,qh,qw,C1) bf16
            d = jnp.dot(tap.reshape(m, c1), w2_ref[3 * di + dj],
                        preferred_element_type=jnp.float32)
            acc2 = d if acc2 is None else acc2 + d
    f2 = jnp.maximum(acc2 + b2_ref[...], 0.0)                    # (M, C2) f32

    # ---- global average pool (sum * 1/S) + classifier head (128-lane dense) --
    pooled = jnp.sum(f2.reshape(bt, qh * qw, c2), axis=1) * (1.0 / (qh * qw))
    logits = jnp.dot(pooled.astype(jnp.bfloat16), wf_ref[...],
                     preferred_element_type=jnp.float32) + bf_ref[...]
    o_ref[0] = logits                                            # (Bt, 128) f32


# ------------------------------ host wrappers --------------------------------

def _prep_input_phases(x_nchw):
    """NCHW -> bf16 NHWC, conv pad 1, Cin pad to 32, mod-4 phase split of both
    spatial dims so every in-kernel conv1 tap is a contiguous block slice."""
    x = jnp.transpose(x_nchw, (0, 2, 3, 1))
    b, h, w, c = x.shape
    # TODO(synk): stand-in backbone requires H, W divisible by 4; the real timm
    # backbone handles arbitrary sizes.
    assert h % 4 == 0 and w % 4 == 0 and c <= _CIN_PAD
    xp = jnp.pad(x, ((0, 0), (1, 3), (1, 3), (0, _CIN_PAD - c)))   # (B,H+4,W+4,32)
    ph, pw = (h + 4) // 4, (w + 4) // 4
    xph = xp.reshape(b, ph, 4, pw, 4, _CIN_PAD).transpose(0, 2, 4, 1, 3, 5)
    return xph.reshape(b, 16, ph, pw, _CIN_PAD).astype(jnp.bfloat16)


def rsna24_forward(x_nchw, params, n_classes, block_b=2):
    """Fused forward: one pallas_call, batch-tiled grid; logits (B, n_classes)."""
    w1, b1, w2, b2, wf, bf = params
    xph = _prep_input_phases(x_nchw)            # (B, 16, Ph, Pw, 32) bf16
    batch, _, ph, pw, cinp = xph.shape
    assert batch % block_b == 0
    c1 = w1.shape[2]
    ncls_pad = wf.shape[1]
    grid_b = batch // block_b

    out = pl.pallas_call(
        _rsna24_fused_kernel,
        out_shape=jax.ShapeDtypeStruct((grid_b, block_b, ncls_pad), jnp.float32),
        grid=(grid_b,),
        in_specs=[
            pl.BlockSpec((block_b, 16, ph, pw, cinp), lambda i: (i, 0, 0, 0, 0)),
            pl.BlockSpec(w1.shape, lambda i: (0, 0, 0)),
            pl.BlockSpec(b1.shape, lambda i: (0, 0)),
            pl.BlockSpec(w2.shape, lambda i: (0, 0, 0)),
            pl.BlockSpec(b2.shape, lambda i: (0, 0)),
            pl.BlockSpec(wf.shape, lambda i: (0, 0)),
            pl.BlockSpec(bf.shape, lambda i: (0, 0)),
        ],
        out_specs=pl.BlockSpec((1, block_b, ncls_pad), lambda i: (i, 0, 0)),
        scratch_shapes=[
            # padded conv1 features, mod-2 phase split, bf16 (conv2 input)
            pltpu.VMEM((block_b, 4, ph, pw, c1), jnp.bfloat16),
        ],
        compiler_params=pltpu.CompilerParams(
            dimension_semantics=("parallel",)),      # megacore over batch tiles
    )(xph, w1, b1, w2, b2, wf, bf)
    return out.reshape(batch, ncls_pad)[:, :n_classes]


# ----------------------------------- main ------------------------------------

if __name__ == "__main__":
    B, IN_C, H, W = 4, 30, 16, 16            # in_c=30 per module default
    C1, C2, NCLS = 128, 128, 75              # n_classes=75 per module default
    NCLS_PAD = 128                           # lane-dense classifier output
    BT = 2                                   # samples fused per grid step

    key = jax.random.PRNGKey(0)
    kx, k1, k2, k3, k4, k5, k6 = jax.random.split(key, 7)

    x = jax.random.normal(kx, (B, IN_C, H, W), jnp.float32)      # NCHW input

    # Synthetic parameters (HWIO conv layout).
    # TODO(synk): real PyTorch/timm conv weights (Cout, Cin, kh, kw) must be
    # permuted with .transpose(2, 3, 1, 0) before the padding/reshape below.
    w1_hwio = 0.05 * jax.random.normal(k1, (3, 3, IN_C, C1), jnp.float32)
    b1 = 0.01 * jax.random.normal(k2, (1, C1), jnp.float32)
    w2_hwio = 0.05 * jax.random.normal(k3, (3, 3, C1, C2), jnp.float32)
    b2 = 0.01 * jax.random.normal(k4, (1, C2), jnp.float32)
    wf = 0.05 * jax.random.normal(k5, (C2, NCLS), jnp.float32)
    bf = 0.01 * jax.random.normal(k6, (1, NCLS), jnp.float32)

    # Kernel-side layouts: per-tap conv weights (9, K, Cout) in bf16, K padded.
    w1_pad = jnp.pad(w1_hwio, ((0, 0), (0, 0), (0, _CIN_PAD - IN_C), (0, 0)))
    params = (
        w1_pad.reshape(9, _CIN_PAD, C1).astype(jnp.bfloat16),
        b1,
        w2_hwio.reshape(9, C1, C2).astype(jnp.bfloat16),
        b2,
        jnp.pad(wf, ((0, 0), (0, NCLS_PAD - NCLS))).astype(jnp.bfloat16),
        jnp.pad(bf, ((0, 0), (0, NCLS_PAD - NCLS))),
    )

    fwd = jax.jit(rsna24_forward, static_argnums=(2, 3))
    logits = fwd(x, params, NCLS, BT)
    jax.block_until_ready(logits)

    assert logits.shape == (B, NCLS), logits.shape
    assert logits.dtype == jnp.float32
    assert bool(jnp.all(jnp.isfinite(logits)))

    # Reference check (f32 XLA convs); bf16 MXU operands -> small abs error.
    def _ref(x_nchw):
        xh = jnp.transpose(x_nchw, (0, 2, 3, 1))
        y = jax.lax.conv_general_dilated(
            xh, w1_hwio, (2, 2), ((1, 1), (1, 1)),
            dimension_numbers=("NHWC", "HWIO", "NHWC"))
        y = jnp.maximum(y + b1[0], 0.0)
        y = jax.lax.conv_general_dilated(
            y, w2_hwio, (2, 2), ((1, 1), (1, 1)),
            dimension_numbers=("NHWC", "HWIO", "NHWC"))
        y = jnp.maximum(y + b2[0], 0.0)
        y = jnp.mean(y, axis=(1, 2))
        return y @ wf + bf[0]

    ref = _ref(x)
    max_err = float(jnp.max(jnp.abs(logits - ref)))
    assert max_err < 5e-2, max_err

    print("KERNEL_OK")
</pallas_src>

<mosaic_0001>
module attributes {stable_mosaic.version = 11 : i64} {
  func.func @_rsna24_fused_kernel(%arg0: i32, %arg1: memref<2x16x5x5x32xbf16, #tpu.memory_space<vmem>>, %arg2: memref<9x32x128xbf16, #tpu.memory_space<vmem>>, %arg3: memref<1x128xf32, #tpu.memory_space<vmem>>, %arg4: memref<9x128x128xbf16, #tpu.memory_space<vmem>>, %arg5: memref<1x128xf32, #tpu.memory_space<vmem>>, %arg6: memref<128x128xbf16, #tpu.memory_space<vmem>>, %arg7: memref<1x128xf32, #tpu.memory_space<vmem>>, %arg8: memref<1x2x128xf32, #tpu.memory_space<vmem>>, %arg9: memref<2x4x5x5x128xbf16, #tpu.memory_space<vmem>>) attributes {dimension_semantics = [#tpu.dimension_semantics<parallel>], iteration_bounds = array<i64: 2>, scalar_prefetch = 0 : i64, scratch_operands = 1 : i64, tpu.core_type = #tpu.core_type<tc>, window_params = [{transform_indices = @transform_0, window_bounds = array<i64: 2, 16, 5, 5, 32>}, {pipeline_mode = #tpu.pipeline_mode<synchronous>, transform_indices = @transform_1, window_bounds = array<i64: 9, 32, 128>}, {pipeline_mode = #tpu.pipeline_mode<synchronous>, transform_indices = @transform_2, window_bounds = array<i64: 1, 128>}, {pipeline_mode = #tpu.pipeline_mode<synchronous>, transform_indices = @transform_3, window_bounds = array<i64: 9, 128, 128>}, {pipeline_mode = #tpu.pipeline_mode<synchronous>, transform_indices = @transform_4, window_bounds = array<i64: 1, 128>}, {pipeline_mode = #tpu.pipeline_mode<synchronous>, transform_indices = @transform_5, window_bounds = array<i64: 128, 128>}, {pipeline_mode = #tpu.pipeline_mode<synchronous>, transform_indices = @transform_6, window_bounds = array<i64: 1, 128>}, {transform_indices = @transform_7, window_bounds = array<i64: 1, 2, 128>}]} {
    %cst = arith.constant 0.000000e+00 : bf16
    %0 = vector.broadcast %cst : bf16 to vector<2x5x128xbf16>
    %c0 = arith.constant 0 : index
    %c0_0 = arith.constant 0 : index
    %c0_1 = arith.constant 0 : index
    %c0_2 = arith.constant 0 : index
    %c0_3 = arith.constant 0 : index
    %1 = vector.load %arg9[%c0, %c0_0, %c0_1, %c0_2, %c0_3] : memref<2x4x5x5x128xbf16, #tpu.memory_space<vmem>>, vector<2x1x1x5x128xbf16>
    %2 = vector.shape_cast %1 : vector<2x1x1x5x128xbf16> to vector<2x5x128xbf16>
    %3 = vector.shape_cast %0 : vector<2x5x128xbf16> to vector<2x1x1x5x128xbf16>
    tpu.vector_store %arg9[%c0, %c0_0, %c0_1, %c0_2, %c0_3], %3 {strides = array<i32>} : memref<2x4x5x5x128xbf16, #tpu.memory_space<vmem>>, vector<2x1x1x5x128xbf16>,
    %cst_4 = arith.constant 0.000000e+00 : bf16
    %4 = vector.broadcast %cst_4 : bf16 to vector<2x5x128xbf16>
    %c0_5 = arith.constant 0 : index
    %c0_6 = arith.constant 0 : index
    %c0_7 = arith.constant 0 : index
    %c0_8 = arith.constant 0 : index
    %c0_9 = arith.constant 0 : index
    %5 = vector.load %arg9[%c0_5, %c0_6, %c0_7, %c0_8, %c0_9] : memref<2x4x5x5x128xbf16, #tpu.memory_space<vmem>>, vector<2x1x5x1x128xbf16>
    %6 = vector.shape_cast %5 : vector<2x1x5x1x128xbf16> to vector<2x5x128xbf16>
    %7 = vector.shape_cast %4 : vector<2x5x128xbf16> to vector<2x1x5x1x128xbf16>
    tpu.vector_store %arg9[%c0_5, %c0_6, %c0_7, %c0_8, %c0_9], %7 {strides = array<i32>} : memref<2x4x5x5x128xbf16, #tpu.memory_space<vmem>>, vector<2x1x5x1x128xbf16>,
    %cst_10 = arith.constant 0.000000e+00 : bf16
    %8 = vector.broadcast %cst_10 : bf16 to vector<2x5x128xbf16>
    %c0_11 = arith.constant 0 : index
    %c1 = arith.constant 1 : index
    %c0_12 = arith.constant 0 : index
    %c0_13 = arith.constant 0 : index
    %c0_14 = arith.constant 0 : index
    %9 = vector.load %arg9[%c0_11, %c1, %c0_12, %c0_13, %c0_14] : memref<2x4x5x5x128xbf16, #tpu.memory_space<vmem>>, vector<2x1x1x5x128xbf16>
    %10 = vector.shape_cast %9 : vector<2x1x1x5x128xbf16> to vector<2x5x128xbf16>
    %11 = vector.shape_cast %8 : vector<2x5x128xbf16> to vector<2x1x1x5x128xbf16>
    tpu.vector_store %arg9[%c0_11, %c1, %c0_12, %c0_13, %c0_14], %11 {strides = array<i32>} : memref<2x4x5x5x128xbf16, #tpu.memory_space<vmem>>, vector<2x1x1x5x128xbf16>,
    %cst_15 = arith.constant 0.000000e+00 : bf16
    %12 = vector.broadcast %cst_15 : bf16 to vector<2x5x128xbf16>
    %c0_16 = arith.constant 0 : index
    %c1_17 = arith.constant 1 : index
    %c0_18 = arith.constant 0 : index
    %c4 = arith.constant 4 : index
    %c0_19 = arith.constant 0 : index
    %13 = vector.load %arg9[%c0_16, %c1_17, %c0_18, %c4, %c0_19] : memref<2x4x5x5x128xbf16, #tpu.memory_space<vmem>>, vector<2x1x5x1x128xbf16>
    %14 = vector.shape_cast %13 : vector<2x1x5x1x128xbf16> to vector<2x5x128xbf16>
    %15 = vector.shape_cast %12 : vector<2x5x128xbf16> to vector<2x1x5x1x128xbf16>
    tpu.vector_store %arg9[%c0_16, %c1_17, %c0_18, %c4, %c0_19], %15 {strides = array<i32>} : memref<2x4x5x5x128xbf16, #tpu.memory_space<vmem>>, vector<2x1x5x1x128xbf16>,
    %cst_20 = arith.constant 0.000000e+00 : bf16
    %16 = vector.broadcast %cst_20 : bf16 to vector<2x5x128xbf16>
    %c0_21 = arith.constant 0 : index
    %c2 = arith.constant 2 : index
    %c4_22 = arith.constant 4 : index
    %c0_23 = arith.constant 0 : index
    %c0_24 = arith.constant 0 : index
    %17 = vector.load %arg9[%c0_21, %c2, %c4_22, %c0_23, %c0_24] : memref<2x4x5x5x128xbf16, #tpu.memory_space<vmem>>, vector<2x1x1x5x128xbf16>
    %18 = vector.shape_cast %17 : vector<2x1x1x5x128xbf16> to vector<2x5x128xbf16>
    %19 = vector.shape_cast %16 : vector<2x5x128xbf16> to vector<2x1x1x5x128xbf16>
    tpu.vector_store %arg9[%c0_21, %c2, %c4_22, %c0_23, %c0_24], %19 {strides = array<i32>} : memref<2x4x5x5x128xbf16, #tpu.memory_space<vmem>>, vector<2x1x1x5x128xbf16>,
    %cst_25 = arith.constant 0.000000e+00 : bf16
    %20 = vector.broadcast %cst_25 : bf16 to vector<2x5x128xbf16>
    %c0_26 = arith.constant 0 : index
    %c2_27 = arith.constant 2 : index
    %c0_28 = arith.constant 0 : index
    %c0_29 = arith.constant 0 : index
    %c0_30 = arith.constant 0 : index
    %21 = vector.load %arg9[%c0_26, %c2_27, %c0_28, %c0_29, %c0_30] : memref<2x4x5x5x128xbf16, #tpu.memory_space<vmem>>, vector<2x1x5x1x128xbf16>
    %22 = vector.shape_cast %21 : vector<2x1x5x1x128xbf16> to vector<2x5x128xbf16>
    %23 = vector.shape_cast %20 : vector<2x5x128xbf16> to vector<2x1x5x1x128xbf16>
    tpu.vector_store %arg9[%c0_26, %c2_27, %c0_28, %c0_29, %c0_30], %23 {strides = array<i32>} : memref<2x4x5x5x128xbf16, #tpu.memory_space<vmem>>, vector<2x1x5x1x128xbf16>,
    %cst_31 = arith.constant 0.000000e+00 : bf16
    %24 = vector.broadcast %cst_31 : bf16 to vector<2x5x128xbf16>
    %c0_32 = arith.constant 0 : index
    %c3 = arith.constant 3 : index
    %c4_33 = arith.constant 4 : index
    %c0_34 = arith.constant 0 : index
    %c0_35 = arith.constant 0 : index
    %25 = vector.load %arg9[%c0_32, %c3, %c4_33, %c0_34, %c0_35] : memref<2x4x5x5x128xbf16, #tpu.memory_space<vmem>>, vector<2x1x1x5x128xbf16>
    %26 = vector.shape_cast %25 : vector<2x1x1x5x128xbf16> to vector<2x5x128xbf16>
    %27 = vector.shape_cast %24 : vector<2x5x128xbf16> to vector<2x1x1x5x128xbf16>
    tpu.vector_store %arg9[%c0_32, %c3, %c4_33, %c0_34, %c0_35], %27 {strides = array<i32>} : memref<2x4x5x5x128xbf16, #tpu.memory_space<vmem>>, vector<2x1x1x5x128xbf16>,
    %cst_36 = arith.constant 0.000000e+00 : bf16
    %28 = vector.broadcast %cst_36 : bf16 to vector<2x5x128xbf16>
    %c0_37 = arith.constant 0 : index
    %c3_38 = arith.constant 3 : index
    %c0_39 = arith.constant 0 : index
    %c4_40 = arith.constant 4 : index
    %c0_41 = arith.constant 0 : index
    %29 = vector.load %arg9[%c0_37, %c3_38, %c0_39, %c4_40, %c0_41] : memref<2x4x5x5x128xbf16, #tpu.memory_space<vmem>>, vector<2x1x5x1x128xbf16>
    %30 = vector.shape_cast %29 : vector<2x1x5x1x128xbf16> to vector<2x5x128xbf16>
    %31 = vector.shape_cast %28 : vector<2x5x128xbf16> to vector<2x1x5x1x128xbf16>
    tpu.vector_store %arg9[%c0_37, %c3_38, %c0_39, %c4_40, %c0_41], %31 {strides = array<i32>} : memref<2x4x5x5x128xbf16, #tpu.memory_space<vmem>>, vector<2x1x5x1x128xbf16>,
    %c0_42 = arith.constant 0 : index
    %c0_43 = arith.constant 0 : index
    %c0_44 = arith.constant 0 : index
    %c0_45 = arith.constant 0 : index
    %c0_46 = arith.constant 0 : index
    %32 = vector.load %arg1[%c0_42, %c0_43, %c0_44, %c0_45, %c0_46] : memref<2x16x5x5x32xbf16, #tpu.memory_space<vmem>>, vector<2x1x4x4x32xbf16>
    %33 = vector.shape_cast %32 : vector<2x1x4x4x32xbf16> to vector<2x4x4x32xbf16>
    %34 = vector.shape_cast %33 : vector<2x4x4x32xbf16> to vector<32x32xbf16>
    %c0_47 = arith.constant 0 : index
    %c0_48 = arith.constant 0 : index
    %c0_49 = arith.constant 0 : index
    %35 = vector.load %arg2[%c0_47, %c0_48, %c0_49] : memref<9x32x128xbf16, #tpu.memory_space<vmem>>, vector<1x32x128xbf16>
    %36 = vector.shape_cast %35 : vector<1x32x128xbf16> to vector<32x128xbf16>
    %cst_50 = arith.constant dense<0.000000e+00> : vector<32x128xf32>
    %37 = tpu.matmul %34, %36, %cst_50 {dimension_numbers = #tpu.dot_dimension_numbers<[1], [0], [0], [1], [0, 0, 1, 1], [], []>} : vector<32x32xbf16>, vector<32x128xbf16>, vector<32x128xf32> -> vector<32x128xf32>
    %c0_51 = arith.constant 0 : index
    %c1_52 = arith.constant 1 : index
    %c0_53 = arith.constant 0 : index
    %c0_54 = arith.constant 0 : index
    %c0_55 = arith.constant 0 : index
    %38 = vector.load %arg1[%c0_51, %c1_52, %c0_53, %c0_54, %c0_55] : memref<2x16x5x5x32xbf16, #tpu.memory_space<vmem>>, vector<2x1x4x4x32xbf16>
    %39 = vector.shape_cast %38 : vector<2x1x4x4x32xbf16> to vector<2x4x4x32xbf16>
    %40 = vector.shape_cast %39 : vector<2x4x4x32xbf16> to vector<32x32xbf16>
    %c1_56 = arith.constant 1 : index
    %c0_57 = arith.constant 0 : index
    %c0_58 = arith.constant 0 : index
    %41 = vector.load %arg2[%c1_56, %c0_57, %c0_58] : memref<9x32x128xbf16, #tpu.memory_space<vmem>>, vector<1x32x128xbf16>
    %42 = vector.shape_cast %41 : vector<1x32x128xbf16> to vector<32x128xbf16>
    %cst_59 = arith.constant dense<0.000000e+00> : vector<32x128xf32>
    %43 = tpu.matmul %40, %42, %cst_59 {dimension_numbers = #tpu.dot_dimension_numbers<[1], [0], [0], [1], [0, 0, 1, 1], [], []>} : vector<32x32xbf16>, vector<32x128xbf16>, vector<32x128xf32> -> vector<32x128xf32>
    %44 = arith.addf %37, %43 : vector<32x128xf32>
    %c0_60 = arith.constant 0 : index
    %c2_61 = arith.constant 2 : index
    %c0_62 = arith.constant 0 : index
    %c0_63 = arith.constant 0 : index
    %c0_64 = arith.constant 0 : index
    %45 = vector.load %arg1[%c0_60, %c2_61, %c0_62, %c0_63, %c0_64] : memref<2x16x5x5x32xbf16, #tpu.memory_space<vmem>>, vector<2x1x4x4x32xbf16>
    %46 = vector.shape_cast %45 : vector<2x1x4x4x32xbf16> to vector<2x4x4x32xbf16>
    %47 = vector.shape_cast %46 : vector<2x4x4x32xbf16> to vector<32x32xbf16>
    %c2_65 = arith.constant 2 : index
    %c0_66 = arith.constant 0 : index
    %c0_67 = arith.constant 0 : index
    %48 = vector.load %arg2[%c2_65, %c0_66, %c0_67] : memref<9x32x128xbf16, #tpu.memory_space<vmem>>, vector<1x32x128xbf16>
    %49 = vector.shape_cast %48 : vector<1x32x128xbf16> to vector<32x128xbf16>
    %cst_68 = arith.constant dense<0.000000e+00> : vector<32x128xf32>
    %50 = tpu.matmul %47, %49, %cst_68 {dimension_numbers = #tpu.dot_dimension_numbers<[1], [0], [0], [1], [0, 0, 1, 1], [], []>} : vector<32x32xbf16>, vector<32x128xbf16>, vector<32x128xf32> -> vector<32x128xf32>
    %51 = arith.addf %44, %50 : vector<32x128xf32>
    %c0_69 = arith.constant 0 : index
    %c4_70 = arith.constant 4 : index
    %c0_71 = arith.constant 0 : index
    %c0_72 = arith.constant 0 : index
    %c0_73 = arith.constant 0 : index
    %52 = vector.load %arg1[%c0_69, %c4_70, %c0_71, %c0_72, %c0_73] : memref<2x16x5x5x32xbf16, #tpu.memory_space<vmem>>, vector<2x1x4x4x32xbf16>
    %53 = vector.shape_cast %52 : vector<2x1x4x4x32xbf16> to vector<2x4x4x32xbf16>
    %54 = vector.shape_cast %53 : vector<2x4x4x32xbf16> to vector<32x32xbf16>
    %c3_74 = arith.constant 3 : index
    %c0_75 = arith.constant 0 : index
    %c0_76 = arith.constant 0 : index
    %55 = vector.load %arg2[%c3_74, %c0_75, %c0_76] : memref<9x32x128xbf16, #tpu.memory_space<vmem>>, vector<1x32x128xbf16>
    %56 = vector.shape_cast %55 : vector<1x32x128xbf16> to vector<32x128xbf16>
    %cst_77 = arith.constant dense<0.000000e+00> : vector<32x128xf32>
    %57 = tpu.matmul %54, %56, %cst_77 {dimension_numbers = #tpu.dot_dimension_numbers<[1], [0], [0], [1], [0, 0, 1, 1], [], []>} : vector<32x32xbf16>, vector<32x128xbf16>, vector<32x128xf32> -> vector<32x128xf32>
    %58 = arith.addf %51, %57 : vector<32x128xf32>
    %c0_78 = arith.constant 0 : index
    %c5 = arith.constant 5 : index
    %c0_79 = arith.constant 0 : index
    %c0_80 = arith.constant 0 : index
    %c0_81 = arith.constant 0 : index
    %59 = vector.load %arg1[%c0_78, %c5, %c0_79, %c0_80, %c0_81] : memref<2x16x5x5x32xbf16, #tpu.memory_space<vmem>>, vector<2x1x4x4x32xbf16>
    %60 = vector.shape_cast %59 : vector<2x1x4x4x32xbf16> to vector<2x4x4x32xbf16>
    %61 = vector.shape_cast %60 : vector<2x4x4x32xbf16> to vector<32x32xbf16>
    %c4_82 = arith.constant 4 : index
    %c0_83 = arith.constant 0 : index
    %c0_84 = arith.constant 0 : index
    %62 = vector.load %arg2[%c4_82, %c0_83, %c0_84] : memref<9x32x128xbf16, #tpu.memory_space<vmem>>, vector<1x32x128xbf16>
    %63 = vector.shape_cast %62 : vector<1x32x128xbf16> to vector<32x128xbf16>
    %cst_85 = arith.constant dense<0.000000e+00> : vector<32x128xf32>
    %64 = tpu.matmul %61, %63, %cst_85 {dimension_numbers = #tpu.dot_dimension_numbers<[1], [0], [0], [1], [0, 0, 1, 1], [], []>} : vector<32x32xbf16>, vector<32x128xbf16>, vector<32x128xf32> -> vector<32x128xf32>
    %65 = arith.addf %58, %64 : vector<32x128xf32>
    %c0_86 = arith.constant 0 : index
    %c6 = arith.constant 6 : index
    %c0_87 = arith.constant 0 : index
    %c0_88 = arith.constant 0 : index
    %c0_89 = arith.constant 0 : index
    %66 = vector.load %arg1[%c0_86, %c6, %c0_87, %c0_88, %c0_89] : memref<2x16x5x5x32xbf16, #tpu.memory_space<vmem>>, vector<2x1x4x4x32xbf16>
    %67 = vector.shape_cast %66 : vector<2x1x4x4x32xbf16> to vector<2x4x4x32xbf16>
    %68 = vector.shape_cast %67 : vector<2x4x4x32xbf16> to vector<32x32xbf16>
    %c5_90 = arith.constant 5 : index
    %c0_91 = arith.constant 0 : index
    %c0_92 = arith.constant 0 : index
    %69 = vector.load %arg2[%c5_90, %c0_91, %c0_92] : memref<9x32x128xbf16, #tpu.memory_space<vmem>>, vector<1x32x128xbf16>
    %70 = vector.shape_cast %69 : vector<1x32x128xbf16> to vector<32x128xbf16>
    %cst_93 = arith.constant dense<0.000000e+00> : vector<32x128xf32>
    %71 = tpu.matmul %68, %70, %cst_93 {dimension_numbers = #tpu.dot_dimension_numbers<[1], [0], [0], [1], [0, 0, 1, 1], [], []>} : vector<32x32xbf16>, vector<32x128xbf16>, vector<32x128xf32> -> vector<32x128xf32>
    %72 = arith.addf %65, %71 : vector<32x128xf32>
    %c0_94 = arith.constant 0 : index
    %c8 = arith.constant 8 : index
    %c0_95 = arith.constant 0 : index
    %c0_96 = arith.constant 0 : index
    %c0_97 = arith.constant 0 : index
    %73 = vector.load %arg1[%c0_94, %c8, %c0_95, %c0_96, %c0_97] : memref<2x16x5x5x32xbf16, #tpu.memory_space<vmem>>, vector<2x1x4x4x32xbf16>
    %74 = vector.shape_cast %73 : vector<2x1x4x4x32xbf16> to vector<2x4x4x32xbf16>
    %75 = vector.shape_cast %74 : vector<2x4x4x32xbf16> to vector<32x32xbf16>
    %c6_98 = arith.constant 6 : index
    %c0_99 = arith.constant 0 : index
    %c0_100 = arith.constant 0 : index
    %76 = vector.load %arg2[%c6_98, %c0_99, %c0_100] : memref<9x32x128xbf16, #tpu.memory_space<vmem>>, vector<1x32x128xbf16>
    %77 = vector.shape_cast %76 : vector<1x32x128xbf16> to vector<32x128xbf16>
    %cst_101 = arith.constant dense<0.000000e+00> : vector<32x128xf32>
    %78 = tpu.matmul %75, %77, %cst_101 {dimension_numbers = #tpu.dot_dimension_numbers<[1], [0], [0], [1], [0, 0, 1, 1], [], []>} : vector<32x32xbf16>, vector<32x128xbf16>, vector<32x128xf32> -> vector<32x128xf32>
    %79 = arith.addf %72, %78 : vector<32x128xf32>
    %c0_102 = arith.constant 0 : index
    %c9 = arith.constant 9 : index
    %c0_103 = arith.constant 0 : index
    %c0_104 = arith.constant 0 : index
    %c0_105 = arith.constant 0 : index
    %80 = vector.load %arg1[%c0_102, %c9, %c0_103, %c0_104, %c0_105] : memref<2x16x5x5x32xbf16, #tpu.memory_space<vmem>>, vector<2x1x4x4x32xbf16>
    %81 = vector.shape_cast %80 : vector<2x1x4x4x32xbf16> to vector<2x4x4x32xbf16>
    %82 = vector.shape_cast %81 : vector<2x4x4x32xbf16> to vector<32x32xbf16>
    %c7 = arith.constant 7 : index
    %c0_106 = arith.constant 0 : index
    %c0_107 = arith.constant 0 : index
    %83 = vector.load %arg2[%c7, %c0_106, %c0_107] : memref<9x32x128xbf16, #tpu.memory_space<vmem>>, vector<1x32x128xbf16>
    %84 = vector.shape_cast %83 : vector<1x32x128xbf16> to vector<32x128xbf16>
    %cst_108 = arith.constant dense<0.000000e+00> : vector<32x128xf32>
    %85 = tpu.matmul %82, %84, %cst_108 {dimension_numbers = #tpu.dot_dimension_numbers<[1], [0], [0], [1], [0, 0, 1, 1], [], []>} : vector<32x32xbf16>, vector<32x128xbf16>, vector<32x128xf32> -> vector<32x128xf32>
    %86 = arith.addf %79, %85 : vector<32x128xf32>
    %c0_109 = arith.constant 0 : index
    %c10 = arith.constant 10 : index
    %c0_110 = arith.constant 0 : index
    %c0_111 = arith.constant 0 : index
    %c0_112 = arith.constant 0 : index
    %87 = vector.load %arg1[%c0_109, %c10, %c0_110, %c0_111, %c0_112] : memref<2x16x5x5x32xbf16, #tpu.memory_space<vmem>>, vector<2x1x4x4x32xbf16>
    %88 = vector.shape_cast %87 : vector<2x1x4x4x32xbf16> to vector<2x4x4x32xbf16>
    %89 = vector.shape_cast %88 : vector<2x4x4x32xbf16> to vector<32x32xbf16>
    %c8_113 = arith.constant 8 : index
    %c0_114 = arith.constant 0 : index
    %c0_115 = arith.constant 0 : index
    %90 = vector.load %arg2[%c8_113, %c0_114, %c0_115] : memref<9x32x128xbf16, #tpu.memory_space<vmem>>, vector<1x32x128xbf16>
    %91 = vector.shape_cast %90 : vector<1x32x128xbf16> to vector<32x128xbf16>
    %cst_116 = arith.constant dense<0.000000e+00> : vector<32x128xf32>
    %92 = tpu.matmul %89, %91, %cst_116 {dimension_numbers = #tpu.dot_dimension_numbers<[1], [0], [0], [1], [0, 0, 1, 1], [], []>} : vector<32x32xbf16>, vector<32x128xbf16>, vector<32x128xf32> -> vector<32x128xf32>
    %93 = arith.addf %86, %92 : vector<32x128xf32>
    %c0_117 = arith.constant 0 : index
    %c0_118 = arith.constant 0 : index
    %94 = vector.load %arg3[%c0_117, %c0_118] : memref<1x128xf32, #tpu.memory_space<vmem>>, vector<1x128xf32>
    %95 = vector.broadcast %94 : vector<1x128xf32> to vector<32x128xf32>
    %96 = arith.addf %93, %95 : vector<32x128xf32>
    %cst_119 = arith.constant 0.000000e+00 : f32
    %97 = vector.broadcast %cst_119 : f32 to vector<32x128xf32>
    %98 = arith.maximumf %96, %97 : vector<32x128xf32>
    %99 = arith.truncf %98 : vector<32x128xf32> to vector<32x128xbf16>
    %100 = vector.shape_cast %99 : vector<32x128xbf16> to vector<2x4x4x128xbf16>
    %c0_120 = arith.constant 0 : index
    %c3_121 = arith.constant 3 : index
    %c0_122 = arith.constant 0 : index
    %c0_123 = arith.constant 0 : index
    %c0_124 = arith.constant 0 : index
    %101 = vector.load %arg9[%c0_120, %c3_121, %c0_122, %c0_123, %c0_124] : memref<2x4x5x5x128xbf16, #tpu.memory_space<vmem>>, vector<2x1x4x4x128xbf16>
    %102 = vector.shape_cast %101 : vector<2x1x4x4x128xbf16> to vector<2x4x4x128xbf16>
    %103 = vector.shape_cast %100 : vector<2x4x4x128xbf16> to vector<2x1x4x4x128xbf16>
    tpu.vector_store %arg9[%c0_120, %c3_121, %c0_122, %c0_123, %c0_124], %103 {strides = array<i32>} : memref<2x4x5x5x128xbf16, #tpu.memory_space<vmem>>, vector<2x1x4x4x128xbf16>,
    %c0_125 = arith.constant 0 : index
    %c2_126 = arith.constant 2 : index
    %c0_127 = arith.constant 0 : index
    %c0_128 = arith.constant 0 : index
    %c0_129 = arith.constant 0 : index
    %104 = vector.load %arg1[%c0_125, %c2_126, %c0_127, %c0_128, %c0_129] : memref<2x16x5x5x32xbf16, #tpu.memory_space<vmem>>, vector<2x1x4x4x32xbf16>
    %105 = vector.shape_cast %104 : vector<2x1x4x4x32xbf16> to vector<2x4x4x32xbf16>
    %106 = vector.shape_cast %105 : vector<2x4x4x32xbf16> to vector<32x32xbf16>
    %c0_130 = arith.constant 0 : index
    %c0_131 = arith.constant 0 : index
    %c0_132 = arith.constant 0 : index
    %107 = vector.load %arg2[%c0_130, %c0_131, %c0_132] : memref<9x32x128xbf16, #tpu.memory_space<vmem>>, vector<1x32x128xbf16>
    %108 = vector.shape_cast %107 : vector<1x32x128xbf16> to vector<32x128xbf16>
    %cst_133 = arith.constant dense<0.000000e+00> : vector<32x128xf32>
    %109 = tpu.matmul %106, %108, %cst_133 {dimension_numbers = #tpu.dot_dimension_numbers<[1], [0], [0], [1], [0, 0, 1, 1], [], []>} : vector<32x32xbf16>, vector<32x128xbf16>, vector<32x128xf32> -> vector<32x128xf32>
    %c0_134 = arith.constant 0 : index
    %c3_135 = arith.constant 3 : index
    %c0_136 = arith.constant 0 : index
    %c0_137 = arith.constant 0 : index
    %c0_138 = arith.constant 0 : index
    %110 = vector.load %arg1[%c0_134, %c3_135, %c0_136, %c0_137, %c0_138] : memref<2x16x5x5x32xbf16, #tpu.memory_space<vmem>>, vector<2x1x4x4x32xbf16>
    %111 = vector.shape_cast %110 : vector<2x1x4x4x32xbf16> to vector<2x4x4x32xbf16>
    %112 = vector.shape_cast %111 : vector<2x4x4x32xbf16> to vector<32x32xbf16>
    %c1_139 = arith.constant 1 : index
    %c0_140 = arith.constant 0 : index
    %c0_141 = arith.constant 0 : index
    %113 = vector.load %arg2[%c1_139, %c0_140, %c0_141] : memref<9x32x128xbf16, #tpu.memory_space<vmem>>, vector<1x32x128xbf16>
    %114 = vector.shape_cast %113 : vector<1x32x128xbf16> to vector<32x128xbf16>
    %cst_142 = arith.constant dense<0.000000e+00> : vector<32x128xf32>
    %115 = tpu.matmul %112, %114, %cst_142 {dimension_numbers = #tpu.dot_dimension_numbers<[1], [0], [0], [1], [0, 0, 1, 1], [], []>} : vector<32x32xbf16>, vector<32x128xbf16>, vector<32x128xf32> -> vector<32x128xf32>
    %116 = arith.addf %109, %115 : vector<32x128xf32>
    %c0_143 = arith.constant 0 : index
    %c0_144 = arith.constant 0 : index
    %c0_145 = arith.constant 0 : index
    %c1_146 = arith.constant 1 : index
    %c0_147 = arith.constant 0 : index
    %117 = vector.load %arg1[%c0_143, %c0_144, %c0_145, %c1_146, %c0_147] : memref<2x16x5x5x32xbf16, #tpu.memory_space<vmem>>, vector<2x1x4x4x32xbf16>
    %118 = vector.shape_cast %117 : vector<2x1x4x4x32xbf16> to vector<2x4x4x32xbf16>
    %119 = vector.shape_cast %118 : vector<2x4x4x32xbf16> to vector<32x32xbf16>
    %c2_148 = arith.constant 2 : index
    %c0_149 = arith.constant 0 : index
    %c0_150 = arith.constant 0 : index
    %120 = vector.load %arg2[%c2_148, %c0_149, %c0_150] : memref<9x32x128xbf16, #tpu.memory_space<vmem>>, vector<1x32x128xbf16>
    %121 = vector.shape_cast %120 : vector<1x32x128xbf16> to vector<32x128xbf16>
    %cst_151 = arith.constant dense<0.000000e+00> : vector<32x128xf32>
    %122 = tpu.matmul %119, %121, %cst_151 {dimension_numbers = #tpu.dot_dimension_numbers<[1], [0], [0], [1], [0, 0, 1, 1], [], []>} : vector<32x32xbf16>, vector<32x128xbf16>, vector<32x128xf32> -> vector<32x128xf32>
    %123 = arith.addf %116, %122 : vector<32x128xf32>
    %c0_152 = arith.constant 0 : index
    %c6_153 = arith.constant 6 : index
    %c0_154 = arith.constant 0 : index
    %c0_155 = arith.constant 0 : index
    %c0_156 = arith.constant 0 : index
    %124 = vector.load %arg1[%c0_152, %c6_153, %c0_154, %c0_155, %c0_156] : memref<2x16x5x5x32xbf16, #tpu.memory_space<vmem>>, vector<2x1x4x4x32xbf16>
    %125 = vector.shape_cast %124 : vector<2x1x4x4x32xbf16> to vector<2x4x4x32xbf16>
    %126 = vector.shape_cast %125 : vector<2x4x4x32xbf16> to vector<32x32xbf16>
    %c3_157 = arith.constant 3 : index
    %c0_158 = arith.constant 0 : index
    %c0_159 = arith.constant 0 : index
    %127 = vector.load %arg2[%c3_157, %c0_158, %c0_159] : memref<9x32x128xbf16, #tpu.memory_space<vmem>>, vector<1x32x128xbf16>
    %128 = vector.shape_cast %127 : vector<1x32x128xbf16> to vector<32x128xbf16>
    %cst_160 = arith.constant dense<0.000000e+00> : vector<32x128xf32>
    %129 = tpu.matmul %126, %128, %cst_160 {dimension_numbers = #tpu.dot_dimension_numbers<[1], [0], [0], [1], [0, 0, 1, 1], [], []>} : vector<32x32xbf16>, vector<32x128xbf16>, vector<32x128xf32> -> vector<32x128xf32>
    %130 = arith.addf %123, %129 : vector<32x128xf32>
    %c0_161 = arith.constant 0 : index
    %c7_162 = arith.constant 7 : index
    %c0_163 = arith.constant 0 : index
    %c0_164 = arith.constant 0 : index
    %c0_165 = arith.constant 0 : index
    %131 = vector.load %arg1[%c0_161, %c7_162, %c0_163, %c0_164, %c0_165] : memref<2x16x5x5x32xbf16, #tpu.memory_space<vmem>>, vector<2x1x4x4x32xbf16>
    %132 = vector.shape_cast %131 : vector<2x1x4x4x32xbf16> to vector<2x4x4x32xbf16>
    %133 = vector.shape_cast %132 : vector<2x4x4x32xbf16> to vector<32x32xbf16>
    %c4_166 = arith.constant 4 : index
    %c0_167 = arith.constant 0 : index
    %c0_168 = arith.constant 0 : index
    %134 = vector.load %arg2[%c4_166, %c0_167, %c0_168] : memref<9x32x128xbf16, #tpu.memory_space<vmem>>, vector<1x32x128xbf16>
    %135 = vector.shape_cast %134 : vector<1x32x128xbf16> to vector<32x128xbf16>
    %cst_169 = arith.constant dense<0.000000e+00> : vector<32x128xf32>
    %136 = tpu.matmul %133, %135, %cst_169 {dimension_numbers = #tpu.dot_dimension_numbers<[1], [0], [0], [1], [0, 0, 1, 1], [], []>} : vector<32x32xbf16>, vector<32x128xbf16>, vector<32x128xf32> -> vector<32x128xf32>
    %137 = arith.addf %130, %136 : vector<32x128xf32>
    %c0_170 = arith.constant 0 : index
    %c4_171 = arith.constant 4 : index
    %c0_172 = arith.constant 0 : index
    %c1_173 = arith.constant 1 : index
    %c0_174 = arith.constant 0 : index
    %138 = vector.load %arg1[%c0_170, %c4_171, %c0_172, %c1_173, %c0_174] : memref<2x16x5x5x32xbf16, #tpu.memory_space<vmem>>, vector<2x1x4x4x32xbf16>
    %139 = vector.shape_cast %138 : vector<2x1x4x4x32xbf16> to vector<2x4x4x32xbf16>
    %140 = vector.shape_cast %139 : vector<2x4x4x32xbf16> to vector<32x32xbf16>
    %c5_175 = arith.constant 5 : index
    %c0_176 = arith.constant 0 : index
    %c0_177 = arith.constant 0 : index
    %141 = vector.load %arg2[%c5_175, %c0_176, %c0_177] : memref<9x32x128xbf16, #tpu.memory_space<vmem>>, vector<1x32x128xbf16>
    %142 = vector.shape_cast %141 : vector<1x32x128xbf16> to vector<32x128xbf16>
    %cst_178 = arith.constant dense<0.000000e+00> : vector<32x128xf32>
    %143 = tpu.matmul %140, %142, %cst_178 {dimension_numbers = #tpu.dot_dimension_numbers<[1], [0], [0], [1], [0, 0, 1, 1], [], []>} : vector<32x32xbf16>, vector<32x128xbf16>, vector<32x128xf32> -> vector<32x128xf32>
    %144 = arith.addf %137, %143 : vector<32x128xf32>
    %c0_179 = arith.constant 0 : index
    %c10_180 = arith.constant 10 : index
    %c0_181 = arith.constant 0 : index
    %c0_182 = arith.constant 0 : index
    %c0_183 = arith.constant 0 : index
    %145 = vector.load %arg1[%c0_179, %c10_180, %c0_181, %c0_182, %c0_183] : memref<2x16x5x5x32xbf16, #tpu.memory_space<vmem>>, vector<2x1x4x4x32xbf16>
    %146 = vector.shape_cast %145 : vector<2x1x4x4x32xbf16> to vector<2x4x4x32xbf16>
    %147 = vector.shape_cast %146 : vector<2x4x4x32xbf16> to vector<32x32xbf16>
    %c6_184 = arith.constant 6 : index
    %c0_185 = arith.constant 0 : index
    %c0_186 = arith.constant 0 : index
    %148 = vector.load %arg2[%c6_184, %c0_185, %c0_186] : memref<9x32x128xbf16, #tpu.memory_space<vmem>>, vector<1x32x128xbf16>
    %149 = vector.shape_cast %148 : vector<1x32x128xbf16> to vector<32x128xbf16>
    %cst_187 = arith.constant dense<0.000000e+00> : vector<32x128xf32>
    %150 = tpu.matmul %147, %149, %cst_187 {dimension_numbers = #tpu.dot_dimension_numbers<[1], [0], [0], [1], [0, 0, 1, 1], [], []>} : vector<32x32xbf16>, vector<32x128xbf16>, vector<32x128xf32> -> vector<32x128xf32>
    %151 = arith.addf %144, %150 : vector<32x128xf32>
    %c0_188 = arith.constant 0 : index
    %c11 = arith.constant 11 : index
    %c0_189 = arith.constant 0 : index
    %c0_190 = arith.constant 0 : index
    %c0_191 = arith.constant 0 : index
    %152 = vector.load %arg1[%c0_188, %c11, %c0_189, %c0_190, %c0_191] : memref<2x16x5x5x32xbf16, #tpu.memory_space<vmem>>, vector<2x1x4x4x32xbf16>
    %153 = vector.shape_cast %152 : vector<2x1x4x4x32xbf16> to vector<2x4x4x32xbf16>
    %154 = vector.shape_cast %153 : vector<2x4x4x32xbf16> to vector<32x32xbf16>
    %c7_192 = arith.constant 7 : index
    %c0_193 = arith.constant 0 : index
    %c0_194 = arith.constant 0 : index
    %155 = vector.load %arg2[%c7_192, %c0_193, %c0_194] : memref<9x32x128xbf16, #tpu.memory_space<vmem>>, vector<1x32x128xbf16>
    %156 = vector.shape_cast %155 : vector<1x32x128xbf16> to vector<32x128xbf16>
    %cst_195 = arith.constant dense<0.000000e+00> : vector<32x128xf32>
    %157 = tpu.matmul %154, %156, %cst_195 {dimension_numbers = #tpu.dot_dimension_numbers<[1], [0], [0], [1], [0, 0, 1, 1], [], []>} : vector<32x32xbf16>, vector<32x128xbf16>, vector<32x128xf32> -> vector<32x128xf32>
    %158 = arith.addf %151, %157 : vector<32x128xf32>
    %c0_196 = arith.constant 0 : index
    %c8_197 = arith.constant 8 : index
    %c0_198 = arith.constant 0 : index
    %c1_199 = arith.constant 1 : index
    %c0_200 = arith.constant 0 : index
    %159 = vector.load %arg1[%c0_196, %c8_197, %c0_198, %c1_199, %c0_200] : memref<2x16x5x5x32xbf16, #tpu.memory_space<vmem>>, vector<2x1x4x4x32xbf16>
    %160 = vector.shape_cast %159 : vector<2x1x4x4x32xbf16> to vector<2x4x4x32xbf16>
    %161 = vector.shape_cast %160 : vector<2x4x4x32xbf16> to vector<32x32xbf16>
    %c8_201 = arith.constant 8 : index
    %c0_202 = arith.constant 0 : index
    %c0_203 = arith.constant 0 : index
    %162 = vector.load %arg2[%c8_201, %c0_202, %c0_203] : memref<9x32x128xbf16, #tpu.memory_space<vmem>>, vector<1x32x128xbf16>
    %163 = vector.shape_cast %162 : vector<1x32x128xbf16> to vector<32x128xbf16>
    %cst_204 = arith.constant dense<0.000000e+00> : vector<32x128xf32>
    %164 = tpu.matmul %161, %163, %cst_204 {dimension_numbers = #tpu.dot_dimension_numbers<[1], [0], [0], [1], [0, 0, 1, 1], [], []>} : vector<32x32xbf16>, vector<32x128xbf16>, vector<32x128xf32> -> vector<32x128xf32>
    %165 = arith.addf %158, %164 : vector<32x128xf32>
    %c0_205 = arith.constant 0 : index
    %c0_206 = arith.constant 0 : index
    %166 = vector.load %arg3[%c0_205, %c0_206] : memref<1x128xf32, #tpu.memory_space<vmem>>, vector<1x128xf32>
    %167 = vector.broadcast %166 : vector<1x128xf32> to vector<32x128xf32>
    %168 = arith.addf %165, %167 : vector<32x128xf32>
    %cst_207 = arith.constant 0.000000e+00 : f32
    %169 = vector.broadcast %cst_207 : f32 to vector<32x128xf32>
    %170 = arith.maximumf %168, %169 : vector<32x128xf32>
    %171 = arith.truncf %170 : vector<32x128xf32> to vector<32x128xbf16>
    %172 = vector.shape_cast %171 : vector<32x128xbf16> to vector<2x4x4x128xbf16>
    %c0_208 = arith.constant 0 : index
    %c2_209 = arith.constant 2 : index
    %c0_210 = arith.constant 0 : index
    %c1_211 = arith.constant 1 : index
    %c0_212 = arith.constant 0 : index
    %173 = vector.load %arg9[%c0_208, %c2_209, %c0_210, %c1_211, %c0_212] : memref<2x4x5x5x128xbf16, #tpu.memory_space<vmem>>, vector<2x1x4x4x128xbf16>
    %174 = vector.shape_cast %173 : vector<2x1x4x4x128xbf16> to vector<2x4x4x128xbf16>
    %175 = vector.shape_cast %172 : vector<2x4x4x128xbf16> to vector<2x1x4x4x128xbf16>
    tpu.vector_store %arg9[%c0_208, %c2_209, %c0_210, %c1_211, %c0_212], %175 {strides = array<i32>} : memref<2x4x5x5x128xbf16, #tpu.memory_space<vmem>>, vector<2x1x4x4x128xbf16>,
    %c0_213 = arith.constant 0 : index
    %c8_214 = arith.constant 8 : index
    %c0_215 = arith.constant 0 : index
    %c0_216 = arith.constant 0 : index
    %c0_217 = arith.constant 0 : index
    %176 = vector.load %arg1[%c0_213, %c8_214, %c0_215, %c0_216, %c0_217] : memref<2x16x5x5x32xbf16, #tpu.memory_space<vmem>>, vector<2x1x4x4x32xbf16>
    %177 = vector.shape_cast %176 : vector<2x1x4x4x32xbf16> to vector<2x4x4x32xbf16>
    %178 = vector.shape_cast %177 : vector<2x4x4x32xbf16> to vector<32x32xbf16>
    %c0_218 = arith.constant 0 : index
    %c0_219 = arith.constant 0 : index
    %c0_220 = arith.constant 0 : index
    %179 = vector.load %arg2[%c0_218, %c0_219, %c0_220] : memref<9x32x128xbf16, #tpu.memory_space<vmem>>, vector<1x32x128xbf16>
    %180 = vector.shape_cast %179 : vector<1x32x128xbf16> to vector<32x128xbf16>
    %cst_221 = arith.constant dense<0.000000e+00> : vector<32x128xf32>
    %181 = tpu.matmul %178, %180, %cst_221 {dimension_numbers = #tpu.dot_dimension_numbers<[1], [0], [0], [1], [0, 0, 1, 1], [], []>} : vector<32x32xbf16>, vector<32x128xbf16>, vector<32x128xf32> -> vector<32x128xf32>
    %c0_222 = arith.constant 0 : index
    %c9_223 = arith.constant 9 : index
    %c0_224 = arith.constant 0 : index
    %c0_225 = arith.constant 0 : index
    %c0_226 = arith.constant 0 : index
    %182 = vector.load %arg1[%c0_222, %c9_223, %c0_224, %c0_225, %c0_226] : memref<2x16x5x5x32xbf16, #tpu.memory_space<vmem>>, vector<2x1x4x4x32xbf16>
    %183 = vector.shape_cast %182 : vector<2x1x4x4x32xbf16> to vector<2x4x4x32xbf16>
    %184 = vector.shape_cast %183 : vector<2x4x4x32xbf16> to vector<32x32xbf16>
    %c1_227 = arith.constant 1 : index
    %c0_228 = arith.constant 0 : index
    %c0_229 = arith.constant 0 : index
    %185 = vector.load %arg2[%c1_227, %c0_228, %c0_229] : memref<9x32x128xbf16, #tpu.memory_space<vmem>>, vector<1x32x128xbf16>
    %186 = vector.shape_cast %185 : vector<1x32x128xbf16> to vector<32x128xbf16>
    %cst_230 = arith.constant dense<0.000000e+00> : vector<32x128xf32>
    %187 = tpu.matmul %184, %186, %cst_230 {dimension_numbers = #tpu.dot_dimension_numbers<[1], [0], [0], [1], [0, 0, 1, 1], [], []>} : vector<32x32xbf16>, vector<32x128xbf16>, vector<32x128xf32> -> vector<32x128xf32>
    %188 = arith.addf %181, %187 : vector<32x128xf32>
    %c0_231 = arith.constant 0 : index
    %c10_232 = arith.constant 10 : index
    %c0_233 = arith.constant 0 : index
    %c0_234 = arith.constant 0 : index
    %c0_235 = arith.constant 0 : index
    %189 = vector.load %arg1[%c0_231, %c10_232, %c0_233, %c0_234, %c0_235] : memref<2x16x5x5x32xbf16, #tpu.memory_space<vmem>>, vector<2x1x4x4x32xbf16>
    %190 = vector.shape_cast %189 : vector<2x1x4x4x32xbf16> to vector<2x4x4x32xbf16>
    %191 = vector.shape_cast %190 : vector<2x4x4x32xbf16> to vector<32x32xbf16>
    %c2_236 = arith.constant 2 : index
    %c0_237 = arith.constant 0 : index
    %c0_238 = arith.constant 0 : index
    %192 = vector.load %arg2[%c2_236, %c0_237, %c0_238] : memref<9x32x128xbf16, #tpu.memory_space<vmem>>, vector<1x32x128xbf16>
    %193 = vector.shape_cast %192 : vector<1x32x128xbf16> to vector<32x128xbf16>
    %cst_239 = arith.constant dense<0.000000e+00> : vector<32x128xf32>
    %194 = tpu.matmul %191, %193, %cst_239 {dimension_numbers = #tpu.dot_dimension_numbers<[1], [0], [0], [1], [0, 0, 1, 1], [], []>} : vector<32x32xbf16>, vector<32x128xbf16>, vector<32x128xf32> -> vector<32x128xf32>
    %195 = arith.addf %188, %194 : vector<32x128xf32>
    %c0_240 = arith.constant 0 : index
    %c12 = arith.constant 12 : index
    %c0_241 = arith.constant 0 : index
    %c0_242 = arith.constant 0 : index
    %c0_243 = arith.constant 0 : index
    %196 = vector.load %arg1[%c0_240, %c12, %c0_241, %c0_242, %c0_243] : memref<2x16x5x5x32xbf16, #tpu.memory_space<vmem>>, vector<2x1x4x4x32xbf16>
    %197 = vector.shape_cast %196 : vector<2x1x4x4x32xbf16> to vector<2x4x4x32xbf16>
    %198 = vector.shape_cast %197 : vector<2x4x4x32xbf16> to vector<32x32xbf16>
    %c3_244 = arith.constant 3 : index
    %c0_245 = arith.constant 0 : index
    %c0_246 = arith.constant 0 : index
    %199 = vector.load %arg2[%c3_244, %c0_245, %c0_246] : memref<9x32x128xbf16, #tpu.memory_space<vmem>>, vector<1x32x128xbf16>
    %200 = vector.shape_cast %199 : vector<1x32x128xbf16> to vector<32x128xbf16>
    %cst_247 = arith.constant dense<0.000000e+00> : vector<32x128xf32>
    %201 = tpu.matmul %198, %200, %cst_247 {dimension_numbers = #tpu.dot_dimension_numbers<[1], [0], [0], [1], [0, 0, 1, 1], [], []>} : vector<32x32xbf16>, vector<32x128xbf16>, vector<32x128xf32> -> vector<32x128xf32>
    %202 = arith.addf %195, %201 : vector<32x128xf32>
    %c0_248 = arith.constant 0 : index
    %c13 = arith.constant 13 : index
    %c0_249 = arith.constant 0 : index
    %c0_250 = arith.constant 0 : index
    %c0_251 = arith.constant 0 : index
    %203 = vector.load %arg1[%c0_248, %c13, %c0_249, %c0_250, %c0_251] : memref<2x16x5x5x32xbf16, #tpu.memory_space<vmem>>, vector<2x1x4x4x32xbf16>
    %204 = vector.shape_cast %203 : vector<2x1x4x4x32xbf16> to vector<2x4x4x32xbf16>
    %205 = vector.shape_cast %204 : vector<2x4x4x32xbf16> to vector<32x32xbf16>
    %c4_252 = arith.constant 4 : index
    %c0_253 = arith.constant 0 : index
    %c0_254 = arith.constant 0 : index
    %206 = vector.load %arg2[%c4_252, %c0_253, %c0_254] : memref<9x32x128xbf16, #tpu.memory_space<vmem>>, vector<1x32x128xbf16>
    %207 = vector.shape_cast %206 : vector<1x32x128xbf16> to vector<32x128xbf16>
    %cst_255 = arith.constant dense<0.000000e+00> : vector<32x128xf32>
    %208 = tpu.matmul %205, %207, %cst_255 {dimension_numbers = #tpu.dot_dimension_numbers<[1], [0], [0], [1], [0, 0, 1, 1], [], []>} : vector<32x32xbf16>, vector<32x128xbf16>, vector<32x128xf32> -> vector<32x128xf32>
    %209 = arith.addf %202, %208 : vector<32x128xf32>
    %c0_256 = arith.constant 0 : index
    %c14 = arith.constant 14 : index
    %c0_257 = arith.constant 0 : index
    %c0_258 = arith.constant 0 : index
    %c0_259 = arith.constant 0 : index
    %210 = vector.load %arg1[%c0_256, %c14, %c0_257, %c0_258, %c0_259] : memref<2x16x5x5x32xbf16, #tpu.memory_space<vmem>>, vector<2x1x4x4x32xbf16>
    %211 = vector.shape_cast %210 : vector<2x1x4x4x32xbf16> to vector<2x4x4x32xbf16>
    %212 = vector.shape_cast %211 : vector<2x4x4x32xbf16> to vector<32x32xbf16>
    %c5_260 = arith.constant 5 : index
    %c0_261 = arith.constant 0 : index
    %c0_262 = arith.constant 0 : index
    %213 = vector.load %arg2[%c5_260, %c0_261, %c0_262] : memref<9x32x128xbf16, #tpu.memory_space<vmem>>, vector<1x32x128xbf16>
    %214 = vector.shape_cast %213 : vector<1x32x128xbf16> to vector<32x128xbf16>
    %cst_263 = arith.constant dense<0.000000e+00> : vector<32x128xf32>
    %215 = tpu.matmul %212, %214, %cst_263 {dimension_numbers = #tpu.dot_dimension_numbers<[1], [0], [0], [1], [0, 0, 1, 1], [], []>} : vector<32x32xbf16>, vector<32x128xbf16>, vector<32x128xf32> -> vector<32x128xf32>
    %216 = arith.addf %209, %215 : vector<32x128xf32>
    %c0_264 = arith.constant 0 : index
    %c0_265 = arith.constant 0 : index
    %c1_266 = arith.constant 1 : index
    %c0_267 = arith.constant 0 : index
    %c0_268 = arith.constant 0 : index
    %217 = vector.load %arg1[%c0_264, %c0_265, %c1_266, %c0_267, %c0_268] : memref<2x16x5x5x32xbf16, #tpu.memory_space<vmem>>, vector<2x1x4x4x32xbf16>
    %218 = vector.shape_cast %217 : vector<2x1x4x4x32xbf16> to vector<2x4x4x32xbf16>
    %219 = vector.shape_cast %218 : vector<2x4x4x32xbf16> to vector<32x32xbf16>
    %c6_269 = arith.constant 6 : index
    %c0_270 = arith.constant 0 : index
    %c0_271 = arith.constant 0 : index
    %220 = vector.load %arg2[%c6_269, %c0_270, %c0_271] : memref<9x32x128xbf16, #tpu.memory_space<vmem>>, vector<1x32x128xbf16>
    %221 = vector.shape_cast %220 : vector<1x32x128xbf16> to vector<32x128xbf16>
    %cst_272 = arith.constant dense<0.000000e+00> : vector<32x128xf32>
    %222 = tpu.matmul %219, %221, %cst_272 {dimension_numbers = #tpu.dot_dimension_numbers<[1], [0], [0], [1], [0, 0, 1, 1], [], []>} : vector<32x32xbf16>, vector<32x128xbf16>, vector<32x128xf32> -> vector<32x128xf32>
    %223 = arith.addf %216, %222 : vector<32x128xf32>
    %c0_273 = arith.constant 0 : index
    %c1_274 = arith.constant 1 : index
    %c1_275 = arith.constant 1 : index
    %c0_276 = arith.constant 0 : index
    %c0_277 = arith.constant 0 : index
    %224 = vector.load %arg1[%c0_273, %c1_274, %c1_275, %c0_276, %c0_277] : memref<2x16x5x5x32xbf16, #tpu.memory_space<vmem>>, vector<2x1x4x4x32xbf16>
    %225 = vector.shape_cast %224 : vector<2x1x4x4x32xbf16> to vector<2x4x4x32xbf16>
    %226 = vector.shape_cast %225 : vector<2x4x4x32xbf16> to vector<32x32xbf16>
    %c7_278 = arith.constant 7 : index
    %c0_279 = arith.constant 0 : index
    %c0_280 = arith.constant 0 : index
    %227 = vector.load %arg2[%c7_278, %c0_279, %c0_280] : memref<9x32x128xbf16, #tpu.memory_space<vmem>>, vector<1x32x128xbf16>
    %228 = vector.shape_cast %227 : vector<1x32x128xbf16> to vector<32x128xbf16>
    %cst_281 = arith.constant dense<0.000000e+00> : vector<32x128xf32>
    %229 = tpu.matmul %226, %228, %cst_281 {dimension_numbers = #tpu.dot_dimension_numbers<[1], [0], [0], [1], [0, 0, 1, 1], [], []>} : vector<32x32xbf16>, vector<32x128xbf16>, vector<32x128xf32> -> vector<32x128xf32>
    %230 = arith.addf %223, %229 : vector<32x128xf32>
    %c0_282 = arith.constant 0 : index
    %c2_283 = arith.constant 2 : index
    %c1_284 = arith.constant 1 : index
    %c0_285 = arith.constant 0 : index
    %c0_286 = arith.constant 0 : index
    %231 = vector.load %arg1[%c0_282, %c2_283, %c1_284, %c0_285, %c0_286] : memref<2x16x5x5x32xbf16, #tpu.memory_space<vmem>>, vector<2x1x4x4x32xbf16>
    %232 = vector.shape_cast %231 : vector<2x1x4x4x32xbf16> to vector<2x4x4x32xbf16>
    %233 = vector.shape_cast %232 : vector<2x4x4x32xbf16> to vector<32x32xbf16>
    %c8_287 = arith.constant 8 : index
    %c0_288 = arith.constant 0 : index
    %c0_289 = arith.constant 0 : index
    %234 = vector.load %arg2[%c8_287, %c0_288, %c0_289] : memref<9x32x128xbf16, #tpu.memory_space<vmem>>, vector<1x32x128xbf16>
    %235 = vector.shape_cast %234 : vector<1x32x128xbf16> to vector<32x128xbf16>
    %cst_290 = arith.constant dense<0.000000e+00> : vector<32x128xf32>
    %236 = tpu.matmul %233, %235, %cst_290 {dimension_numbers = #tpu.dot_dimension_numbers<[1], [0], [0], [1], [0, 0, 1, 1], [], []>} : vector<32x32xbf16>, vector<32x128xbf16>, vector<32x128xf32> -> vector<32x128xf32>
    %237 = arith.addf %230, %236 : vector<32x128xf32>
    %c0_291 = arith.constant 0 : index
    %c0_292 = arith.constant 0 : index
    %238 = vector.load %arg3[%c0_291, %c0_292] : memref<1x128xf32, #tpu.memory_space<vmem>>, vector<1x128xf32>
    %239 = vector.broadcast %238 : vector<1x128xf32> to vector<32x128xf32>
    %240 = arith.addf %237, %239 : vector<32x128xf32>
    %cst_293 = arith.constant 0.000000e+00 : f32
    %241 = vector.broadcast %cst_293 : f32 to vector<32x128xf32>
    %242 = arith.maximumf %240, %241 : vector<32x128xf32>
    %243 = arith.truncf %242 : vector<32x128xf32> to vector<32x128xbf16>
    %244 = vector.shape_cast %243 : vector<32x128xbf16> to vector<2x4x4x128xbf16>
    %c0_294 = arith.constant 0 : index
    %c1_295 = arith.constant 1 : index
    %c1_296 = arith.constant 1 : index
    %c0_297 = arith.constant 0 : index
    %c0_298 = arith.constant 0 : index
    %245 = vector.load %arg9[%c0_294, %c1_295, %c1_296, %c0_297, %c0_298] : memref<2x4x5x5x128xbf16, #tpu.memory_space<vmem>>, vector<2x1x4x4x128xbf16>
    %246 = vector.shape_cast %245 : vector<2x1x4x4x128xbf16> to vector<2x4x4x128xbf16>
    %247 = vector.shape_cast %244 : vector<2x4x4x128xbf16> to vector<2x1x4x4x128xbf16>
    tpu.vector_store %arg9[%c0_294, %c1_295, %c1_296, %c0_297, %c0_298], %247 {strides = array<i32>} : memref<2x4x5x5x128xbf16, #tpu.memory_space<vmem>>, vector<2x1x4x4x128xbf16>,
    %c0_299 = arith.constant 0 : index
    %c10_300 = arith.constant 10 : index
    %c0_301 = arith.constant 0 : index
    %c0_302 = arith.constant 0 : index
    %c0_303 = arith.constant 0 : index
    %248 = vector.load %arg1[%c0_299, %c10_300, %c0_301, %c0_302, %c0_303] : memref<2x16x5x5x32xbf16, #tpu.memory_space<vmem>>, vector<2x1x4x4x32xbf16>
    %249 = vector.shape_cast %248 : vector<2x1x4x4x32xbf16> to vector<2x4x4x32xbf16>
    %250 = vector.shape_cast %249 : vector<2x4x4x32xbf16> to vector<32x32xbf16>
    %c0_304 = arith.constant 0 : index
    %c0_305 = arith.constant 0 : index
    %c0_306 = arith.constant 0 : index
    %251 = vector.load %arg2[%c0_304, %c0_305, %c0_306] : memref<9x32x128xbf16, #tpu.memory_space<vmem>>, vector<1x32x128xbf16>
    %252 = vector.shape_cast %251 : vector<1x32x128xbf16> to vector<32x128xbf16>
    %cst_307 = arith.constant dense<0.000000e+00> : vector<32x128xf32>
    %253 = tpu.matmul %250, %252, %cst_307 {dimension_numbers = #tpu.dot_dimension_numbers<[1], [0], [0], [1], [0, 0, 1, 1], [], []>} : vector<32x32xbf16>, vector<32x128xbf16>, vector<32x128xf32> -> vector<32x128xf32>
    %c0_308 = arith.constant 0 : index
    %c11_309 = arith.constant 11 : index
    %c0_310 = arith.constant 0 : index
    %c0_311 = arith.constant 0 : index
    %c0_312 = arith.constant 0 : index
    %254 = vector.load %arg1[%c0_308, %c11_309, %c0_310, %c0_311, %c0_312] : memref<2x16x5x5x32xbf16, #tpu.memory_space<vmem>>, vector<2x1x4x4x32xbf16>
    %255 = vector.shape_cast %254 : vector<2x1x4x4x32xbf16> to vector<2x4x4x32xbf16>
    %256 = vector.shape_cast %255 : vector<2x4x4x32xbf16> to vector<32x32xbf16>
    %c1_313 = arith.constant 1 : index
    %c0_314 = arith.constant 0 : index
    %c0_315 = arith.constant 0 : index
    %257 = vector.load %arg2[%c1_313, %c0_314, %c0_315] : memref<9x32x128xbf16, #tpu.memory_space<vmem>>, vector<1x32x128xbf16>
    %258 = vector.shape_cast %257 : vector<1x32x128xbf16> to vector<32x128xbf16>
    %cst_316 = arith.constant dense<0.000000e+00> : vector<32x128xf32>
    %259 = tpu.matmul %256, %258, %cst_316 {dimension_numbers = #tpu.dot_dimension_numbers<[1], [0], [0], [1], [0, 0, 1, 1], [], []>} : vector<32x32xbf16>, vector<32x128xbf16>, vector<32x128xf32> -> vector<32x128xf32>
    %260 = arith.addf %253, %259 : vector<32x128xf32>
    %c0_317 = arith.constant 0 : index
    %c8_318 = arith.constant 8 : index
    %c0_319 = arith.constant 0 : index
    %c1_320 = arith.constant 1 : index
    %c0_321 = arith.constant 0 : index
    %261 = vector.load %arg1[%c0_317, %c8_318, %c0_319, %c1_320, %c0_321] : memref<2x16x5x5x32xbf16, #tpu.memory_space<vmem>>, vector<2x1x4x4x32xbf16>
    %262 = vector.shape_cast %261 : vector<2x1x4x4x32xbf16> to vector<2x4x4x32xbf16>
    %263 = vector.shape_cast %262 : vector<2x4x4x32xbf16> to vector<32x32xbf16>
    %c2_322 = arith.constant 2 : index
    %c0_323 = arith.constant 0 : index
    %c0_324 = arith.constant 0 : index
    %264 = vector.load %arg2[%c2_322, %c0_323, %c0_324] : memref<9x32x128xbf16, #tpu.memory_space<vmem>>, vector<1x32x128xbf16>
    %265 = vector.shape_cast %264 : vector<1x32x128xbf16> to vector<32x128xbf16>
    %cst_325 = arith.constant dense<0.000000e+00> : vector<32x128xf32>
    %266 = tpu.matmul %263, %265, %cst_325 {dimension_numbers = #tpu.dot_dimension_numbers<[1], [0], [0], [1], [0, 0, 1, 1], [], []>} : vector<32x32xbf16>, vector<32x128xbf16>, vector<32x128xf32> -> vector<32x128xf32>
    %267 = arith.addf %260, %266 : vector<32x128xf32>
    %c0_326 = arith.constant 0 : index
    %c14_327 = arith.constant 14 : index
    %c0_328 = arith.constant 0 : index
    %c0_329 = arith.constant 0 : index
    %c0_330 = arith.constant 0 : index
    %268 = vector.load %arg1[%c0_326, %c14_327, %c0_328, %c0_329, %c0_330] : memref<2x16x5x5x32xbf16, #tpu.memory_space<vmem>>, vector<2x1x4x4x32xbf16>
    %269 = vector.shape_cast %268 : vector<2x1x4x4x32xbf16> to vector<2x4x4x32xbf16>
    %270 = vector.shape_cast %269 : vector<2x4x4x32xbf16> to vector<32x32xbf16>
    %c3_331 = arith.constant 3 : index
    %c0_332 = arith.constant 0 : index
    %c0_333 = arith.constant 0 : index
    %271 = vector.load %arg2[%c3_331, %c0_332, %c0_333] : memref<9x32x128xbf16, #tpu.memory_space<vmem>>, vector<1x32x128xbf16>
    %272 = vector.shape_cast %271 : vector<1x32x128xbf16> to vector<32x128xbf16>
    %cst_334 = arith.constant dense<0.000000e+00> : vector<32x128xf32>
    %273 = tpu.matmul %270, %272, %cst_334 {dimension_numbers = #tpu.dot_dimension_numbers<[1], [0], [0], [1], [0, 0, 1, 1], [], []>} : vector<32x32xbf16>, vector<32x128xbf16>, vector<32x128xf32> -> vector<32x128xf32>
    %274 = arith.addf %267, %273 : vector<32x128xf32>
    %c0_335 = arith.constant 0 : index
    %c15 = arith.constant 15 : index
    %c0_336 = arith.constant 0 : index
    %c0_337 = arith.constant 0 : index
    %c0_338 = arith.constant 0 : index
    %275 = vector.load %arg1[%c0_335, %c15, %c0_336, %c0_337, %c0_338] : memref<2x16x5x5x32xbf16, #tpu.memory_space<vmem>>, vector<2x1x4x4x32xbf16>
    %276 = vector.shape_cast %275 : vector<2x1x4x4x32xbf16> to vector<2x4x4x32xbf16>
    %277 = vector.shape_cast %276 : vector<2x4x4x32xbf16> to vector<32x32xbf16>
    %c4_339 = arith.constant 4 : index
    %c0_340 = arith.constant 0 : index
    %c0_341 = arith.constant 0 : index
    %278 = vector.load %arg2[%c4_339, %c0_340, %c0_341] : memref<9x32x128xbf16, #tpu.memory_space<vmem>>, vector<1x32x128xbf16>
    %279 = vector.shape_cast %278 : vector<1x32x128xbf16> to vector<32x128xbf16>
    %cst_342 = arith.constant dense<0.000000e+00> : vector<32x128xf32>
    %280 = tpu.matmul %277, %279, %cst_342 {dimension_numbers = #tpu.dot_dimension_numbers<[1], [0], [0], [1], [0, 0, 1, 1], [], []>} : vector<32x32xbf16>, vector<32x128xbf16>, vector<32x128xf32> -> vector<32x128xf32>
    %281 = arith.addf %274, %280 : vector<32x128xf32>
    %c0_343 = arith.constant 0 : index
    %c12_344 = arith.constant 12 : index
    %c0_345 = arith.constant 0 : index
    %c1_346 = arith.constant 1 : index
    %c0_347 = arith.constant 0 : index
    %282 = vector.load %arg1[%c0_343, %c12_344, %c0_345, %c1_346, %c0_347] : memref<2x16x5x5x32xbf16, #tpu.memory_space<vmem>>, vector<2x1x4x4x32xbf16>
    %283 = vector.shape_cast %282 : vector<2x1x4x4x32xbf16> to vector<2x4x4x32xbf16>
    %284 = vector.shape_cast %283 : vector<2x4x4x32xbf16> to vector<32x32xbf16>
    %c5_348 = arith.constant 5 : index
    %c0_349 = arith.constant 0 : index
    %c0_350 = arith.constant 0 : index
    %285 = vector.load %arg2[%c5_348, %c0_349, %c0_350] : memref<9x32x128xbf16, #tpu.memory_space<vmem>>, vector<1x32x128xbf16>
    %286 = vector.shape_cast %285 : vector<1x32x128xbf16> to vector<32x128xbf16>
    %cst_351 = arith.constant dense<0.000000e+00> : vector<32x128xf32>
    %287 = tpu.matmul %284, %286, %cst_351 {dimension_numbers = #tpu.dot_dimension_numbers<[1], [0], [0], [1], [0, 0, 1, 1], [], []>} : vector<32x32xbf16>, vector<32x128xbf16>, vector<32x128xf32> -> vector<32x128xf32>
    %288 = arith.addf %281, %287 : vector<32x128xf32>
    %c0_352 = arith.constant 0 : index
    %c2_353 = arith.constant 2 : index
    %c1_354 = arith.constant 1 : index
    %c0_355 = arith.constant 0 : index
    %c0_356 = arith.constant 0 : index
    %289 = vector.load %arg1[%c0_352, %c2_353, %c1_354, %c0_355, %c0_356] : memref<2x16x5x5x32xbf16, #tpu.memory_space<vmem>>, vector<2x1x4x4x32xbf16>
    %290 = vector.shape_cast %289 : vector<2x1x4x4x32xbf16> to vector<2x4x4x32xbf16>
    %291 = vector.shape_cast %290 : vector<2x4x4x32xbf16> to vector<32x32xbf16>
    %c6_357 = arith.constant 6 : index
    %c0_358 = arith.constant 0 : index
    %c0_359 = arith.constant 0 : index
    %292 = vector.load %arg2[%c6_357, %c0_358, %c0_359] : memref<9x32x128xbf16, #tpu.memory_space<vmem>>, vector<1x32x128xbf16>
    %293 = vector.shape_cast %292 : vector<1x32x128xbf16> to vector<32x128xbf16>
    %cst_360 = arith.constant dense<0.000000e+00> : vector<32x128xf32>
    %294 = tpu.matmul %291, %293, %cst_360 {dimension_numbers = #tpu.dot_dimension_numbers<[1], [0], [0], [1], [0, 0, 1, 1], [], []>} : vector<32x32xbf16>, vector<32x128xbf16>, vector<32x128xf32> -> vector<32x128xf32>
    %295 = arith.addf %288, %294 : vector<32x128xf32>
    %c0_361 = arith.constant 0 : index
    %c3_362 = arith.constant 3 : index
    %c1_363 = arith.constant 1 : index
    %c0_364 = arith.constant 0 : index
    %c0_365 = arith.constant 0 : index
    %296 = vector.load %arg1[%c0_361, %c3_362, %c1_363, %c0_364, %c0_365] : memref<2x16x5x5x32xbf16, #tpu.memory_space<vmem>>, vector<2x1x4x4x32xbf16>
    %297 = vector.shape_cast %296 : vector<2x1x4x4x32xbf16> to vector<2x4x4x32xbf16>
    %298 = vector.shape_cast %297 : vector<2x4x4x32xbf16> to vector<32x32xbf16>
    %c7_366 = arith.constant 7 : index
    %c0_367 = arith.constant 0 : index
    %c0_368 = arith.constant 0 : index
    %299 = vector.load %arg2[%c7_366, %c0_367, %c0_368] : memref<9x32x128xbf16, #tpu.memory_space<vmem>>, vector<1x32x128xbf16>
    %300 = vector.shape_cast %299 : vector<1x32x128xbf16> to vector<32x128xbf16>
    %cst_369 = arith.constant dense<0.000000e+00> : vector<32x128xf32>
    %301 = tpu.matmul %298, %300, %cst_369 {dimension_numbers = #tpu.dot_dimension_numbers<[1], [0], [0], [1], [0, 0, 1, 1], [], []>} : vector<32x32xbf16>, vector<32x128xbf16>, vector<32x128xf32> -> vector<32x128xf32>
    %302 = arith.addf %295, %301 : vector<32x128xf32>
    %c0_370 = arith.constant 0 : index
    %c0_371 = arith.constant 0 : index
    %c1_372 = arith.constant 1 : index
    %c1_373 = arith.constant 1 : index
    %c0_374 = arith.constant 0 : index
    %303 = vector.load %arg1[%c0_370, %c0_371, %c1_372, %c1_373, %c0_374] : memref<2x16x5x5x32xbf16, #tpu.memory_space<vmem>>, vector<2x1x4x4x32xbf16>
    %304 = vector.shape_cast %303 : vector<2x1x4x4x32xbf16> to vector<2x4x4x32xbf16>
    %305 = vector.shape_cast %304 : vector<2x4x4x32xbf16> to vector<32x32xbf16>
    %c8_375 = arith.constant 8 : index
    %c0_376 = arith.constant 0 : index
    %c0_377 = arith.constant 0 : index
    %306 = vector.load %arg2[%c8_375, %c0_376, %c0_377] : memref<9x32x128xbf16, #tpu.memory_space<vmem>>, vector<1x32x128xbf16>
    %307 = vector.shape_cast %306 : vector<1x32x128xbf16> to vector<32x128xbf16>
    %cst_378 = arith.constant dense<0.000000e+00> : vector<32x128xf32>
    %308 = tpu.matmul %305, %307, %cst_378 {dimension_numbers = #tpu.dot_dimension_numbers<[1], [0], [0], [1], [0, 0, 1, 1], [], []>} : vector<32x32xbf16>, vector<32x128xbf16>, vector<32x128xf32> -> vector<32x128xf32>
    %309 = arith.addf %302, %308 : vector<32x128xf32>
    %c0_379 = arith.constant 0 : index
    %c0_380 = arith.constant 0 : index
    %310 = vector.load %arg3[%c0_379, %c0_380] : memref<1x128xf32, #tpu.memory_space<vmem>>, vector<1x128xf32>
    %311 = vector.broadcast %310 : vector<1x128xf32> to vector<32x128xf32>
    %312 = arith.addf %309, %311 : vector<32x128xf32>
    %cst_381 = arith.constant 0.000000e+00 : f32
    %313 = vector.broadcast %cst_381 : f32 to vector<32x128xf32>
    %314 = arith.maximumf %312, %313 : vector<32x128xf32>
    %315 = arith.truncf %314 : vector<32x128xf32> to vector<32x128xbf16>
    %316 = vector.shape_cast %315 : vector<32x128xbf16> to vector<2x4x4x128xbf16>
    %c0_382 = arith.constant 0 : index
    %c0_383 = arith.constant 0 : index
    %c1_384 = arith.constant 1 : index
    %c1_385 = arith.constant 1 : index
    %c0_386 = arith.constant 0 : index
    %317 = vector.load %arg9[%c0_382, %c0_383, %c1_384, %c1_385, %c0_386] : memref<2x4x5x5x128xbf16, #tpu.memory_space<vmem>>, vector<2x1x4x4x128xbf16>
    %318 = vector.shape_cast %317 : vector<2x1x4x4x128xbf16> to vector<2x4x4x128xbf16>
    %319 = vector.shape_cast %316 : vector<2x4x4x128xbf16> to vector<2x1x4x4x128xbf16>
    tpu.vector_store %arg9[%c0_382, %c0_383, %c1_384, %c1_385, %c0_386], %319 {strides = array<i32>} : memref<2x4x5x5x128xbf16, #tpu.memory_space<vmem>>, vector<2x1x4x4x128xbf16>,
    %c0_387 = arith.constant 0 : index
    %c0_388 = arith.constant 0 : index
    %c0_389 = arith.constant 0 : index
    %c0_390 = arith.constant 0 : index
    %c0_391 = arith.constant 0 : index
    %320 = vector.load %arg9[%c0_387, %c0_388, %c0_389, %c0_390, %c0_391] : memref<2x4x5x5x128xbf16, #tpu.memory_space<vmem>>, vector<2x1x4x4x128xbf16>
    %321 = vector.shape_cast %320 : vector<2x1x4x4x128xbf16> to vector<2x4x4x128xbf16>
    %322 = vector.shape_cast %321 : vector<2x4x4x128xbf16> to vector<32x128xbf16>
    %c0_392 = arith.constant 0 : index
    %c0_393 = arith.constant 0 : index
    %c0_394 = arith.constant 0 : index
    %323 = vector.load %arg4[%c0_392, %c0_393, %c0_394] : memref<9x128x128xbf16, #tpu.memory_space<vmem>>, vector<1x128x128xbf16>
    %324 = vector.shape_cast %323 : vector<1x128x128xbf16> to vector<128x128xbf16>
    %cst_395 = arith.constant dense<0.000000e+00> : vector<32x128xf32>
    %325 = tpu.matmul %322, %324, %cst_395 {dimension_numbers = #tpu.dot_dimension_numbers<[1], [0], [0], [1], [0, 0, 1, 1], [], []>} : vector<32x128xbf16>, vector<128x128xbf16>, vector<32x128xf32> -> vector<32x128xf32>
    %c0_396 = arith.constant 0 : index
    %c1_397 = arith.constant 1 : index
    %c0_398 = arith.constant 0 : index
    %c0_399 = arith.constant 0 : index
    %c0_400 = arith.constant 0 : index
    %326 = vector.load %arg9[%c0_396, %c1_397, %c0_398, %c0_399, %c0_400] : memref<2x4x5x5x128xbf16, #tpu.memory_space<vmem>>, vector<2x1x4x4x128xbf16>
    %327 = vector.shape_cast %326 : vector<2x1x4x4x128xbf16> to vector<2x4x4x128xbf16>
    %328 = vector.shape_cast %327 : vector<2x4x4x128xbf16> to vector<32x128xbf16>
    %c1_401 = arith.constant 1 : index
    %c0_402 = arith.constant 0 : index
    %c0_403 = arith.constant 0 : index
    %329 = vector.load %arg4[%c1_401, %c0_402, %c0_403] : memref<9x128x128xbf16, #tpu.memory_space<vmem>>, vector<1x128x128xbf16>
    %330 = vector.shape_cast %329 : vector<1x128x128xbf16> to vector<128x128xbf16>
    %cst_404 = arith.constant dense<0.000000e+00> : vector<32x128xf32>
    %331 = tpu.matmul %328, %330, %cst_404 {dimension_numbers = #tpu.dot_dimension_numbers<[1], [0], [0], [1], [0, 0, 1, 1], [], []>} : vector<32x128xbf16>, vector<128x128xbf16>, vector<32x128xf32> -> vector<32x128xf32>
    %332 = arith.addf %325, %331 : vector<32x128xf32>
    %c0_405 = arith.constant 0 : index
    %c0_406 = arith.constant 0 : index
    %c0_407 = arith.constant 0 : index
    %c1_408 = arith.constant 1 : index
    %c0_409 = arith.constant 0 : index
    %333 = vector.load %arg9[%c0_405, %c0_406, %c0_407, %c1_408, %c0_409] : memref<2x4x5x5x128xbf16, #tpu.memory_space<vmem>>, vector<2x1x4x4x128xbf16>
    %334 = vector.shape_cast %333 : vector<2x1x4x4x128xbf16> to vector<2x4x4x128xbf16>
    %335 = vector.shape_cast %334 : vector<2x4x4x128xbf16> to vector<32x128xbf16>
    %c2_410 = arith.constant 2 : index
    %c0_411 = arith.constant 0 : index
    %c0_412 = arith.constant 0 : index
    %336 = vector.load %arg4[%c2_410, %c0_411, %c0_412] : memref<9x128x128xbf16, #tpu.memory_space<vmem>>, vector<1x128x128xbf16>
    %337 = vector.shape_cast %336 : vector<1x128x128xbf16> to vector<128x128xbf16>
    %cst_413 = arith.constant dense<0.000000e+00> : vector<32x128xf32>
    %338 = tpu.matmul %335, %337, %cst_413 {dimension_numbers = #tpu.dot_dimension_numbers<[1], [0], [0], [1], [0, 0, 1, 1], [], []>} : vector<32x128xbf16>, vector<128x128xbf16>, vector<32x128xf32> -> vector<32x128xf32>
    %339 = arith.addf %332, %338 : vector<32x128xf32>
    %c0_414 = arith.constant 0 : index
    %c2_415 = arith.constant 2 : index
    %c0_416 = arith.constant 0 : index
    %c0_417 = arith.constant 0 : index
    %c0_418 = arith.constant 0 : index
    %340 = vector.load %arg9[%c0_414, %c2_415, %c0_416, %c0_417, %c0_418] : memref<2x4x5x5x128xbf16, #tpu.memory_space<vmem>>, vector<2x1x4x4x128xbf16>
    %341 = vector.shape_cast %340 : vector<2x1x4x4x128xbf16> to vector<2x4x4x128xbf16>
    %342 = vector.shape_cast %341 : vector<2x4x4x128xbf16> to vector<32x128xbf16>
    %c3_419 = arith.constant 3 : index
    %c0_420 = arith.constant 0 : index
    %c0_421 = arith.constant 0 : index
    %343 = vector.load %arg4[%c3_419, %c0_420, %c0_421] : memref<9x128x128xbf16, #tpu.memory_space<vmem>>, vector<1x128x128xbf16>
    %344 = vector.shape_cast %343 : vector<1x128x128xbf16> to vector<128x128xbf16>
    %cst_422 = arith.constant dense<0.000000e+00> : vector<32x128xf32>
    %345 = tpu.matmul %342, %344, %cst_422 {dimension_numbers = #tpu.dot_dimension_numbers<[1], [0], [0], [1], [0, 0, 1, 1], [], []>} : vector<32x128xbf16>, vector<128x128xbf16>, vector<32x128xf32> -> vector<32x128xf32>
    %346 = arith.addf %339, %345 : vector<32x128xf32>
    %c0_423 = arith.constant 0 : index
    %c3_424 = arith.constant 3 : index
    %c0_425 = arith.constant 0 : index
    %c0_426 = arith.constant 0 : index
    %c0_427 = arith.constant 0 : index
    %347 = vector.load %arg9[%c0_423, %c3_424, %c0_425, %c0_426, %c0_427] : memref<2x4x5x5x128xbf16, #tpu.memory_space<vmem>>, vector<2x1x4x4x128xbf16>
    %348 = vector.shape_cast %347 : vector<2x1x4x4x128xbf16> to vector<2x4x4x128xbf16>
    %349 = vector.shape_cast %348 : vector<2x4x4x128xbf16> to vector<32x128xbf16>
    %c4_428 = arith.constant 4 : index
    %c0_429 = arith.constant 0 : index
    %c0_430 = arith.constant 0 : index
    %350 = vector.load %arg4[%c4_428, %c0_429, %c0_430] : memref<9x128x128xbf16, #tpu.memory_space<vmem>>, vector<1x128x128xbf16>
    %351 = vector.shape_cast %350 : vector<1x128x128xbf16> to vector<128x128xbf16>
    %cst_431 = arith.constant dense<0.000000e+00> : vector<32x128xf32>
    %352 = tpu.matmul %349, %351, %cst_431 {dimension_numbers = #tpu.dot_dimension_numbers<[1], [0], [0], [1], [0, 0, 1, 1], [], []>} : vector<32x128xbf16>, vector<128x128xbf16>, vector<32x128xf32> -> vector<32x128xf32>
    %353 = arith.addf %346, %352 : vector<32x128xf32>
    %c0_432 = arith.constant 0 : index
    %c2_433 = arith.constant 2 : index
    %c0_434 = arith.constant 0 : index
    %c1_435 = arith.constant 1 : index
    %c0_436 = arith.constant 0 : index
    %354 = vector.load %arg9[%c0_432, %c2_433, %c0_434, %c1_435, %c0_436] : memref<2x4x5x5x128xbf16, #tpu.memory_space<vmem>>, vector<2x1x4x4x128xbf16>
    %355 = vector.shape_cast %354 : vector<2x1x4x4x128xbf16> to vector<2x4x4x128xbf16>
    %356 = vector.shape_cast %355 : vector<2x4x4x128xbf16> to vector<32x128xbf16>
    %c5_437 = arith.constant 5 : index
    %c0_438 = arith.constant 0 : index
    %c0_439 = arith.constant 0 : index
    %357 = vector.load %arg4[%c5_437, %c0_438, %c0_439] : memref<9x128x128xbf16, #tpu.memory_space<vmem>>, vector<1x128x128xbf16>
    %358 = vector.shape_cast %357 : vector<1x128x128xbf16> to vector<128x128xbf16>
    %cst_440 = arith.constant dense<0.000000e+00> : vector<32x128xf32>
    %359 = tpu.matmul %356, %358, %cst_440 {dimension_numbers = #tpu.dot_dimension_numbers<[1], [0], [0], [1], [0, 0, 1, 1], [], []>} : vector<32x128xbf16>, vector<128x128xbf16>, vector<32x128xf32> -> vector<32x128xf32>
    %360 = arith.addf %353, %359 : vector<32x128xf32>
    %c0_441 = arith.constant 0 : index
    %c0_442 = arith.constant 0 : index
    %c1_443 = arith.constant 1 : index
    %c0_444 = arith.constant 0 : index
    %c0_445 = arith.constant 0 : index
    %361 = vector.load %arg9[%c0_441, %c0_442, %c1_443, %c0_444, %c0_445] : memref<2x4x5x5x128xbf16, #tpu.memory_space<vmem>>, vector<2x1x4x4x128xbf16>
    %362 = vector.shape_cast %361 : vector<2x1x4x4x128xbf16> to vector<2x4x4x128xbf16>
    %363 = vector.shape_cast %362 : vector<2x4x4x128xbf16> to vector<32x128xbf16>
    %c6_446 = arith.constant 6 : index
    %c0_447 = arith.constant 0 : index
    %c0_448 = arith.constant 0 : index
    %364 = vector.load %arg4[%c6_446, %c0_447, %c0_448] : memref<9x128x128xbf16, #tpu.memory_space<vmem>>, vector<1x128x128xbf16>
    %365 = vector.shape_cast %364 : vector<1x128x128xbf16> to vector<128x128xbf16>
    %cst_449 = arith.constant dense<0.000000e+00> : vector<32x128xf32>
    %366 = tpu.matmul %363, %365, %cst_449 {dimension_numbers = #tpu.dot_dimension_numbers<[1], [0], [0], [1], [0, 0, 1, 1], [], []>} : vector<32x128xbf16>, vector<128x128xbf16>, vector<32x128xf32> -> vector<32x128xf32>
    %367 = arith.addf %360, %366 : vector<32x128xf32>
    %c0_450 = arith.constant 0 : index
    %c1_451 = arith.constant 1 : index
    %c1_452 = arith.constant 1 : index
    %c0_453 = arith.constant 0 : index
    %c0_454 = arith.constant 0 : index
    %368 = vector.load %arg9[%c0_450, %c1_451, %c1_452, %c0_453, %c0_454] : memref<2x4x5x5x128xbf16, #tpu.memory_space<vmem>>, vector<2x1x4x4x128xbf16>
    %369 = vector.shape_cast %368 : vector<2x1x4x4x128xbf16> to vector<2x4x4x128xbf16>
    %370 = vector.shape_cast %369 : vector<2x4x4x128xbf16> to vector<32x128xbf16>
    %c7_455 = arith.constant 7 : index
    %c0_456 = arith.constant 0 : index
    %c0_457 = arith.constant 0 : index
    %371 = vector.load %arg4[%c7_455, %c0_456, %c0_457] : memref<9x128x128xbf16, #tpu.memory_space<vmem>>, vector<1x128x128xbf16>
    %372 = vector.shape_cast %371 : vector<1x128x128xbf16> to vector<128x128xbf16>
    %cst_458 = arith.constant dense<0.000000e+00> : vector<32x128xf32>
    %373 = tpu.matmul %370, %372, %cst_458 {dimension_numbers = #tpu.dot_dimension_numbers<[1], [0], [0], [1], [0, 0, 1, 1], [], []>} : vector<32x128xbf16>, vector<128x128xbf16>, vector<32x128xf32> -> vector<32x128xf32>
    %374 = arith.addf %367, %373 : vector<32x128xf32>
    %c0_459 = arith.constant 0 : index
    %c0_460 = arith.constant 0 : index
    %c1_461 = arith.constant 1 : index
    %c1_462 = arith.constant 1 : index
    %c0_463 = arith.constant 0 : index
    %375 = vector.load %arg9[%c0_459, %c0_460, %c1_461, %c1_462, %c0_463] : memref<2x4x5x5x128xbf16, #tpu.memory_space<vmem>>, vector<2x1x4x4x128xbf16>
    %376 = vector.shape_cast %375 : vector<2x1x4x4x128xbf16> to vector<2x4x4x128xbf16>
    %377 = vector.shape_cast %376 : vector<2x4x4x128xbf16> to vector<32x128xbf16>
    %c8_464 = arith.constant 8 : index
    %c0_465 = arith.constant 0 : index
    %c0_466 = arith.constant 0 : index
    %378 = vector.load %arg4[%c8_464, %c0_465, %c0_466] : memref<9x128x128xbf16, #tpu.memory_space<vmem>>, vector<1x128x128xbf16>
    %379 = vector.shape_cast %378 : vector<1x128x128xbf16> to vector<128x128xbf16>
    %cst_467 = arith.constant dense<0.000000e+00> : vector<32x128xf32>
    %380 = tpu.matmul %377, %379, %cst_467 {dimension_numbers = #tpu.dot_dimension_numbers<[1], [0], [0], [1], [0, 0, 1, 1], [], []>} : vector<32x128xbf16>, vector<128x128xbf16>, vector<32x128xf32> -> vector<32x128xf32>
    %381 = arith.addf %374, %380 : vector<32x128xf32>
    %c0_468 = arith.constant 0 : index
    %c0_469 = arith.constant 0 : index
    %382 = vector.load %arg5[%c0_468, %c0_469] : memref<1x128xf32, #tpu.memory_space<vmem>>, vector<1x128xf32>
    %383 = vector.broadcast %382 : vector<1x128xf32> to vector<32x128xf32>
    %384 = arith.addf %381, %383 : vector<32x128xf32>
    %cst_470 = arith.constant 0.000000e+00 : f32
    %385 = vector.broadcast %cst_470 : f32 to vector<32x128xf32>
    %386 = arith.maximumf %384, %385 : vector<32x128xf32>
    %387 = vector.shape_cast %386 : vector<32x128xf32> to vector<2x16x128xf32>
    %cst_471 = arith.constant dense<0.000000e+00> : vector<2x128xf32>
    %388 = vector.multi_reduction <add>, %387, %cst_471 [1] : vector<2x16x128xf32> to vector<2x128xf32>
    %cst_472 = arith.constant 6.250000e-02 : f32
    %389 = vector.broadcast %cst_472 : f32 to vector<2x128xf32>
    %390 = arith.mulf %388, %389 : vector<2x128xf32>
    %391 = arith.truncf %390 : vector<2x128xf32> to vector<2x128xbf16>
    %c0_473 = arith.constant 0 : index
    %c0_474 = arith.constant 0 : index
    %392 = vector.load %arg6[%c0_473, %c0_474] : memref<128x128xbf16, #tpu.memory_space<vmem>>, vector<128x128xbf16>
    %cst_475 = arith.constant dense<0.000000e+00> : vector<2x128xf32>
    %393 = tpu.matmul %391, %392, %cst_475 {dimension_numbers = #tpu.dot_dimension_numbers<[1], [0], [0], [1], [0, 0, 1, 1], [], []>} : vector<2x128xbf16>, vector<128x128xbf16>, vector<2x128xf32> -> vector<2x128xf32>
    %c0_476 = arith.constant 0 : index
    %c0_477 = arith.constant 0 : index
    %394 = vector.load %arg7[%c0_476, %c0_477] : memref<1x128xf32, #tpu.memory_space<vmem>>, vector<1x128xf32>
    %395 = vector.broadcast %394 : vector<1x128xf32> to vector<2x128xf32>
    %396 = arith.addf %393, %395 : vector<2x128xf32>
    %c0_478 = arith.constant 0 : index
    %c0_479 = arith.constant 0 : index
    %c0_480 = arith.constant 0 : index
    %397 = vector.load %arg8[%c0_478, %c0_479, %c0_480] : memref<1x2x128xf32, #tpu.memory_space<vmem>>, vector<1x2x128xf32>
    %398 = vector.shape_cast %397 : vector<1x2x128xf32> to vector<2x128xf32>
    %399 = vector.shape_cast %396 : vector<2x128xf32> to vector<1x2x128xf32>
    tpu.vector_store %arg8[%c0_478, %c0_479, %c0_480], %399 {strides = array<i32>} : memref<1x2x128xf32, #tpu.memory_space<vmem>>, vector<1x2x128xf32>,
    return
  }
  func.func @transform_0(%arg0: i32) -> (i32, i32, i32, i32, i32) {
    %c0_i32 = arith.constant 0 : i32
    %c0_i32_0 = arith.constant 0 : i32
    %c0_i32_1 = arith.constant 0 : i32
    %c0_i32_2 = arith.constant 0 : i32
    %c0_i32_3 = arith.constant 0 : i32
    return %arg0, %c0_i32, %c0_i32_0, %c0_i32_1, %c0_i32_2 : i32, i32, i32, i32, i32
  }
  func.func @transform_1(%arg0: i32) -> (i32, i32, i32) {
    %c0_i32 = arith.constant 0 : i32
    %c0_i32_0 = arith.constant 0 : i32
    %c0_i32_1 = arith.constant 0 : i32
    %c0_i32_2 = arith.constant 0 : i32
    return %c0_i32, %c0_i32_0, %c0_i32_1 : i32, i32, i32
  }
  func.func @transform_2(%arg0: i32) -> (i32, i32) {
    %c0_i32 = arith.constant 0 : i32
    %c0_i32_0 = arith.constant 0 : i32
    %c0_i32_1 = arith.constant 0 : i32
    return %c0_i32, %c0_i32_0 : i32, i32
  }
  func.func @transform_3(%arg0: i32) -> (i32, i32, i32) {
    %c0_i32 = arith.constant 0 : i32
    %c0_i32_0 = arith.constant 0 : i32
    %c0_i32_1 = arith.constant 0 : i32
    %c0_i32_2 = arith.constant 0 : i32
    return %c0_i32, %c0_i32_0, %c0_i32_1 : i32, i32, i32
  }
  func.func @transform_4(%arg0: i32) -> (i32, i32) {
    %c0_i32 = arith.constant 0 : i32
    %c0_i32_0 = arith.constant 0 : i32
    %c0_i32_1 = arith.constant 0 : i32
    return %c0_i32, %c0_i32_0 : i32, i32
  }
  func.func @transform_5(%arg0: i32) -> (i32, i32) {
    %c0_i32 = arith.constant 0 : i32
    %c0_i32_0 = arith.constant 0 : i32
    %c0_i32_1 = arith.constant 0 : i32
    return %c0_i32, %c0_i32_0 : i32, i32
  }
  func.func @transform_6(%arg0: i32) -> (i32, i32) {
    %c0_i32 = arith.constant 0 : i32
    %c0_i32_0 = arith.constant 0 : i32
    %c0_i32_1 = arith.constant 0 : i32
    return %c0_i32, %c0_i32_0 : i32, i32
  }
  func.func @transform_7(%arg0: i32) -> (i32, i32, i32) {
    %c0_i32 = arith.constant 0 : i32
    %c0_i32_0 = arith.constant 0 : i32
    %c0_i32_1 = arith.constant 0 : i32
    return %arg0, %c0_i32, %c0_i32_0 : i32, i32, i32
  }
}

</mosaic_0001>

<llo_original>
// kernel: rsna24_forward.1
$region0: #{rsna24_forward.1}
  #allocation0 [shape = 'u32[]', space=smem, size = 0x4, offset = 0x4, fixed_abs, tag = 'smem constant byte address 0x4 - core index']
  #allocation1 [shape = 'u32[72,128]{1,0:T(1,128)}', space=vmem, size = 0x9000, scoped, tag = 'internal scratch']
  #allocation2 [shape = 'bf16[2,4,5,5,128]{4,3,2,1,0:T(8,128)(2,1)}', space=vmem, size = 0x14000, scoped, tag = 'scratch operand']
  %s0 = inlined_call_operand.vmem [shape: bf16[4,16,5,5,32], index: 0, kind: input, shape index: {}]
  %s1 = inlined_call_operand.vmem [shape: bf16[9,32,128], index: 1, kind: input, shape index: {}]
  %s2 = inlined_call_operand.vmem [shape: f32[1,128], index: 2, kind: input, shape index: {}]
  %s3 = inlined_call_operand.vmem [shape: bf16[9,128,128], index: 3, kind: input, shape index: {}]
  %s4 = inlined_call_operand.vmem [shape: f32[1,128], index: 4, kind: input, shape index: {}]
  %s5 = inlined_call_operand.vmem [shape: bf16[128,128], index: 5, kind: input, shape index: {}]
  %s6 = inlined_call_operand.vmem [shape: f32[1,128], index: 6, kind: input, shape index: {}]
  %s7 = inlined_call_operand.hbm [shape: f32[2,2,128], index: 7, kind: output, shape index: {}]
  %s8 = sld [smem:[#allocation0]]
  $region61: #{rsna24_forward.1} parent=0
    _
  %s10 = ssub.s32 1, %s8
  %s11 = scalar_select 0, %s10, %s8
  $region1: #{rsna24_forward.1} parent=0
    #allocation3 [shape = 'u8[2048]{0}', space=vmem, size = 0x800, scoped, tag = 'output window, operand 0']
    #allocation4 [shape = 's32[2]{0}', space=sflag, size = 0x8, scoped, tag = 'scoped memory for rsna24_forward.1']
    %12 = vsyncpa [#allocation4], 0
    %s13 = scalar_lea.sflag [#allocation4], 1
    %14 = vsyncpa %s13, 0
    loop: start=0, step=1, limit=4
    $region2: #{rsna24_forward.1} parent=1 // loop_pre_header
      _
    $region3: #{rsna24_forward.1} parent=1 // loop_header
      %s16 = sphi 0, %s20
      %p17 = scmp.ge.s32.totalorder %s16, 4
      %s26 = sphi 0, %s28
      %s29 = sphi 0, %s26
      %s30 = sphi 0, %s29
      %s46 = sphi 0, %s30
      %s50 = sphi 0, %s50
      %s52 = sphi 0, %s50
      %s53 = sphi 0, %s52
      %s67 = sphi 0, %s53
      %s71 = sphi 0, %s71
      %s73 = sphi 0, %s71
      %s74 = sphi 0, %s73
      %s88 = sphi 0, %s74
      %s92 = sphi 0, %s92
      %s94 = sphi 0, %s92
      %s95 = sphi 0, %s94
      %s109 = sphi 0, %s95
      %s113 = sphi 0, %s113
      %s115 = sphi 0, %s113
      %s116 = sphi 0, %s115
      %s130 = sphi 0, %s116
      %s134 = sphi 0, %s134
      %s136 = sphi 0, %s134
      %s137 = sphi 0, %s136
      %s151 = sphi 0, %s137
      %s155 = sphi 0, %s155
      %s157 = sphi 0, %s155
      %s158 = sphi 0, %s157
      %s172 = sphi 0, %s158
      %s178 = sphi 0, %s180
      %s181 = sphi 0, %s178
      %s182 = sphi 0, %s181
      %s198 = sphi 0, %s182
    $region4: #{rsna24_forward.1} parent=1 // loop_header_branch
      %19 = sbr.rel (%p17) target = $region8
    $region5: #{rsna24_forward.1} parent=1 // loop_body
      %s21 = ssub.s32 %s16, 1
      %s22 = ssub.s32 %s16, 2
      %s23 = sadd.s32 %s16, 1
      %s24 = ssub.s32 %s16, %s23
      %p25 = scmp.eq.s32.totalorder %s24, 0
      %s27 = sadd.s32 %s26, 1
      %s28 = scalar_select %p25, %s26, %s27
      %p31 = pneg %p25
      %p32 = scmp.eq.s32.totalorder %s16, 1
      %p33 = por %p31, %p32
      %p34 = scmp.ne.s32.totalorder %s26, %s29
      %p35 = scmp.eq.s32.totalorder %s16, 0
      %p36 = por %p34, %p35
      %p37 = scmp.ne.s32.totalorder %s26, %s29
      %p38 = scmp.eq.s32.totalorder %s21, 1
      %p39 = por %p37, %p38
      %p40 = scmp.ne.s32.totalorder %s29, %s30
      %p41 = scmp.eq.s32.totalorder %s21, 0
      %p42 = por %p40, %p41
      %p43 = scmp.ne.s32.totalorder %s29, %s30
      %p44 = scmp.eq.s32.totalorder %s22, 1
      %p45 = por %p43, %p44
      %p47 = scmp.ne.s32.totalorder %s30, %s46
      %p48 = scmp.eq.s32.totalorder %s22, 0
      %p49 = por %p47, %p48
      %s51 = sadd.s32 %s50, 1
      %p54 = scmp.eq.s32.totalorder %s16, 1
      %p55 = scmp.ne.s32.totalorder %s50, %s52
      %p56 = scmp.eq.s32.totalorder %s16, 0
      %p57 = por %p55, %p56
      %p58 = scmp.ne.s32.totalorder %s50, %s52
      %p59 = scmp.eq.s32.totalorder %s21, 1
      %p60 = por %p58, %p59
      %p61 = scmp.ne.s32.totalorder %s52, %s53
      %p62 = scmp.eq.s32.totalorder %s21, 0
      %p63 = por %p61, %p62
      %p64 = scmp.ne.s32.totalorder %s52, %s53
      %p65 = scmp.eq.s32.totalorder %s22, 1
      %p66 = por %p64, %p65
      %p68 = scmp.ne.s32.totalorder %s53, %s67
      %p69 = scmp.eq.s32.totalorder %s22, 0
      %p70 = por %p68, %p69
      %s72 = sadd.s32 %s71, 1
      %p75 = scmp.eq.s32.totalorder %s16, 1
      %p76 = scmp.ne.s32.totalorder %s71, %s73
      %p77 = scmp.eq.s32.totalorder %s16, 0
      %p78 = por %p76, %p77
      %p79 = scmp.ne.s32.totalorder %s71, %s73
      %p80 = scmp.eq.s32.totalorder %s21, 1
      %p81 = por %p79, %p80
      %p82 = scmp.ne.s32.totalorder %s73, %s74
      %p83 = scmp.eq.s32.totalorder %s21, 0
      %p84 = por %p82, %p83
      %p85 = scmp.ne.s32.totalorder %s73, %s74
      %p86 = scmp.eq.s32.totalorder %s22, 1
      %p87 = por %p85, %p86
      %p89 = scmp.ne.s32.totalorder %s74, %s88
      %p90 = scmp.eq.s32.totalorder %s22, 0
      %p91 = por %p89, %p90
      %s93 = sadd.s32 %s92, 1
      %p96 = scmp.eq.s32.totalorder %s16, 1
      %p97 = scmp.ne.s32.totalorder %s92, %s94
      %p98 = scmp.eq.s32.totalorder %s16, 0
      %p99 = por %p97, %p98
      %p100 = scmp.ne.s32.totalorder %s92, %s94
      %p101 = scmp.eq.s32.totalorder %s21, 1
      %p102 = por %p100, %p101
      %p103 = scmp.ne.s32.totalorder %s94, %s95
      %p104 = scmp.eq.s32.totalorder %s21, 0
      %p105 = por %p103, %p104
      %p106 = scmp.ne.s32.totalorder %s94, %s95
      %p107 = scmp.eq.s32.totalorder %s22, 1
      %p108 = por %p106, %p107
      %p110 = scmp.ne.s32.totalorder %s95, %s109
      %p111 = scmp.eq.s32.totalorder %s22, 0
      %p112 = por %p110, %p111
      %s114 = sadd.s32 %s113, 1
      %p117 = scmp.eq.s32.totalorder %s16, 1
      %p118 = scmp.ne.s32.totalorder %s113, %s115
      %p119 = scmp.eq.s32.totalorder %s16, 0
      %p120 = por %p118, %p119
      %p121 = scmp.ne.s32.totalorder %s113, %s115
      %p122 = scmp.eq.s32.totalorder %s21, 1
      %p123 = por %p121, %p122
      %p124 = scmp.ne.s32.totalorder %s115, %s116
      %p125 = scmp.eq.s32.totalorder %s21, 0
      %p126 = por %p124, %p125
      %p127 = scmp.ne.s32.totalorder %s115, %s116
      %p128 = scmp.eq.s32.totalorder %s22, 1
      %p129 = por %p127, %p128
      %p131 = scmp.ne.s32.totalorder %s116, %s130
      %p132 = scmp.eq.s32.totalorder %s22, 0
      %p133 = por %p131, %p132
      %s135 = sadd.s32 %s134, 1
      %p138 = scmp.eq.s32.totalorder %s16, 1
      %p139 = scmp.ne.s32.totalorder %s134, %s136
      %p140 = scmp.eq.s32.totalorder %s16, 0
      %p141 = por %p139, %p140
      %p142 = scmp.ne.s32.totalorder %s134, %s136
      %p143 = scmp.eq.s32.totalorder %s21, 1
      %p144 = por %p142, %p143
      %p145 = scmp.ne.s32.totalorder %s136, %s137
      %p146 = scmp.eq.s32.totalorder %s21, 0
      %p147 = por %p145, %p146
      %p148 = scmp.ne.s32.totalorder %s136, %s137
      %p149 = scmp.eq.s32.totalorder %s22, 1
      %p150 = por %p148, %p149
      %p152 = scmp.ne.s32.totalorder %s137, %s151
      %p153 = scmp.eq.s32.totalorder %s22, 0
      %p154 = por %p152, %p153
      %s156 = sadd.s32 %s155, 1
      %p159 = scmp.eq.s32.totalorder %s16, 1
      %p160 = scmp.ne.s32.totalorder %s155, %s157
      %p161 = scmp.eq.s32.totalorder %s16, 0
      %p162 = por %p160, %p161
      %p163 = scmp.ne.s32.totalorder %s155, %s157
      %p164 = scmp.eq.s32.totalorder %s21, 1
      %p165 = por %p163, %p164
      %p166 = scmp.ne.s32.totalorder %s157, %s158
      %p167 = scmp.eq.s32.totalorder %s21, 0
      %p168 = por %p166, %p167
      %p169 = scmp.ne.s32.totalorder %s157, %s158
      %p170 = scmp.eq.s32.totalorder %s22, 1
      %p171 = por %p169, %p170
      %p173 = scmp.ne.s32.totalorder %s158, %s172
      %p174 = scmp.eq.s32.totalorder %s22, 0
      %p175 = por %p173, %p174
      %s176 = ssub.s32 %s16, %s23
      %p177 = scmp.eq.s32.totalorder %s176, 0
      %s179 = sadd.s32 %s178, 1
      %s180 = scalar_select %p177, %s178, %s179
      %p183 = pneg %p177
      %p184 = scmp.eq.s32.totalorder %s16, 1
      %p185 = por %p183, %p184
      %p186 = scmp.ne.s32.totalorder %s178, %s181
      %p187 = scmp.eq.s32.totalorder %s16, 0
      %p188 = por %p186, %p187
      %p189 = scmp.ne.s32.totalorder %s178, %s181
      %p190 = scmp.eq.s32.totalorder %s21, 1
      %p191 = por %p189, %p190
      %p192 = scmp.ne.s32.totalorder %s181, %s182
      %p193 = scmp.eq.s32.totalorder %s21, 0
      %p194 = por %p192, %p193
      %p195 = scmp.ne.s32.totalorder %s181, %s182
      %p196 = scmp.eq.s32.totalorder %s22, 1
      %p197 = por %p195, %p196
      %p199 = scmp.ne.s32.totalorder %s182, %s198
      %p200 = scmp.eq.s32.totalorder %s22, 0
      %p201 = por %p199, %p200
      %p202 = scmp.le.s32.totalorder 1, %s16
      %p203 = scmp.lt.s32.totalorder %s16, 3
      %p204 = pnand %p202, %p203
      %p205 = pneg %p204
      // Predicated region
      $region9: #{rsna24_forward.1} parent=5 // pred_check
        _
      $region10: #{rsna24_forward.1} parent=5 // pred_check_branch
        %207 = sbr.rel (%p204) target = $region12
      $region11: #{rsna24_forward.1} parent=5 // pred_region
        %s208 = ssub.s32 %s16, 1
        // Predicated region
        $region13: #{rsna24_forward.1} parent=11 // pred_check
          %p209 = pneg %p63
        $region14: #{rsna24_forward.1} parent=11 // pred_check_branch
          %211 = sbr.rel (%p209) target = $region16
        $region15: #{rsna24_forward.1} parent=11 // pred_region
          _
        $region16: #{rsna24_forward.1} parent=11 // pred_fallthru
          _
        // Predicated region
        $region17: #{rsna24_forward.1} parent=11 // pred_check
          %p212 = pneg %p84
        $region18: #{rsna24_forward.1} parent=11 // pred_check_branch
          %214 = sbr.rel (%p212) target = $region20
        $region19: #{rsna24_forward.1} parent=11 // pred_region
          _
        $region20: #{rsna24_forward.1} parent=11 // pred_fallthru
          _
        // Predicated region
        $region21: #{rsna24_forward.1} parent=11 // pred_check
          %p215 = pneg %p105
        $region22: #{rsna24_forward.1} parent=11 // pred_check_branch
          %217 = sbr.rel (%p215) target = $region24
        $region23: #{rsna24_forward.1} parent=11 // pred_region
          _
        $region24: #{rsna24_forward.1} parent=11 // pred_fallthru
          _
        // Predicated region
        $region25: #{rsna24_forward.1} parent=11 // pred_check
          %p218 = pneg %p126
        $region26: #{rsna24_forward.1} parent=11 // pred_check_branch
          %220 = sbr.rel (%p218) target = $region28
        $region27: #{rsna24_forward.1} parent=11 // pred_region
          _
        $region28: #{rsna24_forward.1} parent=11 // pred_fallthru
          _
        // Predicated region
        $region29: #{rsna24_forward.1} parent=11 // pred_check
          %p221 = pneg %p147
        $region30: #{rsna24_forward.1} parent=11 // pred_check_branch
          %223 = sbr.rel (%p221) target = $region32
        $region31: #{rsna24_forward.1} parent=11 // pred_region
          _
        $region32: #{rsna24_forward.1} parent=11 // pred_fallthru
          _
        // Predicated region
        $region33: #{rsna24_forward.1} parent=11 // pred_check
          %p224 = pneg %p168
        $region34: #{rsna24_forward.1} parent=11 // pred_check_branch
          %226 = sbr.rel (%p224) target = $region36
        $region35: #{rsna24_forward.1} parent=11 // pred_region
          _
        $region36: #{rsna24_forward.1} parent=11 // pred_fallthru
          _
      $region12: #{rsna24_forward.1} parent=5 // pred_fallthru
        _
      %p227 = scmp.lt.s32.totalorder %s16, 2
      // Predicated region
      $region37: #{rsna24_forward.1} parent=5 // pred_check
        %p228 = pneg %p227
      $region38: #{rsna24_forward.1} parent=5 // pred_check_branch
        %230 = sbr.rel (%p228) target = $region40
      $region39: #{rsna24_forward.1} parent=5 // pred_region
        // Predicated region
        $region41: #{rsna24_forward.1} parent=39 // pred_check
          %p231 = pneg %p36
        $region42: #{rsna24_forward.1} parent=39 // pred_check_branch
          %233 = sbr.rel (%p231) target = $region44
        $region43: #{rsna24_forward.1} parent=39 // pred_region
          %s234 = smul.u32 2, %s16
          %p235 = scmp.lt.s32.totalorder %s234, 3
          %s236 = scalar_select %p235, %s234, 3
          %s237 = smul.addr %s236, 80
          %s238 = smul.addr %s237, 4
          %s239 = scalar_lea.vmem %s0, %s238
          %s240 = smul.u32 2, %s16
        $region44: #{rsna24_forward.1} parent=39 // pred_fallthru
          _
      $region40: #{rsna24_forward.1} parent=5 // pred_fallthru
        _
      %p241 = scmp.le.s32.totalorder 1, %s16
      %p242 = scmp.lt.s32.totalorder %s16, 3
      %p243 = pnand %p241, %p242
      %p244 = pneg %p243
      // Predicated region
      $region45: #{rsna24_forward.1} parent=5 // pred_check
        _
      $region46: #{rsna24_forward.1} parent=5 // pred_check_branch
        %246 = sbr.rel (%p243) target = $region48
      $region47: #{rsna24_forward.1} parent=5 // pred_region
        %s247 = ssub.s32 %s16, 1
        %s248 = smul.u32 2, %s21
        %p249 = scmp.lt.s32.totalorder %s248, 3
        %s250 = scalar_select %p249, %s248, 3
        %s251 = smul.addr %s250, 80
        %s252 = smul.addr %s251, 4
        %s253 = scalar_lea.vmem %s0, %s252
        %p254 = pneg %p42
        %p255 = pneg %p39
        %p256 = pneg %p63
        %p257 = pneg %p60
        %p258 = pneg %p84
        %p259 = pneg %p81
        %p260 = pneg %p105
        %p261 = pneg %p102
        %p262 = pneg %p126
        %p263 = pneg %p123
        %p264 = pneg %p147
        %p265 = pneg %p144
        %p266 = pneg %p168
        %p267 = pneg %p165
        %p268 = pneg %p194
        %p269 = pneg %p191
        %s270 = sand.u32 %s181, 1
        %s271 = scalar_lea.sflag [#allocation4], %s270
        %s272 = sand.u32 %s181, 1
        %s273 = smul.addr %s272, 2
        %s274 = scalar_lea.vmem [#allocation3], %s273
        %s275 = smul.u32 2, %s21
        %p276 = scmp.lt.s32.totalorder %s275, 3
        %s277 = scalar_select %p276, %s275, 3
        %s278 = smul.addr %s277, 80
        %s279 = smul.addr %s278, 4
        %s280 = scalar_lea.vmem %s0, %s279
        %s281 = smul.u32 2, %s21
        %vm283 = vcmask 1042432
        %vm284 = vsmask.f32 2304
        %vm285 = vmand %vm283, %vm284
        %v286 = vld [vmem:[#allocation2] sm:$0x7]
        %v287 = vsel %vm285, 0, %v286
        %288 = vst [vmem:[#allocation2] sm:$0x7] %v287
        %v289 = vld [vmem:[#allocation2 + $0x50] sm:$0x7]
        %v290 = vsel %vm285, 0, %v289
        %291 = vst [vmem:[#allocation2 + $0x50] sm:$0x7] %v290
        %vm292 = vcmask 1040384
        %vm293 = vsmask.f32 256
        %vm294 = vmand %vm292, %vm293
        %v295 = vld [vmem:[#allocation2] sm:$0x1]
        %v296 = vsel %vm294, 0, %v295
        %297 = vst [vmem:[#allocation2] sm:$0x1] %v296
        %v298 = vld [vmem:[#allocation2 + $0x4] sm:$0x1]
        %v299 = vsel %vm294, 0, %v298
        %300 = vst [vmem:[#allocation2 + $0x4] sm:$0x1] %v299
        %v301 = vld [vmem:[#allocation2 + $0x8] sm:$0x1]
        %v302 = vsel %vm294, 0, %v301
        %303 = vst [vmem:[#allocation2 + $0x8] sm:$0x1] %v302
        %v304 = vld [vmem:[#allocation2 + $0xc] sm:$0x1]
        %v305 = vsel %vm294, 0, %v304
        %306 = vst [vmem:[#allocation2 + $0xc] sm:$0x1] %v305
        %v307 = vld [vmem:[#allocation2 + $0x10] sm:$0x1]
        %v308 = vsel %vm294, 0, %v307
        %309 = vst [vmem:[#allocation2 + $0x10] sm:$0x1] %v308
        %v310 = vld [vmem:[#allocation2 + $0x50] sm:$0x1]
        %v311 = vsel %vm294, 0, %v310
        %312 = vst [vmem:[#allocation2 + $0x50] sm:$0x1] %v311
        %v313 = vld [vmem:[#allocation2 + $0x54] sm:$0x1]
        %v314 = vsel %vm294, 0, %v313
        %315 = vst [vmem:[#allocation2 + $0x54] sm:$0x1] %v314
        %v316 = vld [vmem:[#allocation2 + $0x58] sm:$0x1]
        %v317 = vsel %vm294, 0, %v316
        %318 = vst [vmem:[#allocation2 + $0x58] sm:$0x1] %v317
        %v319 = vld [vmem:[#allocation2 + $0x5c] sm:$0x1]
        %v320 = vsel %vm294, 0, %v319
        %321 = vst [vmem:[#allocation2 + $0x5c] sm:$0x1] %v320
        %v322 = vld [vmem:[#allocation2 + $0x60] sm:$0x1]
        %v323 = vsel %vm294, 0, %v322
        %324 = vst [vmem:[#allocation2 + $0x60] sm:$0x1] %v323
        %s325 = scalar_lea.vmem [#allocation2], 20
        %v326 = vld [vmem:[%s325] sm:$0x7]
        %v327 = vsel %vm285, 0, %v326
        %328 = vst [vmem:[%s325] sm:$0x7] %v327
        %v329 = vld [vmem:[%s325 + $0x50] sm:$0x7]
        %v330 = vsel %vm285, 0, %v329
        %331 = vst [vmem:[%s325 + $0x50] sm:$0x7] %v330
        %vm332 = vcmask 1042434
        %vm333 = vmand %vm332, %vm284
        %v334 = vld [vmem:[%s325] sm:$0x4]
        %v335 = vsel %vm333, 0, %v334
        %336 = vst [vmem:[%s325] sm:$0x4] %v335
        %v337 = vld [vmem:[%s325 + $0x4] sm:$0x4]
        %v338 = vsel %vm333, 0, %v337
        %339 = vst [vmem:[%s325 + $0x4] sm:$0x4] %v338
        %v340 = vld [vmem:[%s325 + $0x8] sm:$0x4]
        %v341 = vsel %vm333, 0, %v340
        %342 = vst [vmem:[%s325 + $0x8] sm:$0x4] %v341
        %v343 = vld [vmem:[%s325 + $0xc] sm:$0x4]
        %v344 = vsel %vm333, 0, %v343
        %345 = vst [vmem:[%s325 + $0xc] sm:$0x4] %v344
        %v346 = vld [vmem:[%s325 + $0x10] sm:$0x4]
        %v347 = vsel %vm333, 0, %v346
        %348 = vst [vmem:[%s325 + $0x10] sm:$0x4] %v347
        %v349 = vld [vmem:[%s325 + $0x50] sm:$0x4]
        %v350 = vsel %vm333, 0, %v349
        %351 = vst [vmem:[%s325 + $0x50] sm:$0x4] %v350
        %v352 = vld [vmem:[%s325 + $0x54] sm:$0x4]
        %v353 = vsel %vm333, 0, %v352
        %354 = vst [vmem:[%s325 + $0x54] sm:$0x4] %v353
        %v355 = vld [vmem:[%s325 + $0x58] sm:$0x4]
        %v356 = vsel %vm333, 0, %v355
        %357 = vst [vmem:[%s325 + $0x58] sm:$0x4] %v356
        %v358 = vld [vmem:[%s325 + $0x5c] sm:$0x4]
        %v359 = vsel %vm333, 0, %v358
        %360 = vst [vmem:[%s325 + $0x5c] sm:$0x4] %v359
        %v361 = vld [vmem:[%s325 + $0x60] sm:$0x4]
        %v362 = vsel %vm333, 0, %v361
        %363 = vst [vmem:[%s325 + $0x60] sm:$0x4] %v362
        %s364 = scalar_lea.vmem [#allocation2], 56
        %v365 = vld [vmem:[%s364] sm:$0x7]
        %v366 = vsel %vm285, 0, %v365
        %367 = vst [vmem:[%s364] sm:$0x7] %v366
        %v368 = vld [vmem:[%s364 + $0x50] sm:$0x7]
        %v369 = vsel %vm285, 0, %v368
        %370 = vst [vmem:[%s364 + $0x50] sm:$0x7] %v369
        %s371 = scalar_lea.vmem [#allocation2], 40
        %v372 = vld [vmem:[%s371] sm:$0x1]
        %v373 = vsel %vm294, 0, %v372
        %374 = vst [vmem:[%s371] sm:$0x1] %v373
        %v375 = vld [vmem:[%s371 + $0x4] sm:$0x1]
        %v376 = vsel %vm294, 0, %v375
        %377 = vst [vmem:[%s371 + $0x4] sm:$0x1] %v376
        %v378 = vld [vmem:[%s371 + $0x8] sm:$0x1]
        %v379 = vsel %vm294, 0, %v378
        %380 = vst [vmem:[%s371 + $0x8] sm:$0x1] %v379
        %v381 = vld [vmem:[%s371 + $0xc] sm:$0x1]
        %v382 = vsel %vm294, 0, %v381
        %383 = vst [vmem:[%s371 + $0xc] sm:$0x1] %v382
        %v384 = vld [vmem:[%s371 + $0x10] sm:$0x1]
        %v385 = vsel %vm294, 0, %v384
        %386 = vst [vmem:[%s371 + $0x10] sm:$0x1] %v385
        %v387 = vld [vmem:[%s371 + $0x50] sm:$0x1]
        %v388 = vsel %vm294, 0, %v387
        %389 = vst [vmem:[%s371 + $0x50] sm:$0x1] %v388
        %v390 = vld [vmem:[%s371 + $0x54] sm:$0x1]
        %v391 = vsel %vm294, 0, %v390
        %392 = vst [vmem:[%s371 + $0x54] sm:$0x1] %v391
        %v393 = vld [vmem:[%s371 + $0x58] sm:$0x1]
        %v394 = vsel %vm294, 0, %v393
        %395 = vst [vmem:[%s371 + $0x58] sm:$0x1] %v394
        %v396 = vld [vmem:[%s371 + $0x5c] sm:$0x1]
        %v397 = vsel %vm294, 0, %v396
        %398 = vst [vmem:[%s371 + $0x5c] sm:$0x1] %v397
        %v399 = vld [vmem:[%s371 + $0x60] sm:$0x1]
        %v400 = vsel %vm294, 0, %v399
        %401 = vst [vmem:[%s371 + $0x60] sm:$0x1] %v400
        %s402 = scalar_lea.vmem [#allocation2], 76
        %v403 = vld [vmem:[%s402] sm:$0x7]
        %v404 = vsel %vm285, 0, %v403
        %405 = vst [vmem:[%s402] sm:$0x7] %v404
        %v406 = vld [vmem:[%s402 + $0x50] sm:$0x7]
        %v407 = vsel %vm285, 0, %v406
        %408 = vst [vmem:[%s402 + $0x50] sm:$0x7] %v407
        %s409 = scalar_lea.vmem [#allocation2], 60
        %v410 = vld [vmem:[%s409] sm:$0x4]
        %v411 = vsel %vm333, 0, %v410
        %412 = vst [vmem:[%s409] sm:$0x4] %v411
        %v413 = vld [vmem:[%s409 + $0x4] sm:$0x4]
        %v414 = vsel %vm333, 0, %v413
        %415 = vst [vmem:[%s409 + $0x4] sm:$0x4] %v414
        %v416 = vld [vmem:[%s409 + $0x8] sm:$0x4]
        %v417 = vsel %vm333, 0, %v416
        %418 = vst [vmem:[%s409 + $0x8] sm:$0x4] %v417
        %v419 = vld [vmem:[%s409 + $0xc] sm:$0x4]
        %v420 = vsel %vm333, 0, %v419
        %421 = vst [vmem:[%s409 + $0xc] sm:$0x4] %v420
        %v422 = vld [vmem:[%s409 + $0x10] sm:$0x4]
        %v423 = vsel %vm333, 0, %v422
        %424 = vst [vmem:[%s409 + $0x10] sm:$0x4] %v423
        %v425 = vld [vmem:[%s409 + $0x50] sm:$0x4]
        %v426 = vsel %vm333, 0, %v425
        %427 = vst [vmem:[%s409 + $0x50] sm:$0x4] %v426
        %v428 = vld [vmem:[%s409 + $0x54] sm:$0x4]
        %v429 = vsel %vm333, 0, %v428
        %430 = vst [vmem:[%s409 + $0x54] sm:$0x4] %v429
        %v431 = vld [vmem:[%s409 + $0x58] sm:$0x4]
        %v432 = vsel %vm333, 0, %v431
        %433 = vst [vmem:[%s409 + $0x58] sm:$0x4] %v432
        %v434 = vld [vmem:[%s409 + $0x5c] sm:$0x4]
        %v435 = vsel %vm333, 0, %v434
        %436 = vst [vmem:[%s409 + $0x5c] sm:$0x4] %v435
        %v437 = vld [vmem:[%s409 + $0x60] sm:$0x4]
        %v438 = vsel %vm333, 0, %v437
        %439 = vst [vmem:[%s409 + $0x60] sm:$0x4] %v438
        %v440 = vld [vmem:[%s280] sm:$0x3]
        %v441 = vld [vmem:[%s280 + $0x4] sm:$0x3]
        %v442 = vld [vmem:[%s280 + $0x8] sm:$0x3]
        %v443 = vld [vmem:[%s280 + $0xc] sm:$0x3]
        %v444 = vld [vmem:[%s280 + $0x140] sm:$0x3]
        %v445 = vld [vmem:[%s280 + $0x144] sm:$0x3]
        %v446 = vld [vmem:[%s280 + $0x148] sm:$0x3]
        %v447 = vld [vmem:[%s280 + $0x14c] sm:$0x3]
        %v448 = vld [vmem:[%s1] sm:$0xf]
        %v449 = vld [vmem:[%s1 + $0x4] sm:$0xf]
        %v450 = vld [vmem:[%s1 + $0x8] sm:$0xf]
        %v451 = vld [vmem:[%s1 + $0xc] sm:$0xf]
        %s452 = scalar_lea.vmem %s280, 20
        %v453 = vld [vmem:[%s452] sm:$0x3]
        %v454 = vld [vmem:[%s452 + $0x4] sm:$0x3]
        %v455 = vld [vmem:[%s452 + $0x8] sm:$0x3]
        %v456 = vld [vmem:[%s452 + $0xc] sm:$0x3]
        %v457 = vld [vmem:[%s452 + $0x140] sm:$0x3]
        %v458 = vld [vmem:[%s452 + $0x144] sm:$0x3]
        %v459 = vld [vmem:[%s452 + $0x148] sm:$0x3]
        %v460 = vld [vmem:[%s452 + $0x14c] sm:$0x3]
        %s461 = scalar_lea.vmem %s1, 16
        %v462 = vld [vmem:[%s461] sm:$0xf]
        %v463 = vld [vmem:[%s461 + $0x4] sm:$0xf]
        %v464 = vld [vmem:[%s461 + $0x8] sm:$0xf]
        %v465 = vld [vmem:[%s461 + $0xc] sm:$0xf]
        %467 = vst [vmem:[#allocation1] ss:$4 sm:$0xff] %v453
        %s469 = scalar_lea.vmem [#allocation1], 1
        %470 = vst [vmem:[%s469] ss:$4 sm:$0xff] %v454
        %s472 = scalar_lea.vmem [#allocation1], 2
        %473 = vst [vmem:[%s472] ss:$4 sm:$0xff] %v455
        %s475 = scalar_lea.vmem [#allocation1], 3
        %476 = vst [vmem:[%s475] ss:$4 sm:$0xff] %v456
        %s478 = scalar_lea.vmem [#allocation1], 32
        %479 = vst [vmem:[%s478] ss:$4 sm:$0xff] %v457
        %s481 = scalar_lea.vmem [#allocation1], 33
        %482 = vst [vmem:[%s481] ss:$4 sm:$0xff] %v458
        %s484 = scalar_lea.vmem [#allocation1], 34
        %485 = vst [vmem:[%s484] ss:$4 sm:$0xff] %v459
        %s487 = scalar_lea.vmem [#allocation1], 35
        %488 = vst [vmem:[%s487] ss:$4 sm:$0xff] %v460
        %v489 = vld.sshfl [vmem:[#allocation1] sm:$0xff pattern:$0x73625140]
        %v490 = vld.sshfl [vmem:[#allocation1 + $0x20] sm:$0xff pattern:$0x73625140]
        %v495 = vunpack.c.l.b16 %v462
        %v496 = vunpack.c.l.b16 %v463
        %v497 = vunpack.c.l.b16 %v464
        %v498 = vunpack.c.l.b16 %v465
        %v499 = vpack.c.b16 %v496, %v495
        %v500 = vpack.c.b16 %v498, %v497
        %vm503 = vcmask 261120
        %v504 = vsel %vm503, %v489, 0
        %v506 = vsel %vm503, %v490, 0
        %508 = vmatpush.bf16.msra.mxu0 0
        %509 = vmatpush.bf16.msra.mxu0 0
        %510 = vmatpush.bf16.msra.mxu0 0
        %511 = vmatpush.bf16.msra.mxu0 0
        %512 = vmatpush.bf16.msra.mxu0 0
        %513 = vmatpush.bf16.msra.mxu0 0
        %514 = vmatpush.bf16.msra.mxu0 %v500
        %515 = vmatpush.bf16.msra.mxu0 %v499
        %516 = vmatmul.bf16.gmra.mxu0 %v504
        %v517 = vpop.f32.mrf.mxu0
        %v518 = vadd.f32 0.0, %v517
        %v519 = vpop.f32.mrf.mxu0
        %v520 = vadd.f32 0.0, %v519
        %521 = vmatmul.bf16.gmra.mxu0 %v506
        %v522 = vpop.f32.mrf.mxu0
        %v523 = vadd.f32 0.0, %v522
        %v524 = vpop.f32.mrf.mxu0
        %v525 = vadd.f32 0.0, %v524
        %526 = vdwg.mxu0
        %528 = vst [vmem:[#allocation1] ss:$4 sm:$0xff] %v440
        %s530 = scalar_lea.vmem [#allocation1], 1
        %531 = vst [vmem:[%s530] ss:$4 sm:$0xff] %v441
        %s533 = scalar_lea.vmem [#allocation1], 2
        %534 = vst [vmem:[%s533] ss:$4 sm:$0xff] %v442
        %s536 = scalar_lea.vmem [#allocation1], 3
        %537 = vst [vmem:[%s536] ss:$4 sm:$0xff] %v443
        %s539 = scalar_lea.vmem [#allocation1], 32
        %540 = vst [vmem:[%s539] ss:$4 sm:$0xff] %v444
        %s542 = scalar_lea.vmem [#allocation1], 33
        %543 = vst [vmem:[%s542] ss:$4 sm:$0xff] %v445
        %s545 = scalar_lea.vmem [#allocation1], 34
        %546 = vst [vmem:[%s545] ss:$4 sm:$0xff] %v446
        %s548 = scalar_lea.vmem [#allocation1], 35
        %549 = vst [vmem:[%s548] ss:$4 sm:$0xff] %v447
        %v550 = vld.sshfl [vmem:[#allocation1] sm:$0xff pattern:$0x73625140]
        %v551 = vld.sshfl [vmem:[#allocation1 + $0x20] sm:$0xff pattern:$0x73625140]
        %v556 = vunpack.c.l.b16 %v448
        %v557 = vunpack.c.l.b16 %v449
        %v558 = vunpack.c.l.b16 %v450
        %v559 = vunpack.c.l.b16 %v451
        %v560 = vpack.c.b16 %v557, %v556
        %v561 = vpack.c.b16 %v559, %v558
        %v564 = vsel %vm503, %v550, 0
        %v566 = vsel %vm503, %v551, 0
        %568 = vmatpush.bf16.msra.mxu0 0
        %569 = vmatpush.bf16.msra.mxu0 0
        %570 = vmatpush.bf16.msra.mxu0 0
        %571 = vmatpush.bf16.msra.mxu0 0
        %572 = vmatpush.bf16.msra.mxu0 0
        %573 = vmatpush.bf16.msra.mxu0 0
        %574 = vmatpush.bf16.msra.mxu0 %v561
        %575 = vmatpush.bf16.msra.mxu0 %v560
        %576 = vmatmul.bf16.gmra.mxu0 %v564
        %v577 = vpop.f32.mrf.mxu0
        %v578 = vadd.f32 %v518, %v577
        %v579 = vpop.f32.mrf.mxu0
        %v580 = vadd.f32 %v520, %v579
        %581 = vmatmul.bf16.gmra.mxu0 %v566
        %v582 = vpop.f32.mrf.mxu0
        %v583 = vadd.f32 %v523, %v582
        %v584 = vpop.f32.mrf.mxu0
        %v585 = vadd.f32 %v525, %v584
        %586 = vdwg.mxu0
        %s587 = scalar_lea.vmem %s280, 40
        %v588 = vld [vmem:[%s587] sm:$0x3]
        %v589 = vld [vmem:[%s587 + $0x4] sm:$0x3]
        %v590 = vld [vmem:[%s587 + $0x8] sm:$0x3]
        %v591 = vld [vmem:[%s587 + $0xc] sm:$0x3]
        %v592 = vld [vmem:[%s587 + $0x140] sm:$0x3]
        %v593 = vld [vmem:[%s587 + $0x144] sm:$0x3]
        %v594 = vld [vmem:[%s587 + $0x148] sm:$0x3]
        %v595 = vld [vmem:[%s587 + $0x14c] sm:$0x3]
        %s596 = scalar_lea.vmem %s1, 32
        %v597 = vld [vmem:[%s596] sm:$0xf]
        %v598 = vld [vmem:[%s596 + $0x4] sm:$0xf]
        %v599 = vld [vmem:[%s596 + $0x8] sm:$0xf]
        %v600 = vld [vmem:[%s596 + $0xc] sm:$0xf]
        %602 = vst [vmem:[#allocation1] ss:$4 sm:$0xff] %v588
        %s604 = scalar_lea.vmem [#allocation1], 1
        %605 = vst [vmem:[%s604] ss:$4 sm:$0xff] %v589
        %s607 = scalar_lea.vmem [#allocation1], 2
        %608 = vst [vmem:[%s607] ss:$4 sm:$0xff] %v590
        %s610 = scalar_lea.vmem [#allocation1], 3
        %611 = vst [vmem:[%s610] ss:$4 sm:$0xff] %v591
        %s613 = scalar_lea.vmem [#allocation1], 32
        %614 = vst [vmem:[%s613] ss:$4 sm:$0xff] %v592
        %s616 = scalar_lea.vmem [#allocation1], 33
        %617 = vst [vmem:[%s616] ss:$4 sm:$0xff] %v593
        %s619 = scalar_lea.vmem [#allocation1], 34
        %620 = vst [vmem:[%s619] ss:$4 sm:$0xff] %v594
        %s622 = scalar_lea.vmem [#allocation1], 35
        %623 = vst [vmem:[%s622] ss:$4 sm:$0xff] %v595
        %v624 = vld.sshfl [vmem:[#allocation1] sm:$0xff pattern:$0x73625140]
        %v625 = vld.sshfl [vmem:[#allocation1 + $0x20] sm:$0xff pattern:$0x73625140]
        %v630 = vunpack.c.l.b16 %v597
        %v631 = vunpack.c.l.b16 %v598
        %v632 = vunpack.c.l.b16 %v599
        %v633 = vunpack.c.l.b16 %v600
        %v634 = vpack.c.b16 %v631, %v630
        %v635 = vpack.c.b16 %v633, %v632
        %v638 = vsel %vm503, %v624, 0
        %v640 = vsel %vm503, %v625, 0
        %642 = vmatpush.bf16.msra.mxu0 0
        %643 = vmatpush.bf16.msra.mxu0 0
        %644 = vmatpush.bf16.msra.mxu0 0
        %645 = vmatpush.bf16.msra.mxu0 0
        %646 = vmatpush.bf16.msra.mxu0 0
        %647 = vmatpush.bf16.msra.mxu0 0
        %648 = vmatpush.bf16.msra.mxu0 %v635
        %649 = vmatpush.bf16.msra.mxu0 %v634
        %650 = vmatmul.bf16.gmra.mxu0 %v638
        %v651 = vpop.f32.mrf.mxu0
        %v652 = vadd.f32 0.0, %v651
        %v653 = vpop.f32.mrf.mxu0
        %v654 = vadd.f32 0.0, %v653
        %655 = vmatmul.bf16.gmra.mxu0 %v640
        %v656 = vpop.f32.mrf.mxu0
        %v657 = vadd.f32 0.0, %v656
        %v658 = vpop.f32.mrf.mxu0
        %v659 = vadd.f32 0.0, %v658
        %660 = vdwg.mxu0
        %v661 = vadd.f32 %v578, %v652
        %v662 = vadd.f32 %v580, %v654
        %v663 = vadd.f32 %v583, %v657
        %v664 = vadd.f32 %v585, %v659
        %s665 = scalar_lea.vmem %s280, 80
        %v666 = vld [vmem:[%s665] sm:$0x3]
        %v667 = vld [vmem:[%s665 + $0x4] sm:$0x3]
        %v668 = vld [vmem:[%s665 + $0x8] sm:$0x3]
        %v669 = vld [vmem:[%s665 + $0xc] sm:$0x3]
        %v670 = vld [vmem:[%s665 + $0x140] sm:$0x3]
        %v671 = vld [vmem:[%s665 + $0x144] sm:$0x3]
        %v672 = vld [vmem:[%s665 + $0x148] sm:$0x3]
        %v673 = vld [vmem:[%s665 + $0x14c] sm:$0x3]
        %s674 = scalar_lea.vmem %s1, 48
        %v675 = vld [vmem:[%s674] sm:$0xf]
        %v676 = vld [vmem:[%s674 + $0x4] sm:$0xf]
        %v677 = vld [vmem:[%s674 + $0x8] sm:$0xf]
        %v678 = vld [vmem:[%s674 + $0xc] sm:$0xf]
        %680 = vst [vmem:[#allocation1] ss:$4 sm:$0xff] %v666
        %s682 = scalar_lea.vmem [#allocation1], 1
        %683 = vst [vmem:[%s682] ss:$4 sm:$0xff] %v667
        %s685 = scalar_lea.vmem [#allocation1], 2
        %686 = vst [vmem:[%s685] ss:$4 sm:$0xff] %v668
        %s688 = scalar_lea.vmem [#allocation1], 3
        %689 = vst [vmem:[%s688] ss:$4 sm:$0xff] %v669
        %s691 = scalar_lea.vmem [#allocation1], 32
        %692 = vst [vmem:[%s691] ss:$4 sm:$0xff] %v670
        %s694 = scalar_lea.vmem [#allocation1], 33
        %695 = vst [vmem:[%s694] ss:$4 sm:$0xff] %v671
        %s697 = scalar_lea.vmem [#allocation1], 34
        %698 = vst [vmem:[%s697] ss:$4 sm:$0xff] %v672
        %s700 = scalar_lea.vmem [#allocation1], 35
        %701 = vst [vmem:[%s700] ss:$4 sm:$0xff] %v673
        %v702 = vld.sshfl [vmem:[#allocation1] sm:$0xff pattern:$0x73625140]
        %v703 = vld.sshfl [vmem:[#allocation1 + $0x20] sm:$0xff pattern:$0x73625140]
        %v708 = vunpack.c.l.b16 %v675
        %v709 = vunpack.c.l.b16 %v676
        %v710 = vunpack.c.l.b16 %v677
        %v711 = vunpack.c.l.b16 %v678
        %v712 = vpack.c.b16 %v709, %v708
        %v713 = vpack.c.b16 %v711, %v710
        %v716 = vsel %vm503, %v702, 0
        %v718 = vsel %vm503, %v703, 0
        %720 = vmatpush.bf16.msra.mxu0 0
        %721 = vmatpush.bf16.msra.mxu0 0
        %722 = vmatpush.bf16.msra.mxu0 0
        %723 = vmatpush.bf16.msra.mxu0 0
        %724 = vmatpush.bf16.msra.mxu0 0
        %725 = vmatpush.bf16.msra.mxu0 0
        %726 = vmatpush.bf16.msra.mxu0 %v713
        %727 = vmatpush.bf16.msra.mxu0 %v712
        %728 = vmatmul.bf16.gmra.mxu0 %v716
        %v729 = vpop.f32.mrf.mxu0
        %v730 = vadd.f32 0.0, %v729
        %v731 = vpop.f32.mrf.mxu0
        %v732 = vadd.f32 0.0, %v731
        %733 = vmatmul.bf16.gmra.mxu0 %v718
        %v734 = vpop.f32.mrf.mxu0
        %v735 = vadd.f32 0.0, %v734
        %v736 = vpop.f32.mrf.mxu0
        %v737 = vadd.f32 0.0, %v736
        %738 = vdwg.mxu0
        %v739 = vadd.f32 %v661, %v730
        %v740 = vadd.f32 %v662, %v732
        %v741 = vadd.f32 %v663, %v735
        %v742 = vadd.f32 %v664, %v737
        %s743 = scalar_lea.vmem %s280, 100
        %v744 = vld [vmem:[%s743] sm:$0x3]
        %v745 = vld [vmem:[%s743 + $0x4] sm:$0x3]
        %v746 = vld [vmem:[%s743 + $0x8] sm:$0x3]
        %v747 = vld [vmem:[%s743 + $0xc] sm:$0x3]
        %v748 = vld [vmem:[%s743 + $0x140] sm:$0x3]
        %v749 = vld [vmem:[%s743 + $0x144] sm:$0x3]
        %v750 = vld [vmem:[%s743 + $0x148] sm:$0x3]
        %v751 = vld [vmem:[%s743 + $0x14c] sm:$0x3]
        %s752 = scalar_lea.vmem %s1, 64
        %v753 = vld [vmem:[%s752] sm:$0xf]
        %v754 = vld [vmem:[%s752 + $0x4] sm:$0xf]
        %v755 = vld [vmem:[%s752 + $0x8] sm:$0xf]
        %v756 = vld [vmem:[%s752 + $0xc] sm:$0xf]
        %758 = vst [vmem:[#allocation1] ss:$4 sm:$0xff] %v744
        %s760 = scalar_lea.vmem [#allocation1], 1
        %761 = vst [vmem:[%s760] ss:$4 sm:$0xff] %v745
        %s763 = scalar_lea.vmem [#allocation1], 2
        %764 = vst [vmem:[%s763] ss:$4 sm:$0xff] %v746
        %s766 = scalar_lea.vmem [#allocation1], 3
        %767 = vst [vmem:[%s766] ss:$4 sm:$0xff] %v747
        %s769 = scalar_lea.vmem [#allocation1], 32
        %770 = vst [vmem:[%s769] ss:$4 sm:$0xff] %v748
        %s772 = scalar_lea.vmem [#allocation1], 33
        %773 = vst [vmem:[%s772] ss:$4 sm:$0xff] %v749
        %s775 = scalar_lea.vmem [#allocation1], 34
        %776 = vst [vmem:[%s775] ss:$4 sm:$0xff] %v750
        %s778 = scalar_lea.vmem [#allocation1], 35
        %779 = vst [vmem:[%s778] ss:$4 sm:$0xff] %v751
        %v780 = vld.sshfl [vmem:[#allocation1] sm:$0xff pattern:$0x73625140]
        %v781 = vld.sshfl [vmem:[#allocation1 + $0x20] sm:$0xff pattern:$0x73625140]
        %v786 = vunpack.c.l.b16 %v753
        %v787 = vunpack.c.l.b16 %v754
        %v788 = vunpack.c.l.b16 %v755
        %v789 = vunpack.c.l.b16 %v756
        %v790 = vpack.c.b16 %v787, %v786
        %v791 = vpack.c.b16 %v789, %v788
        %v794 = vsel %vm503, %v780, 0
        %v796 = vsel %vm503, %v781, 0
        %798 = vmatpush.bf16.msra.mxu0 0
        %799 = vmatpush.bf16.msra.mxu0 0
        %800 = vmatpush.bf16.msra.mxu0 0
        %801 = vmatpush.bf16.msra.mxu0 0
        %802 = vmatpush.bf16.msra.mxu0 0
        %803 = vmatpush.bf16.msra.mxu0 0
        %804 = vmatpush.bf16.msra.mxu0 %v791
        %805 = vmatpush.bf16.msra.mxu0 %v790
        %806 = vmatmul.bf16.gmra.mxu0 %v794
        %v807 = vpop.f32.mrf.mxu0
        %v808 = vadd.f32 0.0, %v807
        %v809 = vpop.f32.mrf.mxu0
        %v810 = vadd.f32 0.0, %v809
        %811 = vmatmul.bf16.gmra.mxu0 %v796
        %v812 = vpop.f32.mrf.mxu0
        %v813 = vadd.f32 0.0, %v812
        %v814 = vpop.f32.mrf.mxu0
        %v815 = vadd.f32 0.0, %v814
        %816 = vdwg.mxu0
        %v817 = vadd.f32 %v739, %v808
        %v818 = vadd.f32 %v740, %v810
        %v819 = vadd.f32 %v741, %v813
        %v820 = vadd.f32 %v742, %v815
        %s821 = scalar_lea.vmem %s280, 120
        %v822 = vld [vmem:[%s821] sm:$0x3]
        %v823 = vld [vmem:[%s821 + $0x4] sm:$0x3]
        %v824 = vld [vmem:[%s821 + $0x8] sm:$0x3]
        %v825 = vld [vmem:[%s821 + $0xc] sm:$0x3]
        %v826 = vld [vmem:[%s821 + $0x140] sm:$0x3]
        %v827 = vld [vmem:[%s821 + $0x144] sm:$0x3]
        %v828 = vld [vmem:[%s821 + $0x148] sm:$0x3]
        %v829 = vld [vmem:[%s821 + $0x14c] sm:$0x3]
        %s830 = scalar_lea.vmem %s1, 80
        %v831 = vld [vmem:[%s830] sm:$0xf]
        %v832 = vld [vmem:[%s830 + $0x4] sm:$0xf]
        %v833 = vld [vmem:[%s830 + $0x8] sm:$0xf]
        %v834 = vld [vmem:[%s830 + $0xc] sm:$0xf]
        %836 = vst [vmem:[#allocation1] ss:$4 sm:$0xff] %v822
        %s838 = scalar_lea.vmem [#allocation1], 1
        %839 = vst [vmem:[%s838] ss:$4 sm:$0xff] %v823
        %s841 = scalar_lea.vmem [#allocation1], 2
        %842 = vst [vmem:[%s841] ss:$4 sm:$0xff] %v824
        %s844 = scalar_lea.vmem [#allocation1], 3
        %845 = vst [vmem:[%s844] ss:$4 sm:$0xff] %v825
        %s847 = scalar_lea.vmem [#allocation1], 32
        %848 = vst [vmem:[%s847] ss:$4 sm:$0xff] %v826
        %s850 = scalar_lea.vmem [#allocation1], 33
        %851 = vst [vmem:[%s850] ss:$4 sm:$0xff] %v827
        %s853 = scalar_lea.vmem [#allocation1], 34
        %854 = vst [vmem:[%s853] ss:$4 sm:$0xff] %v828
        %s856 = scalar_lea.vmem [#allocation1], 35
        %857 = vst [vmem:[%s856] ss:$4 sm:$0xff] %v829
        %v858 = vld.sshfl [vmem:[#allocation1] sm:$0xff pattern:$0x73625140]
        %v859 = vld.sshfl [vmem:[#allocation1 + $0x20] sm:$0xff pattern:$0x73625140]
        %v864 = vunpack.c.l.b16 %v831
        %v865 = vunpack.c.l.b16 %v832
        %v866 = vunpack.c.l.b16 %v833
        %v867 = vunpack.c.l.b16 %v834
        %v868 = vpack.c.b16 %v865, %v864
        %v869 = vpack.c.b16 %v867, %v866
        %v872 = vsel %vm503, %v858, 0
        %v874 = vsel %vm503, %v859, 0
        %876 = vmatpush.bf16.msra.mxu0 0
        %877 = vmatpush.bf16.msra.mxu0 0
        %878 = vmatpush.bf16.msra.mxu0 0
        %879 = vmatpush.bf16.msra.mxu0 0
        %880 = vmatpush.bf16.msra.mxu0 0
        %881 = vmatpush.bf16.msra.mxu0 0
        %882 = vmatpush.bf16.msra.mxu0 %v869
        %883 = vmatpush.bf16.msra.mxu0 %v868
        %884 = vmatmul.bf16.gmra.mxu0 %v872
        %v885 = vpop.f32.mrf.mxu0
        %v886 = vadd.f32 0.0, %v885
        %v887 = vpop.f32.mrf.mxu0
        %v888 = vadd.f32 0.0, %v887
        %889 = vmatmul.bf16.gmra.mxu0 %v874
        %v890 = vpop.f32.mrf.mxu0
        %v891 = vadd.f32 0.0, %v890
        %v892 = vpop.f32.mrf.mxu0
        %v893 = vadd.f32 0.0, %v892
        %894 = vdwg.mxu0
        %v895 = vadd.f32 %v817, %v886
        %v896 = vadd.f32 %v818, %v888
        %v897 = vadd.f32 %v819, %v891
        %v898 = vadd.f32 %v820, %v893
        %s899 = scalar_lea.vmem %s280, 160
        %v900 = vld [vmem:[%s899] sm:$0x3]
        %v901 = vld [vmem:[%s899 + $0x4] sm:$0x3]
        %v902 = vld [vmem:[%s899 + $0x8] sm:$0x3]
        %v903 = vld [vmem:[%s899 + $0xc] sm:$0x3]
        %v904 = vld [vmem:[%s899 + $0x140] sm:$0x3]
        %v905 = vld [vmem:[%s899 + $0x144] sm:$0x3]
        %v906 = vld [vmem:[%s899 + $0x148] sm:$0x3]
        %v907 = vld [vmem:[%s899 + $0x14c] sm:$0x3]
        %s908 = scalar_lea.vmem %s1, 96
        %v909 = vld [vmem:[%s908] sm:$0xf]
        %v910 = vld [vmem:[%s908 + $0x4] sm:$0xf]
        %v911 = vld [vmem:[%s908 + $0x8] sm:$0xf]
        %v912 = vld [vmem:[%s908 + $0xc] sm:$0xf]
        %914 = vst [vmem:[#allocation1] ss:$4 sm:$0xff] %v900
        %s916 = scalar_lea.vmem [#allocation1], 1
        %917 = vst [vmem:[%s916] ss:$4 sm:$0xff] %v901
        %s919 = scalar_lea.vmem [#allocation1], 2
        %920 = vst [vmem:[%s919] ss:$4 sm:$0xff] %v902
        %s922 = scalar_lea.vmem [#allocation1], 3
        %923 = vst [vmem:[%s922] ss:$4 sm:$0xff] %v903
        %s925 = scalar_lea.vmem [#allocation1], 32
        %926 = vst [vmem:[%s925] ss:$4 sm:$0xff] %v904
        %s928 = scalar_lea.vmem [#allocation1], 33
        %929 = vst [vmem:[%s928] ss:$4 sm:$0xff] %v905
        %s931 = scalar_lea.vmem [#allocation1], 34
        %932 = vst [vmem:[%s931] ss:$4 sm:$0xff] %v906
        %s934 = scalar_lea.vmem [#allocation1], 35
        %935 = vst [vmem:[%s934] ss:$4 sm:$0xff] %v907
        %v936 = vld.sshfl [vmem:[#allocation1] sm:$0xff pattern:$0x73625140]
        %v937 = vld.sshfl [vmem:[#allocation1 + $0x20] sm:$0xff pattern:$0x73625140]
        %v942 = vunpack.c.l.b16 %v909
        %v943 = vunpack.c.l.b16 %v910
        %v944 = vunpack.c.l.b16 %v911
        %v945 = vunpack.c.l.b16 %v912
        %v946 = vpack.c.b16 %v943, %v942
        %v947 = vpack.c.b16 %v945, %v944
        %v950 = vsel %vm503, %v936, 0
        %v952 = vsel %vm503, %v937, 0
        %954 = vmatpush.bf16.msra.mxu0 0
        %955 = vmatpush.bf16.msra.mxu0 0
        %956 = vmatpush.bf16.msra.mxu0 0
        %957 = vmatpush.bf16.msra.mxu0 0
        %958 = vmatpush.bf16.msra.mxu0 0
        %959 = vmatpush.bf16.msra.mxu0 0
        %960 = vmatpush.bf16.msra.mxu0 %v947
        %961 = vmatpush.bf16.msra.mxu0 %v946
        %962 = vmatmul.bf16.gmra.mxu0 %v950
        %v963 = vpop.f32.mrf.mxu0
        %v964 = vadd.f32 0.0, %v963
        %v965 = vpop.f32.mrf.mxu0
        %v966 = vadd.f32 0.0, %v965
        %967 = vmatmul.bf16.gmra.mxu0 %v952
        %v968 = vpop.f32.mrf.mxu0
        %v969 = vadd.f32 0.0, %v968
        %v970 = vpop.f32.mrf.mxu0
        %v971 = vadd.f32 0.0, %v970
        %972 = vdwg.mxu0
        %v973 = vadd.f32 %v895, %v964
        %v974 = vadd.f32 %v896, %v966
        %v975 = vadd.f32 %v897, %v969
        %v976 = vadd.f32 %v898, %v971
        %s977 = scalar_lea.vmem %s280, 180
        %v978 = vld [vmem:[%s977] sm:$0x3]
        %v979 = vld [vmem:[%s977 + $0x4] sm:$0x3]
        %v980 = vld [vmem:[%s977 + $0x8] sm:$0x3]
        %v981 = vld [vmem:[%s977 + $0xc] sm:$0x3]
        %v982 = vld [vmem:[%s977 + $0x140] sm:$0x3]
        %v983 = vld [vmem:[%s977 + $0x144] sm:$0x3]
        %v984 = vld [vmem:[%s977 + $0x148] sm:$0x3]
        %v985 = vld [vmem:[%s977 + $0x14c] sm:$0x3]
        %s986 = scalar_lea.vmem %s1, 112
        %v987 = vld [vmem:[%s986] sm:$0xf]
        %v988 = vld [vmem:[%s986 + $0x4] sm:$0xf]
        %v989 = vld [vmem:[%s986 + $0x8] sm:$0xf]
        %v990 = vld [vmem:[%s986 + $0xc] sm:$0xf]
        %992 = vst [vmem:[#allocation1] ss:$4 sm:$0xff] %v978
        %s994 = scalar_lea.vmem [#allocation1], 1
        %995 = vst [vmem:[%s994] ss:$4 sm:$0xff] %v979
        %s997 = scalar_lea.vmem [#allocation1], 2
        %998 = vst [vmem:[%s997] ss:$4 sm:$0xff] %v980
        %s1000 = scalar_lea.vmem [#allocation1], 3
        %1001 = vst [vmem:[%s1000] ss:$4 sm:$0xff] %v981
        %s1003 = scalar_lea.vmem [#allocation1], 32
        %1004 = vst [vmem:[%s1003] ss:$4 sm:$0xff] %v982
        %s1006 = scalar_lea.vmem [#allocation1], 33
        %1007 = vst [vmem:[%s1006] ss:$4 sm:$0xff] %v983
        %s1009 = scalar_lea.vmem [#allocation1], 34
        %1010 = vst [vmem:[%s1009] ss:$4 sm:$0xff] %v984
        %s1012 = scalar_lea.vmem [#allocation1], 35
        %1013 = vst [vmem:[%s1012] ss:$4 sm:$0xff] %v985
        %v1014 = vld.sshfl [vmem:[#allocation1] sm:$0xff pattern:$0x73625140]
        %v1015 = vld.sshfl [vmem:[#allocation1 + $0x20] sm:$0xff pattern:$0x73625140]
        %v1020 = vunpack.c.l.b16 %v987
        %v1021 = vunpack.c.l.b16 %v988
        %v1022 = vunpack.c.l.b16 %v989
        %v1023 = vunpack.c.l.b16 %v990
        %v1024 = vpack.c.b16 %v1021, %v1020
        %v1025 = vpack.c.b16 %v1023, %v1022
        %v1028 = vsel %vm503, %v1014, 0
        %v1030 = vsel %vm503, %v1015, 0
        %1032 = vmatpush.bf16.msra.mxu0 0
        %1033 = vmatpush.bf16.msra.mxu0 0
        %1034 = vmatpush.bf16.msra.mxu0 0
        %1035 = vmatpush.bf16.msra.mxu0 0
        %1036 = vmatpush.bf16.msra.mxu0 0
        %1037 = vmatpush.bf16.msra.mxu0 0
        %1038 = vmatpush.bf16.msra.mxu0 %v1025
        %1039 = vmatpush.bf16.msra.mxu0 %v1024
        %1040 = vmatmul.bf16.gmra.mxu0 %v1028
        %v1041 = vpop.f32.mrf.mxu0
        %v1042 = vadd.f32 0.0, %v1041
        %v1043 = vpop.f32.mrf.mxu0
        %v1044 = vadd.f32 0.0, %v1043
        %1045 = vmatmul.bf16.gmra.mxu0 %v1030
        %v1046 = vpop.f32.mrf.mxu0
        %v1047 = vadd.f32 0.0, %v1046
        %v1048 = vpop.f32.mrf.mxu0
        %v1049 = vadd.f32 0.0, %v1048
        %1050 = vdwg.mxu0
        %v1051 = vadd.f32 %v973, %v1042
        %v1052 = vadd.f32 %v974, %v1044
        %v1053 = vadd.f32 %v975, %v1047
        %v1054 = vadd.f32 %v976, %v1049
        %s1055 = scalar_lea.vmem %s280, 200
        %v1056 = vld [vmem:[%s1055] sm:$0x3]
        %v1057 = vld [vmem:[%s1055 + $0x4] sm:$0x3]
        %v1058 = vld [vmem:[%s1055 + $0x8] sm:$0x3]
        %v1059 = vld [vmem:[%s1055 + $0xc] sm:$0x3]
        %v1060 = vld [vmem:[%s1055 + $0x140] sm:$0x3]
        %v1061 = vld [vmem:[%s1055 + $0x144] sm:$0x3]
        %v1062 = vld [vmem:[%s1055 + $0x148] sm:$0x3]
        %v1063 = vld [vmem:[%s1055 + $0x14c] sm:$0x3]
        %s1064 = scalar_lea.vmem %s1, 128
        %v1065 = vld [vmem:[%s1064] sm:$0xf]
        %v1066 = vld [vmem:[%s1064 + $0x4] sm:$0xf]
        %v1067 = vld [vmem:[%s1064 + $0x8] sm:$0xf]
        %v1068 = vld [vmem:[%s1064 + $0xc] sm:$0xf]
        %1070 = vst [vmem:[#allocation1] ss:$4 sm:$0xff] %v1056
        %s1072 = scalar_lea.vmem [#allocation1], 1
        %1073 = vst [vmem:[%s1072] ss:$4 sm:$0xff] %v1057
        %s1075 = scalar_lea.vmem [#allocation1], 2
        %1076 = vst [vmem:[%s1075] ss:$4 sm:$0xff] %v1058
        %s1078 = scalar_lea.vmem [#allocation1], 3
        %1079 = vst [vmem:[%s1078] ss:$4 sm:$0xff] %v1059
        %s1081 = scalar_lea.vmem [#allocation1], 32
        %1082 = vst [vmem:[%s1081] ss:$4 sm:$0xff] %v1060
        %s1084 = scalar_lea.vmem [#allocation1], 33
        %1085 = vst [vmem:[%s1084] ss:$4 sm:$0xff] %v1061
        %s1087 = scalar_lea.vmem [#allocation1], 34
        %1088 = vst [vmem:[%s1087] ss:$4 sm:$0xff] %v1062
        %s1090 = scalar_lea.vmem [#allocation1], 35
        %1091 = vst [vmem:[%s1090] ss:$4 sm:$0xff] %v1063
        %v1092 = vld.sshfl [vmem:[#allocation1] sm:$0xff pattern:$0x73625140]
        %v1093 = vld.sshfl [vmem:[#allocation1 + $0x20] sm:$0xff pattern:$0x73625140]
        %v1098 = vunpack.c.l.b16 %v1065
        %v1099 = vunpack.c.l.b16 %v1066
        %v1100 = vunpack.c.l.b16 %v1067
        %v1101 = vunpack.c.l.b16 %v1068
        %v1102 = vpack.c.b16 %v1099, %v1098
        %v1103 = vpack.c.b16 %v1101, %v1100
        %v1106 = vsel %vm503, %v1092, 0
        %v1108 = vsel %vm503, %v1093, 0
        %1110 = vmatpush.bf16.msra.mxu0 0
        %1111 = vmatpush.bf16.msra.mxu0 0
        %1112 = vmatpush.bf16.msra.mxu0 0
        %1113 = vmatpush.bf16.msra.mxu0 0
        %1114 = vmatpush.bf16.msra.mxu0 0
        %1115 = vmatpush.bf16.msra.mxu0 0
        %1116 = vmatpush.bf16.msra.mxu0 %v1103
        %1117 = vmatpush.bf16.msra.mxu0 %v1102
        %1118 = vmatmul.bf16.gmra.mxu0 %v1106
        %v1119 = vpop.f32.mrf.mxu0
        %v1120 = vadd.f32 0.0, %v1119
        %v1121 = vpop.f32.mrf.mxu0
        %v1122 = vadd.f32 0.0, %v1121
        %1123 = vmatmul.bf16.gmra.mxu0 %v1108
        %v1124 = vpop.f32.mrf.mxu0
        %v1125 = vadd.f32 0.0, %v1124
        %v1126 = vpop.f32.mrf.mxu0
        %v1127 = vadd.f32 0.0, %v1126
        %1128 = vdwg.mxu0
        %v1129 = vadd.f32 %v1051, %v1120
        %v1130 = vadd.f32 %v1052, %v1122
        %v1131 = vadd.f32 %v1053, %v1125
        %v1132 = vadd.f32 %v1054, %v1127
        %v1133 = vld [vmem:[%s2] sm:$0x1]
        %v1135 = vperm.slane %v1133, 0
        %v1137 = vadd.f32 %v1129, %v1135
        %v1138 = vadd.f32 %v1130, %v1135
        %v1139 = vadd.f32 %v1131, %v1135
        %v1140 = vadd.f32 %v1132, %v1135
        %v1141 = vmax.f32 %v1137, 0.0
        %v1142 = vmax.f32 %v1138, 0.0
        %v1143 = vmax.f32 %v1139, 0.0
        %v1144 = vmax.f32 %v1140, 0.0
        %v1145 = vpack.c.bf16 %v1141, %v1141
        %v1146 = vpack.c.bf16 %v1142, %v1142
        %v1147 = vpack.c.bf16 %v1143, %v1143
        %v1148 = vpack.c.bf16 %v1144, %v1144
        %v1153 = vrot.slane %v1145, 2
        %v1154 = vrot.slane %v1146, 2
        %v1155 = vrot.slane %v1147, 2
        %v1156 = vrot.slane %v1148, 2
        %vm1157 = vcmask 1041408
        %v1160 = vsel %vm1157, %v1145, %v1153
        %vm1161 = vcmask 1043458
        %v1162 = vsel %vm1161, %v1145, %v1153
        %v1164 = vrot.slane %v1162, 2
        %v1167 = vsel %vm1157, %v1146, %v1154
        %v1168 = vsel %vm1161, %v1146, %v1154
        %v1170 = vrot.slane %v1168, 2
        %v1173 = vsel %vm1157, %v1147, %v1155
        %v1174 = vsel %vm1161, %v1147, %v1155
        %v1176 = vrot.slane %v1174, 2
        %v1179 = vsel %vm1157, %v1148, %v1156
        %v1180 = vsel %vm1161, %v1148, %v1156
        %v1182 = vrot.slane %v1180, 2
        %1191 = vst [vmem:[%s409] sm:$0x3] %v1160
        %1192 = vst [vmem:[%s409 + $0x4] sm:$0x3] %v1164
        %1193 = vst [vmem:[%s409 + $0x8] sm:$0x3] %v1167
        %1194 = vst [vmem:[%s409 + $0xc] sm:$0x3] %v1170
        %1195 = vst [vmem:[%s409 + $0x50] sm:$0x3] %v1173
        %1196 = vst [vmem:[%s409 + $0x54] sm:$0x3] %v1176
        %1197 = vst [vmem:[%s409 + $0x58] sm:$0x3] %v1179
        %1198 = vst [vmem:[%s409 + $0x5c] sm:$0x3] %v1182
        %v1199 = vld [vmem:[%s587] sm:$0x3]
        %v1200 = vld [vmem:[%s587 + $0x4] sm:$0x3]
        %v1201 = vld [vmem:[%s587 + $0x8] sm:$0x3]
        %v1202 = vld [vmem:[%s587 + $0xc] sm:$0x3]
        %v1203 = vld [vmem:[%s587 + $0x140] sm:$0x3]
        %v1204 = vld [vmem:[%s587 + $0x144] sm:$0x3]
        %v1205 = vld [vmem:[%s587 + $0x148] sm:$0x3]
        %v1206 = vld [vmem:[%s587 + $0x14c] sm:$0x3]
        %v1207 = vld [vmem:[%s1] sm:$0xf]
        %v1208 = vld [vmem:[%s1 + $0x4] sm:$0xf]
        %v1209 = vld [vmem:[%s1 + $0x8] sm:$0xf]
        %v1210 = vld [vmem:[%s1 + $0xc] sm:$0xf]
        %s1211 = scalar_lea.vmem %s280, 60
        %v1212 = vld [vmem:[%s1211] sm:$0x3]
        %v1213 = vld [vmem:[%s1211 + $0x4] sm:$0x3]
        %v1214 = vld [vmem:[%s1211 + $0x8] sm:$0x3]
        %v1215 = vld [vmem:[%s1211 + $0xc] sm:$0x3]
        %v1216 = vld [vmem:[%s1211 + $0x140] sm:$0x3]
        %v1217 = vld [vmem:[%s1211 + $0x144] sm:$0x3]
        %v1218 = vld [vmem:[%s1211 + $0x148] sm:$0x3]
        %v1219 = vld [vmem:[%s1211 + $0x14c] sm:$0x3]
        %v1220 = vld [vmem:[%s461] sm:$0xf]
        %v1221 = vld [vmem:[%s461 + $0x4] sm:$0xf]
        %v1222 = vld [vmem:[%s461 + $0x8] sm:$0xf]
        %v1223 = vld [vmem:[%s461 + $0xc] sm:$0xf]
        %1225 = vst [vmem:[#allocation1] ss:$4 sm:$0xff] %v1212
        %s1227 = scalar_lea.vmem [#allocation1], 1
        %1228 = vst [vmem:[%s1227] ss:$4 sm:$0xff] %v1213
        %s1230 = scalar_lea.vmem [#allocation1], 2
        %1231 = vst [vmem:[%s1230] ss:$4 sm:$0xff] %v1214
        %s1233 = scalar_lea.vmem [#allocation1], 3
        %1234 = vst [vmem:[%s1233] ss:$4 sm:$0xff] %v1215
        %s1236 = scalar_lea.vmem [#allocation1], 32
        %1237 = vst [vmem:[%s1236] ss:$4 sm:$0xff] %v1216
        %s1239 = scalar_lea.vmem [#allocation1], 33
        %1240 = vst [vmem:[%s1239] ss:$4 sm:$0xff] %v1217
        %s1242 = scalar_lea.vmem [#allocation1], 34
        %1243 = vst [vmem:[%s1242] ss:$4 sm:$0xff] %v1218
        %s1245 = scalar_lea.vmem [#allocation1], 35
        %1246 = vst [vmem:[%s1245] ss:$4 sm:$0xff] %v1219
        %v1247 = vld.sshfl [vmem:[#allocation1] sm:$0xff pattern:$0x73625140]
        %v1248 = vld.sshfl [vmem:[#allocation1 + $0x20] sm:$0xff pattern:$0x73625140]
        %v1253 = vunpack.c.l.b16 %v1220
        %v1254 = vunpack.c.l.b16 %v1221
        %v1255 = vunpack.c.l.b16 %v1222
        %v1256 = vunpack.c.l.b16 %v1223
        %v1257 = vpack.c.b16 %v1254, %v1253
        %v1258 = vpack.c.b16 %v1256, %v1255
        %v1261 = vsel %vm503, %v1247, 0
        %v1263 = vsel %vm503, %v1248, 0
        %1265 = vmatpush.bf16.msra.mxu0 0
        %1266 = vmatpush.bf16.msra.mxu0 0
        %1267 = vmatpush.bf16.msra.mxu0 0
        %1268 = vmatpush.bf16.msra.mxu0 0
        %1269 = vmatpush.bf16.msra.mxu0 0
        %1270 = vmatpush.bf16.msra.mxu0 0
        %1271 = vmatpush.bf16.msra.mxu0 %v1258
        %1272 = vmatpush.bf16.msra.mxu0 %v1257
        %1273 = vmatmul.bf16.gmra.mxu0 %v1261
        %v1274 = vpop.f32.mrf.mxu0
        %v1275 = vadd.f32 0.0, %v1274
        %v1276 = vpop.f32.mrf.mxu0
        %v1277 = vadd.f32 0.0, %v1276
        %1278 = vmatmul.bf16.gmra.mxu0 %v1263
        %v1279 = vpop.f32.mrf.mxu0
        %v1280 = vadd.f32 0.0, %v1279
        %v1281 = vpop.f32.mrf.mxu0
        %v1282 = vadd.f32 0.0, %v1281
        %1283 = vdwg.mxu0
        %1285 = vst [vmem:[#allocation1] ss:$4 sm:$0xff] %v1199
        %s1287 = scalar_lea.vmem [#allocation1], 1
        %1288 = vst [vmem:[%s1287] ss:$4 sm:$0xff] %v1200
        %s1290 = scalar_lea.vmem [#allocation1], 2
        %1291 = vst [vmem:[%s1290] ss:$4 sm:$0xff] %v1201
        %s1293 = scalar_lea.vmem [#allocation1], 3
        %1294 = vst [vmem:[%s1293] ss:$4 sm:$0xff] %v1202
        %s1296 = scalar_lea.vmem [#allocation1], 32
        %1297 = vst [vmem:[%s1296] ss:$4 sm:$0xff] %v1203
        %s1299 = scalar_lea.vmem [#allocation1], 33
        %1300 = vst [vmem:[%s1299] ss:$4 sm:$0xff] %v1204
        %s1302 = scalar_lea.vmem [#allocation1], 34
        %1303 = vst [vmem:[%s1302] ss:$4 sm:$0xff] %v1205
        %s1305 = scalar_lea.vmem [#allocation1], 35
        %1306 = vst [vmem:[%s1305] ss:$4 sm:$0xff] %v1206
        %v1307 = vld.sshfl [vmem:[#allocation1] sm:$0xff pattern:$0x73625140]
        %v1308 = vld.sshfl [vmem:[#allocation1 + $0x20] sm:$0xff pattern:$0x73625140]
        %v1313 = vunpack.c.l.b16 %v1207
        %v1314 = vunpack.c.l.b16 %v1208
        %v1315 = vunpack.c.l.b16 %v1209
        %v1316 = vunpack.c.l.b16 %v1210
        %v1317 = vpack.c.b16 %v1314, %v1313
        %v1318 = vpack.c.b16 %v1316, %v1315
        %v1321 = vsel %vm503, %v1307, 0
        %v1323 = vsel %vm503, %v1308, 0
        %1325 = vmatpush.bf16.msra.mxu0 0
        %1326 = vmatpush.bf16.msra.mxu0 0
        %1327 = vmatpush.bf16.msra.mxu0 0
        %1328 = vmatpush.bf16.msra.mxu0 0
        %1329 = vmatpush.bf16.msra.mxu0 0
        %1330 = vmatpush.bf16.msra.mxu0 0
        %1331 = vmatpush.bf16.msra.mxu0 %v1318
        %1332 = vmatpush.bf16.msra.mxu0 %v1317
        %1333 = vmatmul.bf16.gmra.mxu0 %v1321
        %v1334 = vpop.f32.mrf.mxu0
        %v1335 = vadd.f32 %v1275, %v1334
        %v1336 = vpop.f32.mrf.mxu0
        %v1337 = vadd.f32 %v1277, %v1336
        %1338 = vmatmul.bf16.gmra.mxu0 %v1323
        %v1339 = vpop.f32.mrf.mxu0
        %v1340 = vadd.f32 %v1280, %v1339
        %v1341 = vpop.f32.mrf.mxu0
        %v1342 = vadd.f32 %v1282, %v1341
        %1343 = vdwg.mxu0
        %v1344 = vld [vmem:[%s280] sm:$0x7]
        %v1345 = vld [vmem:[%s280 + $0x4] sm:$0x7]
        %v1346 = vld [vmem:[%s280 + $0x8] sm:$0x7]
        %v1347 = vld [vmem:[%s280 + $0xc] sm:$0x7]
        %v1348 = vld [vmem:[%s280 + $0x140] sm:$0x7]
        %v1349 = vld [vmem:[%s280 + $0x144] sm:$0x7]
        %v1350 = vld [vmem:[%s280 + $0x148] sm:$0x7]
        %v1351 = vld [vmem:[%s280 + $0x14c] sm:$0x7]
        %v1360 = vrot.slane %v1344, 2
        %v1361 = vrot.slane %v1345, 2
        %v1362 = vrot.slane %v1346, 2
        %v1363 = vrot.slane %v1347, 2
        %v1364 = vrot.slane %v1348, 2
        %v1365 = vrot.slane %v1349, 2
        %v1366 = vrot.slane %v1350, 2
        %v1367 = vrot.slane %v1351, 2
        %v1370 = vsel %vm1157, %v1344, %v1360
        %v1371 = vsel %vm1161, %v1344, %v1360
        %v1373 = vrot.slane %v1371, 2
        %v1376 = vsel %vm1157, %v1345, %v1361
        %v1377 = vsel %vm1161, %v1345, %v1361
        %v1379 = vrot.slane %v1377, 2
        %v1382 = vsel %vm1157, %v1346, %v1362
        %v1383 = vsel %vm1161, %v1346, %v1362
        %v1385 = vrot.slane %v1383, 2
        %v1388 = vsel %vm1157, %v1347, %v1363
        %v1389 = vsel %vm1161, %v1347, %v1363
        %v1391 = vrot.slane %v1389, 2
        %v1394 = vsel %vm1157, %v1348, %v1364
        %v1395 = vsel %vm1161, %v1348, %v1364
        %v1397 = vrot.slane %v1395, 2
        %v1400 = vsel %vm1157, %v1349, %v1365
        %v1401 = vsel %vm1161, %v1349, %v1365
        %v1403 = vrot.slane %v1401, 2
        %v1406 = vsel %vm1157, %v1350, %v1366
        %v1407 = vsel %vm1161, %v1350, %v1366
        %v1409 = vrot.slane %v1407, 2
        %v1412 = vsel %vm1157, %v1351, %v1367
        %v1413 = vsel %vm1161, %v1351, %v1367
        %v1415 = vrot.slane %v1413, 2
        %vm1416 = vsmask.f32 1280
        %vm1417 = vsmask.f32 3336
        %vm1418 = vmor %vm1416, %vm1417
        %vm1419 = vsmask.f32 5392
        %vm1420 = vmor %vm1418, %vm1419
        %vm1421 = vsmask.f32 7448
        %vm1422 = vmor %vm1420, %vm1421
        %v1423 = vshrl.u32 %v1370, 16
        %v1425 = vrot.slane %v1423, 6
        %v1426 = vshll.u32 %v1370, 16
        %v1428 = vrot.slane %v1426, 7
        %v1429 = vor.u32 %v1425, %v1428
        %v1430 = vrot.slane %v1429, 2
        %v1432 = vshll.u32 %v1373, 16
        %v1434 = vrot.slane %v1432, 7
        %v1435 = vsel %vm1422, %v1430, %v1434
        %v1436 = vshrl.u32 %v1376, 16
        %v1438 = vrot.slane %v1436, 6
        %v1439 = vshll.u32 %v1376, 16
        %v1441 = vrot.slane %v1439, 7
        %v1442 = vor.u32 %v1438, %v1441
        %v1443 = vrot.slane %v1442, 2
        %v1445 = vshll.u32 %v1379, 16
        %v1447 = vrot.slane %v1445, 7
        %v1448 = vsel %vm1422, %v1443, %v1447
        %v1449 = vshrl.u32 %v1382, 16
        %v1451 = vrot.slane %v1449, 6
        %v1452 = vshll.u32 %v1382, 16
        %v1454 = vrot.slane %v1452, 7
        %v1455 = vor.u32 %v1451, %v1454
        %v1456 = vrot.slane %v1455, 2
        %v1458 = vshll.u32 %v1385, 16
        %v1460 = vrot.slane %v1458, 7
        %v1461 = vsel %vm1422, %v1456, %v1460
        %v1462 = vshrl.u32 %v1388, 16
        %v1464 = vrot.slane %v1462, 6
        %v1465 = vshll.u32 %v1388, 16
        %v1467 = vrot.slane %v1465, 7
        %v1468 = vor.u32 %v1464, %v1467
        %v1469 = vrot.slane %v1468, 2
        %v1471 = vshll.u32 %v1391, 16
        %v1473 = vrot.slane %v1471, 7
        %v1474 = vsel %vm1422, %v1469, %v1473
        %v1475 = vshrl.u32 %v1394, 16
        %v1477 = vrot.slane %v1475, 6
        %v1478 = vshll.u32 %v1394, 16
        %v1480 = vrot.slane %v1478, 7
        %v1481 = vor.u32 %v1477, %v1480
        %v1482 = vrot.slane %v1481, 2
        %v1484 = vshll.u32 %v1397, 16
        %v1486 = vrot.slane %v1484, 7
        %v1487 = vsel %vm1422, %v1482, %v1486
        %v1488 = vshrl.u32 %v1400, 16
        %v1490 = vrot.slane %v1488, 6
        %v1491 = vshll.u32 %v1400, 16
        %v1493 = vrot.slane %v1491, 7
        %v1494 = vor.u32 %v1490, %v1493
        %v1495 = vrot.slane %v1494, 2
        %v1497 = vshll.u32 %v1403, 16
        %v1499 = vrot.slane %v1497, 7
        %v1500 = vsel %vm1422, %v1495, %v1499
        %v1501 = vshrl.u32 %v1406, 16
        %v1503 = vrot.slane %v1501, 6
        %v1504 = vshll.u32 %v1406, 16
        %v1506 = vrot.slane %v1504, 7
        %v1507 = vor.u32 %v1503, %v1506
        %v1508 = vrot.slane %v1507, 2
        %v1510 = vshll.u32 %v1409, 16
        %v1512 = vrot.slane %v1510, 7
        %v1513 = vsel %vm1422, %v1508, %v1512
        %v1514 = vshrl.u32 %v1412, 16
        %v1516 = vrot.slane %v1514, 6
        %v1517 = vshll.u32 %v1412, 16
        %v1519 = vrot.slane %v1517, 7
        %v1520 = vor.u32 %v1516, %v1519
        %v1521 = vrot.slane %v1520, 2
        %v1523 = vshll.u32 %v1415, 16
        %v1525 = vrot.slane %v1523, 7
        %v1526 = vsel %vm1422, %v1521, %v1525
        %v1527 = vld [vmem:[%s596] sm:$0xf]
        %v1528 = vld [vmem:[%s596 + $0x4] sm:$0xf]
        %v1529 = vld [vmem:[%s596 + $0x8] sm:$0xf]
        %v1530 = vld [vmem:[%s596 + $0xc] sm:$0xf]
        %1532 = vst [vmem:[#allocation1] ss:$4 sm:$0xff] %v1435
        %s1534 = scalar_lea.vmem [#allocation1], 1
        %1535 = vst [vmem:[%s1534] ss:$4 sm:$0xff] %v1448
        %s1537 = scalar_lea.vmem [#allocation1], 2
        %1538 = vst [vmem:[%s1537] ss:$4 sm:$0xff] %v1461
        %s1540 = scalar_lea.vmem [#allocation1], 3
        %1541 = vst [vmem:[%s1540] ss:$4 sm:$0xff] %v1474
        %s1543 = scalar_lea.vmem [#allocation1], 32
        %1544 = vst [vmem:[%s1543] ss:$4 sm:$0xff] %v1487
        %s1546 = scalar_lea.vmem [#allocation1], 33
        %1547 = vst [vmem:[%s1546] ss:$4 sm:$0xff] %v1500
        %s1549 = scalar_lea.vmem [#allocation1], 34
        %1550 = vst [vmem:[%s1549] ss:$4 sm:$0xff] %v1513
        %s1552 = scalar_lea.vmem [#allocation1], 35
        %1553 = vst [vmem:[%s1552] ss:$4 sm:$0xff] %v1526
        %v1554 = vld.sshfl [vmem:[#allocation1] sm:$0xff pattern:$0x73625140]
        %v1555 = vld.sshfl [vmem:[#allocation1 + $0x20] sm:$0xff pattern:$0x73625140]
        %v1560 = vunpack.c.l.b16 %v1527
        %v1561 = vunpack.c.l.b16 %v1528
        %v1562 = vunpack.c.l.b16 %v1529
        %v1563 = vunpack.c.l.b16 %v1530
        %v1564 = vpack.c.b16 %v1561, %v1560
        %v1565 = vpack.c.b16 %v1563, %v1562
        %v1568 = vsel %vm503, %v1554, 0
        %v1570 = vsel %vm503, %v1555, 0
        %1572 = vmatpush.bf16.msra.mxu0 0
        %1573 = vmatpush.bf16.msra.mxu0 0
        %1574 = vmatpush.bf16.msra.mxu0 0
        %1575 = vmatpush.bf16.msra.mxu0 0
        %1576 = vmatpush.bf16.msra.mxu0 0
        %1577 = vmatpush.bf16.msra.mxu0 0
        %1578 = vmatpush.bf16.msra.mxu0 %v1565
        %1579 = vmatpush.bf16.msra.mxu0 %v1564
        %1580 = vmatmul.bf16.gmra.mxu0 %v1568
        %v1581 = vpop.f32.mrf.mxu0
        %v1582 = vadd.f32 0.0, %v1581
        %v1583 = vpop.f32.mrf.mxu0
        %v1584 = vadd.f32 0.0, %v1583
        %1585 = vmatmul.bf16.gmra.mxu0 %v1570
        %v1586 = vpop.f32.mrf.mxu0
        %v1587 = vadd.f32 0.0, %v1586
        %v1588 = vpop.f32.mrf.mxu0
        %v1589 = vadd.f32 0.0, %v1588
        %1590 = vdwg.mxu0
        %v1591 = vadd.f32 %v1335, %v1582
        %v1592 = vadd.f32 %v1337, %v1584
        %v1593 = vadd.f32 %v1340, %v1587
        %v1594 = vadd.f32 %v1342, %v1589
        %v1595 = vld [vmem:[%s821] sm:$0x3]
        %v1596 = vld [vmem:[%s821 + $0x4] sm:$0x3]
        %v1597 = vld [vmem:[%s821 + $0x8] sm:$0x3]
        %v1598 = vld [vmem:[%s821 + $0xc] sm:$0x3]
        %v1599 = vld [vmem:[%s821 + $0x140] sm:$0x3]
        %v1600 = vld [vmem:[%s821 + $0x144] sm:$0x3]
        %v1601 = vld [vmem:[%s821 + $0x148] sm:$0x3]
        %v1602 = vld [vmem:[%s821 + $0x14c] sm:$0x3]
        %v1603 = vld [vmem:[%s674] sm:$0xf]
        %v1604 = vld [vmem:[%s674 + $0x4] sm:$0xf]
        %v1605 = vld [vmem:[%s674 + $0x8] sm:$0xf]
        %v1606 = vld [vmem:[%s674 + $0xc] sm:$0xf]
        %1608 = vst [vmem:[#allocation1] ss:$4 sm:$0xff] %v1595
        %s1610 = scalar_lea.vmem [#allocation1], 1
        %1611 = vst [vmem:[%s1610] ss:$4 sm:$0xff] %v1596
        %s1613 = scalar_lea.vmem [#allocation1], 2
        %1614 = vst [vmem:[%s1613] ss:$4 sm:$0xff] %v1597
        %s1616 = scalar_lea.vmem [#allocation1], 3
        %1617 = vst [vmem:[%s1616] ss:$4 sm:$0xff] %v1598
        %s1619 = scalar_lea.vmem [#allocation1], 32
        %1620 = vst [vmem:[%s1619] ss:$4 sm:$0xff] %v1599
        %s1622 = scalar_lea.vmem [#allocation1], 33
        %1623 = vst [vmem:[%s1622] ss:$4 sm:$0xff] %v1600
        %s1625 = scalar_lea.vmem [#allocation1], 34
        %1626 = vst [vmem:[%s1625] ss:$4 sm:$0xff] %v1601
        %s1628 = scalar_lea.vmem [#allocation1], 35
        %1629 = vst [vmem:[%s1628] ss:$4 sm:$0xff] %v1602
        %v1630 = vld.sshfl [vmem:[#allocation1] sm:$0xff pattern:$0x73625140]
        %v1631 = vld.sshfl [vmem:[#allocation1 + $0x20] sm:$0xff pattern:$0x73625140]
        %v1636 = vunpack.c.l.b16 %v1603
        %v1637 = vunpack.c.l.b16 %v1604
        %v1638 = vunpack.c.l.b16 %v1605
        %v1639 = vunpack.c.l.b16 %v1606
        %v1640 = vpack.c.b16 %v1637, %v1636
        %v1641 = vpack.c.b16 %v1639, %v1638
        %v1644 = vsel %vm503, %v1630, 0
        %v1646 = vsel %vm503, %v1631, 0
        %1648 = vmatpush.bf16.msra.mxu0 0
        %1649 = vmatpush.bf16.msra.mxu0 0
        %1650 = vmatpush.bf16.msra.mxu0 0
        %1651 = vmatpush.bf16.msra.mxu0 0
        %1652 = vmatpush.bf16.msra.mxu0 0
        %1653 = vmatpush.bf16.msra.mxu0 0
        %1654 = vmatpush.bf16.msra.mxu0 %v1641
        %1655 = vmatpush.bf16.msra.mxu0 %v1640
        %1656 = vmatmul.bf16.gmra.mxu0 %v1644
        %v1657 = vpop.f32.mrf.mxu0
        %v1658 = vadd.f32 0.0, %v1657
        %v1659 = vpop.f32.mrf.mxu0
        %v1660 = vadd.f32 0.0, %v1659
        %1661 = vmatmul.bf16.gmra.mxu0 %v1646
        %v1662 = vpop.f32.mrf.mxu0
        %v1663 = vadd.f32 0.0, %v1662
        %v1664 = vpop.f32.mrf.mxu0
        %v1665 = vadd.f32 0.0, %v1664
        %1666 = vdwg.mxu0
        %v1667 = vadd.f32 %v1591, %v1658
        %v1668 = vadd.f32 %v1592, %v1660
        %v1669 = vadd.f32 %v1593, %v1663
        %v1670 = vadd.f32 %v1594, %v1665
        %s1671 = scalar_lea.vmem %s280, 140
        %v1672 = vld [vmem:[%s1671] sm:$0x3]
        %v1673 = vld [vmem:[%s1671 + $0x4] sm:$0x3]
        %v1674 = vld [vmem:[%s1671 + $0x8] sm:$0x3]
        %v1675 = vld [vmem:[%s1671 + $0xc] sm:$0x3]
        %v1676 = vld [vmem:[%s1671 + $0x140] sm:$0x3]
        %v1677 = vld [vmem:[%s1671 + $0x144] sm:$0x3]
        %v1678 = vld [vmem:[%s1671 + $0x148] sm:$0x3]
        %v1679 = vld [vmem:[%s1671 + $0x14c] sm:$0x3]
        %v1680 = vld [vmem:[%s752] sm:$0xf]
        %v1681 = vld [vmem:[%s752 + $0x4] sm:$0xf]
        %v1682 = vld [vmem:[%s752 + $0x8] sm:$0xf]
        %v1683 = vld [vmem:[%s752 + $0xc] sm:$0xf]
        %1685 = vst [vmem:[#allocation1] ss:$4 sm:$0xff] %v1672
        %s1687 = scalar_lea.vmem [#allocation1], 1
        %1688 = vst [vmem:[%s1687] ss:$4 sm:$0xff] %v1673
        %s1690 = scalar_lea.vmem [#allocation1], 2
        %1691 = vst [vmem:[%s1690] ss:$4 sm:$0xff] %v1674
        %s1693 = scalar_lea.vmem [#allocation1], 3
        %1694 = vst [vmem:[%s1693] ss:$4 sm:$0xff] %v1675
        %s1696 = scalar_lea.vmem [#allocation1], 32
        %1697 = vst [vmem:[%s1696] ss:$4 sm:$0xff] %v1676
        %s1699 = scalar_lea.vmem [#allocation1], 33
        %1700 = vst [vmem:[%s1699] ss:$4 sm:$0xff] %v1677
        %s1702 = scalar_lea.vmem [#allocation1], 34
        %1703 = vst [vmem:[%s1702] ss:$4 sm:$0xff] %v1678
        %s1705 = scalar_lea.vmem [#allocation1], 35
        %1706 = vst [vmem:[%s1705] ss:$4 sm:$0xff] %v1679
        %v1707 = vld.sshfl [vmem:[#allocation1] sm:$0xff pattern:$0x73625140]
        %v1708 = vld.sshfl [vmem:[#allocation1 + $0x20] sm:$0xff pattern:$0x73625140]
        %v1713 = vunpack.c.l.b16 %v1680
        %v1714 = vunpack.c.l.b16 %v1681
        %v1715 = vunpack.c.l.b16 %v1682
        %v1716 = vunpack.c.l.b16 %v1683
        %v1717 = vpack.c.b16 %v1714, %v1713
        %v1718 = vpack.c.b16 %v1716, %v1715
        %v1721 = vsel %vm503, %v1707, 0
        %v1723 = vsel %vm503, %v1708, 0
        %1725 = vmatpush.bf16.msra.mxu0 0
        %1726 = vmatpush.bf16.msra.mxu0 0
        %1727 = vmatpush.bf16.msra.mxu0 0
        %1728 = vmatpush.bf16.msra.mxu0 0
        %1729 = vmatpush.bf16.msra.mxu0 0
        %1730 = vmatpush.bf16.msra.mxu0 0
        %1731 = vmatpush.bf16.msra.mxu0 %v1718
        %1732 = vmatpush.bf16.msra.mxu0 %v1717
        %1733 = vmatmul.bf16.gmra.mxu0 %v1721
        %v1734 = vpop.f32.mrf.mxu0
        %v1735 = vadd.f32 0.0, %v1734
        %v1736 = vpop.f32.mrf.mxu0
        %v1737 = vadd.f32 0.0, %v1736
        %1738 = vmatmul.bf16.gmra.mxu0 %v1723
        %v1739 = vpop.f32.mrf.mxu0
        %v1740 = vadd.f32 0.0, %v1739
        %v1741 = vpop.f32.mrf.mxu0
        %v1742 = vadd.f32 0.0, %v1741
        %1743 = vdwg.mxu0
        %v1744 = vadd.f32 %v1667, %v1735
        %v1745 = vadd.f32 %v1668, %v1737
        %v1746 = vadd.f32 %v1669, %v1740
        %v1747 = vadd.f32 %v1670, %v1742
        %v1748 = vld [vmem:[%s665] sm:$0x7]
        %v1749 = vld [vmem:[%s665 + $0x4] sm:$0x7]
        %v1750 = vld [vmem:[%s665 + $0x8] sm:$0x7]
        %v1751 = vld [vmem:[%s665 + $0xc] sm:$0x7]
        %v1752 = vld [vmem:[%s665 + $0x140] sm:$0x7]
        %v1753 = vld [vmem:[%s665 + $0x144] sm:$0x7]
        %v1754 = vld [vmem:[%s665 + $0x148] sm:$0x7]
        %v1755 = vld [vmem:[%s665 + $0x14c] sm:$0x7]
        %v1764 = vrot.slane %v1748, 2
        %v1765 = vrot.slane %v1749, 2
        %v1766 = vrot.slane %v1750, 2
        %v1767 = vrot.slane %v1751, 2
        %v1768 = vrot.slane %v1752, 2
        %v1769 = vrot.slane %v1753, 2
        %v1770 = vrot.slane %v1754, 2
        %v1771 = vrot.slane %v1755, 2
        %v1774 = vsel %vm1157, %v1748, %v1764
        %v1775 = vsel %vm1161, %v1748, %v1764
        %v1777 = vrot.slane %v1775, 2
        %v1780 = vsel %vm1157, %v1749, %v1765
        %v1781 = vsel %vm1161, %v1749, %v1765
        %v1783 = vrot.slane %v1781, 2
        %v1786 = vsel %vm1157, %v1750, %v1766
        %v1787 = vsel %vm1161, %v1750, %v1766
        %v1789 = vrot.slane %v1787, 2
        %v1792 = vsel %vm1157, %v1751, %v1767
        %v1793 = vsel %vm1161, %v1751, %v1767
        %v1795 = vrot.slane %v1793, 2
        %v1798 = vsel %vm1157, %v1752, %v1768
        %v1799 = vsel %vm1161, %v1752, %v1768
        %v1801 = vrot.slane %v1799, 2
        %v1804 = vsel %vm1157, %v1753, %v1769
        %v1805 = vsel %vm1161, %v1753, %v1769
        %v1807 = vrot.slane %v1805, 2
        %v1810 = vsel %vm1157, %v1754, %v1770
        %v1811 = vsel %vm1161, %v1754, %v1770
        %v1813 = vrot.slane %v1811, 2
        %v1816 = vsel %vm1157, %v1755, %v1771
        %v1817 = vsel %vm1161, %v1755, %v1771
        %v1819 = vrot.slane %v1817, 2
        %v1820 = vshrl.u32 %v1774, 16
        %v1822 = vrot.slane %v1820, 6
        %v1823 = vshll.u32 %v1774, 16
        %v1825 = vrot.slane %v1823, 7
        %v1826 = vor.u32 %v1822, %v1825
        %v1827 = vrot.slane %v1826, 2
        %v1829 = vshll.u32 %v1777, 16
        %v1831 = vrot.slane %v1829, 7
        %v1832 = vsel %vm1422, %v1827, %v1831
        %v1833 = vshrl.u32 %v1780, 16
        %v1835 = vrot.slane %v1833, 6
        %v1836 = vshll.u32 %v1780, 16
        %v1838 = vrot.slane %v1836, 7
        %v1839 = vor.u32 %v1835, %v1838
        %v1840 = vrot.slane %v1839, 2
        %v1842 = vshll.u32 %v1783, 16
        %v1844 = vrot.slane %v1842, 7
        %v1845 = vsel %vm1422, %v1840, %v1844
        %v1846 = vshrl.u32 %v1786, 16
        %v1848 = vrot.slane %v1846, 6
        %v1849 = vshll.u32 %v1786, 16
        %v1851 = vrot.slane %v1849, 7
        %v1852 = vor.u32 %v1848, %v1851
        %v1853 = vrot.slane %v1852, 2
        %v1855 = vshll.u32 %v1789, 16
        %v1857 = vrot.slane %v1855, 7
        %v1858 = vsel %vm1422, %v1853, %v1857
        %v1859 = vshrl.u32 %v1792, 16
        %v1861 = vrot.slane %v1859, 6
        %v1862 = vshll.u32 %v1792, 16
        %v1864 = vrot.slane %v1862, 7
        %v1865 = vor.u32 %v1861, %v1864
        %v1866 = vrot.slane %v1865, 2
        %v1868 = vshll.u32 %v1795, 16
        %v1870 = vrot.slane %v1868, 7
        %v1871 = vsel %vm1422, %v1866, %v1870
        %v1872 = vshrl.u32 %v1798, 16
        %v1874 = vrot.slane %v1872, 6
        %v1875 = vshll.u32 %v1798, 16
        %v1877 = vrot.slane %v1875, 7
        %v1878 = vor.u32 %v1874, %v1877
        %v1879 = vrot.slane %v1878, 2
        %v1881 = vshll.u32 %v1801, 16
        %v1883 = vrot.slane %v1881, 7
        %v1884 = vsel %vm1422, %v1879, %v1883
        %v1885 = vshrl.u32 %v1804, 16
        %v1887 = vrot.slane %v1885, 6
        %v1888 = vshll.u32 %v1804, 16
        %v1890 = vrot.slane %v1888, 7
        %v1891 = vor.u32 %v1887, %v1890
        %v1892 = vrot.slane %v1891, 2
        %v1894 = vshll.u32 %v1807, 16
        %v1896 = vrot.slane %v1894, 7
        %v1897 = vsel %vm1422, %v1892, %v1896
        %v1898 = vshrl.u32 %v1810, 16
        %v1900 = vrot.slane %v1898, 6
        %v1901 = vshll.u32 %v1810, 16
        %v1903 = vrot.slane %v1901, 7
        %v1904 = vor.u32 %v1900, %v1903
        %v1905 = vrot.slane %v1904, 2
        %v1907 = vshll.u32 %v1813, 16
        %v1909 = vrot.slane %v1907, 7
        %v1910 = vsel %vm1422, %v1905, %v1909
        %v1911 = vshrl.u32 %v1816, 16
        %v1913 = vrot.slane %v1911, 6
        %v1914 = vshll.u32 %v1816, 16
        %v1916 = vrot.slane %v1914, 7
        %v1917 = vor.u32 %v1913, %v1916
        %v1918 = vrot.slane %v1917, 2
        %v1920 = vshll.u32 %v1819, 16
        %v1922 = vrot.slane %v1920, 7
        %v1923 = vsel %vm1422, %v1918, %v1922
        %v1924 = vld [vmem:[%s830] sm:$0xf]
        %v1925 = vld [vmem:[%s830 + $0x4] sm:$0xf]
        %v1926 = vld [vmem:[%s830 + $0x8] sm:$0xf]
        %v1927 = vld [vmem:[%s830 + $0xc] sm:$0xf]
        %1929 = vst [vmem:[#allocation1] ss:$4 sm:$0xff] %v1832
        %s1931 = scalar_lea.vmem [#allocation1], 1
        %1932 = vst [vmem:[%s1931] ss:$4 sm:$0xff] %v1845
        %s1934 = scalar_lea.vmem [#allocation1], 2
        %1935 = vst [vmem:[%s1934] ss:$4 sm:$0xff] %v1858
        %s1937 = scalar_lea.vmem [#allocation1], 3
        %1938 = vst [vmem:[%s1937] ss:$4 sm:$0xff] %v1871
        %s1940 = scalar_lea.vmem [#allocation1], 32
        %1941 = vst [vmem:[%s1940] ss:$4 sm:$0xff] %v1884
        %s1943 = scalar_lea.vmem [#allocation1], 33
        %1944 = vst [vmem:[%s1943] ss:$4 sm:$0xff] %v1897
        %s1946 = scalar_lea.vmem [#allocation1], 34
        %1947 = vst [vmem:[%s1946] ss:$4 sm:$0xff] %v1910
        %s1949 = scalar_lea.vmem [#allocation1], 35
        %1950 = vst [vmem:[%s1949] ss:$4 sm:$0xff] %v1923
        %v1951 = vld.sshfl [vmem:[#allocation1] sm:$0xff pattern:$0x73625140]
        %v1952 = vld.sshfl [vmem:[#allocation1 + $0x20] sm:$0xff pattern:$0x73625140]
        %v1957 = vunpack.c.l.b16 %v1924
        %v1958 = vunpack.c.l.b16 %v1925
        %v1959 = vunpack.c.l.b16 %v1926
        %v1960 = vunpack.c.l.b16 %v1927
        %v1961 = vpack.c.b16 %v1958, %v1957
        %v1962 = vpack.c.b16 %v1960, %v1959
        %v1965 = vsel %vm503, %v1951, 0
        %v1967 = vsel %vm503, %v1952, 0
        %1969 = vmatpush.bf16.msra.mxu0 0
        %1970 = vmatpush.bf16.msra.mxu0 0
        %1971 = vmatpush.bf16.msra.mxu0 0
        %1972 = vmatpush.bf16.msra.mxu0 0
        %1973 = vmatpush.bf16.msra.mxu0 0
        %1974 = vmatpush.bf16.msra.mxu0 0
        %1975 = vmatpush.bf16.msra.mxu0 %v1962
        %1976 = vmatpush.bf16.msra.mxu0 %v1961
        %1977 = vmatmul.bf16.gmra.mxu0 %v1965
        %v1978 = vpop.f32.mrf.mxu0
        %v1979 = vadd.f32 0.0, %v1978
        %v1980 = vpop.f32.mrf.mxu0
        %v1981 = vadd.f32 0.0, %v1980
        %1982 = vmatmul.bf16.gmra.mxu0 %v1967
        %v1983 = vpop.f32.mrf.mxu0
        %v1984 = vadd.f32 0.0, %v1983
        %v1985 = vpop.f32.mrf.mxu0
        %v1986 = vadd.f32 0.0, %v1985
        %1987 = vdwg.mxu0
        %v1988 = vadd.f32 %v1744, %v1979
        %v1989 = vadd.f32 %v1745, %v1981
        %v1990 = vadd.f32 %v1746, %v1984
        %v1991 = vadd.f32 %v1747, %v1986
        %v1992 = vld [vmem:[%s1055] sm:$0x3]
        %v1993 = vld [vmem:[%s1055 + $0x4] sm:$0x3]
        %v1994 = vld [vmem:[%s1055 + $0x8] sm:$0x3]
        %v1995 = vld [vmem:[%s1055 + $0xc] sm:$0x3]
        %v1996 = vld [vmem:[%s1055 + $0x140] sm:$0x3]
        %v1997 = vld [vmem:[%s1055 + $0x144] sm:$0x3]
        %v1998 = vld [vmem:[%s1055 + $0x148] sm:$0x3]
        %v1999 = vld [vmem:[%s1055 + $0x14c] sm:$0x3]
        %v2000 = vld [vmem:[%s908] sm:$0xf]
        %v2001 = vld [vmem:[%s908 + $0x4] sm:$0xf]
        %v2002 = vld [vmem:[%s908 + $0x8] sm:$0xf]
        %v2003 = vld [vmem:[%s908 + $0xc] sm:$0xf]
        %2005 = vst [vmem:[#allocation1] ss:$4 sm:$0xff] %v1992
        %s2007 = scalar_lea.vmem [#allocation1], 1
        %2008 = vst [vmem:[%s2007] ss:$4 sm:$0xff] %v1993
        %s2010 = scalar_lea.vmem [#allocation1], 2
        %2011 = vst [vmem:[%s2010] ss:$4 sm:$0xff] %v1994
        %s2013 = scalar_lea.vmem [#allocation1], 3
        %2014 = vst [vmem:[%s2013] ss:$4 sm:$0xff] %v1995
        %s2016 = scalar_lea.vmem [#allocation1], 32
        %2017 = vst [vmem:[%s2016] ss:$4 sm:$0xff] %v1996
        %s2019 = scalar_lea.vmem [#allocation1], 33
        %2020 = vst [vmem:[%s2019] ss:$4 sm:$0xff] %v1997
        %s2022 = scalar_lea.vmem [#allocation1], 34
        %2023 = vst [vmem:[%s2022] ss:$4 sm:$0xff] %v1998
        %s2025 = scalar_lea.vmem [#allocation1], 35
        %2026 = vst [vmem:[%s2025] ss:$4 sm:$0xff] %v1999
        %v2027 = vld.sshfl [vmem:[#allocation1] sm:$0xff pattern:$0x73625140]
        %v2028 = vld.sshfl [vmem:[#allocation1 + $0x20] sm:$0xff pattern:$0x73625140]
        %v2033 = vunpack.c.l.b16 %v2000
        %v2034 = vunpack.c.l.b16 %v2001
        %v2035 = vunpack.c.l.b16 %v2002
        %v2036 = vunpack.c.l.b16 %v2003
        %v2037 = vpack.c.b16 %v2034, %v2033
        %v2038 = vpack.c.b16 %v2036, %v2035
        %v2041 = vsel %vm503, %v2027, 0
        %v2043 = vsel %vm503, %v2028, 0
        %2045 = vmatpush.bf16.msra.mxu0 0
        %2046 = vmatpush.bf16.msra.mxu0 0
        %2047 = vmatpush.bf16.msra.mxu0 0
        %2048 = vmatpush.bf16.msra.mxu0 0
        %2049 = vmatpush.bf16.msra.mxu0 0
        %2050 = vmatpush.bf16.msra.mxu0 0
        %2051 = vmatpush.bf16.msra.mxu0 %v2038
        %2052 = vmatpush.bf16.msra.mxu0 %v2037
        %2053 = vmatmul.bf16.gmra.mxu0 %v2041
        %v2054 = vpop.f32.mrf.mxu0
        %v2055 = vadd.f32 0.0, %v2054
        %v2056 = vpop.f32.mrf.mxu0
        %v2057 = vadd.f32 0.0, %v2056
        %2058 = vmatmul.bf16.gmra.mxu0 %v2043
        %v2059 = vpop.f32.mrf.mxu0
        %v2060 = vadd.f32 0.0, %v2059
        %v2061 = vpop.f32.mrf.mxu0
        %v2062 = vadd.f32 0.0, %v2061
        %2063 = vdwg.mxu0
        %v2064 = vadd.f32 %v1988, %v2055
        %v2065 = vadd.f32 %v1989, %v2057
        %v2066 = vadd.f32 %v1990, %v2060
        %v2067 = vadd.f32 %v1991, %v2062
        %s2068 = scalar_lea.vmem %s280, 220
        %v2069 = vld [vmem:[%s2068] sm:$0x3]
        %v2070 = vld [vmem:[%s2068 + $0x4] sm:$0x3]
        %v2071 = vld [vmem:[%s2068 + $0x8] sm:$0x3]
        %v2072 = vld [vmem:[%s2068 + $0xc] sm:$0x3]
        %v2073 = vld [vmem:[%s2068 + $0x140] sm:$0x3]
        %v2074 = vld [vmem:[%s2068 + $0x144] sm:$0x3]
        %v2075 = vld [vmem:[%s2068 + $0x148] sm:$0x3]
        %v2076 = vld [vmem:[%s2068 + $0x14c] sm:$0x3]
        %v2077 = vld [vmem:[%s986] sm:$0xf]
        %v2078 = vld [vmem:[%s986 + $0x4] sm:$0xf]
        %v2079 = vld [vmem:[%s986 + $0x8] sm:$0xf]
        %v2080 = vld [vmem:[%s986 + $0xc] sm:$0xf]
        %2082 = vst [vmem:[#allocation1] ss:$4 sm:$0xff] %v2069
        %s2084 = scalar_lea.vmem [#allocation1], 1
        %2085 = vst [vmem:[%s2084] ss:$4 sm:$0xff] %v2070
        %s2087 = scalar_lea.vmem [#allocation1], 2
        %2088 = vst [vmem:[%s2087] ss:$4 sm:$0xff] %v2071
        %s2090 = scalar_lea.vmem [#allocation1], 3
        %2091 = vst [vmem:[%s2090] ss:$4 sm:$0xff] %v2072
        %s2093 = scalar_lea.vmem [#allocation1], 32
        %2094 = vst [vmem:[%s2093] ss:$4 sm:$0xff] %v2073
        %s2096 = scalar_lea.vmem [#allocation1], 33
        %2097 = vst [vmem:[%s2096] ss:$4 sm:$0xff] %v2074
        %s2099 = scalar_lea.vmem [#allocation1], 34
        %2100 = vst [vmem:[%s2099] ss:$4 sm:$0xff] %v2075
        %s2102 = scalar_lea.vmem [#allocation1], 35
        %2103 = vst [vmem:[%s2102] ss:$4 sm:$0xff] %v2076
        %v2104 = vld.sshfl [vmem:[#allocation1] sm:$0xff pattern:$0x73625140]
        %v2105 = vld.sshfl [vmem:[#allocation1 + $0x20] sm:$0xff pattern:$0x73625140]
        %v2110 = vunpack.c.l.b16 %v2077
        %v2111 = vunpack.c.l.b16 %v2078
        %v2112 = vunpack.c.l.b16 %v2079
        %v2113 = vunpack.c.l.b16 %v2080
        %v2114 = vpack.c.b16 %v2111, %v2110
        %v2115 = vpack.c.b16 %v2113, %v2112
        %v2118 = vsel %vm503, %v2104, 0
        %v2120 = vsel %vm503, %v2105, 0
        %2122 = vmatpush.bf16.msra.mxu0 0
        %2123 = vmatpush.bf16.msra.mxu0 0
        %2124 = vmatpush.bf16.msra.mxu0 0
        %2125 = vmatpush.bf16.msra.mxu0 0
        %2126 = vmatpush.bf16.msra.mxu0 0
        %2127 = vmatpush.bf16.msra.mxu0 0
        %2128 = vmatpush.bf16.msra.mxu0 %v2115
        %2129 = vmatpush.bf16.msra.mxu0 %v2114
        %2130 = vmatmul.bf16.gmra.mxu0 %v2118
        %v2131 = vpop.f32.mrf.mxu0
        %v2132 = vadd.f32 0.0, %v2131
        %v2133 = vpop.f32.mrf.mxu0
        %v2134 = vadd.f32 0.0, %v2133
        %2135 = vmatmul.bf16.gmra.mxu0 %v2120
        %v2136 = vpop.f32.mrf.mxu0
        %v2137 = vadd.f32 0.0, %v2136
        %v2138 = vpop.f32.mrf.mxu0
        %v2139 = vadd.f32 0.0, %v2138
        %2140 = vdwg.mxu0
        %v2141 = vadd.f32 %v2064, %v2132
        %v2142 = vadd.f32 %v2065, %v2134
        %v2143 = vadd.f32 %v2066, %v2137
        %v2144 = vadd.f32 %v2067, %v2139
        %v2145 = vld [vmem:[%s899] sm:$0x7]
        %v2146 = vld [vmem:[%s899 + $0x4] sm:$0x7]
        %v2147 = vld [vmem:[%s899 + $0x8] sm:$0x7]
        %v2148 = vld [vmem:[%s899 + $0xc] sm:$0x7]
        %v2149 = vld [vmem:[%s899 + $0x140] sm:$0x7]
        %v2150 = vld [vmem:[%s899 + $0x144] sm:$0x7]
        %v2151 = vld [vmem:[%s899 + $0x148] sm:$0x7]
        %v2152 = vld [vmem:[%s899 + $0x14c] sm:$0x7]
        %v2161 = vrot.slane %v2145, 2
        %v2162 = vrot.slane %v2146, 2
        %v2163 = vrot.slane %v2147, 2
        %v2164 = vrot.slane %v2148, 2
        %v2165 = vrot.slane %v2149, 2
        %v2166 = vrot.slane %v2150, 2
        %v2167 = vrot.slane %v2151, 2
        %v2168 = vrot.slane %v2152, 2
        %v2171 = vsel %vm1157, %v2145, %v2161
        %v2172 = vsel %vm1161, %v2145, %v2161
        %v2174 = vrot.slane %v2172, 2
        %v2177 = vsel %vm1157, %v2146, %v2162
        %v2178 = vsel %vm1161, %v2146, %v2162
        %v2180 = vrot.slane %v2178, 2
        %v2183 = vsel %vm1157, %v2147, %v2163
        %v2184 = vsel %vm1161, %v2147, %v2163
        %v2186 = vrot.slane %v2184, 2
        %v2189 = vsel %vm1157, %v2148, %v2164
        %v2190 = vsel %vm1161, %v2148, %v2164
        %v2192 = vrot.slane %v2190, 2
        %v2195 = vsel %vm1157, %v2149, %v2165
        %v2196 = vsel %vm1161, %v2149, %v2165
        %v2198 = vrot.slane %v2196, 2
        %v2201 = vsel %vm1157, %v2150, %v2166
        %v2202 = vsel %vm1161, %v2150, %v2166
        %v2204 = vrot.slane %v2202, 2
        %v2207 = vsel %vm1157, %v2151, %v2167
        %v2208 = vsel %vm1161, %v2151, %v2167
        %v2210 = vrot.slane %v2208, 2
        %v2213 = vsel %vm1157, %v2152, %v2168
        %v2214 = vsel %vm1161, %v2152, %v2168
        %v2216 = vrot.slane %v2214, 2
        %v2217 = vshrl.u32 %v2171, 16
        %v2219 = vrot.slane %v2217, 6
        %v2220 = vshll.u32 %v2171, 16
        %v2222 = vrot.slane %v2220, 7
        %v2223 = vor.u32 %v2219, %v2222
        %v2224 = vrot.slane %v2223, 2
        %v2226 = vshll.u32 %v2174, 16
        %v2228 = vrot.slane %v2226, 7
        %v2229 = vsel %vm1422, %v2224, %v2228
        %v2230 = vshrl.u32 %v2177, 16
        %v2232 = vrot.slane %v2230, 6
        %v2233 = vshll.u32 %v2177, 16
        %v2235 = vrot.slane %v2233, 7
        %v2236 = vor.u32 %v2232, %v2235
        %v2237 = vrot.slane %v2236, 2
        %v2239 = vshll.u32 %v2180, 16
        %v2241 = vrot.slane %v2239, 7
        %v2242 = vsel %vm1422, %v2237, %v2241
        %v2243 = vshrl.u32 %v2183, 16
        %v2245 = vrot.slane %v2243, 6
        %v2246 = vshll.u32 %v2183, 16
        %v2248 = vrot.slane %v2246, 7
        %v2249 = vor.u32 %v2245, %v2248
        %v2250 = vrot.slane %v2249, 2
        %v2252 = vshll.u32 %v2186, 16
        %v2254 = vrot.slane %v2252, 7
        %v2255 = vsel %vm1422, %v2250, %v2254
        %v2256 = vshrl.u32 %v2189, 16
        %v2258 = vrot.slane %v2256, 6
        %v2259 = vshll.u32 %v2189, 16
        %v2261 = vrot.slane %v2259, 7
        %v2262 = vor.u32 %v2258, %v2261
        %v2263 = vrot.slane %v2262, 2
        %v2265 = vshll.u32 %v2192, 16
        %v2267 = vrot.slane %v2265, 7
        %v2268 = vsel %vm1422, %v2263, %v2267
        %v2269 = vshrl.u32 %v2195, 16
        %v2271 = vrot.slane %v2269, 6
        %v2272 = vshll.u32 %v2195, 16
        %v2274 = vrot.slane %v2272, 7
        %v2275 = vor.u32 %v2271, %v2274
        %v2276 = vrot.slane %v2275, 2
        %v2278 = vshll.u32 %v2198, 16
        %v2280 = vrot.slane %v2278, 7
        %v2281 = vsel %vm1422, %v2276, %v2280
        %v2282 = vshrl.u32 %v2201, 16
        %v2284 = vrot.slane %v2282, 6
        %v2285 = vshll.u32 %v2201, 16
        %v2287 = vrot.slane %v2285, 7
        %v2288 = vor.u32 %v2284, %v2287
        %v2289 = vrot.slane %v2288, 2
        %v2291 = vshll.u32 %v2204, 16
        %v2293 = vrot.slane %v2291, 7
        %v2294 = vsel %vm1422, %v2289, %v2293
        %v2295 = vshrl.u32 %v2207, 16
        %v2297 = vrot.slane %v2295, 6
        %v2298 = vshll.u32 %v2207, 16
        %v2300 = vrot.slane %v2298, 7
        %v2301 = vor.u32 %v2297, %v2300
        %v2302 = vrot.slane %v2301, 2
        %v2304 = vshll.u32 %v2210, 16
        %v2306 = vrot.slane %v2304, 7
        %v2307 = vsel %vm1422, %v2302, %v2306
        %v2308 = vshrl.u32 %v2213, 16
        %v2310 = vrot.slane %v2308, 6
        %v2311 = vshll.u32 %v2213, 16
        %v2313 = vrot.slane %v2311, 7
        %v2314 = vor.u32 %v2310, %v2313
        %v2315 = vrot.slane %v2314, 2
        %v2317 = vshll.u32 %v2216, 16
        %v2319 = vrot.slane %v2317, 7
        %v2320 = vsel %vm1422, %v2315, %v2319
        %v2321 = vld [vmem:[%s1064] sm:$0xf]
        %v2322 = vld [vmem:[%s1064 + $0x4] sm:$0xf]
        %v2323 = vld [vmem:[%s1064 + $0x8] sm:$0xf]
        %v2324 = vld [vmem:[%s1064 + $0xc] sm:$0xf]
        %2326 = vst [vmem:[#allocation1] ss:$4 sm:$0xff] %v2229
        %s2328 = scalar_lea.vmem [#allocation1], 1
        %2329 = vst [vmem:[%s2328] ss:$4 sm:$0xff] %v2242
        %s2331 = scalar_lea.vmem [#allocation1], 2
        %2332 = vst [vmem:[%s2331] ss:$4 sm:$0xff] %v2255
        %s2334 = scalar_lea.vmem [#allocation1], 3
        %2335 = vst [vmem:[%s2334] ss:$4 sm:$0xff] %v2268
        %s2337 = scalar_lea.vmem [#allocation1], 32
        %2338 = vst [vmem:[%s2337] ss:$4 sm:$0xff] %v2281
        %s2340 = scalar_lea.vmem [#allocation1], 33
        %2341 = vst [vmem:[%s2340] ss:$4 sm:$0xff] %v2294
        %s2343 = scalar_lea.vmem [#allocation1], 34
        %2344 = vst [vmem:[%s2343] ss:$4 sm:$0xff] %v2307
        %s2346 = scalar_lea.vmem [#allocation1], 35
        %2347 = vst [vmem:[%s2346] ss:$4 sm:$0xff] %v2320
        %v2348 = vld.sshfl [vmem:[#allocation1] sm:$0xff pattern:$0x73625140]
        %v2349 = vld.sshfl [vmem:[#allocation1 + $0x20] sm:$0xff pattern:$0x73625140]
        %v2354 = vunpack.c.l.b16 %v2321
        %v2355 = vunpack.c.l.b16 %v2322
        %v2356 = vunpack.c.l.b16 %v2323
        %v2357 = vunpack.c.l.b16 %v2324
        %v2358 = vpack.c.b16 %v2355, %v2354
        %v2359 = vpack.c.b16 %v2357, %v2356
        %v2362 = vsel %vm503, %v2348, 0
        %v2364 = vsel %vm503, %v2349, 0
        %2366 = vmatpush.bf16.msra.mxu0 0
        %2367 = vmatpush.bf16.msra.mxu0 0
        %2368 = vmatpush.bf16.msra.mxu0 0
        %2369 = vmatpush.bf16.msra.mxu0 0
        %2370 = vmatpush.bf16.msra.mxu0 0
        %2371 = vmatpush.bf16.msra.mxu0 0
        %2372 = vmatpush.bf16.msra.mxu0 %v2359
        %2373 = vmatpush.bf16.msra.mxu0 %v2358
        %2374 = vmatmul.bf16.gmra.mxu0 %v2362
        %v2375 = vpop.f32.mrf.mxu0
        %v2376 = vadd.f32 0.0, %v2375
        %v2377 = vpop.f32.mrf.mxu0
        %v2378 = vadd.f32 0.0, %v2377
        %2379 = vmatmul.bf16.gmra.mxu0 %v2364
        %v2380 = vpop.f32.mrf.mxu0
        %v2381 = vadd.f32 0.0, %v2380
        %v2382 = vpop.f32.mrf.mxu0
        %v2383 = vadd.f32 0.0, %v2382
        %2384 = vdwg.mxu0
        %v2385 = vadd.f32 %v2141, %v2376
        %v2386 = vadd.f32 %v2142, %v2378
        %v2387 = vadd.f32 %v2143, %v2381
        %v2388 = vadd.f32 %v2144, %v2383
        %v2389 = vld [vmem:[%s2] sm:$0x1]
        %v2391 = vperm.slane %v2389, 0
        %v2393 = vadd.f32 %v2385, %v2391
        %v2394 = vadd.f32 %v2386, %v2391
        %v2395 = vadd.f32 %v2387, %v2391
        %v2396 = vadd.f32 %v2388, %v2391
        %v2397 = vmax.f32 %v2393, 0.0
        %v2398 = vmax.f32 %v2394, 0.0
        %v2399 = vmax.f32 %v2395, 0.0
        %v2400 = vmax.f32 %v2396, 0.0
        %v2401 = vpack.c.bf16 %v2397, %v2397
        %v2402 = vpack.c.bf16 %v2398, %v2398
        %v2403 = vpack.c.bf16 %v2399, %v2399
        %v2404 = vpack.c.bf16 %v2400, %v2400
        %v2409 = vrot.slane %v2401, 2
        %v2410 = vrot.slane %v2402, 2
        %v2411 = vrot.slane %v2403, 2
        %v2412 = vrot.slane %v2404, 2
        %v2415 = vsel %vm1157, %v2401, %v2409
        %v2416 = vsel %vm1161, %v2401, %v2409
        %v2418 = vrot.slane %v2416, 2
        %v2421 = vsel %vm1157, %v2402, %v2410
        %v2422 = vsel %vm1161, %v2402, %v2410
        %v2424 = vrot.slane %v2422, 2
        %v2427 = vsel %vm1157, %v2403, %v2411
        %v2428 = vsel %vm1161, %v2403, %v2411
        %v2430 = vrot.slane %v2428, 2
        %v2433 = vsel %vm1157, %v2404, %v2412
        %v2434 = vsel %vm1161, %v2404, %v2412
        %v2436 = vrot.slane %v2434, 2
        %2437 = vst [vmem:[#allocation1] ss:$2 sm:$0xff] %v2415
        %v2438 = vld.sshfl [vmem:[#allocation1] sm:$0xff pattern:$0x75643120]
        %s2440 = scalar_lea.vmem [#allocation1], 16
        %2441 = vst [vmem:[%s2440] ss:$2 sm:$0xff] %v2418
        %v2442 = vld.sshfl [vmem:[#allocation1 + $0x10] sm:$0xff pattern:$0x75643120]
        %s2443 = scalar_lea.vmem [#allocation1], 32
        %2444 = vst [vmem:[%s2443] ss:$2 sm:$0xff] %v2421
        %v2445 = vld.sshfl [vmem:[#allocation1 + $0x20] sm:$0xff pattern:$0x75643120]
        %s2447 = scalar_lea.vmem [#allocation1], 48
        %2448 = vst [vmem:[%s2447] ss:$2 sm:$0xff] %v2424
        %v2449 = vld.sshfl [vmem:[#allocation1 + $0x30] sm:$0xff pattern:$0x75643120]
        %2450 = vst [vmem:[#allocation1] ss:$2 sm:$0xff] %v2427
        %v2451 = vld.sshfl [vmem:[#allocation1] sm:$0xff pattern:$0x75643120]
        %2453 = vst [vmem:[%s2440] ss:$2 sm:$0xff] %v2430
        %v2454 = vld.sshfl [vmem:[#allocation1 + $0x10] sm:$0xff pattern:$0x75643120]
        %2455 = vst [vmem:[%s2443] ss:$2 sm:$0xff] %v2433
        %v2456 = vld.sshfl [vmem:[#allocation1 + $0x20] sm:$0xff pattern:$0x75643120]
        %2458 = vst [vmem:[%s2447] ss:$2 sm:$0xff] %v2436
        %v2459 = vld.sshfl [vmem:[#allocation1 + $0x30] sm:$0xff pattern:$0x75643120]
        %v2460 = vshrl.u32 %v2438, 16
        %v2462 = vrot.slane %v2460, 7
        %v2463 = vshll.u32 %v2438, 16
        %v2465 = vor.u32 %v2462, %v2463
        %v2466 = vshrl.u32 %v2442, 16
        %v2468 = vrot.slane %v2466, 7
        %v2469 = vshll.u32 %v2442, 16
        %v2471 = vor.u32 %v2468, %v2469
        %v2472 = vshrl.u32 %v2445, 16
        %v2474 = vrot.slane %v2472, 7
        %v2475 = vshll.u32 %v2445, 16
        %v2477 = vor.u32 %v2474, %v2475
        %v2478 = vshrl.u32 %v2449, 16
        %v2480 = vrot.slane %v2478, 7
        %v2481 = vshll.u32 %v2449, 16
        %v2483 = vor.u32 %v2480, %v2481
        %v2484 = vshrl.u32 %v2451, 16
        %v2486 = vrot.slane %v2484, 7
        %v2487 = vshll.u32 %v2451, 16
        %v2489 = vor.u32 %v2486, %v2487
        %v2490 = vshrl.u32 %v2454, 16
        %v2492 = vrot.slane %v2490, 7
        %v2493 = vshll.u32 %v2454, 16
        %v2495 = vor.u32 %v2492, %v2493
        %v2496 = vshrl.u32 %v2456, 16
        %v2498 = vrot.slane %v2496, 7
        %v2499 = vshll.u32 %v2456, 16
        %v2501 = vor.u32 %v2498, %v2499
        %v2502 = vshrl.u32 %v2459, 16
        %v2504 = vrot.slane %v2502, 7
        %v2505 = vshll.u32 %v2459, 16
        %v2507 = vor.u32 %v2504, %v2505
        %vm2516 = vsmask.f32 2306
        %vm2517 = vmand %vm283, %vm2516
        %v2518 = vld [vmem:[%s371] sm:$0x7]
        %v2519 = vsel %vm2517, %v2465, %v2518
        %2520 = vst [vmem:[%s371] sm:$0x7] %v2519
        %v2521 = vld [vmem:[%s371 + $0x4] sm:$0x7]
        %v2522 = vsel %vm2517, %v2471, %v2521
        %2523 = vst [vmem:[%s371 + $0x4] sm:$0x7] %v2522
        %v2524 = vld [vmem:[%s371 + $0x8] sm:$0x7]
        %v2525 = vsel %vm2517, %v2477, %v2524
        %2526 = vst [vmem:[%s371 + $0x8] sm:$0x7] %v2525
        %v2527 = vld [vmem:[%s371 + $0xc] sm:$0x7]
        %v2528 = vsel %vm2517, %v2483, %v2527
        %2529 = vst [vmem:[%s371 + $0xc] sm:$0x7] %v2528
        %v2530 = vld [vmem:[%s371 + $0x50] sm:$0x7]
        %v2531 = vsel %vm2517, %v2489, %v2530
        %2532 = vst [vmem:[%s371 + $0x50] sm:$0x7] %v2531
        %v2533 = vld [vmem:[%s371 + $0x54] sm:$0x7]
        %v2534 = vsel %vm2517, %v2495, %v2533
        %2535 = vst [vmem:[%s371 + $0x54] sm:$0x7] %v2534
        %v2536 = vld [vmem:[%s371 + $0x58] sm:$0x7]
        %v2537 = vsel %vm2517, %v2501, %v2536
        %2538 = vst [vmem:[%s371 + $0x58] sm:$0x7] %v2537
        %v2539 = vld [vmem:[%s371 + $0x5c] sm:$0x7]
        %v2540 = vsel %vm2517, %v2507, %v2539
        %2541 = vst [vmem:[%s371 + $0x5c] sm:$0x7] %v2540
        %v2542 = vld [vmem:[%s899] sm:$0x3]
        %v2543 = vld [vmem:[%s899 + $0x4] sm:$0x3]
        %v2544 = vld [vmem:[%s899 + $0x8] sm:$0x3]
        %v2545 = vld [vmem:[%s899 + $0xc] sm:$0x3]
        %v2546 = vld [vmem:[%s899 + $0x140] sm:$0x3]
        %v2547 = vld [vmem:[%s899 + $0x144] sm:$0x3]
        %v2548 = vld [vmem:[%s899 + $0x148] sm:$0x3]
        %v2549 = vld [vmem:[%s899 + $0x14c] sm:$0x3]
        %v2550 = vld [vmem:[%s1] sm:$0xf]
        %v2551 = vld [vmem:[%s1 + $0x4] sm:$0xf]
        %v2552 = vld [vmem:[%s1 + $0x8] sm:$0xf]
        %v2553 = vld [vmem:[%s1 + $0xc] sm:$0xf]
        %v2554 = vld [vmem:[%s977] sm:$0x3]
        %v2555 = vld [vmem:[%s977 + $0x4] sm:$0x3]
        %v2556 = vld [vmem:[%s977 + $0x8] sm:$0x3]
        %v2557 = vld [vmem:[%s977 + $0xc] sm:$0x3]
        %v2558 = vld [vmem:[%s977 + $0x140] sm:$0x3]
        %v2559 = vld [vmem:[%s977 + $0x144] sm:$0x3]
        %v2560 = vld [vmem:[%s977 + $0x148] sm:$0x3]
        %v2561 = vld [vmem:[%s977 + $0x14c] sm:$0x3]
        %v2562 = vld [vmem:[%s461] sm:$0xf]
        %v2563 = vld [vmem:[%s461 + $0x4] sm:$0xf]
        %v2564 = vld [vmem:[%s461 + $0x8] sm:$0xf]
        %v2565 = vld [vmem:[%s461 + $0xc] sm:$0xf]
        %2567 = vst [vmem:[#allocation1] ss:$4 sm:$0xff] %v2554
        %s2569 = scalar_lea.vmem [#allocation1], 1
        %2570 = vst [vmem:[%s2569] ss:$4 sm:$0xff] %v2555
        %s2572 = scalar_lea.vmem [#allocation1], 2
        %2573 = vst [vmem:[%s2572] ss:$4 sm:$0xff] %v2556
        %s2575 = scalar_lea.vmem [#allocation1], 3
        %2576 = vst [vmem:[%s2575] ss:$4 sm:$0xff] %v2557
        %s2578 = scalar_lea.vmem [#allocation1], 32
        %2579 = vst [vmem:[%s2578] ss:$4 sm:$0xff] %v2558
        %s2581 = scalar_lea.vmem [#allocation1], 33
        %2582 = vst [vmem:[%s2581] ss:$4 sm:$0xff] %v2559
        %s2584 = scalar_lea.vmem [#allocation1], 34
        %2585 = vst [vmem:[%s2584] ss:$4 sm:$0xff] %v2560
        %s2587 = scalar_lea.vmem [#allocation1], 35
        %2588 = vst [vmem:[%s2587] ss:$4 sm:$0xff] %v2561
        %v2589 = vld.sshfl [vmem:[#allocation1] sm:$0xff pattern:$0x73625140]
        %v2590 = vld.sshfl [vmem:[#allocation1 + $0x20] sm:$0xff pattern:$0x73625140]
        %v2595 = vunpack.c.l.b16 %v2562
        %v2596 = vunpack.c.l.b16 %v2563
        %v2597 = vunpack.c.l.b16 %v2564
        %v2598 = vunpack.c.l.b16 %v2565
        %v2599 = vpack.c.b16 %v2596, %v2595
        %v2600 = vpack.c.b16 %v2598, %v2597
        %v2603 = vsel %vm503, %v2589, 0
        %v2605 = vsel %vm503, %v2590, 0
        %2607 = vmatpush.bf16.msra.mxu0 0
        %2608 = vmatpush.bf16.msra.mxu0 0
        %2609 = vmatpush.bf16.msra.mxu0 0
        %2610 = vmatpush.bf16.msra.mxu0 0
        %2611 = vmatpush.bf16.msra.mxu0 0
        %2612 = vmatpush.bf16.msra.mxu0 0
        %2613 = vmatpush.bf16.msra.mxu0 %v2600
        %2614 = vmatpush.bf16.msra.mxu0 %v2599
        %2615 = vmatmul.bf16.gmra.mxu0 %v2603
        %v2616 = vpop.f32.mrf.mxu0
        %v2617 = vadd.f32 0.0, %v2616
        %v2618 = vpop.f32.mrf.mxu0
        %v2619 = vadd.f32 0.0, %v2618
        %2620 = vmatmul.bf16.gmra.mxu0 %v2605
        %v2621 = vpop.f32.mrf.mxu0
        %v2622 = vadd.f32 0.0, %v2621
        %v2623 = vpop.f32.mrf.mxu0
        %v2624 = vadd.f32 0.0, %v2623
        %2625 = vdwg.mxu0
        %2627 = vst [vmem:[#allocation1] ss:$4 sm:$0xff] %v2542
        %s2629 = scalar_lea.vmem [#allocation1], 1
        %2630 = vst [vmem:[%s2629] ss:$4 sm:$0xff] %v2543
        %s2632 = scalar_lea.vmem [#allocation1], 2
        %2633 = vst [vmem:[%s2632] ss:$4 sm:$0xff] %v2544
        %s2635 = scalar_lea.vmem [#allocation1], 3
        %2636 = vst [vmem:[%s2635] ss:$4 sm:$0xff] %v2545
        %s2638 = scalar_lea.vmem [#allocation1], 32
        %2639 = vst [vmem:[%s2638] ss:$4 sm:$0xff] %v2546
        %s2641 = scalar_lea.vmem [#allocation1], 33
        %2642 = vst [vmem:[%s2641] ss:$4 sm:$0xff] %v2547
        %s2644 = scalar_lea.vmem [#allocation1], 34
        %2645 = vst [vmem:[%s2644] ss:$4 sm:$0xff] %v2548
        %s2647 = scalar_lea.vmem [#allocation1], 35
        %2648 = vst [vmem:[%s2647] ss:$4 sm:$0xff] %v2549
        %v2649 = vld.sshfl [vmem:[#allocation1] sm:$0xff pattern:$0x73625140]
        %v2650 = vld.sshfl [vmem:[#allocation1 + $0x20] sm:$0xff pattern:$0x73625140]
        %v2655 = vunpack.c.l.b16 %v2550
        %v2656 = vunpack.c.l.b16 %v2551
        %v2657 = vunpack.c.l.b16 %v2552
        %v2658 = vunpack.c.l.b16 %v2553
        %v2659 = vpack.c.b16 %v2656, %v2655
        %v2660 = vpack.c.b16 %v2658, %v2657
        %v2663 = vsel %vm503, %v2649, 0
        %v2665 = vsel %vm503, %v2650, 0
        %2667 = vmatpush.bf16.msra.mxu0 0
        %2668 = vmatpush.bf16.msra.mxu0 0
        %2669 = vmatpush.bf16.msra.mxu0 0
        %2670 = vmatpush.bf16.msra.mxu0 0
        %2671 = vmatpush.bf16.msra.mxu0 0
        %2672 = vmatpush.bf16.msra.mxu0 0
        %2673 = vmatpush.bf16.msra.mxu0 %v2660
        %2674 = vmatpush.bf16.msra.mxu0 %v2659
        %2675 = vmatmul.bf16.gmra.mxu0 %v2663
        %v2676 = vpop.f32.mrf.mxu0
        %v2677 = vadd.f32 %v2617, %v2676
        %v2678 = vpop.f32.mrf.mxu0
        %v2679 = vadd.f32 %v2619, %v2678
        %2680 = vmatmul.bf16.gmra.mxu0 %v2665
        %v2681 = vpop.f32.mrf.mxu0
        %v2682 = vadd.f32 %v2622, %v2681
        %v2683 = vpop.f32.mrf.mxu0
        %v2684 = vadd.f32 %v2624, %v2683
        %2685 = vdwg.mxu0
        %v2686 = vld [vmem:[%s1055] sm:$0x3]
        %v2687 = vld [vmem:[%s1055 + $0x4] sm:$0x3]
        %v2688 = vld [vmem:[%s1055 + $0x8] sm:$0x3]
        %v2689 = vld [vmem:[%s1055 + $0xc] sm:$0x3]
        %v2690 = vld [vmem:[%s1055 + $0x140] sm:$0x3]
        %v2691 = vld [vmem:[%s1055 + $0x144] sm:$0x3]
        %v2692 = vld [vmem:[%s1055 + $0x148] sm:$0x3]
        %v2693 = vld [vmem:[%s1055 + $0x14c] sm:$0x3]
        %v2694 = vld [vmem:[%s596] sm:$0xf]
        %v2695 = vld [vmem:[%s596 + $0x4] sm:$0xf]
        %v2696 = vld [vmem:[%s596 + $0x8] sm:$0xf]
        %v2697 = vld [vmem:[%s596 + $0xc] sm:$0xf]
        %2699 = vst [vmem:[#allocation1] ss:$4 sm:$0xff] %v2686
        %s2701 = scalar_lea.vmem [#allocation1], 1
        %2702 = vst [vmem:[%s2701] ss:$4 sm:$0xff] %v2687
        %s2704 = scalar_lea.vmem [#allocation1], 2
        %2705 = vst [vmem:[%s2704] ss:$4 sm:$0xff] %v2688
        %s2707 = scalar_lea.vmem [#allocation1], 3
        %2708 = vst [vmem:[%s2707] ss:$4 sm:$0xff] %v2689
        %s2710 = scalar_lea.vmem [#allocation1], 32
        %2711 = vst [vmem:[%s2710] ss:$4 sm:$0xff] %v2690
        %s2713 = scalar_lea.vmem [#allocation1], 33
        %2714 = vst [vmem:[%s2713] ss:$4 sm:$0xff] %v2691
        %s2716 = scalar_lea.vmem [#allocation1], 34
        %2717 = vst [vmem:[%s2716] ss:$4 sm:$0xff] %v2692
        %s2719 = scalar_lea.vmem [#allocation1], 35
        %2720 = vst [vmem:[%s2719] ss:$4 sm:$0xff] %v2693
        %v2721 = vld.sshfl [vmem:[#allocation1] sm:$0xff pattern:$0x73625140]
        %v2722 = vld.sshfl [vmem:[#allocation1 + $0x20] sm:$0xff pattern:$0x73625140]
        %v2727 = vunpack.c.l.b16 %v2694
        %v2728 = vunpack.c.l.b16 %v2695
        %v2729 = vunpack.c.l.b16 %v2696
        %v2730 = vunpack.c.l.b16 %v2697
        %v2731 = vpack.c.b16 %v2728, %v2727
        %v2732 = vpack.c.b16 %v2730, %v2729
        %v2735 = vsel %vm503, %v2721, 0
        %v2737 = vsel %vm503, %v2722, 0
        %2739 = vmatpush.bf16.msra.mxu0 0
        %2740 = vmatpush.bf16.msra.mxu0 0
        %2741 = vmatpush.bf16.msra.mxu0 0
        %2742 = vmatpush.bf16.msra.mxu0 0
        %2743 = vmatpush.bf16.msra.mxu0 0
        %2744 = vmatpush.bf16.msra.mxu0 0
        %2745 = vmatpush.bf16.msra.mxu0 %v2732
        %2746 = vmatpush.bf16.msra.mxu0 %v2731
        %2747 = vmatmul.bf16.gmra.mxu0 %v2735
        %v2748 = vpop.f32.mrf.mxu0
        %v2749 = vadd.f32 0.0, %v2748
        %v2750 = vpop.f32.mrf.mxu0
        %v2751 = vadd.f32 0.0, %v2750
        %2752 = vmatmul.bf16.gmra.mxu0 %v2737
        %v2753 = vpop.f32.mrf.mxu0
        %v2754 = vadd.f32 0.0, %v2753
        %v2755 = vpop.f32.mrf.mxu0
        %v2756 = vadd.f32 0.0, %v2755
        %2757 = vdwg.mxu0
        %v2758 = vadd.f32 %v2677, %v2749
        %v2759 = vadd.f32 %v2679, %v2751
        %v2760 = vadd.f32 %v2682, %v2754
        %v2761 = vadd.f32 %v2684, %v2756
        %s2762 = scalar_lea.vmem %s280, 240
        %v2763 = vld [vmem:[%s2762] sm:$0x3]
        %v2764 = vld [vmem:[%s2762 + $0x4] sm:$0x3]
        %v2765 = vld [vmem:[%s2762 + $0x8] sm:$0x3]
        %v2766 = vld [vmem:[%s2762 + $0xc] sm:$0x3]
        %v2767 = vld [vmem:[%s2762 + $0x140] sm:$0x3]
        %v2768 = vld [vmem:[%s2762 + $0x144] sm:$0x3]
        %v2769 = vld [vmem:[%s2762 + $0x148] sm:$0x3]
        %v2770 = vld [vmem:[%s2762 + $0x14c] sm:$0x3]
        %v2771 = vld [vmem:[%s674] sm:$0xf]
        %v2772 = vld [vmem:[%s674 + $0x4] sm:$0xf]
        %v2773 = vld [vmem:[%s674 + $0x8] sm:$0xf]
        %v2774 = vld [vmem:[%s674 + $0xc] sm:$0xf]
        %2776 = vst [vmem:[#allocation1] ss:$4 sm:$0xff] %v2763
        %s2778 = scalar_lea.vmem [#allocation1], 1
        %2779 = vst [vmem:[%s2778] ss:$4 sm:$0xff] %v2764
        %s2781 = scalar_lea.vmem [#allocation1], 2
        %2782 = vst [vmem:[%s2781] ss:$4 sm:$0xff] %v2765
        %s2784 = scalar_lea.vmem [#allocation1], 3
        %2785 = vst [vmem:[%s2784] ss:$4 sm:$0xff] %v2766
        %s2787 = scalar_lea.vmem [#allocation1], 32
        %2788 = vst [vmem:[%s2787] ss:$4 sm:$0xff] %v2767
        %s2790 = scalar_lea.vmem [#allocation1], 33
        %2791 = vst [vmem:[%s2790] ss:$4 sm:$0xff] %v2768
        %s2793 = scalar_lea.vmem [#allocation1], 34
        %2794 = vst [vmem:[%s2793] ss:$4 sm:$0xff] %v2769
        %s2796 = scalar_lea.vmem [#allocation1], 35
        %2797 = vst [vmem:[%s2796] ss:$4 sm:$0xff] %v2770
        %v2798 = vld.sshfl [vmem:[#allocation1] sm:$0xff pattern:$0x73625140]
        %v2799 = vld.sshfl [vmem:[#allocation1 + $0x20] sm:$0xff pattern:$0x73625140]
        %v2804 = vunpack.c.l.b16 %v2771
        %v2805 = vunpack.c.l.b16 %v2772
        %v2806 = vunpack.c.l.b16 %v2773
        %v2807 = vunpack.c.l.b16 %v2774
        %v2808 = vpack.c.b16 %v2805, %v2804
        %v2809 = vpack.c.b16 %v2807, %v2806
        %v2812 = vsel %vm503, %v2798, 0
        %v2814 = vsel %vm503, %v2799, 0
        %2816 = vmatpush.bf16.msra.mxu0 0
        %2817 = vmatpush.bf16.msra.mxu0 0
        %2818 = vmatpush.bf16.msra.mxu0 0
        %2819 = vmatpush.bf16.msra.mxu0 0
        %2820 = vmatpush.bf16.msra.mxu0 0
        %2821 = vmatpush.bf16.msra.mxu0 0
        %2822 = vmatpush.bf16.msra.mxu0 %v2809
        %2823 = vmatpush.bf16.msra.mxu0 %v2808
        %2824 = vmatmul.bf16.gmra.mxu0 %v2812
        %v2825 = vpop.f32.mrf.mxu0
        %v2826 = vadd.f32 0.0, %v2825
        %v2827 = vpop.f32.mrf.mxu0
        %v2828 = vadd.f32 0.0, %v2827
        %2829 = vmatmul.bf16.gmra.mxu0 %v2814
        %v2830 = vpop.f32.mrf.mxu0
        %v2831 = vadd.f32 0.0, %v2830
        %v2832 = vpop.f32.mrf.mxu0
        %v2833 = vadd.f32 0.0, %v2832
        %2834 = vdwg.mxu0
        %v2835 = vadd.f32 %v2758, %v2826
        %v2836 = vadd.f32 %v2759, %v2828
        %v2837 = vadd.f32 %v2760, %v2831
        %v2838 = vadd.f32 %v2761, %v2833
        %s2839 = scalar_lea.vmem %s280, 260
        %v2840 = vld [vmem:[%s2839] sm:$0x3]
        %v2841 = vld [vmem:[%s2839 + $0x4] sm:$0x3]
        %v2842 = vld [vmem:[%s2839 + $0x8] sm:$0x3]
        %v2843 = vld [vmem:[%s2839 + $0xc] sm:$0x3]
        %v2844 = vld [vmem:[%s2839 + $0x140] sm:$0x3]
        %v2845 = vld [vmem:[%s2839 + $0x144] sm:$0x3]
        %v2846 = vld [vmem:[%s2839 + $0x148] sm:$0x3]
        %v2847 = vld [vmem:[%s2839 + $0x14c] sm:$0x3]
        %v2848 = vld [vmem:[%s752] sm:$0xf]
        %v2849 = vld [vmem:[%s752 + $0x4] sm:$0xf]
        %v2850 = vld [vmem:[%s752 + $0x8] sm:$0xf]
        %v2851 = vld [vmem:[%s752 + $0xc] sm:$0xf]
        %2853 = vst [vmem:[#allocation1] ss:$4 sm:$0xff] %v2840
        %s2855 = scalar_lea.vmem [#allocation1], 1
        %2856 = vst [vmem:[%s2855] ss:$4 sm:$0xff] %v2841
        %s2858 = scalar_lea.vmem [#allocation1], 2
        %2859 = vst [vmem:[%s2858] ss:$4 sm:$0xff] %v2842
        %s2861 = scalar_lea.vmem [#allocation1], 3
        %2862 = vst [vmem:[%s2861] ss:$4 sm:$0xff] %v2843
        %s2864 = scalar_lea.vmem [#allocation1], 32
        %2865 = vst [vmem:[%s2864] ss:$4 sm:$0xff] %v2844
        %s2867 = scalar_lea.vmem [#allocation1], 33
        %2868 = vst [vmem:[%s2867] ss:$4 sm:$0xff] %v2845
        %s2870 = scalar_lea.vmem [#allocation1], 34
        %2871 = vst [vmem:[%s2870] ss:$4 sm:$0xff] %v2846
        %s2873 = scalar_lea.vmem [#allocation1], 35
        %2874 = vst [vmem:[%s2873] ss:$4 sm:$0xff] %v2847
        %v2875 = vld.sshfl [vmem:[#allocation1] sm:$0xff pattern:$0x73625140]
        %v2876 = vld.sshfl [vmem:[#allocation1 + $0x20] sm:$0xff pattern:$0x73625140]
        %v2881 = vunpack.c.l.b16 %v2848
        %v2882 = vunpack.c.l.b16 %v2849
        %v2883 = vunpack.c.l.b16 %v2850
        %v2884 = vunpack.c.l.b16 %v2851
        %v2885 = vpack.c.b16 %v2882, %v2881
        %v2886 = vpack.c.b16 %v2884, %v2883
        %v2889 = vsel %vm503, %v2875, 0
        %v2891 = vsel %vm503, %v2876, 0
        %2893 = vmatpush.bf16.msra.mxu0 0
        %2894 = vmatpush.bf16.msra.mxu0 0
        %2895 = vmatpush.bf16.msra.mxu0 0
        %2896 = vmatpush.bf16.msra.mxu0 0
        %2897 = vmatpush.bf16.msra.mxu0 0
        %2898 = vmatpush.bf16.msra.mxu0 0
        %2899 = vmatpush.bf16.msra.mxu0 %v2886
        %2900 = vmatpush.bf16.msra.mxu0 %v2885
        %2901 = vmatmul.bf16.gmra.mxu0 %v2889
        %v2902 = vpop.f32.mrf.mxu0
        %v2903 = vadd.f32 0.0, %v2902
        %v2904 = vpop.f32.mrf.mxu0
        %v2905 = vadd.f32 0.0, %v2904
        %2906 = vmatmul.bf16.gmra.mxu0 %v2891
        %v2907 = vpop.f32.mrf.mxu0
        %v2908 = vadd.f32 0.0, %v2907
        %v2909 = vpop.f32.mrf.mxu0
        %v2910 = vadd.f32 0.0, %v2909
        %2911 = vdwg.mxu0
        %v2912 = vadd.f32 %v2835, %v2903
        %v2913 = vadd.f32 %v2836, %v2905
        %v2914 = vadd.f32 %v2837, %v2908
        %v2915 = vadd.f32 %v2838, %v2910
        %s2916 = scalar_lea.vmem %s280, 280
        %v2917 = vld [vmem:[%s2916] sm:$0x3]
        %v2918 = vld [vmem:[%s2916 + $0x4] sm:$0x3]
        %v2919 = vld [vmem:[%s2916 + $0x8] sm:$0x3]
        %v2920 = vld [vmem:[%s2916 + $0xc] sm:$0x3]
        %v2921 = vld [vmem:[%s2916 + $0x140] sm:$0x3]
        %v2922 = vld [vmem:[%s2916 + $0x144] sm:$0x3]
        %v2923 = vld [vmem:[%s2916 + $0x148] sm:$0x3]
        %v2924 = vld [vmem:[%s2916 + $0x14c] sm:$0x3]
        %v2925 = vld [vmem:[%s830] sm:$0xf]
        %v2926 = vld [vmem:[%s830 + $0x4] sm:$0xf]
        %v2927 = vld [vmem:[%s830 + $0x8] sm:$0xf]
        %v2928 = vld [vmem:[%s830 + $0xc] sm:$0xf]
        %2930 = vst [vmem:[#allocation1] ss:$4 sm:$0xff] %v2917
        %s2932 = scalar_lea.vmem [#allocation1], 1
        %2933 = vst [vmem:[%s2932] ss:$4 sm:$0xff] %v2918
        %s2935 = scalar_lea.vmem [#allocation1], 2
        %2936 = vst [vmem:[%s2935] ss:$4 sm:$0xff] %v2919
        %s2938 = scalar_lea.vmem [#allocation1], 3
        %2939 = vst [vmem:[%s2938] ss:$4 sm:$0xff] %v2920
        %s2941 = scalar_lea.vmem [#allocation1], 32
        %2942 = vst [vmem:[%s2941] ss:$4 sm:$0xff] %v2921
        %s2944 = scalar_lea.vmem [#allocation1], 33
        %2945 = vst [vmem:[%s2944] ss:$4 sm:$0xff] %v2922
        %s2947 = scalar_lea.vmem [#allocation1], 34
        %2948 = vst [vmem:[%s2947] ss:$4 sm:$0xff] %v2923
        %s2950 = scalar_lea.vmem [#allocation1], 35
        %2951 = vst [vmem:[%s2950] ss:$4 sm:$0xff] %v2924
        %v2952 = vld.sshfl [vmem:[#allocation1] sm:$0xff pattern:$0x73625140]
        %v2953 = vld.sshfl [vmem:[#allocation1 + $0x20] sm:$0xff pattern:$0x73625140]
        %v2958 = vunpack.c.l.b16 %v2925
        %v2959 = vunpack.c.l.b16 %v2926
        %v2960 = vunpack.c.l.b16 %v2927
        %v2961 = vunpack.c.l.b16 %v2928
        %v2962 = vpack.c.b16 %v2959, %v2958
        %v2963 = vpack.c.b16 %v2961, %v2960
        %v2966 = vsel %vm503, %v2952, 0
        %v2968 = vsel %vm503, %v2953, 0
        %2970 = vmatpush.bf16.msra.mxu0 0
        %2971 = vmatpush.bf16.msra.mxu0 0
        %2972 = vmatpush.bf16.msra.mxu0 0
        %2973 = vmatpush.bf16.msra.mxu0 0
        %2974 = vmatpush.bf16.msra.mxu0 0
        %2975 = vmatpush.bf16.msra.mxu0 0
        %2976 = vmatpush.bf16.msra.mxu0 %v2963
        %2977 = vmatpush.bf16.msra.mxu0 %v2962
        %2978 = vmatmul.bf16.gmra.mxu0 %v2966
        %v2979 = vpop.f32.mrf.mxu0
        %v2980 = vadd.f32 0.0, %v2979
        %v2981 = vpop.f32.mrf.mxu0
        %v2982 = vadd.f32 0.0, %v2981
        %2983 = vmatmul.bf16.gmra.mxu0 %v2968
        %v2984 = vpop.f32.mrf.mxu0
        %v2985 = vadd.f32 0.0, %v2984
        %v2986 = vpop.f32.mrf.mxu0
        %v2987 = vadd.f32 0.0, %v2986
        %2988 = vdwg.mxu0
        %v2989 = vadd.f32 %v2912, %v2980
        %v2990 = vadd.f32 %v2913, %v2982
        %v2991 = vadd.f32 %v2914, %v2985
        %v2992 = vadd.f32 %v2915, %v2987
        %s2993 = scalar_lea.vmem %s280, 4
        %v2994 = vld [vmem:[%s2993] sm:$0x3]
        %v2995 = vld [vmem:[%s2993 + $0x4] sm:$0x3]
        %v2996 = vld [vmem:[%s2993 + $0x8] sm:$0x3]
        %v2997 = vld [vmem:[%s2993 + $0xc] sm:$0x3]
        %v2998 = vld [vmem:[%s2993 + $0x140] sm:$0x3]
        %v2999 = vld [vmem:[%s2993 + $0x144] sm:$0x3]
        %v3000 = vld [vmem:[%s2993 + $0x148] sm:$0x3]
        %v3001 = vld [vmem:[%s2993 + $0x14c] sm:$0x3]
        %v3002 = vld [vmem:[%s908] sm:$0xf]
        %v3003 = vld [vmem:[%s908 + $0x4] sm:$0xf]
        %v3004 = vld [vmem:[%s908 + $0x8] sm:$0xf]
        %v3005 = vld [vmem:[%s908 + $0xc] sm:$0xf]
        %3007 = vst [vmem:[#allocation1] ss:$4 sm:$0xff] %v2994
        %s3009 = scalar_lea.vmem [#allocation1], 1
        %3010 = vst [vmem:[%s3009] ss:$4 sm:$0xff] %v2995
        %s3012 = scalar_lea.vmem [#allocation1], 2
        %3013 = vst [vmem:[%s3012] ss:$4 sm:$0xff] %v2996
        %s3015 = scalar_lea.vmem [#allocation1], 3
        %3016 = vst [vmem:[%s3015] ss:$4 sm:$0xff] %v2997
        %s3018 = scalar_lea.vmem [#allocation1], 32
        %3019 = vst [vmem:[%s3018] ss:$4 sm:$0xff] %v2998
        %s3021 = scalar_lea.vmem [#allocation1], 33
        %3022 = vst [vmem:[%s3021] ss:$4 sm:$0xff] %v2999
        %s3024 = scalar_lea.vmem [#allocation1], 34
        %3025 = vst [vmem:[%s3024] ss:$4 sm:$0xff] %v3000
        %s3027 = scalar_lea.vmem [#allocation1], 35
        %3028 = vst [vmem:[%s3027] ss:$4 sm:$0xff] %v3001
        %v3029 = vld.sshfl [vmem:[#allocation1] sm:$0xff pattern:$0x73625140]
        %v3030 = vld.sshfl [vmem:[#allocation1 + $0x20] sm:$0xff pattern:$0x73625140]
        %v3035 = vunpack.c.l.b16 %v3002
        %v3036 = vunpack.c.l.b16 %v3003
        %v3037 = vunpack.c.l.b16 %v3004
        %v3038 = vunpack.c.l.b16 %v3005
        %v3039 = vpack.c.b16 %v3036, %v3035
        %v3040 = vpack.c.b16 %v3038, %v3037
        %v3043 = vsel %vm503, %v3029, 0
        %v3045 = vsel %vm503, %v3030, 0
        %3047 = vmatpush.bf16.msra.mxu0 0
        %3048 = vmatpush.bf16.msra.mxu0 0
        %3049 = vmatpush.bf16.msra.mxu0 0
        %3050 = vmatpush.bf16.msra.mxu0 0
        %3051 = vmatpush.bf16.msra.mxu0 0
        %3052 = vmatpush.bf16.msra.mxu0 0
        %3053 = vmatpush.bf16.msra.mxu0 %v3040
        %3054 = vmatpush.bf16.msra.mxu0 %v3039
        %3055 = vmatmul.bf16.gmra.mxu0 %v3043
        %v3056 = vpop.f32.mrf.mxu0
        %v3057 = vadd.f32 0.0, %v3056
        %v3058 = vpop.f32.mrf.mxu0
        %v3059 = vadd.f32 0.0, %v3058
        %3060 = vmatmul.bf16.gmra.mxu0 %v3045
        %v3061 = vpop.f32.mrf.mxu0
        %v3062 = vadd.f32 0.0, %v3061
        %v3063 = vpop.f32.mrf.mxu0
        %v3064 = vadd.f32 0.0, %v3063
        %3065 = vdwg.mxu0
        %v3066 = vadd.f32 %v2989, %v3057
        %v3067 = vadd.f32 %v2990, %v3059
        %v3068 = vadd.f32 %v2991, %v3062
        %v3069 = vadd.f32 %v2992, %v3064
        %s3070 = scalar_lea.vmem %s280, 24
        %v3071 = vld [vmem:[%s3070] sm:$0x3]
        %v3072 = vld [vmem:[%s3070 + $0x4] sm:$0x3]
        %v3073 = vld [vmem:[%s3070 + $0x8] sm:$0x3]
        %v3074 = vld [vmem:[%s3070 + $0xc] sm:$0x3]
        %v3075 = vld [vmem:[%s3070 + $0x140] sm:$0x3]
        %v3076 = vld [vmem:[%s3070 + $0x144] sm:$0x3]
        %v3077 = vld [vmem:[%s3070 + $0x148] sm:$0x3]
        %v3078 = vld [vmem:[%s3070 + $0x14c] sm:$0x3]
        %v3079 = vld [vmem:[%s986] sm:$0xf]
        %v3080 = vld [vmem:[%s986 + $0x4] sm:$0xf]
        %v3081 = vld [vmem:[%s986 + $0x8] sm:$0xf]
        %v3082 = vld [vmem:[%s986 + $0xc] sm:$0xf]
        %3084 = vst [vmem:[#allocation1] ss:$4 sm:$0xff] %v3071
        %s3086 = scalar_lea.vmem [#allocation1], 1
        %3087 = vst [vmem:[%s3086] ss:$4 sm:$0xff] %v3072
        %s3089 = scalar_lea.vmem [#allocation1], 2
        %3090 = vst [vmem:[%s3089] ss:$4 sm:$0xff] %v3073
        %s3092 = scalar_lea.vmem [#allocation1], 3
        %3093 = vst [vmem:[%s3092] ss:$4 sm:$0xff] %v3074
        %s3095 = scalar_lea.vmem [#allocation1], 32
        %3096 = vst [vmem:[%s3095] ss:$4 sm:$0xff] %v3075
        %s3098 = scalar_lea.vmem [#allocation1], 33
        %3099 = vst [vmem:[%s3098] ss:$4 sm:$0xff] %v3076
        %s3101 = scalar_lea.vmem [#allocation1], 34
        %3102 = vst [vmem:[%s3101] ss:$4 sm:$0xff] %v3077
        %s3104 = scalar_lea.vmem [#allocation1], 35
        %3105 = vst [vmem:[%s3104] ss:$4 sm:$0xff] %v3078
        %v3106 = vld.sshfl [vmem:[#allocation1] sm:$0xff pattern:$0x73625140]
        %v3107 = vld.sshfl [vmem:[#allocation1 + $0x20] sm:$0xff pattern:$0x73625140]
        %v3112 = vunpack.c.l.b16 %v3079
        %v3113 = vunpack.c.l.b16 %v3080
        %v3114 = vunpack.c.l.b16 %v3081
        %v3115 = vunpack.c.l.b16 %v3082
        %v3116 = vpack.c.b16 %v3113, %v3112
        %v3117 = vpack.c.b16 %v3115, %v3114
        %v3120 = vsel %vm503, %v3106, 0
        %v3122 = vsel %vm503, %v3107, 0
        %3124 = vmatpush.bf16.msra.mxu0 0
        %3125 = vmatpush.bf16.msra.mxu0 0
        %3126 = vmatpush.bf16.msra.mxu0 0
        %3127 = vmatpush.bf16.msra.mxu0 0
        %3128 = vmatpush.bf16.msra.mxu0 0
        %3129 = vmatpush.bf16.msra.mxu0 0
        %3130 = vmatpush.bf16.msra.mxu0 %v3117
        %3131 = vmatpush.bf16.msra.mxu0 %v3116
        %3132 = vmatmul.bf16.gmra.mxu0 %v3120
        %v3133 = vpop.f32.mrf.mxu0
        %v3134 = vadd.f32 0.0, %v3133
        %v3135 = vpop.f32.mrf.mxu0
        %v3136 = vadd.f32 0.0, %v3135
        %3137 = vmatmul.bf16.gmra.mxu0 %v3122
        %v3138 = vpop.f32.mrf.mxu0
        %v3139 = vadd.f32 0.0, %v3138
        %v3140 = vpop.f32.mrf.mxu0
        %v3141 = vadd.f32 0.0, %v3140
        %3142 = vdwg.mxu0
        %v3143 = vadd.f32 %v3066, %v3134
        %v3144 = vadd.f32 %v3067, %v3136
        %v3145 = vadd.f32 %v3068, %v3139
        %v3146 = vadd.f32 %v3069, %v3141
        %s3147 = scalar_lea.vmem %s280, 44
        %v3148 = vld [vmem:[%s3147] sm:$0x3]
        %v3149 = vld [vmem:[%s3147 + $0x4] sm:$0x3]
        %v3150 = vld [vmem:[%s3147 + $0x8] sm:$0x3]
        %v3151 = vld [vmem:[%s3147 + $0xc] sm:$0x3]
        %v3152 = vld [vmem:[%s3147 + $0x140] sm:$0x3]
        %v3153 = vld [vmem:[%s3147 + $0x144] sm:$0x3]
        %v3154 = vld [vmem:[%s3147 + $0x148] sm:$0x3]
        %v3155 = vld [vmem:[%s3147 + $0x14c] sm:$0x3]
        %v3156 = vld [vmem:[%s1064] sm:$0xf]
        %v3157 = vld [vmem:[%s1064 + $0x4] sm:$0xf]
        %v3158 = vld [vmem:[%s1064 + $0x8] sm:$0xf]
        %v3159 = vld [vmem:[%s1064 + $0xc] sm:$0xf]
        %3161 = vst [vmem:[#allocation1] ss:$4 sm:$0xff] %v3148
        %s3163 = scalar_lea.vmem [#allocation1], 1
        %3164 = vst [vmem:[%s3163] ss:$4 sm:$0xff] %v3149
        %s3166 = scalar_lea.vmem [#allocation1], 2
        %3167 = vst [vmem:[%s3166] ss:$4 sm:$0xff] %v3150
        %s3169 = scalar_lea.vmem [#allocation1], 3
        %3170 = vst [vmem:[%s3169] ss:$4 sm:$0xff] %v3151
        %s3172 = scalar_lea.vmem [#allocation1], 32
        %3173 = vst [vmem:[%s3172] ss:$4 sm:$0xff] %v3152
        %s3175 = scalar_lea.vmem [#allocation1], 33
        %3176 = vst [vmem:[%s3175] ss:$4 sm:$0xff] %v3153
        %s3178 = scalar_lea.vmem [#allocation1], 34
        %3179 = vst [vmem:[%s3178] ss:$4 sm:$0xff] %v3154
        %s3181 = scalar_lea.vmem [#allocation1], 35
        %3182 = vst [vmem:[%s3181] ss:$4 sm:$0xff] %v3155
        %v3183 = vld.sshfl [vmem:[#allocation1] sm:$0xff pattern:$0x73625140]
        %v3184 = vld.sshfl [vmem:[#allocation1 + $0x20] sm:$0xff pattern:$0x73625140]
        %v3189 = vunpack.c.l.b16 %v3156
        %v3190 = vunpack.c.l.b16 %v3157
        %v3191 = vunpack.c.l.b16 %v3158
        %v3192 = vunpack.c.l.b16 %v3159
        %v3193 = vpack.c.b16 %v3190, %v3189
        %v3194 = vpack.c.b16 %v3192, %v3191
        %v3197 = vsel %vm503, %v3183, 0
        %v3199 = vsel %vm503, %v3184, 0
        %3201 = vmatpush.bf16.msra.mxu0 0
        %3202 = vmatpush.bf16.msra.mxu0 0
        %3203 = vmatpush.bf16.msra.mxu0 0
        %3204 = vmatpush.bf16.msra.mxu0 0
        %3205 = vmatpush.bf16.msra.mxu0 0
        %3206 = vmatpush.bf16.msra.mxu0 0
        %3207 = vmatpush.bf16.msra.mxu0 %v3194
        %3208 = vmatpush.bf16.msra.mxu0 %v3193
        %3209 = vmatmul.bf16.gmra.mxu0 %v3197
        %v3210 = vpop.f32.mrf.mxu0
        %v3211 = vadd.f32 0.0, %v3210
        %v3212 = vpop.f32.mrf.mxu0
        %v3213 = vadd.f32 0.0, %v3212
        %3214 = vmatmul.bf16.gmra.mxu0 %v3199
        %v3215 = vpop.f32.mrf.mxu0
        %v3216 = vadd.f32 0.0, %v3215
        %v3217 = vpop.f32.mrf.mxu0
        %v3218 = vadd.f32 0.0, %v3217
        %3219 = vdwg.mxu0
        %v3220 = vadd.f32 %v3143, %v3211
        %v3221 = vadd.f32 %v3144, %v3213
        %v3222 = vadd.f32 %v3145, %v3216
        %v3223 = vadd.f32 %v3146, %v3218
        %v3224 = vld [vmem:[%s2] sm:$0x1]
        %v3226 = vperm.slane %v3224, 0
        %v3228 = vadd.f32 %v3220, %v3226
        %v3229 = vadd.f32 %v3221, %v3226
        %v3230 = vadd.f32 %v3222, %v3226
        %v3231 = vadd.f32 %v3223, %v3226
        %v3232 = vmax.f32 %v3228, 0.0
        %v3233 = vmax.f32 %v3229, 0.0
        %v3234 = vmax.f32 %v3230, 0.0
        %v3235 = vmax.f32 %v3231, 0.0
        %v3236 = vpack.c.bf16 %v3232, %v3232
        %v3237 = vpack.c.bf16 %v3233, %v3233
        %v3238 = vpack.c.bf16 %v3234, %v3234
        %v3239 = vpack.c.bf16 %v3235, %v3235
        %v3244 = vrot.slane %v3236, 2
        %v3245 = vrot.slane %v3237, 2
        %v3246 = vrot.slane %v3238, 2
        %v3247 = vrot.slane %v3239, 2
        %v3250 = vsel %vm1157, %v3236, %v3244
        %v3251 = vsel %vm1161, %v3236, %v3244
        %v3253 = vrot.slane %v3251, 2
        %v3256 = vsel %vm1157, %v3237, %v3245
        %v3257 = vsel %vm1161, %v3237, %v3245
        %v3259 = vrot.slane %v3257, 2
        %v3262 = vsel %vm1157, %v3238, %v3246
        %v3263 = vsel %vm1161, %v3238, %v3246
        %v3265 = vrot.slane %v3263, 2
        %v3268 = vsel %vm1157, %v3239, %v3247
        %v3269 = vsel %vm1161, %v3239, %v3247
        %v3271 = vrot.slane %v3269, 2
        %s3280 = scalar_lea.vmem [#allocation2], 24
        %3281 = vst [vmem:[%s3280] sm:$0x3] %v3250
        %3282 = vst [vmem:[%s3280 + $0x4] sm:$0x3] %v3253
        %3283 = vst [vmem:[%s3280 + $0x8] sm:$0x3] %v3256
        %3284 = vst [vmem:[%s3280 + $0xc] sm:$0x3] %v3259
        %3285 = vst [vmem:[%s3280 + $0x50] sm:$0x3] %v3262
        %3286 = vst [vmem:[%s3280 + $0x54] sm:$0x3] %v3265
        %3287 = vst [vmem:[%s3280 + $0x58] sm:$0x3] %v3268
        %3288 = vst [vmem:[%s3280 + $0x5c] sm:$0x3] %v3271
        %v3289 = vld [vmem:[%s1055] sm:$0x3]
        %v3290 = vld [vmem:[%s1055 + $0x4] sm:$0x3]
        %v3291 = vld [vmem:[%s1055 + $0x8] sm:$0x3]
        %v3292 = vld [vmem:[%s1055 + $0xc] sm:$0x3]
        %v3293 = vld [vmem:[%s1055 + $0x140] sm:$0x3]
        %v3294 = vld [vmem:[%s1055 + $0x144] sm:$0x3]
        %v3295 = vld [vmem:[%s1055 + $0x148] sm:$0x3]
        %v3296 = vld [vmem:[%s1055 + $0x14c] sm:$0x3]
        %v3297 = vld [vmem:[%s1] sm:$0xf]
        %v3298 = vld [vmem:[%s1 + $0x4] sm:$0xf]
        %v3299 = vld [vmem:[%s1 + $0x8] sm:$0xf]
        %v3300 = vld [vmem:[%s1 + $0xc] sm:$0xf]
        %v3301 = vld [vmem:[%s2068] sm:$0x3]
        %v3302 = vld [vmem:[%s2068 + $0x4] sm:$0x3]
        %v3303 = vld [vmem:[%s2068 + $0x8] sm:$0x3]
        %v3304 = vld [vmem:[%s2068 + $0xc] sm:$0x3]
        %v3305 = vld [vmem:[%s2068 + $0x140] sm:$0x3]
        %v3306 = vld [vmem:[%s2068 + $0x144] sm:$0x3]
        %v3307 = vld [vmem:[%s2068 + $0x148] sm:$0x3]
        %v3308 = vld [vmem:[%s2068 + $0x14c] sm:$0x3]
        %v3309 = vld [vmem:[%s461] sm:$0xf]
        %v3310 = vld [vmem:[%s461 + $0x4] sm:$0xf]
        %v3311 = vld [vmem:[%s461 + $0x8] sm:$0xf]
        %v3312 = vld [vmem:[%s461 + $0xc] sm:$0xf]
        %3314 = vst [vmem:[#allocation1] ss:$4 sm:$0xff] %v3301
        %s3316 = scalar_lea.vmem [#allocation1], 1
        %3317 = vst [vmem:[%s3316] ss:$4 sm:$0xff] %v3302
        %s3319 = scalar_lea.vmem [#allocation1], 2
        %3320 = vst [vmem:[%s3319] ss:$4 sm:$0xff] %v3303
        %s3322 = scalar_lea.vmem [#allocation1], 3
        %3323 = vst [vmem:[%s3322] ss:$4 sm:$0xff] %v3304
        %s3325 = scalar_lea.vmem [#allocation1], 32
        %3326 = vst [vmem:[%s3325] ss:$4 sm:$0xff] %v3305
        %s3328 = scalar_lea.vmem [#allocation1], 33
        %3329 = vst [vmem:[%s3328] ss:$4 sm:$0xff] %v3306
        %s3331 = scalar_lea.vmem [#allocation1], 34
        %3332 = vst [vmem:[%s3331] ss:$4 sm:$0xff] %v3307
        %s3334 = scalar_lea.vmem [#allocation1], 35
        %3335 = vst [vmem:[%s3334] ss:$4 sm:$0xff] %v3308
        %v3336 = vld.sshfl [vmem:[#allocation1] sm:$0xff pattern:$0x73625140]
        %v3337 = vld.sshfl [vmem:[#allocation1 + $0x20] sm:$0xff pattern:$0x73625140]
        %v3342 = vunpack.c.l.b16 %v3309
        %v3343 = vunpack.c.l.b16 %v3310
        %v3344 = vunpack.c.l.b16 %v3311
        %v3345 = vunpack.c.l.b16 %v3312
        %v3346 = vpack.c.b16 %v3343, %v3342
        %v3347 = vpack.c.b16 %v3345, %v3344
        %v3350 = vsel %vm503, %v3336, 0
        %v3352 = vsel %vm503, %v3337, 0
        %3354 = vmatpush.bf16.msra.mxu0 0
        %3355 = vmatpush.bf16.msra.mxu0 0
        %3356 = vmatpush.bf16.msra.mxu0 0
        %3357 = vmatpush.bf16.msra.mxu0 0
        %3358 = vmatpush.bf16.msra.mxu0 0
        %3359 = vmatpush.bf16.msra.mxu0 0
        %3360 = vmatpush.bf16.msra.mxu0 %v3347
        %3361 = vmatpush.bf16.msra.mxu0 %v3346
        %3362 = vmatmul.bf16.gmra.mxu0 %v3350
        %v3363 = vpop.f32.mrf.mxu0
        %v3364 = vadd.f32 0.0, %v3363
        %v3365 = vpop.f32.mrf.mxu0
        %v3366 = vadd.f32 0.0, %v3365
        %3367 = vmatmul.bf16.gmra.mxu0 %v3352
        %v3368 = vpop.f32.mrf.mxu0
        %v3369 = vadd.f32 0.0, %v3368
        %v3370 = vpop.f32.mrf.mxu0
        %v3371 = vadd.f32 0.0, %v3370
        %3372 = vdwg.mxu0
        %3374 = vst [vmem:[#allocation1] ss:$4 sm:$0xff] %v3289
        %s3376 = scalar_lea.vmem [#allocation1], 1
        %3377 = vst [vmem:[%s3376] ss:$4 sm:$0xff] %v3290
        %s3379 = scalar_lea.vmem [#allocation1], 2
        %3380 = vst [vmem:[%s3379] ss:$4 sm:$0xff] %v3291
        %s3382 = scalar_lea.vmem [#allocation1], 3
        %3383 = vst [vmem:[%s3382] ss:$4 sm:$0xff] %v3292
        %s3385 = scalar_lea.vmem [#allocation1], 32
        %3386 = vst [vmem:[%s3385] ss:$4 sm:$0xff] %v3293
        %s3388 = scalar_lea.vmem [#allocation1], 33
        %3389 = vst [vmem:[%s3388] ss:$4 sm:$0xff] %v3294
        %s3391 = scalar_lea.vmem [#allocation1], 34
        %3392 = vst [vmem:[%s3391] ss:$4 sm:$0xff] %v3295
        %s3394 = scalar_lea.vmem [#allocation1], 35
        %3395 = vst [vmem:[%s3394] ss:$4 sm:$0xff] %v3296
        %v3396 = vld.sshfl [vmem:[#allocation1] sm:$0xff pattern:$0x73625140]
        %v3397 = vld.sshfl [vmem:[#allocation1 + $0x20] sm:$0xff pattern:$0x73625140]
        %v3402 = vunpack.c.l.b16 %v3297
        %v3403 = vunpack.c.l.b16 %v3298
        %v3404 = vunpack.c.l.b16 %v3299
        %v3405 = vunpack.c.l.b16 %v3300
        %v3406 = vpack.c.b16 %v3403, %v3402
        %v3407 = vpack.c.b16 %v3405, %v3404
        %v3410 = vsel %vm503, %v3396, 0
        %v3412 = vsel %vm503, %v3397, 0
        %3414 = vmatpush.bf16.msra.mxu0 0
        %3415 = vmatpush.bf16.msra.mxu0 0
        %3416 = vmatpush.bf16.msra.mxu0 0
        %3417 = vmatpush.bf16.msra.mxu0 0
        %3418 = vmatpush.bf16.msra.mxu0 0
        %3419 = vmatpush.bf16.msra.mxu0 0
        %3420 = vmatpush.bf16.msra.mxu0 %v3407
        %3421 = vmatpush.bf16.msra.mxu0 %v3406
        %3422 = vmatmul.bf16.gmra.mxu0 %v3410
        %v3423 = vpop.f32.mrf.mxu0
        %v3424 = vadd.f32 %v3364, %v3423
        %v3425 = vpop.f32.mrf.mxu0
        %v3426 = vadd.f32 %v3366, %v3425
        %3427 = vmatmul.bf16.gmra.mxu0 %v3412
        %v3428 = vpop.f32.mrf.mxu0
        %v3429 = vadd.f32 %v3369, %v3428
        %v3430 = vpop.f32.mrf.mxu0
        %v3431 = vadd.f32 %v3371, %v3430
        %3432 = vdwg.mxu0
        %v3433 = vld [vmem:[%s899] sm:$0x7]
        %v3434 = vld [vmem:[%s899 + $0x4] sm:$0x7]
        %v3435 = vld [vmem:[%s899 + $0x8] sm:$0x7]
        %v3436 = vld [vmem:[%s899 + $0xc] sm:$0x7]
        %v3437 = vld [vmem:[%s899 + $0x140] sm:$0x7]
        %v3438 = vld [vmem:[%s899 + $0x144] sm:$0x7]
        %v3439 = vld [vmem:[%s899 + $0x148] sm:$0x7]
        %v3440 = vld [vmem:[%s899 + $0x14c] sm:$0x7]
        %v3449 = vrot.slane %v3433, 2
        %v3450 = vrot.slane %v3434, 2
        %v3451 = vrot.slane %v3435, 2
        %v3452 = vrot.slane %v3436, 2
        %v3453 = vrot.slane %v3437, 2
        %v3454 = vrot.slane %v3438, 2
        %v3455 = vrot.slane %v3439, 2
        %v3456 = vrot.slane %v3440, 2
        %v3459 = vsel %vm1157, %v3433, %v3449
        %v3460 = vsel %vm1161, %v3433, %v3449
        %v3462 = vrot.slane %v3460, 2
        %v3465 = vsel %vm1157, %v3434, %v3450
        %v3466 = vsel %vm1161, %v3434, %v3450
        %v3468 = vrot.slane %v3466, 2
        %v3471 = vsel %vm1157, %v3435, %v3451
        %v3472 = vsel %vm1161, %v3435, %v3451
        %v3474 = vrot.slane %v3472, 2
        %v3477 = vsel %vm1157, %v3436, %v3452
        %v3478 = vsel %vm1161, %v3436, %v3452
        %v3480 = vrot.slane %v3478, 2
        %v3483 = vsel %vm1157, %v3437, %v3453
        %v3484 = vsel %vm1161, %v3437, %v3453
        %v3486 = vrot.slane %v3484, 2
        %v3489 = vsel %vm1157, %v3438, %v3454
        %v3490 = vsel %vm1161, %v3438, %v3454
        %v3492 = vrot.slane %v3490, 2
        %v3495 = vsel %vm1157, %v3439, %v3455
        %v3496 = vsel %vm1161, %v3439, %v3455
        %v3498 = vrot.slane %v3496, 2
        %v3501 = vsel %vm1157, %v3440, %v3456
        %v3502 = vsel %vm1161, %v3440, %v3456
        %v3504 = vrot.slane %v3502, 2
        %v3505 = vshrl.u32 %v3459, 16
        %v3507 = vrot.slane %v3505, 6
        %v3508 = vshll.u32 %v3459, 16
        %v3510 = vrot.slane %v3508, 7
        %v3511 = vor.u32 %v3507, %v3510
        %v3512 = vrot.slane %v3511, 2
        %v3514 = vshll.u32 %v3462, 16
        %v3516 = vrot.slane %v3514, 7
        %v3517 = vsel %vm1422, %v3512, %v3516
        %v3518 = vshrl.u32 %v3465, 16
        %v3520 = vrot.slane %v3518, 6
        %v3521 = vshll.u32 %v3465, 16
        %v3523 = vrot.slane %v3521, 7
        %v3524 = vor.u32 %v3520, %v3523
        %v3525 = vrot.slane %v3524, 2
        %v3527 = vshll.u32 %v3468, 16
        %v3529 = vrot.slane %v3527, 7
        %v3530 = vsel %vm1422, %v3525, %v3529
        %v3531 = vshrl.u32 %v3471, 16
        %v3533 = vrot.slane %v3531, 6
        %v3534 = vshll.u32 %v3471, 16
        %v3536 = vrot.slane %v3534, 7
        %v3537 = vor.u32 %v3533, %v3536
        %v3538 = vrot.slane %v3537, 2
        %v3540 = vshll.u32 %v3474, 16
        %v3542 = vrot.slane %v3540, 7
        %v3543 = vsel %vm1422, %v3538, %v3542
        %v3544 = vshrl.u32 %v3477, 16
        %v3546 = vrot.slane %v3544, 6
        %v3547 = vshll.u32 %v3477, 16
        %v3549 = vrot.slane %v3547, 7
        %v3550 = vor.u32 %v3546, %v3549
        %v3551 = vrot.slane %v3550, 2
        %v3553 = vshll.u32 %v3480, 16
        %v3555 = vrot.slane %v3553, 7
        %v3556 = vsel %vm1422, %v3551, %v3555
        %v3557 = vshrl.u32 %v3483, 16
        %v3559 = vrot.slane %v3557, 6
        %v3560 = vshll.u32 %v3483, 16
        %v3562 = vrot.slane %v3560, 7
        %v3563 = vor.u32 %v3559, %v3562
        %v3564 = vrot.slane %v3563, 2
        %v3566 = vshll.u32 %v3486, 16
        %v3568 = vrot.slane %v3566, 7
        %v3569 = vsel %vm1422, %v3564, %v3568
        %v3570 = vshrl.u32 %v3489, 16
        %v3572 = vrot.slane %v3570, 6
        %v3573 = vshll.u32 %v3489, 16
        %v3575 = vrot.slane %v3573, 7
        %v3576 = vor.u32 %v3572, %v3575
        %v3577 = vrot.slane %v3576, 2
        %v3579 = vshll.u32 %v3492, 16
        %v3581 = vrot.slane %v3579, 7
        %v3582 = vsel %vm1422, %v3577, %v3581
        %v3583 = vshrl.u32 %v3495, 16
        %v3585 = vrot.slane %v3583, 6
        %v3586 = vshll.u32 %v3495, 16
        %v3588 = vrot.slane %v3586, 7
        %v3589 = vor.u32 %v3585, %v3588
        %v3590 = vrot.slane %v3589, 2
        %v3592 = vshll.u32 %v3498, 16
        %v3594 = vrot.slane %v3592, 7
        %v3595 = vsel %vm1422, %v3590, %v3594
        %v3596 = vshrl.u32 %v3501, 16
        %v3598 = vrot.slane %v3596, 6
        %v3599 = vshll.u32 %v3501, 16
        %v3601 = vrot.slane %v3599, 7
        %v3602 = vor.u32 %v3598, %v3601
        %v3603 = vrot.slane %v3602, 2
        %v3605 = vshll.u32 %v3504, 16
        %v3607 = vrot.slane %v3605, 7
        %v3608 = vsel %vm1422, %v3603, %v3607
        %v3609 = vld [vmem:[%s596] sm:$0xf]
        %v3610 = vld [vmem:[%s596 + $0x4] sm:$0xf]
        %v3611 = vld [vmem:[%s596 + $0x8] sm:$0xf]
        %v3612 = vld [vmem:[%s596 + $0xc] sm:$0xf]
        %3614 = vst [vmem:[#allocation1] ss:$4 sm:$0xff] %v3517
        %s3616 = scalar_lea.vmem [#allocation1], 1
        %3617 = vst [vmem:[%s3616] ss:$4 sm:$0xff] %v3530
        %s3619 = scalar_lea.vmem [#allocation1], 2
        %3620 = vst [vmem:[%s3619] ss:$4 sm:$0xff] %v3543
        %s3622 = scalar_lea.vmem [#allocation1], 3
        %3623 = vst [vmem:[%s3622] ss:$4 sm:$0xff] %v3556
        %s3625 = scalar_lea.vmem [#allocation1], 32
        %3626 = vst [vmem:[%s3625] ss:$4 sm:$0xff] %v3569
        %s3628 = scalar_lea.vmem [#allocation1], 33
        %3629 = vst [vmem:[%s3628] ss:$4 sm:$0xff] %v3582
        %s3631 = scalar_lea.vmem [#allocation1], 34
        %3632 = vst [vmem:[%s3631] ss:$4 sm:$0xff] %v3595
        %s3634 = scalar_lea.vmem [#allocation1], 35
        %3635 = vst [vmem:[%s3634] ss:$4 sm:$0xff] %v3608
        %v3636 = vld.sshfl [vmem:[#allocation1] sm:$0xff pattern:$0x73625140]
        %v3637 = vld.sshfl [vmem:[#allocation1 + $0x20] sm:$0xff pattern:$0x73625140]
        %v3642 = vunpack.c.l.b16 %v3609
        %v3643 = vunpack.c.l.b16 %v3610
        %v3644 = vunpack.c.l.b16 %v3611
        %v3645 = vunpack.c.l.b16 %v3612
        %v3646 = vpack.c.b16 %v3643, %v3642
        %v3647 = vpack.c.b16 %v3645, %v3644
        %v3650 = vsel %vm503, %v3636, 0
        %v3652 = vsel %vm503, %v3637, 0
        %3654 = vmatpush.bf16.msra.mxu0 0
        %3655 = vmatpush.bf16.msra.mxu0 0
        %3656 = vmatpush.bf16.msra.mxu0 0
        %3657 = vmatpush.bf16.msra.mxu0 0
        %3658 = vmatpush.bf16.msra.mxu0 0
        %3659 = vmatpush.bf16.msra.mxu0 0
        %3660 = vmatpush.bf16.msra.mxu0 %v3647
        %3661 = vmatpush.bf16.msra.mxu0 %v3646
        %3662 = vmatmul.bf16.gmra.mxu0 %v3650
        %v3663 = vpop.f32.mrf.mxu0
        %v3664 = vadd.f32 0.0, %v3663
        %v3665 = vpop.f32.mrf.mxu0
        %v3666 = vadd.f32 0.0, %v3665
        %3667 = vmatmul.bf16.gmra.mxu0 %v3652
        %v3668 = vpop.f32.mrf.mxu0
        %v3669 = vadd.f32 0.0, %v3668
        %v3670 = vpop.f32.mrf.mxu0
        %v3671 = vadd.f32 0.0, %v3670
        %3672 = vdwg.mxu0
        %v3673 = vadd.f32 %v3424, %v3664
        %v3674 = vadd.f32 %v3426, %v3666
        %v3675 = vadd.f32 %v3429, %v3669
        %v3676 = vadd.f32 %v3431, %v3671
        %v3677 = vld [vmem:[%s2916] sm:$0x3]
        %v3678 = vld [vmem:[%s2916 + $0x4] sm:$0x3]
        %v3679 = vld [vmem:[%s2916 + $0x8] sm:$0x3]
        %v3680 = vld [vmem:[%s2916 + $0xc] sm:$0x3]
        %v3681 = vld [vmem:[%s2916 + $0x140] sm:$0x3]
        %v3682 = vld [vmem:[%s2916 + $0x144] sm:$0x3]
        %v3683 = vld [vmem:[%s2916 + $0x148] sm:$0x3]
        %v3684 = vld [vmem:[%s2916 + $0x14c] sm:$0x3]
        %v3685 = vld [vmem:[%s674] sm:$0xf]
        %v3686 = vld [vmem:[%s674 + $0x4] sm:$0xf]
        %v3687 = vld [vmem:[%s674 + $0x8] sm:$0xf]
        %v3688 = vld [vmem:[%s674 + $0xc] sm:$0xf]
        %3690 = vst [vmem:[#allocation1] ss:$4 sm:$0xff] %v3677
        %s3692 = scalar_lea.vmem [#allocation1], 1
        %3693 = vst [vmem:[%s3692] ss:$4 sm:$0xff] %v3678
        %s3695 = scalar_lea.vmem [#allocation1], 2
        %3696 = vst [vmem:[%s3695] ss:$4 sm:$0xff] %v3679
        %s3698 = scalar_lea.vmem [#allocation1], 3
        %3699 = vst [vmem:[%s3698] ss:$4 sm:$0xff] %v3680
        %s3701 = scalar_lea.vmem [#allocation1], 32
        %3702 = vst [vmem:[%s3701] ss:$4 sm:$0xff] %v3681
        %s3704 = scalar_lea.vmem [#allocation1], 33
        %3705 = vst [vmem:[%s3704] ss:$4 sm:$0xff] %v3682
        %s3707 = scalar_lea.vmem [#allocation1], 34
        %3708 = vst [vmem:[%s3707] ss:$4 sm:$0xff] %v3683
        %s3710 = scalar_lea.vmem [#allocation1], 35
        %3711 = vst [vmem:[%s3710] ss:$4 sm:$0xff] %v3684
        %v3712 = vld.sshfl [vmem:[#allocation1] sm:$0xff pattern:$0x73625140]
        %v3713 = vld.sshfl [vmem:[#allocation1 + $0x20] sm:$0xff pattern:$0x73625140]
        %v3718 = vunpack.c.l.b16 %v3685
        %v3719 = vunpack.c.l.b16 %v3686
        %v3720 = vunpack.c.l.b16 %v3687
        %v3721 = vunpack.c.l.b16 %v3688
        %v3722 = vpack.c.b16 %v3719, %v3718
        %v3723 = vpack.c.b16 %v3721, %v3720
        %v3726 = vsel %vm503, %v3712, 0
        %v3728 = vsel %vm503, %v3713, 0
        %3730 = vmatpush.bf16.msra.mxu0 0
        %3731 = vmatpush.bf16.msra.mxu0 0
        %3732 = vmatpush.bf16.msra.mxu0 0
        %3733 = vmatpush.bf16.msra.mxu0 0
        %3734 = vmatpush.bf16.msra.mxu0 0
        %3735 = vmatpush.bf16.msra.mxu0 0
        %3736 = vmatpush.bf16.msra.mxu0 %v3723
        %3737 = vmatpush.bf16.msra.mxu0 %v3722
        %3738 = vmatmul.bf16.gmra.mxu0 %v3726
        %v3739 = vpop.f32.mrf.mxu0
        %v3740 = vadd.f32 0.0, %v3739
        %v3741 = vpop.f32.mrf.mxu0
        %v3742 = vadd.f32 0.0, %v3741
        %3743 = vmatmul.bf16.gmra.mxu0 %v3728
        %v3744 = vpop.f32.mrf.mxu0
        %v3745 = vadd.f32 0.0, %v3744
        %v3746 = vpop.f32.mrf.mxu0
        %v3747 = vadd.f32 0.0, %v3746
        %3748 = vdwg.mxu0
        %v3749 = vadd.f32 %v3673, %v3740
        %v3750 = vadd.f32 %v3674, %v3742
        %v3751 = vadd.f32 %v3675, %v3745
        %v3752 = vadd.f32 %v3676, %v3747
        %s3753 = scalar_lea.vmem %s280, 300
        %v3754 = vld [vmem:[%s3753] sm:$0x3]
        %v3755 = vld [vmem:[%s3753 + $0x4] sm:$0x3]
        %v3756 = vld [vmem:[%s3753 + $0x8] sm:$0x3]
        %v3757 = vld [vmem:[%s3753 + $0xc] sm:$0x3]
        %v3758 = vld [vmem:[%s3753 + $0x140] sm:$0x3]
        %v3759 = vld [vmem:[%s3753 + $0x144] sm:$0x3]
        %v3760 = vld [vmem:[%s3753 + $0x148] sm:$0x3]
        %v3761 = vld [vmem:[%s3753 + $0x14c] sm:$0x3]
        %v3762 = vld [vmem:[%s752] sm:$0xf]
        %v3763 = vld [vmem:[%s752 + $0x4] sm:$0xf]
        %v3764 = vld [vmem:[%s752 + $0x8] sm:$0xf]
        %v3765 = vld [vmem:[%s752 + $0xc] sm:$0xf]
        %3767 = vst [vmem:[#allocation1] ss:$4 sm:$0xff] %v3754
        %s3769 = scalar_lea.vmem [#allocation1], 1
        %3770 = vst [vmem:[%s3769] ss:$4 sm:$0xff] %v3755
        %s3772 = scalar_lea.vmem [#allocation1], 2
        %3773 = vst [vmem:[%s3772] ss:$4 sm:$0xff] %v3756
        %s3775 = scalar_lea.vmem [#allocation1], 3
        %3776 = vst [vmem:[%s3775] ss:$4 sm:$0xff] %v3757
        %s3778 = scalar_lea.vmem [#allocation1], 32
        %3779 = vst [vmem:[%s3778] ss:$4 sm:$0xff] %v3758
        %s3781 = scalar_lea.vmem [#allocation1], 33
        %3782 = vst [vmem:[%s3781] ss:$4 sm:$0xff] %v3759
        %s3784 = scalar_lea.vmem [#allocation1], 34
        %3785 = vst [vmem:[%s3784] ss:$4 sm:$0xff] %v3760
        %s3787 = scalar_lea.vmem [#allocation1], 35
        %3788 = vst [vmem:[%s3787] ss:$4 sm:$0xff] %v3761
        %v3789 = vld.sshfl [vmem:[#allocation1] sm:$0xff pattern:$0x73625140]
        %v3790 = vld.sshfl [vmem:[#allocation1 + $0x20] sm:$0xff pattern:$0x73625140]
        %v3795 = vunpack.c.l.b16 %v3762
        %v3796 = vunpack.c.l.b16 %v3763
        %v3797 = vunpack.c.l.b16 %v3764
        %v3798 = vunpack.c.l.b16 %v3765
        %v3799 = vpack.c.b16 %v3796, %v3795
        %v3800 = vpack.c.b16 %v3798, %v3797
        %v3803 = vsel %vm503, %v3789, 0
        %v3805 = vsel %vm503, %v3790, 0
        %3807 = vmatpush.bf16.msra.mxu0 0
        %3808 = vmatpush.bf16.msra.mxu0 0
        %3809 = vmatpush.bf16.msra.mxu0 0
        %3810 = vmatpush.bf16.msra.mxu0 0
        %3811 = vmatpush.bf16.msra.mxu0 0
        %3812 = vmatpush.bf16.msra.mxu0 0
        %3813 = vmatpush.bf16.msra.mxu0 %v3800
        %3814 = vmatpush.bf16.msra.mxu0 %v3799
        %3815 = vmatmul.bf16.gmra.mxu0 %v3803
        %v3816 = vpop.f32.mrf.mxu0
        %v3817 = vadd.f32 0.0, %v3816
        %v3818 = vpop.f32.mrf.mxu0
        %v3819 = vadd.f32 0.0, %v3818
        %3820 = vmatmul.bf16.gmra.mxu0 %v3805
        %v3821 = vpop.f32.mrf.mxu0
        %v3822 = vadd.f32 0.0, %v3821
        %v3823 = vpop.f32.mrf.mxu0
        %v3824 = vadd.f32 0.0, %v3823
        %3825 = vdwg.mxu0
        %v3826 = vadd.f32 %v3749, %v3817
        %v3827 = vadd.f32 %v3750, %v3819
        %v3828 = vadd.f32 %v3751, %v3822
        %v3829 = vadd.f32 %v3752, %v3824
        %v3830 = vld [vmem:[%s2762] sm:$0x7]
        %v3831 = vld [vmem:[%s2762 + $0x4] sm:$0x7]
        %v3832 = vld [vmem:[%s2762 + $0x8] sm:$0x7]
        %v3833 = vld [vmem:[%s2762 + $0xc] sm:$0x7]
        %v3834 = vld [vmem:[%s2762 + $0x140] sm:$0x7]
        %v3835 = vld [vmem:[%s2762 + $0x144] sm:$0x7]
        %v3836 = vld [vmem:[%s2762 + $0x148] sm:$0x7]
        %v3837 = vld [vmem:[%s2762 + $0x14c] sm:$0x7]
        %v3846 = vrot.slane %v3830, 2
        %v3847 = vrot.slane %v3831, 2
        %v3848 = vrot.slane %v3832, 2
        %v3849 = vrot.slane %v3833, 2
        %v3850 = vrot.slane %v3834, 2
        %v3851 = vrot.slane %v3835, 2
        %v3852 = vrot.slane %v3836, 2
        %v3853 = vrot.slane %v3837, 2
        %v3856 = vsel %vm1157, %v3830, %v3846
        %v3857 = vsel %vm1161, %v3830, %v3846
        %v3859 = vrot.slane %v3857, 2
        %v3862 = vsel %vm1157, %v3831, %v3847
        %v3863 = vsel %vm1161, %v3831, %v3847
        %v3865 = vrot.slane %v3863, 2
        %v3868 = vsel %vm1157, %v3832, %v3848
        %v3869 = vsel %vm1161, %v3832, %v3848
        %v3871 = vrot.slane %v3869, 2
        %v3874 = vsel %vm1157, %v3833, %v3849
        %v3875 = vsel %vm1161, %v3833, %v3849
        %v3877 = vrot.slane %v3875, 2
        %v3880 = vsel %vm1157, %v3834, %v3850
        %v3881 = vsel %vm1161, %v3834, %v3850
        %v3883 = vrot.slane %v3881, 2
        %v3886 = vsel %vm1157, %v3835, %v3851
        %v3887 = vsel %vm1161, %v3835, %v3851
        %v3889 = vrot.slane %v3887, 2
        %v3892 = vsel %vm1157, %v3836, %v3852
        %v3893 = vsel %vm1161, %v3836, %v3852
        %v3895 = vrot.slane %v3893, 2
        %v3898 = vsel %vm1157, %v3837, %v3853
        %v3899 = vsel %vm1161, %v3837, %v3853
        %v3901 = vrot.slane %v3899, 2
        %v3902 = vshrl.u32 %v3856, 16
        %v3904 = vrot.slane %v3902, 6
        %v3905 = vshll.u32 %v3856, 16
        %v3907 = vrot.slane %v3905, 7
        %v3908 = vor.u32 %v3904, %v3907
        %v3909 = vrot.slane %v3908, 2
        %v3911 = vshll.u32 %v3859, 16
        %v3913 = vrot.slane %v3911, 7
        %v3914 = vsel %vm1422, %v3909, %v3913
        %v3915 = vshrl.u32 %v3862, 16
        %v3917 = vrot.slane %v3915, 6
        %v3918 = vshll.u32 %v3862, 16
        %v3920 = vrot.slane %v3918, 7
        %v3921 = vor.u32 %v3917, %v3920
        %v3922 = vrot.slane %v3921, 2
        %v3924 = vshll.u32 %v3865, 16
        %v3926 = vrot.slane %v3924, 7
        %v3927 = vsel %vm1422, %v3922, %v3926
        %v3928 = vshrl.u32 %v3868, 16
        %v3930 = vrot.slane %v3928, 6
        %v3931 = vshll.u32 %v3868, 16
        %v3933 = vrot.slane %v3931, 7
        %v3934 = vor.u32 %v3930, %v3933
        %v3935 = vrot.slane %v3934, 2
        %v3937 = vshll.u32 %v3871, 16
        %v3939 = vrot.slane %v3937, 7
        %v3940 = vsel %vm1422, %v3935, %v3939
        %v3941 = vshrl.u32 %v3874, 16
        %v3943 = vrot.slane %v3941, 6
        %v3944 = vshll.u32 %v3874, 16
        %v3946 = vrot.slane %v3944, 7
        %v3947 = vor.u32 %v3943, %v3946
        %v3948 = vrot.slane %v3947, 2
        %v3950 = vshll.u32 %v3877, 16
        %v3952 = vrot.slane %v3950, 7
        %v3953 = vsel %vm1422, %v3948, %v3952
        %v3954 = vshrl.u32 %v3880, 16
        %v3956 = vrot.slane %v3954, 6
        %v3957 = vshll.u32 %v3880, 16
        %v3959 = vrot.slane %v3957, 7
        %v3960 = vor.u32 %v3956, %v3959
        %v3961 = vrot.slane %v3960, 2
        %v3963 = vshll.u32 %v3883, 16
        %v3965 = vrot.slane %v3963, 7
        %v3966 = vsel %vm1422, %v3961, %v3965
        %v3967 = vshrl.u32 %v3886, 16
        %v3969 = vrot.slane %v3967, 6
        %v3970 = vshll.u32 %v3886, 16
        %v3972 = vrot.slane %v3970, 7
        %v3973 = vor.u32 %v3969, %v3972
        %v3974 = vrot.slane %v3973, 2
        %v3976 = vshll.u32 %v3889, 16
        %v3978 = vrot.slane %v3976, 7
        %v3979 = vsel %vm1422, %v3974, %v3978
        %v3980 = vshrl.u32 %v3892, 16
        %v3982 = vrot.slane %v3980, 6
        %v3983 = vshll.u32 %v3892, 16
        %v3985 = vrot.slane %v3983, 7
        %v3986 = vor.u32 %v3982, %v3985
        %v3987 = vrot.slane %v3986, 2
        %v3989 = vshll.u32 %v3895, 16
        %v3991 = vrot.slane %v3989, 7
        %v3992 = vsel %vm1422, %v3987, %v3991
        %v3993 = vshrl.u32 %v3898, 16
        %v3995 = vrot.slane %v3993, 6
        %v3996 = vshll.u32 %v3898, 16
        %v3998 = vrot.slane %v3996, 7
        %v3999 = vor.u32 %v3995, %v3998
        %v4000 = vrot.slane %v3999, 2
        %v4002 = vshll.u32 %v3901, 16
        %v4004 = vrot.slane %v4002, 7
        %v4005 = vsel %vm1422, %v4000, %v4004
        %v4006 = vld [vmem:[%s830] sm:$0xf]
        %v4007 = vld [vmem:[%s830 + $0x4] sm:$0xf]
        %v4008 = vld [vmem:[%s830 + $0x8] sm:$0xf]
        %v4009 = vld [vmem:[%s830 + $0xc] sm:$0xf]
        %4011 = vst [vmem:[#allocation1] ss:$4 sm:$0xff] %v3914
        %s4013 = scalar_lea.vmem [#allocation1], 1
        %4014 = vst [vmem:[%s4013] ss:$4 sm:$0xff] %v3927
        %s4016 = scalar_lea.vmem [#allocation1], 2
        %4017 = vst [vmem:[%s4016] ss:$4 sm:$0xff] %v3940
        %s4019 = scalar_lea.vmem [#allocation1], 3
        %4020 = vst [vmem:[%s4019] ss:$4 sm:$0xff] %v3953
        %s4022 = scalar_lea.vmem [#allocation1], 32
        %4023 = vst [vmem:[%s4022] ss:$4 sm:$0xff] %v3966
        %s4025 = scalar_lea.vmem [#allocation1], 33
        %4026 = vst [vmem:[%s4025] ss:$4 sm:$0xff] %v3979
        %s4028 = scalar_lea.vmem [#allocation1], 34
        %4029 = vst [vmem:[%s4028] ss:$4 sm:$0xff] %v3992
        %s4031 = scalar_lea.vmem [#allocation1], 35
        %4032 = vst [vmem:[%s4031] ss:$4 sm:$0xff] %v4005
        %v4033 = vld.sshfl [vmem:[#allocation1] sm:$0xff pattern:$0x73625140]
        %v4034 = vld.sshfl [vmem:[#allocation1 + $0x20] sm:$0xff pattern:$0x73625140]
        %v4039 = vunpack.c.l.b16 %v4006
        %v4040 = vunpack.c.l.b16 %v4007
        %v4041 = vunpack.c.l.b16 %v4008
        %v4042 = vunpack.c.l.b16 %v4009
        %v4043 = vpack.c.b16 %v4040, %v4039
        %v4044 = vpack.c.b16 %v4042, %v4041
        %v4047 = vsel %vm503, %v4033, 0
        %v4049 = vsel %vm503, %v4034, 0
        %4051 = vmatpush.bf16.msra.mxu0 0
        %4052 = vmatpush.bf16.msra.mxu0 0
        %4053 = vmatpush.bf16.msra.mxu0 0
        %4054 = vmatpush.bf16.msra.mxu0 0
        %4055 = vmatpush.bf16.msra.mxu0 0
        %4056 = vmatpush.bf16.msra.mxu0 0
        %4057 = vmatpush.bf16.msra.mxu0 %v4044
        %4058 = vmatpush.bf16.msra.mxu0 %v4043
        %4059 = vmatmul.bf16.gmra.mxu0 %v4047
        %v4060 = vpop.f32.mrf.mxu0
        %v4061 = vadd.f32 0.0, %v4060
        %v4062 = vpop.f32.mrf.mxu0
        %v4063 = vadd.f32 0.0, %v4062
        %4064 = vmatmul.bf16.gmra.mxu0 %v4049
        %v4065 = vpop.f32.mrf.mxu0
        %v4066 = vadd.f32 0.0, %v4065
        %v4067 = vpop.f32.mrf.mxu0
        %v4068 = vadd.f32 0.0, %v4067
        %4069 = vdwg.mxu0
        %v4070 = vadd.f32 %v3826, %v4061
        %v4071 = vadd.f32 %v3827, %v4063
        %v4072 = vadd.f32 %v3828, %v4066
        %v4073 = vadd.f32 %v3829, %v4068
        %v4074 = vld [vmem:[%s3147] sm:$0x3]
        %v4075 = vld [vmem:[%s3147 + $0x4] sm:$0x3]
        %v4076 = vld [vmem:[%s3147 + $0x8] sm:$0x3]
        %v4077 = vld [vmem:[%s3147 + $0xc] sm:$0x3]
        %v4078 = vld [vmem:[%s3147 + $0x140] sm:$0x3]
        %v4079 = vld [vmem:[%s3147 + $0x144] sm:$0x3]
        %v4080 = vld [vmem:[%s3147 + $0x148] sm:$0x3]
        %v4081 = vld [vmem:[%s3147 + $0x14c] sm:$0x3]
        %v4082 = vld [vmem:[%s908] sm:$0xf]
        %v4083 = vld [vmem:[%s908 + $0x4] sm:$0xf]
        %v4084 = vld [vmem:[%s908 + $0x8] sm:$0xf]
        %v4085 = vld [vmem:[%s908 + $0xc] sm:$0xf]
        %4087 = vst [vmem:[#allocation1] ss:$4 sm:$0xff] %v4074
        %s4089 = scalar_lea.vmem [#allocation1], 1
        %4090 = vst [vmem:[%s4089] ss:$4 sm:$0xff] %v4075
        %s4092 = scalar_lea.vmem [#allocation1], 2
        %4093 = vst [vmem:[%s4092] ss:$4 sm:$0xff] %v4076
        %s4095 = scalar_lea.vmem [#allocation1], 3
        %4096 = vst [vmem:[%s4095] ss:$4 sm:$0xff] %v4077
        %s4098 = scalar_lea.vmem [#allocation1], 32
        %4099 = vst [vmem:[%s4098] ss:$4 sm:$0xff] %v4078
        %s4101 = scalar_lea.vmem [#allocation1], 33
        %4102 = vst [vmem:[%s4101] ss:$4 sm:$0xff] %v4079
        %s4104 = scalar_lea.vmem [#allocation1], 34
        %4105 = vst [vmem:[%s4104] ss:$4 sm:$0xff] %v4080
        %s4107 = scalar_lea.vmem [#allocation1], 35
        %4108 = vst [vmem:[%s4107] ss:$4 sm:$0xff] %v4081
        %v4109 = vld.sshfl [vmem:[#allocation1] sm:$0xff pattern:$0x73625140]
        %v4110 = vld.sshfl [vmem:[#allocation1 + $0x20] sm:$0xff pattern:$0x73625140]
        %v4115 = vunpack.c.l.b16 %v4082
        %v4116 = vunpack.c.l.b16 %v4083
        %v4117 = vunpack.c.l.b16 %v4084
        %v4118 = vunpack.c.l.b16 %v4085
        %v4119 = vpack.c.b16 %v4116, %v4115
        %v4120 = vpack.c.b16 %v4118, %v4117
        %v4123 = vsel %vm503, %v4109, 0
        %v4125 = vsel %vm503, %v4110, 0
        %4127 = vmatpush.bf16.msra.mxu0 0
        %4128 = vmatpush.bf16.msra.mxu0 0
        %4129 = vmatpush.bf16.msra.mxu0 0
        %4130 = vmatpush.bf16.msra.mxu0 0
        %4131 = vmatpush.bf16.msra.mxu0 0
        %4132 = vmatpush.bf16.msra.mxu0 0
        %4133 = vmatpush.bf16.msra.mxu0 %v4120
        %4134 = vmatpush.bf16.msra.mxu0 %v4119
        %4135 = vmatmul.bf16.gmra.mxu0 %v4123
        %v4136 = vpop.f32.mrf.mxu0
        %v4137 = vadd.f32 0.0, %v4136
        %v4138 = vpop.f32.mrf.mxu0
        %v4139 = vadd.f32 0.0, %v4138
        %4140 = vmatmul.bf16.gmra.mxu0 %v4125
        %v4141 = vpop.f32.mrf.mxu0
        %v4142 = vadd.f32 0.0, %v4141
        %v4143 = vpop.f32.mrf.mxu0
        %v4144 = vadd.f32 0.0, %v4143
        %4145 = vdwg.mxu0
        %v4146 = vadd.f32 %v4070, %v4137
        %v4147 = vadd.f32 %v4071, %v4139
        %v4148 = vadd.f32 %v4072, %v4142
        %v4149 = vadd.f32 %v4073, %v4144
        %s4150 = scalar_lea.vmem %s280, 64
        %v4151 = vld [vmem:[%s4150] sm:$0x3]
        %v4152 = vld [vmem:[%s4150 + $0x4] sm:$0x3]
        %v4153 = vld [vmem:[%s4150 + $0x8] sm:$0x3]
        %v4154 = vld [vmem:[%s4150 + $0xc] sm:$0x3]
        %v4155 = vld [vmem:[%s4150 + $0x140] sm:$0x3]
        %v4156 = vld [vmem:[%s4150 + $0x144] sm:$0x3]
        %v4157 = vld [vmem:[%s4150 + $0x148] sm:$0x3]
        %v4158 = vld [vmem:[%s4150 + $0x14c] sm:$0x3]
        %v4159 = vld [vmem:[%s986] sm:$0xf]
        %v4160 = vld [vmem:[%s986 + $0x4] sm:$0xf]
        %v4161 = vld [vmem:[%s986 + $0x8] sm:$0xf]
        %v4162 = vld [vmem:[%s986 + $0xc] sm:$0xf]
        %4164 = vst [vmem:[#allocation1] ss:$4 sm:$0xff] %v4151
        %s4166 = scalar_lea.vmem [#allocation1], 1
        %4167 = vst [vmem:[%s4166] ss:$4 sm:$0xff] %v4152
        %s4169 = scalar_lea.vmem [#allocation1], 2
        %4170 = vst [vmem:[%s4169] ss:$4 sm:$0xff] %v4153
        %s4172 = scalar_lea.vmem [#allocation1], 3
        %4173 = vst [vmem:[%s4172] ss:$4 sm:$0xff] %v4154
        %s4175 = scalar_lea.vmem [#allocation1], 32
        %4176 = vst [vmem:[%s4175] ss:$4 sm:$0xff] %v4155
        %s4178 = scalar_lea.vmem [#allocation1], 33
        %4179 = vst [vmem:[%s4178] ss:$4 sm:$0xff] %v4156
        %s4181 = scalar_lea.vmem [#allocation1], 34
        %4182 = vst [vmem:[%s4181] ss:$4 sm:$0xff] %v4157
        %s4184 = scalar_lea.vmem [#allocation1], 35
        %4185 = vst [vmem:[%s4184] ss:$4 sm:$0xff] %v4158
        %v4186 = vld.sshfl [vmem:[#allocation1] sm:$0xff pattern:$0x73625140]
        %v4187 = vld.sshfl [vmem:[#allocation1 + $0x20] sm:$0xff pattern:$0x73625140]
        %v4192 = vunpack.c.l.b16 %v4159
        %v4193 = vunpack.c.l.b16 %v4160
        %v4194 = vunpack.c.l.b16 %v4161
        %v4195 = vunpack.c.l.b16 %v4162
        %v4196 = vpack.c.b16 %v4193, %v4192
        %v4197 = vpack.c.b16 %v4195, %v4194
        %v4200 = vsel %vm503, %v4186, 0
        %v4202 = vsel %vm503, %v4187, 0
        %4204 = vmatpush.bf16.msra.mxu0 0
        %4205 = vmatpush.bf16.msra.mxu0 0
        %4206 = vmatpush.bf16.msra.mxu0 0
        %4207 = vmatpush.bf16.msra.mxu0 0
        %4208 = vmatpush.bf16.msra.mxu0 0
        %4209 = vmatpush.bf16.msra.mxu0 0
        %4210 = vmatpush.bf16.msra.mxu0 %v4197
        %4211 = vmatpush.bf16.msra.mxu0 %v4196
        %4212 = vmatmul.bf16.gmra.mxu0 %v4200
        %v4213 = vpop.f32.mrf.mxu0
        %v4214 = vadd.f32 0.0, %v4213
        %v4215 = vpop.f32.mrf.mxu0
        %v4216 = vadd.f32 0.0, %v4215
        %4217 = vmatmul.bf16.gmra.mxu0 %v4202
        %v4218 = vpop.f32.mrf.mxu0
        %v4219 = vadd.f32 0.0, %v4218
        %v4220 = vpop.f32.mrf.mxu0
        %v4221 = vadd.f32 0.0, %v4220
        %4222 = vdwg.mxu0
        %v4223 = vadd.f32 %v4146, %v4214
        %v4224 = vadd.f32 %v4147, %v4216
        %v4225 = vadd.f32 %v4148, %v4219
        %v4226 = vadd.f32 %v4149, %v4221
        %v4227 = vld [vmem:[%s2993] sm:$0x7]
        %v4228 = vld [vmem:[%s2993 + $0x4] sm:$0x7]
        %v4229 = vld [vmem:[%s2993 + $0x8] sm:$0x7]
        %v4230 = vld [vmem:[%s2993 + $0xc] sm:$0x7]
        %v4231 = vld [vmem:[%s2993 + $0x140] sm:$0x7]
        %v4232 = vld [vmem:[%s2993 + $0x144] sm:$0x7]
        %v4233 = vld [vmem:[%s2993 + $0x148] sm:$0x7]
        %v4234 = vld [vmem:[%s2993 + $0x14c] sm:$0x7]
        %v4243 = vrot.slane %v4227, 2
        %v4244 = vrot.slane %v4228, 2
        %v4245 = vrot.slane %v4229, 2
        %v4246 = vrot.slane %v4230, 2
        %v4247 = vrot.slane %v4231, 2
        %v4248 = vrot.slane %v4232, 2
        %v4249 = vrot.slane %v4233, 2
        %v4250 = vrot.slane %v4234, 2
        %v4253 = vsel %vm1157, %v4227, %v4243
        %v4254 = vsel %vm1161, %v4227, %v4243
        %v4256 = vrot.slane %v4254, 2
        %v4259 = vsel %vm1157, %v4228, %v4244
        %v4260 = vsel %vm1161, %v4228, %v4244
        %v4262 = vrot.slane %v4260, 2
        %v4265 = vsel %vm1157, %v4229, %v4245
        %v4266 = vsel %vm1161, %v4229, %v4245
        %v4268 = vrot.slane %v4266, 2
        %v4271 = vsel %vm1157, %v4230, %v4246
        %v4272 = vsel %vm1161, %v4230, %v4246
        %v4274 = vrot.slane %v4272, 2
        %v4277 = vsel %vm1157, %v4231, %v4247
        %v4278 = vsel %vm1161, %v4231, %v4247
        %v4280 = vrot.slane %v4278, 2
        %v4283 = vsel %vm1157, %v4232, %v4248
        %v4284 = vsel %vm1161, %v4232, %v4248
        %v4286 = vrot.slane %v4284, 2
        %v4289 = vsel %vm1157, %v4233, %v4249
        %v4290 = vsel %vm1161, %v4233, %v4249
        %v4292 = vrot.slane %v4290, 2
        %v4295 = vsel %vm1157, %v4234, %v4250
        %v4296 = vsel %vm1161, %v4234, %v4250
        %v4298 = vrot.slane %v4296, 2
        %v4299 = vshrl.u32 %v4253, 16
        %v4301 = vrot.slane %v4299, 6
        %v4302 = vshll.u32 %v4253, 16
        %v4304 = vrot.slane %v4302, 7
        %v4305 = vor.u32 %v4301, %v4304
        %v4306 = vrot.slane %v4305, 2
        %v4308 = vshll.u32 %v4256, 16
        %v4310 = vrot.slane %v4308, 7
        %v4311 = vsel %vm1422, %v4306, %v4310
        %v4312 = vshrl.u32 %v4259, 16
        %v4314 = vrot.slane %v4312, 6
        %v4315 = vshll.u32 %v4259, 16
        %v4317 = vrot.slane %v4315, 7
        %v4318 = vor.u32 %v4314, %v4317
        %v4319 = vrot.slane %v4318, 2
        %v4321 = vshll.u32 %v4262, 16
        %v4323 = vrot.slane %v4321, 7
        %v4324 = vsel %vm1422, %v4319, %v4323
        %v4325 = vshrl.u32 %v4265, 16
        %v4327 = vrot.slane %v4325, 6
        %v4328 = vshll.u32 %v4265, 16
        %v4330 = vrot.slane %v4328, 7
        %v4331 = vor.u32 %v4327, %v4330
        %v4332 = vrot.slane %v4331, 2
        %v4334 = vshll.u32 %v4268, 16
        %v4336 = vrot.slane %v4334, 7
        %v4337 = vsel %vm1422, %v4332, %v4336
        %v4338 = vshrl.u32 %v4271, 16
        %v4340 = vrot.slane %v4338, 6
        %v4341 = vshll.u32 %v4271, 16
        %v4343 = vrot.slane %v4341, 7
        %v4344 = vor.u32 %v4340, %v4343
        %v4345 = vrot.slane %v4344, 2
        %v4347 = vshll.u32 %v4274, 16
        %v4349 = vrot.slane %v4347, 7
        %v4350 = vsel %vm1422, %v4345, %v4349
        %v4351 = vshrl.u32 %v4277, 16
        %v4353 = vrot.slane %v4351, 6
        %v4354 = vshll.u32 %v4277, 16
        %v4356 = vrot.slane %v4354, 7
        %v4357 = vor.u32 %v4353, %v4356
        %v4358 = vrot.slane %v4357, 2
        %v4360 = vshll.u32 %v4280, 16
        %v4362 = vrot.slane %v4360, 7
        %v4363 = vsel %vm1422, %v4358, %v4362
        %v4364 = vshrl.u32 %v4283, 16
        %v4366 = vrot.slane %v4364, 6
        %v4367 = vshll.u32 %v4283, 16
        %v4369 = vrot.slane %v4367, 7
        %v4370 = vor.u32 %v4366, %v4369
        %v4371 = vrot.slane %v4370, 2
        %v4373 = vshll.u32 %v4286, 16
        %v4375 = vrot.slane %v4373, 7
        %v4376 = vsel %vm1422, %v4371, %v4375
        %v4377 = vshrl.u32 %v4289, 16
        %v4379 = vrot.slane %v4377, 6
        %v4380 = vshll.u32 %v4289, 16
        %v4382 = vrot.slane %v4380, 7
        %v4383 = vor.u32 %v4379, %v4382
        %v4384 = vrot.slane %v4383, 2
        %v4386 = vshll.u32 %v4292, 16
        %v4388 = vrot.slane %v4386, 7
        %v4389 = vsel %vm1422, %v4384, %v4388
        %v4390 = vshrl.u32 %v4295, 16
        %v4392 = vrot.slane %v4390, 6
        %v4393 = vshll.u32 %v4295, 16
        %v4395 = vrot.slane %v4393, 7
        %v4396 = vor.u32 %v4392, %v4395
        %v4397 = vrot.slane %v4396, 2
        %v4399 = vshll.u32 %v4298, 16
        %v4401 = vrot.slane %v4399, 7
        %v4402 = vsel %vm1422, %v4397, %v4401
        %v4403 = vld [vmem:[%s1064] sm:$0xf]
        %v4404 = vld [vmem:[%s1064 + $0x4] sm:$0xf]
        %v4405 = vld [vmem:[%s1064 + $0x8] sm:$0xf]
        %v4406 = vld [vmem:[%s1064 + $0xc] sm:$0xf]
        %4408 = vst [vmem:[#allocation1] ss:$4 sm:$0xff] %v4311
        %s4410 = scalar_lea.vmem [#allocation1], 1
        %4411 = vst [vmem:[%s4410] ss:$4 sm:$0xff] %v4324
        %s4413 = scalar_lea.vmem [#allocation1], 2
        %4414 = vst [vmem:[%s4413] ss:$4 sm:$0xff] %v4337
        %s4416 = scalar_lea.vmem [#allocation1], 3
        %4417 = vst [vmem:[%s4416] ss:$4 sm:$0xff] %v4350
        %s4419 = scalar_lea.vmem [#allocation1], 32
        %4420 = vst [vmem:[%s4419] ss:$4 sm:$0xff] %v4363
        %s4422 = scalar_lea.vmem [#allocation1], 33
        %4423 = vst [vmem:[%s4422] ss:$4 sm:$0xff] %v4376
        %s4425 = scalar_lea.vmem [#allocation1], 34
        %4426 = vst [vmem:[%s4425] ss:$4 sm:$0xff] %v4389
        %s4428 = scalar_lea.vmem [#allocation1], 35
        %4429 = vst [vmem:[%s4428] ss:$4 sm:$0xff] %v4402
        %v4430 = vld.sshfl [vmem:[#allocation1] sm:$0xff pattern:$0x73625140]
        %v4431 = vld.sshfl [vmem:[#allocation1 + $0x20] sm:$0xff pattern:$0x73625140]
        %v4436 = vunpack.c.l.b16 %v4403
        %v4437 = vunpack.c.l.b16 %v4404
        %v4438 = vunpack.c.l.b16 %v4405
        %v4439 = vunpack.c.l.b16 %v4406
        %v4440 = vpack.c.b16 %v4437, %v4436
        %v4441 = vpack.c.b16 %v4439, %v4438
        %v4444 = vsel %vm503, %v4430, 0
        %v4446 = vsel %vm503, %v4431, 0
        %4448 = vmatpush.bf16.msra.mxu0 0
        %4449 = vmatpush.bf16.msra.mxu0 0
        %4450 = vmatpush.bf16.msra.mxu0 0
        %4451 = vmatpush.bf16.msra.mxu0 0
        %4452 = vmatpush.bf16.msra.mxu0 0
        %4453 = vmatpush.bf16.msra.mxu0 0
        %4454 = vmatpush.bf16.msra.mxu0 %v4441
        %4455 = vmatpush.bf16.msra.mxu0 %v4440
        %4456 = vmatmul.bf16.gmra.mxu0 %v4444
        %v4457 = vpop.f32.mrf.mxu0
        %v4458 = vadd.f32 0.0, %v4457
        %v4459 = vpop.f32.mrf.mxu0
        %v4460 = vadd.f32 0.0, %v4459
        %4461 = vmatmul.bf16.gmra.mxu0 %v4446
        %v4462 = vpop.f32.mrf.mxu0
        %v4463 = vadd.f32 0.0, %v4462
        %v4464 = vpop.f32.mrf.mxu0
        %v4465 = vadd.f32 0.0, %v4464
        %4466 = vdwg.mxu0
        %v4467 = vadd.f32 %v4223, %v4458
        %v4468 = vadd.f32 %v4224, %v4460
        %v4469 = vadd.f32 %v4225, %v4463
        %v4470 = vadd.f32 %v4226, %v4465
        %v4471 = vld [vmem:[%s2] sm:$0x1]
        %v4473 = vperm.slane %v4471, 0
        %v4475 = vadd.f32 %v4467, %v4473
        %v4476 = vadd.f32 %v4468, %v4473
        %v4477 = vadd.f32 %v4469, %v4473
        %v4478 = vadd.f32 %v4470, %v4473
        %v4479 = vmax.f32 %v4475, 0.0
        %v4480 = vmax.f32 %v4476, 0.0
        %v4481 = vmax.f32 %v4477, 0.0
        %v4482 = vmax.f32 %v4478, 0.0
        %v4483 = vpack.c.bf16 %v4479, %v4479
        %v4484 = vpack.c.bf16 %v4480, %v4480
        %v4485 = vpack.c.bf16 %v4481, %v4481
        %v4486 = vpack.c.bf16 %v4482, %v4482
        %v4491 = vrot.slane %v4483, 2
        %v4492 = vrot.slane %v4484, 2
        %v4493 = vrot.slane %v4485, 2
        %v4494 = vrot.slane %v4486, 2
        %v4497 = vsel %vm1157, %v4483, %v4491
        %v4498 = vsel %vm1161, %v4483, %v4491
        %v4500 = vrot.slane %v4498, 2
        %v4503 = vsel %vm1157, %v4484, %v4492
        %v4504 = vsel %vm1161, %v4484, %v4492
        %v4506 = vrot.slane %v4504, 2
        %v4509 = vsel %vm1157, %v4485, %v4493
        %v4510 = vsel %vm1161, %v4485, %v4493
        %v4512 = vrot.slane %v4510, 2
        %v4515 = vsel %vm1157, %v4486, %v4494
        %v4516 = vsel %vm1161, %v4486, %v4494
        %v4518 = vrot.slane %v4516, 2
        %4519 = vst [vmem:[#allocation1] ss:$2 sm:$0xff] %v4497
        %v4520 = vld.sshfl [vmem:[#allocation1] sm:$0xff pattern:$0x75643120]
        %s4522 = scalar_lea.vmem [#allocation1], 16
        %4523 = vst [vmem:[%s4522] ss:$2 sm:$0xff] %v4500
        %v4524 = vld.sshfl [vmem:[#allocation1 + $0x10] sm:$0xff pattern:$0x75643120]
        %s4525 = scalar_lea.vmem [#allocation1], 32
        %4526 = vst [vmem:[%s4525] ss:$2 sm:$0xff] %v4503
        %v4527 = vld.sshfl [vmem:[#allocation1 + $0x20] sm:$0xff pattern:$0x75643120]
        %s4529 = scalar_lea.vmem [#allocation1], 48
        %4530 = vst [vmem:[%s4529] ss:$2 sm:$0xff] %v4506
        %v4531 = vld.sshfl [vmem:[#allocation1 + $0x30] sm:$0xff pattern:$0x75643120]
        %4532 = vst [vmem:[#allocation1] ss:$2 sm:$0xff] %v4509
        %v4533 = vld.sshfl [vmem:[#allocation1] sm:$0xff pattern:$0x75643120]
        %4535 = vst [vmem:[%s4522] ss:$2 sm:$0xff] %v4512
        %v4536 = vld.sshfl [vmem:[#allocation1 + $0x10] sm:$0xff pattern:$0x75643120]
        %4537 = vst [vmem:[%s4525] ss:$2 sm:$0xff] %v4515
        %v4538 = vld.sshfl [vmem:[#allocation1 + $0x20] sm:$0xff pattern:$0x75643120]
        %4540 = vst [vmem:[%s4529] ss:$2 sm:$0xff] %v4518
        %v4541 = vld.sshfl [vmem:[#allocation1 + $0x30] sm:$0xff pattern:$0x75643120]
        %v4542 = vshrl.u32 %v4520, 16
        %v4544 = vrot.slane %v4542, 7
        %v4545 = vshll.u32 %v4520, 16
        %v4547 = vor.u32 %v4544, %v4545
        %v4548 = vshrl.u32 %v4524, 16
        %v4550 = vrot.slane %v4548, 7
        %v4551 = vshll.u32 %v4524, 16
        %v4553 = vor.u32 %v4550, %v4551
        %v4554 = vshrl.u32 %v4527, 16
        %v4556 = vrot.slane %v4554, 7
        %v4557 = vshll.u32 %v4527, 16
        %v4559 = vor.u32 %v4556, %v4557
        %v4560 = vshrl.u32 %v4531, 16
        %v4562 = vrot.slane %v4560, 7
        %v4563 = vshll.u32 %v4531, 16
        %v4565 = vor.u32 %v4562, %v4563
        %v4566 = vshrl.u32 %v4533, 16
        %v4568 = vrot.slane %v4566, 7
        %v4569 = vshll.u32 %v4533, 16
        %v4571 = vor.u32 %v4568, %v4569
        %v4572 = vshrl.u32 %v4536, 16
        %v4574 = vrot.slane %v4572, 7
        %v4575 = vshll.u32 %v4536, 16
        %v4577 = vor.u32 %v4574, %v4575
        %v4578 = vshrl.u32 %v4538, 16
        %v4580 = vrot.slane %v4578, 7
        %v4581 = vshll.u32 %v4538, 16
        %v4583 = vor.u32 %v4580, %v4581
        %v4584 = vshrl.u32 %v4541, 16
        %v4586 = vrot.slane %v4584, 7
        %v4587 = vshll.u32 %v4541, 16
        %v4589 = vor.u32 %v4586, %v4587
        %s4598 = scalar_lea.vmem [#allocation2], 4
        %v4599 = vld [vmem:[%s4598] sm:$0x7]
        %v4600 = vsel %vm2517, %v4547, %v4599
        %4601 = vst [vmem:[%s4598] sm:$0x7] %v4600
        %v4602 = vld [vmem:[%s4598 + $0x4] sm:$0x7]
        %v4603 = vsel %vm2517, %v4553, %v4602
        %4604 = vst [vmem:[%s4598 + $0x4] sm:$0x7] %v4603
        %v4605 = vld [vmem:[%s4598 + $0x8] sm:$0x7]
        %v4606 = vsel %vm2517, %v4559, %v4605
        %4607 = vst [vmem:[%s4598 + $0x8] sm:$0x7] %v4606
        %v4608 = vld [vmem:[%s4598 + $0xc] sm:$0x7]
        %v4609 = vsel %vm2517, %v4565, %v4608
        %4610 = vst [vmem:[%s4598 + $0xc] sm:$0x7] %v4609
        %v4611 = vld [vmem:[%s4598 + $0x50] sm:$0x7]
        %v4612 = vsel %vm2517, %v4571, %v4611
        %4613 = vst [vmem:[%s4598 + $0x50] sm:$0x7] %v4612
        %v4614 = vld [vmem:[%s4598 + $0x54] sm:$0x7]
        %v4615 = vsel %vm2517, %v4577, %v4614
        %4616 = vst [vmem:[%s4598 + $0x54] sm:$0x7] %v4615
        %v4617 = vld [vmem:[%s4598 + $0x58] sm:$0x7]
        %v4618 = vsel %vm2517, %v4583, %v4617
        %4619 = vst [vmem:[%s4598 + $0x58] sm:$0x7] %v4618
        %v4620 = vld [vmem:[%s4598 + $0x5c] sm:$0x7]
        %v4621 = vsel %vm2517, %v4589, %v4620
        %4622 = vst [vmem:[%s4598 + $0x5c] sm:$0x7] %v4621
        %v4623 = vld [vmem:[#allocation2] sm:$0x3]
        %v4624 = vld [vmem:[#allocation2 + $0x4] sm:$0x3]
        %v4625 = vld [vmem:[#allocation2 + $0x8] sm:$0x3]
        %v4626 = vld [vmem:[#allocation2 + $0xc] sm:$0x3]
        %v4627 = vld [vmem:[#allocation2 + $0x50] sm:$0x3]
        %v4628 = vld [vmem:[#allocation2 + $0x54] sm:$0x3]
        %v4629 = vld [vmem:[#allocation2 + $0x58] sm:$0x3]
        %v4630 = vld [vmem:[#allocation2 + $0x5c] sm:$0x3]
        %v4631 = vld [vmem:[%s3] sm:$0xf]
        %v4632 = vld [vmem:[%s3 + $0x4] sm:$0xf]
        %v4633 = vld [vmem:[%s3 + $0x8] sm:$0xf]
        %v4634 = vld [vmem:[%s3 + $0xc] sm:$0xf]
        %v4635 = vld [vmem:[%s3 + $0x10] sm:$0xf]
        %v4636 = vld [vmem:[%s3 + $0x14] sm:$0xf]
        %v4637 = vld [vmem:[%s3 + $0x18] sm:$0xf]
        %v4638 = vld [vmem:[%s3 + $0x1c] sm:$0xf]
        %v4639 = vld [vmem:[%s3 + $0x20] sm:$0xf]
        %v4640 = vld [vmem:[%s3 + $0x24] sm:$0xf]
        %v4641 = vld [vmem:[%s3 + $0x28] sm:$0xf]
        %v4642 = vld [vmem:[%s3 + $0x2c] sm:$0xf]
        %v4643 = vld [vmem:[%s3 + $0x30] sm:$0xf]
        %v4644 = vld [vmem:[%s3 + $0x34] sm:$0xf]
        %v4645 = vld [vmem:[%s3 + $0x38] sm:$0xf]
        %v4646 = vld [vmem:[%s3 + $0x3c] sm:$0xf]
        %v4647 = vld [vmem:[%s325] sm:$0x3]
        %v4648 = vld [vmem:[%s325 + $0x4] sm:$0x3]
        %v4649 = vld [vmem:[%s325 + $0x8] sm:$0x3]
        %v4650 = vld [vmem:[%s325 + $0xc] sm:$0x3]
        %v4651 = vld [vmem:[%s325 + $0x50] sm:$0x3]
        %v4652 = vld [vmem:[%s325 + $0x54] sm:$0x3]
        %v4653 = vld [vmem:[%s325 + $0x58] sm:$0x3]
        %v4654 = vld [vmem:[%s325 + $0x5c] sm:$0x3]
        %s4655 = scalar_lea.vmem %s3, 64
        %v4656 = vld [vmem:[%s4655] sm:$0xf]
        %v4657 = vld [vmem:[%s4655 + $0x4] sm:$0xf]
        %v4658 = vld [vmem:[%s4655 + $0x8] sm:$0xf]
        %v4659 = vld [vmem:[%s4655 + $0xc] sm:$0xf]
        %v4660 = vld [vmem:[%s4655 + $0x10] sm:$0xf]
        %v4661 = vld [vmem:[%s4655 + $0x14] sm:$0xf]
        %v4662 = vld [vmem:[%s4655 + $0x18] sm:$0xf]
        %v4663 = vld [vmem:[%s4655 + $0x1c] sm:$0xf]
        %v4664 = vld [vmem:[%s4655 + $0x20] sm:$0xf]
        %v4665 = vld [vmem:[%s4655 + $0x24] sm:$0xf]
        %v4666 = vld [vmem:[%s4655 + $0x28] sm:$0xf]
        %v4667 = vld [vmem:[%s4655 + $0x2c] sm:$0xf]
        %v4668 = vld [vmem:[%s4655 + $0x30] sm:$0xf]
        %v4669 = vld [vmem:[%s4655 + $0x34] sm:$0xf]
        %v4670 = vld [vmem:[%s4655 + $0x38] sm:$0xf]
        %v4671 = vld [vmem:[%s4655 + $0x3c] sm:$0xf]
        %4673 = vst [vmem:[#allocation1] ss:$4 sm:$0xff] %v4647
        %s4675 = scalar_lea.vmem [#allocation1], 1
        %4676 = vst [vmem:[%s4675] ss:$4 sm:$0xff] %v4648
        %s4678 = scalar_lea.vmem [#allocation1], 2
        %4679 = vst [vmem:[%s4678] ss:$4 sm:$0xff] %v4649
        %s4681 = scalar_lea.vmem [#allocation1], 3
        %4682 = vst [vmem:[%s4681] ss:$4 sm:$0xff] %v4650
        %s4684 = scalar_lea.vmem [#allocation1], 32
        %4685 = vst [vmem:[%s4684] ss:$4 sm:$0xff] %v4651
        %s4687 = scalar_lea.vmem [#allocation1], 33
        %4688 = vst [vmem:[%s4687] ss:$4 sm:$0xff] %v4652
        %s4690 = scalar_lea.vmem [#allocation1], 34
        %4691 = vst [vmem:[%s4690] ss:$4 sm:$0xff] %v4653
        %s4693 = scalar_lea.vmem [#allocation1], 35
        %4694 = vst [vmem:[%s4693] ss:$4 sm:$0xff] %v4654
        %v4695 = vld.sshfl [vmem:[#allocation1] sm:$0xff pattern:$0x73625140]
        %v4696 = vld.sshfl [vmem:[#allocation1 + $0x20] sm:$0xff pattern:$0x73625140]
        %v4715 = vunpack.c.l.b16 %v4656
        %v4716 = vunpack.c.l.b16 %v4657
        %v4717 = vunpack.c.l.b16 %v4658
        %v4718 = vunpack.c.l.b16 %v4659
        %v4719 = vunpack.c.l.b16 %v4660
        %v4720 = vunpack.c.l.b16 %v4661
        %v4721 = vunpack.c.l.b16 %v4662
        %v4722 = vunpack.c.l.b16 %v4663
        %v4723 = vunpack.c.l.b16 %v4664
        %v4724 = vunpack.c.l.b16 %v4665
        %v4725 = vunpack.c.l.b16 %v4666
        %v4726 = vunpack.c.l.b16 %v4667
        %v4727 = vunpack.c.l.b16 %v4668
        %v4728 = vunpack.c.l.b16 %v4669
        %v4729 = vunpack.c.l.b16 %v4670
        %v4730 = vunpack.c.l.b16 %v4671
        %v4731 = vpack.c.b16 %v4716, %v4715
        %v4732 = vpack.c.b16 %v4718, %v4717
        %v4733 = vpack.c.b16 %v4720, %v4719
        %v4734 = vpack.c.b16 %v4722, %v4721
        %v4735 = vpack.c.b16 %v4724, %v4723
        %v4736 = vpack.c.b16 %v4726, %v4725
        %v4737 = vpack.c.b16 %v4728, %v4727
        %v4738 = vpack.c.b16 %v4730, %v4729
        %4747 = vmatpush.bf16.msra.mxu0 %v4738
        %4748 = vmatpush.bf16.msra.mxu0 %v4737
        %4749 = vmatpush.bf16.msra.mxu0 %v4736
        %4750 = vmatpush.bf16.msra.mxu0 %v4735
        %4751 = vmatpush.bf16.msra.mxu0 %v4734
        %4752 = vmatpush.bf16.msra.mxu0 %v4733
        %4753 = vmatpush.bf16.msra.mxu0 %v4732
        %4754 = vmatpush.bf16.msra.mxu0 %v4731
        %4755 = vmatmul.bf16.gmra.mxu0 %v4695
        %v4756 = vpop.f32.mrf.mxu0
        %v4757 = vadd.f32 0.0, %v4756
        %v4758 = vpop.f32.mrf.mxu0
        %v4759 = vadd.f32 0.0, %v4758
        %4760 = vmatmul.bf16.gmra.mxu0 %v4696
        %v4761 = vpop.f32.mrf.mxu0
        %v4762 = vadd.f32 0.0, %v4761
        %v4763 = vpop.f32.mrf.mxu0
        %v4764 = vadd.f32 0.0, %v4763
        %4765 = vdwg.mxu0
        %4767 = vst [vmem:[#allocation1] ss:$4 sm:$0xff] %v4623
        %s4769 = scalar_lea.vmem [#allocation1], 1
        %4770 = vst [vmem:[%s4769] ss:$4 sm:$0xff] %v4624
        %s4772 = scalar_lea.vmem [#allocation1], 2
        %4773 = vst [vmem:[%s4772] ss:$4 sm:$0xff] %v4625
        %s4775 = scalar_lea.vmem [#allocation1], 3
        %4776 = vst [vmem:[%s4775] ss:$4 sm:$0xff] %v4626
        %s4778 = scalar_lea.vmem [#allocation1], 32
        %4779 = vst [vmem:[%s4778] ss:$4 sm:$0xff] %v4627
        %s4781 = scalar_lea.vmem [#allocation1], 33
        %4782 = vst [vmem:[%s4781] ss:$4 sm:$0xff] %v4628
        %s4784 = scalar_lea.vmem [#allocation1], 34
        %4785 = vst [vmem:[%s4784] ss:$4 sm:$0xff] %v4629
        %s4787 = scalar_lea.vmem [#allocation1], 35
        %4788 = vst [vmem:[%s4787] ss:$4 sm:$0xff] %v4630
        %v4789 = vld.sshfl [vmem:[#allocation1] sm:$0xff pattern:$0x73625140]
        %v4790 = vld.sshfl [vmem:[#allocation1 + $0x20] sm:$0xff pattern:$0x73625140]
        %v4809 = vunpack.c.l.b16 %v4631
        %v4810 = vunpack.c.l.b16 %v4632
        %v4811 = vunpack.c.l.b16 %v4633
        %v4812 = vunpack.c.l.b16 %v4634
        %v4813 = vunpack.c.l.b16 %v4635
        %v4814 = vunpack.c.l.b16 %v4636
        %v4815 = vunpack.c.l.b16 %v4637
        %v4816 = vunpack.c.l.b16 %v4638
        %v4817 = vunpack.c.l.b16 %v4639
        %v4818 = vunpack.c.l.b16 %v4640
        %v4819 = vunpack.c.l.b16 %v4641
        %v4820 = vunpack.c.l.b16 %v4642
        %v4821 = vunpack.c.l.b16 %v4643
        %v4822 = vunpack.c.l.b16 %v4644
        %v4823 = vunpack.c.l.b16 %v4645
        %v4824 = vunpack.c.l.b16 %v4646
        %v4825 = vpack.c.b16 %v4810, %v4809
        %v4826 = vpack.c.b16 %v4812, %v4811
        %v4827 = vpack.c.b16 %v4814, %v4813
        %v4828 = vpack.c.b16 %v4816, %v4815
        %v4829 = vpack.c.b16 %v4818, %v4817
        %v4830 = vpack.c.b16 %v4820, %v4819
        %v4831 = vpack.c.b16 %v4822, %v4821
        %v4832 = vpack.c.b16 %v4824, %v4823
        %4841 = vmatpush.bf16.msra.mxu0 %v4832
        %4842 = vmatpush.bf16.msra.mxu0 %v4831
        %4843 = vmatpush.bf16.msra.mxu0 %v4830
        %4844 = vmatpush.bf16.msra.mxu0 %v4829
        %4845 = vmatpush.bf16.msra.mxu0 %v4828
        %4846 = vmatpush.bf16.msra.mxu0 %v4827
        %4847 = vmatpush.bf16.msra.mxu0 %v4826
        %4848 = vmatpush.bf16.msra.mxu0 %v4825
        %4849 = vmatmul.bf16.gmra.mxu0 %v4789
        %v4850 = vpop.f32.mrf.mxu0
        %v4851 = vadd.f32 %v4757, %v4850
        %v4852 = vpop.f32.mrf.mxu0
        %v4853 = vadd.f32 %v4759, %v4852
        %4854 = vmatmul.bf16.gmra.mxu0 %v4790
        %v4855 = vpop.f32.mrf.mxu0
        %v4856 = vadd.f32 %v4762, %v4855
        %v4857 = vpop.f32.mrf.mxu0
        %v4858 = vadd.f32 %v4764, %v4857
        %4859 = vdwg.mxu0
        %v4860 = vld [vmem:[#allocation2] sm:$0x7]
        %v4861 = vld [vmem:[#allocation2 + $0x4] sm:$0x7]
        %v4862 = vld [vmem:[#allocation2 + $0x8] sm:$0x7]
        %v4863 = vld [vmem:[#allocation2 + $0xc] sm:$0x7]
        %v4864 = vld [vmem:[#allocation2 + $0x50] sm:$0x7]
        %v4865 = vld [vmem:[#allocation2 + $0x54] sm:$0x7]
        %v4866 = vld [vmem:[#allocation2 + $0x58] sm:$0x7]
        %v4867 = vld [vmem:[#allocation2 + $0x5c] sm:$0x7]
        %v4876 = vrot.slane %v4860, 2
        %v4877 = vrot.slane %v4861, 2
        %v4878 = vrot.slane %v4862, 2
        %v4879 = vrot.slane %v4863, 2
        %v4880 = vrot.slane %v4864, 2
        %v4881 = vrot.slane %v4865, 2
        %v4882 = vrot.slane %v4866, 2
        %v4883 = vrot.slane %v4867, 2
        %v4886 = vsel %vm1157, %v4860, %v4876
        %v4887 = vsel %vm1161, %v4860, %v4876
        %v4889 = vrot.slane %v4887, 2
        %v4892 = vsel %vm1157, %v4861, %v4877
        %v4893 = vsel %vm1161, %v4861, %v4877
        %v4895 = vrot.slane %v4893, 2
        %v4898 = vsel %vm1157, %v4862, %v4878
        %v4899 = vsel %vm1161, %v4862, %v4878
        %v4901 = vrot.slane %v4899, 2
        %v4904 = vsel %vm1157, %v4863, %v4879
        %v4905 = vsel %vm1161, %v4863, %v4879
        %v4907 = vrot.slane %v4905, 2
        %v4910 = vsel %vm1157, %v4864, %v4880
        %v4911 = vsel %vm1161, %v4864, %v4880
        %v4913 = vrot.slane %v4911, 2
        %v4916 = vsel %vm1157, %v4865, %v4881
        %v4917 = vsel %vm1161, %v4865, %v4881
        %v4919 = vrot.slane %v4917, 2
        %v4922 = vsel %vm1157, %v4866, %v4882
        %v4923 = vsel %vm1161, %v4866, %v4882
        %v4925 = vrot.slane %v4923, 2
        %v4928 = vsel %vm1157, %v4867, %v4883
        %v4929 = vsel %vm1161, %v4867, %v4883
        %v4931 = vrot.slane %v4929, 2
        %v4932 = vshrl.u32 %v4886, 16
        %v4934 = vrot.slane %v4932, 6
        %v4935 = vshll.u32 %v4886, 16
        %v4937 = vrot.slane %v4935, 7
        %v4938 = vor.u32 %v4934, %v4937
        %v4939 = vrot.slane %v4938, 2
        %v4941 = vshll.u32 %v4889, 16
        %v4943 = vrot.slane %v4941, 7
        %v4944 = vsel %vm1422, %v4939, %v4943
        %v4945 = vshrl.u32 %v4892, 16
        %v4947 = vrot.slane %v4945, 6
        %v4948 = vshll.u32 %v4892, 16
        %v4950 = vrot.slane %v4948, 7
        %v4951 = vor.u32 %v4947, %v4950
        %v4952 = vrot.slane %v4951, 2
        %v4954 = vshll.u32 %v4895, 16
        %v4956 = vrot.slane %v4954, 7
        %v4957 = vsel %vm1422, %v4952, %v4956
        %v4958 = vshrl.u32 %v4898, 16
        %v4960 = vrot.slane %v4958, 6
        %v4961 = vshll.u32 %v4898, 16
        %v4963 = vrot.slane %v4961, 7
        %v4964 = vor.u32 %v4960, %v4963
        %v4965 = vrot.slane %v4964, 2
        %v4967 = vshll.u32 %v4901, 16
        %v4969 = vrot.slane %v4967, 7
        %v4970 = vsel %vm1422, %v4965, %v4969
        %v4971 = vshrl.u32 %v4904, 16
        %v4973 = vrot.slane %v4971, 6
        %v4974 = vshll.u32 %v4904, 16
        %v4976 = vrot.slane %v4974, 7
        %v4977 = vor.u32 %v4973, %v4976
        %v4978 = vrot.slane %v4977, 2
        %v4980 = vshll.u32 %v4907, 16
        %v4982 = vrot.slane %v4980, 7
        %v4983 = vsel %vm1422, %v4978, %v4982
        %v4984 = vshrl.u32 %v4910, 16
        %v4986 = vrot.slane %v4984, 6
        %v4987 = vshll.u32 %v4910, 16
        %v4989 = vrot.slane %v4987, 7
        %v4990 = vor.u32 %v4986, %v4989
        %v4991 = vrot.slane %v4990, 2
        %v4993 = vshll.u32 %v4913, 16
        %v4995 = vrot.slane %v4993, 7
        %v4996 = vsel %vm1422, %v4991, %v4995
        %v4997 = vshrl.u32 %v4916, 16
        %v4999 = vrot.slane %v4997, 6
        %v5000 = vshll.u32 %v4916, 16
        %v5002 = vrot.slane %v5000, 7
        %v5003 = vor.u32 %v4999, %v5002
        %v5004 = vrot.slane %v5003, 2
        %v5006 = vshll.u32 %v4919, 16
        %v5008 = vrot.slane %v5006, 7
        %v5009 = vsel %vm1422, %v5004, %v5008
        %v5010 = vshrl.u32 %v4922, 16
        %v5012 = vrot.slane %v5010, 6
        %v5013 = vshll.u32 %v4922, 16
        %v5015 = vrot.slane %v5013, 7
        %v5016 = vor.u32 %v5012, %v5015
        %v5017 = vrot.slane %v5016, 2
        %v5019 = vshll.u32 %v4925, 16
        %v5021 = vrot.slane %v5019, 7
        %v5022 = vsel %vm1422, %v5017, %v5021
        %v5023 = vshrl.u32 %v4928, 16
        %v5025 = vrot.slane %v5023, 6
        %v5026 = vshll.u32 %v4928, 16
        %v5028 = vrot.slane %v5026, 7
        %v5029 = vor.u32 %v5025, %v5028
        %v5030 = vrot.slane %v5029, 2
        %v5032 = vshll.u32 %v4931, 16
        %v5034 = vrot.slane %v5032, 7
        %v5035 = vsel %vm1422, %v5030, %v5034
        %s5036 = scalar_lea.vmem %s3, 128
        %v5037 = vld [vmem:[%s5036] sm:$0xf]
        %v5038 = vld [vmem:[%s5036 + $0x4] sm:$0xf]
        %v5039 = vld [vmem:[%s5036 + $0x8] sm:$0xf]
        %v5040 = vld [vmem:[%s5036 + $0xc] sm:$0xf]
        %v5041 = vld [vmem:[%s5036 + $0x10] sm:$0xf]
        %v5042 = vld [vmem:[%s5036 + $0x14] sm:$0xf]
        %v5043 = vld [vmem:[%s5036 + $0x18] sm:$0xf]
        %v5044 = vld [vmem:[%s5036 + $0x1c] sm:$0xf]
        %v5045 = vld [vmem:[%s5036 + $0x20] sm:$0xf]
        %v5046 = vld [vmem:[%s5036 + $0x24] sm:$0xf]
        %v5047 = vld [vmem:[%s5036 + $0x28] sm:$0xf]
        %v5048 = vld [vmem:[%s5036 + $0x2c] sm:$0xf]
        %v5049 = vld [vmem:[%s5036 + $0x30] sm:$0xf]
        %v5050 = vld [vmem:[%s5036 + $0x34] sm:$0xf]
        %v5051 = vld [vmem:[%s5036 + $0x38] sm:$0xf]
        %v5052 = vld [vmem:[%s5036 + $0x3c] sm:$0xf]
        %5054 = vst [vmem:[#allocation1] ss:$4 sm:$0xff] %v4944
        %s5056 = scalar_lea.vmem [#allocation1], 1
        %5057 = vst [vmem:[%s5056] ss:$4 sm:$0xff] %v4957
        %s5059 = scalar_lea.vmem [#allocation1], 2
        %5060 = vst [vmem:[%s5059] ss:$4 sm:$0xff] %v4970
        %s5062 = scalar_lea.vmem [#allocation1], 3
        %5063 = vst [vmem:[%s5062] ss:$4 sm:$0xff] %v4983
        %s5065 = scalar_lea.vmem [#allocation1], 32
        %5066 = vst [vmem:[%s5065] ss:$4 sm:$0xff] %v4996
        %s5068 = scalar_lea.vmem [#allocation1], 33
        %5069 = vst [vmem:[%s5068] ss:$4 sm:$0xff] %v5009
        %s5071 = scalar_lea.vmem [#allocation1], 34
        %5072 = vst [vmem:[%s5071] ss:$4 sm:$0xff] %v5022
        %s5074 = scalar_lea.vmem [#allocation1], 35
        %5075 = vst [vmem:[%s5074] ss:$4 sm:$0xff] %v5035
        %v5076 = vld.sshfl [vmem:[#allocation1] sm:$0xff pattern:$0x73625140]
        %v5077 = vld.sshfl [vmem:[#allocation1 + $0x20] sm:$0xff pattern:$0x73625140]
        %v5096 = vunpack.c.l.b16 %v5037
        %v5097 = vunpack.c.l.b16 %v5038
        %v5098 = vunpack.c.l.b16 %v5039
        %v5099 = vunpack.c.l.b16 %v5040
        %v5100 = vunpack.c.l.b16 %v5041
        %v5101 = vunpack.c.l.b16 %v5042
        %v5102 = vunpack.c.l.b16 %v5043
        %v5103 = vunpack.c.l.b16 %v5044
        %v5104 = vunpack.c.l.b16 %v5045
        %v5105 = vunpack.c.l.b16 %v5046
        %v5106 = vunpack.c.l.b16 %v5047
        %v5107 = vunpack.c.l.b16 %v5048
        %v5108 = vunpack.c.l.b16 %v5049
        %v5109 = vunpack.c.l.b16 %v5050
        %v5110 = vunpack.c.l.b16 %v5051
        %v5111 = vunpack.c.l.b16 %v5052
        %v5112 = vpack.c.b16 %v5097, %v5096
        %v5113 = vpack.c.b16 %v5099, %v5098
        %v5114 = vpack.c.b16 %v5101, %v5100
        %v5115 = vpack.c.b16 %v5103, %v5102
        %v5116 = vpack.c.b16 %v5105, %v5104
        %v5117 = vpack.c.b16 %v5107, %v5106
        %v5118 = vpack.c.b16 %v5109, %v5108
        %v5119 = vpack.c.b16 %v5111, %v5110
        %5128 = vmatpush.bf16.msra.mxu0 %v5119
        %5129 = vmatpush.bf16.msra.mxu0 %v5118
        %5130 = vmatpush.bf16.msra.mxu0 %v5117
        %5131 = vmatpush.bf16.msra.mxu0 %v5116
        %5132 = vmatpush.bf16.msra.mxu0 %v5115
        %5133 = vmatpush.bf16.msra.mxu0 %v5114
        %5134 = vmatpush.bf16.msra.mxu0 %v5113
        %5135 = vmatpush.bf16.msra.mxu0 %v5112
        %5136 = vmatmul.bf16.gmra.mxu0 %v5076
        %v5137 = vpop.f32.mrf.mxu0
        %v5138 = vadd.f32 0.0, %v5137
        %v5139 = vpop.f32.mrf.mxu0
        %v5140 = vadd.f32 0.0, %v5139
        %5141 = vmatmul.bf16.gmra.mxu0 %v5077
        %v5142 = vpop.f32.mrf.mxu0
        %v5143 = vadd.f32 0.0, %v5142
        %v5144 = vpop.f32.mrf.mxu0
        %v5145 = vadd.f32 0.0, %v5144
        %5146 = vdwg.mxu0
        %v5147 = vadd.f32 %v4851, %v5138
        %v5148 = vadd.f32 %v4853, %v5140
        %v5149 = vadd.f32 %v4856, %v5143
        %v5150 = vadd.f32 %v4858, %v5145
        %v5151 = vld [vmem:[%s371] sm:$0x3]
        %v5152 = vld [vmem:[%s371 + $0x4] sm:$0x3]
        %v5153 = vld [vmem:[%s371 + $0x8] sm:$0x3]
        %v5154 = vld [vmem:[%s371 + $0xc] sm:$0x3]
        %v5155 = vld [vmem:[%s371 + $0x50] sm:$0x3]
        %v5156 = vld [vmem:[%s371 + $0x54] sm:$0x3]
        %v5157 = vld [vmem:[%s371 + $0x58] sm:$0x3]
        %v5158 = vld [vmem:[%s371 + $0x5c] sm:$0x3]
        %s5159 = scalar_lea.vmem %s3, 192
        %v5160 = vld [vmem:[%s5159] sm:$0xf]
        %v5161 = vld [vmem:[%s5159 + $0x4] sm:$0xf]
        %v5162 = vld [vmem:[%s5159 + $0x8] sm:$0xf]
        %v5163 = vld [vmem:[%s5159 + $0xc] sm:$0xf]
        %v5164 = vld [vmem:[%s5159 + $0x10] sm:$0xf]
        %v5165 = vld [vmem:[%s5159 + $0x14] sm:$0xf]
        %v5166 = vld [vmem:[%s5159 + $0x18] sm:$0xf]
        %v5167 = vld [vmem:[%s5159 + $0x1c] sm:$0xf]
        %v5168 = vld [vmem:[%s5159 + $0x20] sm:$0xf]
        %v5169 = vld [vmem:[%s5159 + $0x24] sm:$0xf]
        %v5170 = vld [vmem:[%s5159 + $0x28] sm:$0xf]
        %v5171 = vld [vmem:[%s5159 + $0x2c] sm:$0xf]
        %v5172 = vld [vmem:[%s5159 + $0x30] sm:$0xf]
        %v5173 = vld [vmem:[%s5159 + $0x34] sm:$0xf]
        %v5174 = vld [vmem:[%s5159 + $0x38] sm:$0xf]
        %v5175 = vld [vmem:[%s5159 + $0x3c] sm:$0xf]
        %5177 = vst [vmem:[#allocation1] ss:$4 sm:$0xff] %v5151
        %s5179 = scalar_lea.vmem [#allocation1], 1
        %5180 = vst [vmem:[%s5179] ss:$4 sm:$0xff] %v5152
        %s5182 = scalar_lea.vmem [#allocation1], 2
        %5183 = vst [vmem:[%s5182] ss:$4 sm:$0xff] %v5153
        %s5185 = scalar_lea.vmem [#allocation1], 3
        %5186 = vst [vmem:[%s5185] ss:$4 sm:$0xff] %v5154
        %s5188 = scalar_lea.vmem [#allocation1], 32
        %5189 = vst [vmem:[%s5188] ss:$4 sm:$0xff] %v5155
        %s5191 = scalar_lea.vmem [#allocation1], 33
        %5192 = vst [vmem:[%s5191] ss:$4 sm:$0xff] %v5156
        %s5194 = scalar_lea.vmem [#allocation1], 34
        %5195 = vst [vmem:[%s5194] ss:$4 sm:$0xff] %v5157
        %s5197 = scalar_lea.vmem [#allocation1], 35
        %5198 = vst [vmem:[%s5197] ss:$4 sm:$0xff] %v5158
        %v5199 = vld.sshfl [vmem:[#allocation1] sm:$0xff pattern:$0x73625140]
        %v5200 = vld.sshfl [vmem:[#allocation1 + $0x20] sm:$0xff pattern:$0x73625140]
        %v5219 = vunpack.c.l.b16 %v5160
        %v5220 = vunpack.c.l.b16 %v5161
        %v5221 = vunpack.c.l.b16 %v5162
        %v5222 = vunpack.c.l.b16 %v5163
        %v5223 = vunpack.c.l.b16 %v5164
        %v5224 = vunpack.c.l.b16 %v5165
        %v5225 = vunpack.c.l.b16 %v5166
        %v5226 = vunpack.c.l.b16 %v5167
        %v5227 = vunpack.c.l.b16 %v5168
        %v5228 = vunpack.c.l.b16 %v5169
        %v5229 = vunpack.c.l.b16 %v5170
        %v5230 = vunpack.c.l.b16 %v5171
        %v5231 = vunpack.c.l.b16 %v5172
        %v5232 = vunpack.c.l.b16 %v5173
        %v5233 = vunpack.c.l.b16 %v5174
        %v5234 = vunpack.c.l.b16 %v5175
        %v5235 = vpack.c.b16 %v5220, %v5219
        %v5236 = vpack.c.b16 %v5222, %v5221
        %v5237 = vpack.c.b16 %v5224, %v5223
        %v5238 = vpack.c.b16 %v5226, %v5225
        %v5239 = vpack.c.b16 %v5228, %v5227
        %v5240 = vpack.c.b16 %v5230, %v5229
        %v5241 = vpack.c.b16 %v5232, %v5231
        %v5242 = vpack.c.b16 %v5234, %v5233
        %5251 = vmatpush.bf16.msra.mxu0 %v5242
        %5252 = vmatpush.bf16.msra.mxu0 %v5241
        %5253 = vmatpush.bf16.msra.mxu0 %v5240
        %5254 = vmatpush.bf16.msra.mxu0 %v5239
        %5255 = vmatpush.bf16.msra.mxu0 %v5238
        %5256 = vmatpush.bf16.msra.mxu0 %v5237
        %5257 = vmatpush.bf16.msra.mxu0 %v5236
        %5258 = vmatpush.bf16.msra.mxu0 %v5235
        %5259 = vmatmul.bf16.gmra.mxu0 %v5199
        %v5260 = vpop.f32.mrf.mxu0
        %v5261 = vadd.f32 0.0, %v5260
        %v5262 = vpop.f32.mrf.mxu0
        %v5263 = vadd.f32 0.0, %v5262
        %5264 = vmatmul.bf16.gmra.mxu0 %v5200
        %v5265 = vpop.f32.mrf.mxu0
        %v5266 = vadd.f32 0.0, %v5265
        %v5267 = vpop.f32.mrf.mxu0
        %v5268 = vadd.f32 0.0, %v5267
        %5269 = vdwg.mxu0
        %v5270 = vadd.f32 %v5147, %v5261
        %v5271 = vadd.f32 %v5148, %v5263
        %v5272 = vadd.f32 %v5149, %v5266
        %v5273 = vadd.f32 %v5150, %v5268
        %v5274 = vld [vmem:[%s409] sm:$0x3]
        %v5275 = vld [vmem:[%s409 + $0x4] sm:$0x3]
        %v5276 = vld [vmem:[%s409 + $0x8] sm:$0x3]
        %v5277 = vld [vmem:[%s409 + $0xc] sm:$0x3]
        %v5278 = vld [vmem:[%s409 + $0x50] sm:$0x3]
        %v5279 = vld [vmem:[%s409 + $0x54] sm:$0x3]
        %v5280 = vld [vmem:[%s409 + $0x58] sm:$0x3]
        %v5281 = vld [vmem:[%s409 + $0x5c] sm:$0x3]
        %s5282 = scalar_lea.vmem %s3, 256
        %v5283 = vld [vmem:[%s5282] sm:$0xf]
        %v5284 = vld [vmem:[%s5282 + $0x4] sm:$0xf]
        %v5285 = vld [vmem:[%s5282 + $0x8] sm:$0xf]
        %v5286 = vld [vmem:[%s5282 + $0xc] sm:$0xf]
        %v5287 = vld [vmem:[%s5282 + $0x10] sm:$0xf]
        %v5288 = vld [vmem:[%s5282 + $0x14] sm:$0xf]
        %v5289 = vld [vmem:[%s5282 + $0x18] sm:$0xf]
        %v5290 = vld [vmem:[%s5282 + $0x1c] sm:$0xf]
        %v5291 = vld [vmem:[%s5282 + $0x20] sm:$0xf]
        %v5292 = vld [vmem:[%s5282 + $0x24] sm:$0xf]
        %v5293 = vld [vmem:[%s5282 + $0x28] sm:$0xf]
        %v5294 = vld [vmem:[%s5282 + $0x2c] sm:$0xf]
        %v5295 = vld [vmem:[%s5282 + $0x30] sm:$0xf]
        %v5296 = vld [vmem:[%s5282 + $0x34] sm:$0xf]
        %v5297 = vld [vmem:[%s5282 + $0x38] sm:$0xf]
        %v5298 = vld [vmem:[%s5282 + $0x3c] sm:$0xf]
        %5300 = vst [vmem:[#allocation1] ss:$4 sm:$0xff] %v5274
        %s5302 = scalar_lea.vmem [#allocation1], 1
        %5303 = vst [vmem:[%s5302] ss:$4 sm:$0xff] %v5275
        %s5305 = scalar_lea.vmem [#allocation1], 2
        %5306 = vst [vmem:[%s5305] ss:$4 sm:$0xff] %v5276
        %s5308 = scalar_lea.vmem [#allocation1], 3
        %5309 = vst [vmem:[%s5308] ss:$4 sm:$0xff] %v5277
        %s5311 = scalar_lea.vmem [#allocation1], 32
        %5312 = vst [vmem:[%s5311] ss:$4 sm:$0xff] %v5278
        %s5314 = scalar_lea.vmem [#allocation1], 33
        %5315 = vst [vmem:[%s5314] ss:$4 sm:$0xff] %v5279
        %s5317 = scalar_lea.vmem [#allocation1], 34
        %5318 = vst [vmem:[%s5317] ss:$4 sm:$0xff] %v5280
        %s5320 = scalar_lea.vmem [#allocation1], 35
        %5321 = vst [vmem:[%s5320] ss:$4 sm:$0xff] %v5281
        %v5322 = vld.sshfl [vmem:[#allocation1] sm:$0xff pattern:$0x73625140]
        %v5323 = vld.sshfl [vmem:[#allocation1 + $0x20] sm:$0xff pattern:$0x73625140]
        %v5342 = vunpack.c.l.b16 %v5283
        %v5343 = vunpack.c.l.b16 %v5284
        %v5344 = vunpack.c.l.b16 %v5285
        %v5345 = vunpack.c.l.b16 %v5286
        %v5346 = vunpack.c.l.b16 %v5287
        %v5347 = vunpack.c.l.b16 %v5288
        %v5348 = vunpack.c.l.b16 %v5289
        %v5349 = vunpack.c.l.b16 %v5290
        %v5350 = vunpack.c.l.b16 %v5291
        %v5351 = vunpack.c.l.b16 %v5292
        %v5352 = vunpack.c.l.b16 %v5293
        %v5353 = vunpack.c.l.b16 %v5294
        %v5354 = vunpack.c.l.b16 %v5295
        %v5355 = vunpack.c.l.b16 %v5296
        %v5356 = vunpack.c.l.b16 %v5297
        %v5357 = vunpack.c.l.b16 %v5298
        %v5358 = vpack.c.b16 %v5343, %v5342
        %v5359 = vpack.c.b16 %v5345, %v5344
        %v5360 = vpack.c.b16 %v5347, %v5346
        %v5361 = vpack.c.b16 %v5349, %v5348
        %v5362 = vpack.c.b16 %v5351, %v5350
        %v5363 = vpack.c.b16 %v5353, %v5352
        %v5364 = vpack.c.b16 %v5355, %v5354
        %v5365 = vpack.c.b16 %v5357, %v5356
        %5374 = vmatpush.bf16.msra.mxu0 %v5365
        %5375 = vmatpush.bf16.msra.mxu0 %v5364
        %5376 = vmatpush.bf16.msra.mxu0 %v5363
        %5377 = vmatpush.bf16.msra.mxu0 %v5362
        %5378 = vmatpush.bf16.msra.mxu0 %v5361
        %5379 = vmatpush.bf16.msra.mxu0 %v5360
        %5380 = vmatpush.bf16.msra.mxu0 %v5359
        %5381 = vmatpush.bf16.msra.mxu0 %v5358
        %5382 = vmatmul.bf16.gmra.mxu0 %v5322
        %v5383 = vpop.f32.mrf.mxu0
        %v5384 = vadd.f32 0.0, %v5383
        %v5385 = vpop.f32.mrf.mxu0
        %v5386 = vadd.f32 0.0, %v5385
        %5387 = vmatmul.bf16.gmra.mxu0 %v5323
        %v5388 = vpop.f32.mrf.mxu0
        %v5389 = vadd.f32 0.0, %v5388
        %v5390 = vpop.f32.mrf.mxu0
        %v5391 = vadd.f32 0.0, %v5390
        %5392 = vdwg.mxu0
        %v5393 = vadd.f32 %v5270, %v5384
        %v5394 = vadd.f32 %v5271, %v5386
        %v5395 = vadd.f32 %v5272, %v5389
        %v5396 = vadd.f32 %v5273, %v5391
        %v5397 = vld [vmem:[%s371] sm:$0x7]
        %v5398 = vld [vmem:[%s371 + $0x4] sm:$0x7]
        %v5399 = vld [vmem:[%s371 + $0x8] sm:$0x7]
        %v5400 = vld [vmem:[%s371 + $0xc] sm:$0x7]
        %v5401 = vld [vmem:[%s371 + $0x50] sm:$0x7]
        %v5402 = vld [vmem:[%s371 + $0x54] sm:$0x7]
        %v5403 = vld [vmem:[%s371 + $0x58] sm:$0x7]
        %v5404 = vld [vmem:[%s371 + $0x5c] sm:$0x7]
        %v5413 = vrot.slane %v5397, 2
        %v5414 = vrot.slane %v5398, 2
        %v5415 = vrot.slane %v5399, 2
        %v5416 = vrot.slane %v5400, 2
        %v5417 = vrot.slane %v5401, 2
        %v5418 = vrot.slane %v5402, 2
        %v5419 = vrot.slane %v5403, 2
        %v5420 = vrot.slane %v5404, 2
        %v5423 = vsel %vm1157, %v5397, %v5413
        %v5424 = vsel %vm1161, %v5397, %v5413
        %v5426 = vrot.slane %v5424, 2
        %v5429 = vsel %vm1157, %v5398, %v5414
        %v5430 = vsel %vm1161, %v5398, %v5414
        %v5432 = vrot.slane %v5430, 2
        %v5435 = vsel %vm1157, %v5399, %v5415
        %v5436 = vsel %vm1161, %v5399, %v5415
        %v5438 = vrot.slane %v5436, 2
        %v5441 = vsel %vm1157, %v5400, %v5416
        %v5442 = vsel %vm1161, %v5400, %v5416
        %v5444 = vrot.slane %v5442, 2
        %v5447 = vsel %vm1157, %v5401, %v5417
        %v5448 = vsel %vm1161, %v5401, %v5417
        %v5450 = vrot.slane %v5448, 2
        %v5453 = vsel %vm1157, %v5402, %v5418
        %v5454 = vsel %vm1161, %v5402, %v5418
        %v5456 = vrot.slane %v5454, 2
        %v5459 = vsel %vm1157, %v5403, %v5419
        %v5460 = vsel %vm1161, %v5403, %v5419
        %v5462 = vrot.slane %v5460, 2
        %v5465 = vsel %vm1157, %v5404, %v5420
        %v5466 = vsel %vm1161, %v5404, %v5420
        %v5468 = vrot.slane %v5466, 2
        %v5469 = vshrl.u32 %v5423, 16
        %v5471 = vrot.slane %v5469, 6
        %v5472 = vshll.u32 %v5423, 16
        %v5474 = vrot.slane %v5472, 7
        %v5475 = vor.u32 %v5471, %v5474
        %v5476 = vrot.slane %v5475, 2
        %v5478 = vshll.u32 %v5426, 16
        %v5480 = vrot.slane %v5478, 7
        %v5481 = vsel %vm1422, %v5476, %v5480
        %v5482 = vshrl.u32 %v5429, 16
        %v5484 = vrot.slane %v5482, 6
        %v5485 = vshll.u32 %v5429, 16
        %v5487 = vrot.slane %v5485, 7
        %v5488 = vor.u32 %v5484, %v5487
        %v5489 = vrot.slane %v5488, 2
        %v5491 = vshll.u32 %v5432, 16
        %v5493 = vrot.slane %v5491, 7
        %v5494 = vsel %vm1422, %v5489, %v5493
        %v5495 = vshrl.u32 %v5435, 16
        %v5497 = vrot.slane %v5495, 6
        %v5498 = vshll.u32 %v5435, 16
        %v5500 = vrot.slane %v5498, 7
        %v5501 = vor.u32 %v5497, %v5500
        %v5502 = vrot.slane %v5501, 2
        %v5504 = vshll.u32 %v5438, 16
        %v5506 = vrot.slane %v5504, 7
        %v5507 = vsel %vm1422, %v5502, %v5506
        %v5508 = vshrl.u32 %v5441, 16
        %v5510 = vrot.slane %v5508, 6
        %v5511 = vshll.u32 %v5441, 16
        %v5513 = vrot.slane %v5511, 7
        %v5514 = vor.u32 %v5510, %v5513
        %v5515 = vrot.slane %v5514, 2
        %v5517 = vshll.u32 %v5444, 16
        %v5519 = vrot.slane %v5517, 7
        %v5520 = vsel %vm1422, %v5515, %v5519
        %v5521 = vshrl.u32 %v5447, 16
        %v5523 = vrot.slane %v5521, 6
        %v5524 = vshll.u32 %v5447, 16
        %v5526 = vrot.slane %v5524, 7
        %v5527 = vor.u32 %v5523, %v5526
        %v5528 = vrot.slane %v5527, 2
        %v5530 = vshll.u32 %v5450, 16
        %v5532 = vrot.slane %v5530, 7
        %v5533 = vsel %vm1422, %v5528, %v5532
        %v5534 = vshrl.u32 %v5453, 16
        %v5536 = vrot.slane %v5534, 6
        %v5537 = vshll.u32 %v5453, 16
        %v5539 = vrot.slane %v5537, 7
        %v5540 = vor.u32 %v5536, %v5539
        %v5541 = vrot.slane %v5540, 2
        %v5543 = vshll.u32 %v5456, 16
        %v5545 = vrot.slane %v5543, 7
        %v5546 = vsel %vm1422, %v5541, %v5545
        %v5547 = vshrl.u32 %v5459, 16
        %v5549 = vrot.slane %v5547, 6
        %v5550 = vshll.u32 %v5459, 16
        %v5552 = vrot.slane %v5550, 7
        %v5553 = vor.u32 %v5549, %v5552
        %v5554 = vrot.slane %v5553, 2
        %v5556 = vshll.u32 %v5462, 16
        %v5558 = vrot.slane %v5556, 7
        %v5559 = vsel %vm1422, %v5554, %v5558
        %v5560 = vshrl.u32 %v5465, 16
        %v5562 = vrot.slane %v5560, 6
        %v5563 = vshll.u32 %v5465, 16
        %v5565 = vrot.slane %v5563, 7
        %v5566 = vor.u32 %v5562, %v5565
        %v5567 = vrot.slane %v5566, 2
        %v5569 = vshll.u32 %v5468, 16
        %v5571 = vrot.slane %v5569, 7
        %v5572 = vsel %vm1422, %v5567, %v5571
        %s5573 = scalar_lea.vmem %s3, 320
        %v5574 = vld [vmem:[%s5573] sm:$0xf]
        %v5575 = vld [vmem:[%s5573 + $0x4] sm:$0xf]
        %v5576 = vld [vmem:[%s5573 + $0x8] sm:$0xf]
        %v5577 = vld [vmem:[%s5573 + $0xc] sm:$0xf]
        %v5578 = vld [vmem:[%s5573 + $0x10] sm:$0xf]
        %v5579 = vld [vmem:[%s5573 + $0x14] sm:$0xf]
        %v5580 = vld [vmem:[%s5573 + $0x18] sm:$0xf]
        %v5581 = vld [vmem:[%s5573 + $0x1c] sm:$0xf]
        %v5582 = vld [vmem:[%s5573 + $0x20] sm:$0xf]
        %v5583 = vld [vmem:[%s5573 + $0x24] sm:$0xf]
        %v5584 = vld [vmem:[%s5573 + $0x28] sm:$0xf]
        %v5585 = vld [vmem:[%s5573 + $0x2c] sm:$0xf]
        %v5586 = vld [vmem:[%s5573 + $0x30] sm:$0xf]
        %v5587 = vld [vmem:[%s5573 + $0x34] sm:$0xf]
        %v5588 = vld [vmem:[%s5573 + $0x38] sm:$0xf]
        %v5589 = vld [vmem:[%s5573 + $0x3c] sm:$0xf]
        %5591 = vst [vmem:[#allocation1] ss:$4 sm:$0xff] %v5481
        %s5593 = scalar_lea.vmem [#allocation1], 1
        %5594 = vst [vmem:[%s5593] ss:$4 sm:$0xff] %v5494
        %s5596 = scalar_lea.vmem [#allocation1], 2
        %5597 = vst [vmem:[%s5596] ss:$4 sm:$0xff] %v5507
        %s5599 = scalar_lea.vmem [#allocation1], 3
        %5600 = vst [vmem:[%s5599] ss:$4 sm:$0xff] %v5520
        %s5602 = scalar_lea.vmem [#allocation1], 32
        %5603 = vst [vmem:[%s5602] ss:$4 sm:$0xff] %v5533
        %s5605 = scalar_lea.vmem [#allocation1], 33
        %5606 = vst [vmem:[%s5605] ss:$4 sm:$0xff] %v5546
        %s5608 = scalar_lea.vmem [#allocation1], 34
        %5609 = vst [vmem:[%s5608] ss:$4 sm:$0xff] %v5559
        %s5611 = scalar_lea.vmem [#allocation1], 35
        %5612 = vst [vmem:[%s5611] ss:$4 sm:$0xff] %v5572
        %v5613 = vld.sshfl [vmem:[#allocation1] sm:$0xff pattern:$0x73625140]
        %v5614 = vld.sshfl [vmem:[#allocation1 + $0x20] sm:$0xff pattern:$0x73625140]
        %v5633 = vunpack.c.l.b16 %v5574
        %v5634 = vunpack.c.l.b16 %v5575
        %v5635 = vunpack.c.l.b16 %v5576
        %v5636 = vunpack.c.l.b16 %v5577
        %v5637 = vunpack.c.l.b16 %v5578
        %v5638 = vunpack.c.l.b16 %v5579
        %v5639 = vunpack.c.l.b16 %v5580
        %v5640 = vunpack.c.l.b16 %v5581
        %v5641 = vunpack.c.l.b16 %v5582
        %v5642 = vunpack.c.l.b16 %v5583
        %v5643 = vunpack.c.l.b16 %v5584
        %v5644 = vunpack.c.l.b16 %v5585
        %v5645 = vunpack.c.l.b16 %v5586
        %v5646 = vunpack.c.l.b16 %v5587
        %v5647 = vunpack.c.l.b16 %v5588
        %v5648 = vunpack.c.l.b16 %v5589
        %v5649 = vpack.c.b16 %v5634, %v5633
        %v5650 = vpack.c.b16 %v5636, %v5635
        %v5651 = vpack.c.b16 %v5638, %v5637
        %v5652 = vpack.c.b16 %v5640, %v5639
        %v5653 = vpack.c.b16 %v5642, %v5641
        %v5654 = vpack.c.b16 %v5644, %v5643
        %v5655 = vpack.c.b16 %v5646, %v5645
        %v5656 = vpack.c.b16 %v5648, %v5647
        %5665 = vmatpush.bf16.msra.mxu0 %v5656
        %5666 = vmatpush.bf16.msra.mxu0 %v5655
        %5667 = vmatpush.bf16.msra.mxu0 %v5654
        %5668 = vmatpush.bf16.msra.mxu0 %v5653
        %5669 = vmatpush.bf16.msra.mxu0 %v5652
        %5670 = vmatpush.bf16.msra.mxu0 %v5651
        %5671 = vmatpush.bf16.msra.mxu0 %v5650
        %5672 = vmatpush.bf16.msra.mxu0 %v5649
        %5673 = vmatmul.bf16.gmra.mxu0 %v5613
        %v5674 = vpop.f32.mrf.mxu0
        %v5675 = vadd.f32 0.0, %v5674
        %v5676 = vpop.f32.mrf.mxu0
        %v5677 = vadd.f32 0.0, %v5676
        %5678 = vmatmul.bf16.gmra.mxu0 %v5614
        %v5679 = vpop.f32.mrf.mxu0
        %v5680 = vadd.f32 0.0, %v5679
        %v5681 = vpop.f32.mrf.mxu0
        %v5682 = vadd.f32 0.0, %v5681
        %5683 = vdwg.mxu0
        %v5684 = vadd.f32 %v5393, %v5675
        %v5685 = vadd.f32 %v5394, %v5677
        %v5686 = vadd.f32 %v5395, %v5680
        %v5687 = vadd.f32 %v5396, %v5682
        %v5688 = vld [vmem:[%s4598] sm:$0x3]
        %v5689 = vld [vmem:[%s4598 + $0x4] sm:$0x3]
        %v5690 = vld [vmem:[%s4598 + $0x8] sm:$0x3]
        %v5691 = vld [vmem:[%s4598 + $0xc] sm:$0x3]
        %v5692 = vld [vmem:[%s4598 + $0x50] sm:$0x3]
        %v5693 = vld [vmem:[%s4598 + $0x54] sm:$0x3]
        %v5694 = vld [vmem:[%s4598 + $0x58] sm:$0x3]
        %v5695 = vld [vmem:[%s4598 + $0x5c] sm:$0x3]
        %s5696 = scalar_lea.vmem %s3, 384
        %v5697 = vld [vmem:[%s5696] sm:$0xf]
        %v5698 = vld [vmem:[%s5696 + $0x4] sm:$0xf]
        %v5699 = vld [vmem:[%s5696 + $0x8] sm:$0xf]
        %v5700 = vld [vmem:[%s5696 + $0xc] sm:$0xf]
        %v5701 = vld [vmem:[%s5696 + $0x10] sm:$0xf]
        %v5702 = vld [vmem:[%s5696 + $0x14] sm:$0xf]
        %v5703 = vld [vmem:[%s5696 + $0x18] sm:$0xf]
        %v5704 = vld [vmem:[%s5696 + $0x1c] sm:$0xf]
        %v5705 = vld [vmem:[%s5696 + $0x20] sm:$0xf]
        %v5706 = vld [vmem:[%s5696 + $0x24] sm:$0xf]
        %v5707 = vld [vmem:[%s5696 + $0x28] sm:$0xf]
        %v5708 = vld [vmem:[%s5696 + $0x2c] sm:$0xf]
        %v5709 = vld [vmem:[%s5696 + $0x30] sm:$0xf]
        %v5710 = vld [vmem:[%s5696 + $0x34] sm:$0xf]
        %v5711 = vld [vmem:[%s5696 + $0x38] sm:$0xf]
        %v5712 = vld [vmem:[%s5696 + $0x3c] sm:$0xf]
        %5714 = vst [vmem:[#allocation1] ss:$4 sm:$0xff] %v5688
        %s5716 = scalar_lea.vmem [#allocation1], 1
        %5717 = vst [vmem:[%s5716] ss:$4 sm:$0xff] %v5689
        %s5719 = scalar_lea.vmem [#allocation1], 2
        %5720 = vst [vmem:[%s5719] ss:$4 sm:$0xff] %v5690
        %s5722 = scalar_lea.vmem [#allocation1], 3
        %5723 = vst [vmem:[%s5722] ss:$4 sm:$0xff] %v5691
        %s5725 = scalar_lea.vmem [#allocation1], 32
        %5726 = vst [vmem:[%s5725] ss:$4 sm:$0xff] %v5692
        %s5728 = scalar_lea.vmem [#allocation1], 33
        %5729 = vst [vmem:[%s5728] ss:$4 sm:$0xff] %v5693
        %s5731 = scalar_lea.vmem [#allocation1], 34
        %5732 = vst [vmem:[%s5731] ss:$4 sm:$0xff] %v5694
        %s5734 = scalar_lea.vmem [#allocation1], 35
        %5735 = vst [vmem:[%s5734] ss:$4 sm:$0xff] %v5695
        %v5736 = vld.sshfl [vmem:[#allocation1] sm:$0xff pattern:$0x73625140]
        %v5737 = vld.sshfl [vmem:[#allocation1 + $0x20] sm:$0xff pattern:$0x73625140]
        %v5756 = vunpack.c.l.b16 %v5697
        %v5757 = vunpack.c.l.b16 %v5698
        %v5758 = vunpack.c.l.b16 %v5699
        %v5759 = vunpack.c.l.b16 %v5700
        %v5760 = vunpack.c.l.b16 %v5701
        %v5761 = vunpack.c.l.b16 %v5702
        %v5762 = vunpack.c.l.b16 %v5703
        %v5763 = vunpack.c.l.b16 %v5704
        %v5764 = vunpack.c.l.b16 %v5705
        %v5765 = vunpack.c.l.b16 %v5706
        %v5766 = vunpack.c.l.b16 %v5707
        %v5767 = vunpack.c.l.b16 %v5708
        %v5768 = vunpack.c.l.b16 %v5709
        %v5769 = vunpack.c.l.b16 %v5710
        %v5770 = vunpack.c.l.b16 %v5711
        %v5771 = vunpack.c.l.b16 %v5712
        %v5772 = vpack.c.b16 %v5757, %v5756
        %v5773 = vpack.c.b16 %v5759, %v5758
        %v5774 = vpack.c.b16 %v5761, %v5760
        %v5775 = vpack.c.b16 %v5763, %v5762
        %v5776 = vpack.c.b16 %v5765, %v5764
        %v5777 = vpack.c.b16 %v5767, %v5766
        %v5778 = vpack.c.b16 %v5769, %v5768
        %v5779 = vpack.c.b16 %v5771, %v5770
        %5788 = vmatpush.bf16.msra.mxu0 %v5779
        %5789 = vmatpush.bf16.msra.mxu0 %v5778
        %5790 = vmatpush.bf16.msra.mxu0 %v5777
        %5791 = vmatpush.bf16.msra.mxu0 %v5776
        %5792 = vmatpush.bf16.msra.mxu0 %v5775
        %5793 = vmatpush.bf16.msra.mxu0 %v5774
        %5794 = vmatpush.bf16.msra.mxu0 %v5773
        %5795 = vmatpush.bf16.msra.mxu0 %v5772
        %5796 = vmatmul.bf16.gmra.mxu0 %v5736
        %v5797 = vpop.f32.mrf.mxu0
        %v5798 = vadd.f32 0.0, %v5797
        %v5799 = vpop.f32.mrf.mxu0
        %v5800 = vadd.f32 0.0, %v5799
        %5801 = vmatmul.bf16.gmra.mxu0 %v5737
        %v5802 = vpop.f32.mrf.mxu0
        %v5803 = vadd.f32 0.0, %v5802
        %v5804 = vpop.f32.mrf.mxu0
        %v5805 = vadd.f32 0.0, %v5804
        %5806 = vdwg.mxu0
        %v5807 = vadd.f32 %v5684, %v5798
        %v5808 = vadd.f32 %v5685, %v5800
        %v5809 = vadd.f32 %v5686, %v5803
        %v5810 = vadd.f32 %v5687, %v5805
        %v5811 = vld [vmem:[%s3280] sm:$0x3]
        %v5812 = vld [vmem:[%s3280 + $0x4] sm:$0x3]
        %v5813 = vld [vmem:[%s3280 + $0x8] sm:$0x3]
        %v5814 = vld [vmem:[%s3280 + $0xc] sm:$0x3]
        %v5815 = vld [vmem:[%s3280 + $0x50] sm:$0x3]
        %v5816 = vld [vmem:[%s3280 + $0x54] sm:$0x3]
        %v5817 = vld [vmem:[%s3280 + $0x58] sm:$0x3]
        %v5818 = vld [vmem:[%s3280 + $0x5c] sm:$0x3]
        %s5819 = scalar_lea.vmem %s3, 448
        %v5820 = vld [vmem:[%s5819] sm:$0xf]
        %v5821 = vld [vmem:[%s5819 + $0x4] sm:$0xf]
        %v5822 = vld [vmem:[%s5819 + $0x8] sm:$0xf]
        %v5823 = vld [vmem:[%s5819 + $0xc] sm:$0xf]
        %v5824 = vld [vmem:[%s5819 + $0x10] sm:$0xf]
        %v5825 = vld [vmem:[%s5819 + $0x14] sm:$0xf]
        %v5826 = vld [vmem:[%s5819 + $0x18] sm:$0xf]
        %v5827 = vld [vmem:[%s5819 + $0x1c] sm:$0xf]
        %v5828 = vld [vmem:[%s5819 + $0x20] sm:$0xf]
        %v5829 = vld [vmem:[%s5819 + $0x24] sm:$0xf]
        %v5830 = vld [vmem:[%s5819 + $0x28] sm:$0xf]
        %v5831 = vld [vmem:[%s5819 + $0x2c] sm:$0xf]
        %v5832 = vld [vmem:[%s5819 + $0x30] sm:$0xf]
        %v5833 = vld [vmem:[%s5819 + $0x34] sm:$0xf]
        %v5834 = vld [vmem:[%s5819 + $0x38] sm:$0xf]
        %v5835 = vld [vmem:[%s5819 + $0x3c] sm:$0xf]
        %5837 = vst [vmem:[#allocation1] ss:$4 sm:$0xff] %v5811
        %s5839 = scalar_lea.vmem [#allocation1], 1
        %5840 = vst [vmem:[%s5839] ss:$4 sm:$0xff] %v5812
        %s5842 = scalar_lea.vmem [#allocation1], 2
        %5843 = vst [vmem:[%s5842] ss:$4 sm:$0xff] %v5813
        %s5845 = scalar_lea.vmem [#allocation1], 3
        %5846 = vst [vmem:[%s5845] ss:$4 sm:$0xff] %v5814
        %s5848 = scalar_lea.vmem [#allocation1], 32
        %5849 = vst [vmem:[%s5848] ss:$4 sm:$0xff] %v5815
        %s5851 = scalar_lea.vmem [#allocation1], 33
        %5852 = vst [vmem:[%s5851] ss:$4 sm:$0xff] %v5816
        %s5854 = scalar_lea.vmem [#allocation1], 34
        %5855 = vst [vmem:[%s5854] ss:$4 sm:$0xff] %v5817
        %s5857 = scalar_lea.vmem [#allocation1], 35
        %5858 = vst [vmem:[%s5857] ss:$4 sm:$0xff] %v5818
        %v5859 = vld.sshfl [vmem:[#allocation1] sm:$0xff pattern:$0x73625140]
        %v5860 = vld.sshfl [vmem:[#allocation1 + $0x20] sm:$0xff pattern:$0x73625140]
        %v5879 = vunpack.c.l.b16 %v5820
        %v5880 = vunpack.c.l.b16 %v5821
        %v5881 = vunpack.c.l.b16 %v5822
        %v5882 = vunpack.c.l.b16 %v5823
        %v5883 = vunpack.c.l.b16 %v5824
        %v5884 = vunpack.c.l.b16 %v5825
        %v5885 = vunpack.c.l.b16 %v5826
        %v5886 = vunpack.c.l.b16 %v5827
        %v5887 = vunpack.c.l.b16 %v5828
        %v5888 = vunpack.c.l.b16 %v5829
        %v5889 = vunpack.c.l.b16 %v5830
        %v5890 = vunpack.c.l.b16 %v5831
        %v5891 = vunpack.c.l.b16 %v5832
        %v5892 = vunpack.c.l.b16 %v5833
        %v5893 = vunpack.c.l.b16 %v5834
        %v5894 = vunpack.c.l.b16 %v5835
        %v5895 = vpack.c.b16 %v5880, %v5879
        %v5896 = vpack.c.b16 %v5882, %v5881
        %v5897 = vpack.c.b16 %v5884, %v5883
        %v5898 = vpack.c.b16 %v5886, %v5885
        %v5899 = vpack.c.b16 %v5888, %v5887
        %v5900 = vpack.c.b16 %v5890, %v5889
        %v5901 = vpack.c.b16 %v5892, %v5891
        %v5902 = vpack.c.b16 %v5894, %v5893
        %5911 = vmatpush.bf16.msra.mxu0 %v5902
        %5912 = vmatpush.bf16.msra.mxu0 %v5901
        %5913 = vmatpush.bf16.msra.mxu0 %v5900
        %5914 = vmatpush.bf16.msra.mxu0 %v5899
        %5915 = vmatpush.bf16.msra.mxu0 %v5898
        %5916 = vmatpush.bf16.msra.mxu0 %v5897
        %5917 = vmatpush.bf16.msra.mxu0 %v5896
        %5918 = vmatpush.bf16.msra.mxu0 %v5895
        %5919 = vmatmul.bf16.gmra.mxu0 %v5859
        %v5920 = vpop.f32.mrf.mxu0
        %v5921 = vadd.f32 0.0, %v5920
        %v5922 = vpop.f32.mrf.mxu0
        %v5923 = vadd.f32 0.0, %v5922
        %5924 = vmatmul.bf16.gmra.mxu0 %v5860
        %v5925 = vpop.f32.mrf.mxu0
        %v5926 = vadd.f32 0.0, %v5925
        %v5927 = vpop.f32.mrf.mxu0
        %v5928 = vadd.f32 0.0, %v5927
        %5929 = vdwg.mxu0
        %v5930 = vadd.f32 %v5807, %v5921
        %v5931 = vadd.f32 %v5808, %v5923
        %v5932 = vadd.f32 %v5809, %v5926
        %v5933 = vadd.f32 %v5810, %v5928
        %v5934 = vld [vmem:[%s4598] sm:$0x7]
        %v5935 = vld [vmem:[%s4598 + $0x4] sm:$0x7]
        %v5936 = vld [vmem:[%s4598 + $0x8] sm:$0x7]
        %v5937 = vld [vmem:[%s4598 + $0xc] sm:$0x7]
        %v5938 = vld [vmem:[%s4598 + $0x50] sm:$0x7]
        %v5939 = vld [vmem:[%s4598 + $0x54] sm:$0x7]
        %v5940 = vld [vmem:[%s4598 + $0x58] sm:$0x7]
        %v5941 = vld [vmem:[%s4598 + $0x5c] sm:$0x7]
        %v5950 = vrot.slane %v5934, 2
        %v5951 = vrot.slane %v5935, 2
        %v5952 = vrot.slane %v5936, 2
        %v5953 = vrot.slane %v5937, 2
        %v5954 = vrot.slane %v5938, 2
        %v5955 = vrot.slane %v5939, 2
        %v5956 = vrot.slane %v5940, 2
        %v5957 = vrot.slane %v5941, 2
        %v5960 = vsel %vm1157, %v5934, %v5950
        %v5961 = vsel %vm1161, %v5934, %v5950
        %v5963 = vrot.slane %v5961, 2
        %v5966 = vsel %vm1157, %v5935, %v5951
        %v5967 = vsel %vm1161, %v5935, %v5951
        %v5969 = vrot.slane %v5967, 2
        %v5972 = vsel %vm1157, %v5936, %v5952
        %v5973 = vsel %vm1161, %v5936, %v5952
        %v5975 = vrot.slane %v5973, 2
        %v5978 = vsel %vm1157, %v5937, %v5953
        %v5979 = vsel %vm1161, %v5937, %v5953
        %v5981 = vrot.slane %v5979, 2
        %v5984 = vsel %vm1157, %v5938, %v5954
        %v5985 = vsel %vm1161, %v5938, %v5954
        %v5987 = vrot.slane %v5985, 2
        %v5990 = vsel %vm1157, %v5939, %v5955
        %v5991 = vsel %vm1161, %v5939, %v5955
        %v5993 = vrot.slane %v5991, 2
        %v5996 = vsel %vm1157, %v5940, %v5956
        %v5997 = vsel %vm1161, %v5940, %v5956
        %v5999 = vrot.slane %v5997, 2
        %v6002 = vsel %vm1157, %v5941, %v5957
        %v6003 = vsel %vm1161, %v5941, %v5957
        %v6005 = vrot.slane %v6003, 2
        %v6006 = vshrl.u32 %v5960, 16
        %v6008 = vrot.slane %v6006, 6
        %v6009 = vshll.u32 %v5960, 16
        %v6011 = vrot.slane %v6009, 7
        %v6012 = vor.u32 %v6008, %v6011
        %v6013 = vrot.slane %v6012, 2
        %v6015 = vshll.u32 %v5963, 16
        %v6017 = vrot.slane %v6015, 7
        %v6018 = vsel %vm1422, %v6013, %v6017
        %v6019 = vshrl.u32 %v5966, 16
        %v6021 = vrot.slane %v6019, 6
        %v6022 = vshll.u32 %v5966, 16
        %v6024 = vrot.slane %v6022, 7
        %v6025 = vor.u32 %v6021, %v6024
        %v6026 = vrot.slane %v6025, 2
        %v6028 = vshll.u32 %v5969, 16
        %v6030 = vrot.slane %v6028, 7
        %v6031 = vsel %vm1422, %v6026, %v6030
        %v6032 = vshrl.u32 %v5972, 16
        %v6034 = vrot.slane %v6032, 6
        %v6035 = vshll.u32 %v5972, 16
        %v6037 = vrot.slane %v6035, 7
        %v6038 = vor.u32 %v6034, %v6037
        %v6039 = vrot.slane %v6038, 2
        %v6041 = vshll.u32 %v5975, 16
        %v6043 = vrot.slane %v6041, 7
        %v6044 = vsel %vm1422, %v6039, %v6043
        %v6045 = vshrl.u32 %v5978, 16
        %v6047 = vrot.slane %v6045, 6
        %v6048 = vshll.u32 %v5978, 16
        %v6050 = vrot.slane %v6048, 7
        %v6051 = vor.u32 %v6047, %v6050
        %v6052 = vrot.slane %v6051, 2
        %v6054 = vshll.u32 %v5981, 16
        %v6056 = vrot.slane %v6054, 7
        %v6057 = vsel %vm1422, %v6052, %v6056
        %v6058 = vshrl.u32 %v5984, 16
        %v6060 = vrot.slane %v6058, 6
        %v6061 = vshll.u32 %v5984, 16
        %v6063 = vrot.slane %v6061, 7
        %v6064 = vor.u32 %v6060, %v6063
        %v6065 = vrot.slane %v6064, 2
        %v6067 = vshll.u32 %v5987, 16
        %v6069 = vrot.slane %v6067, 7
        %v6070 = vsel %vm1422, %v6065, %v6069
        %v6071 = vshrl.u32 %v5990, 16
        %v6073 = vrot.slane %v6071, 6
        %v6074 = vshll.u32 %v5990, 16
        %v6076 = vrot.slane %v6074, 7
        %v6077 = vor.u32 %v6073, %v6076
        %v6078 = vrot.slane %v6077, 2
        %v6080 = vshll.u32 %v5993, 16
        %v6082 = vrot.slane %v6080, 7
        %v6083 = vsel %vm1422, %v6078, %v6082
        %v6084 = vshrl.u32 %v5996, 16
        %v6086 = vrot.slane %v6084, 6
        %v6087 = vshll.u32 %v5996, 16
        %v6089 = vrot.slane %v6087, 7
        %v6090 = vor.u32 %v6086, %v6089
        %v6091 = vrot.slane %v6090, 2
        %v6093 = vshll.u32 %v5999, 16
        %v6095 = vrot.slane %v6093, 7
        %v6096 = vsel %vm1422, %v6091, %v6095
        %v6097 = vshrl.u32 %v6002, 16
        %v6099 = vrot.slane %v6097, 6
        %v6100 = vshll.u32 %v6002, 16
        %v6102 = vrot.slane %v6100, 7
        %v6103 = vor.u32 %v6099, %v6102
        %v6104 = vrot.slane %v6103, 2
        %v6106 = vshll.u32 %v6005, 16
        %v6108 = vrot.slane %v6106, 7
        %v6109 = vsel %vm1422, %v6104, %v6108
        %s6110 = scalar_lea.vmem %s3, 512
        %v6111 = vld [vmem:[%s6110] sm:$0xf]
        %v6112 = vld [vmem:[%s6110 + $0x4] sm:$0xf]
        %v6113 = vld [vmem:[%s6110 + $0x8] sm:$0xf]
        %v6114 = vld [vmem:[%s6110 + $0xc] sm:$0xf]
        %v6115 = vld [vmem:[%s6110 + $0x10] sm:$0xf]
        %v6116 = vld [vmem:[%s6110 + $0x14] sm:$0xf]
        %v6117 = vld [vmem:[%s6110 + $0x18] sm:$0xf]
        %v6118 = vld [vmem:[%s6110 + $0x1c] sm:$0xf]
        %v6119 = vld [vmem:[%s6110 + $0x20] sm:$0xf]
        %v6120 = vld [vmem:[%s6110 + $0x24] sm:$0xf]
        %v6121 = vld [vmem:[%s6110 + $0x28] sm:$0xf]
        %v6122 = vld [vmem:[%s6110 + $0x2c] sm:$0xf]
        %v6123 = vld [vmem:[%s6110 + $0x30] sm:$0xf]
        %v6124 = vld [vmem:[%s6110 + $0x34] sm:$0xf]
        %v6125 = vld [vmem:[%s6110 + $0x38] sm:$0xf]
        %v6126 = vld [vmem:[%s6110 + $0x3c] sm:$0xf]
        %6128 = vst [vmem:[#allocation1] ss:$4 sm:$0xff] %v6018
        %s6130 = scalar_lea.vmem [#allocation1], 1
        %6131 = vst [vmem:[%s6130] ss:$4 sm:$0xff] %v6031
        %s6133 = scalar_lea.vmem [#allocation1], 2
        %6134 = vst [vmem:[%s6133] ss:$4 sm:$0xff] %v6044
        %s6136 = scalar_lea.vmem [#allocation1], 3
        %6137 = vst [vmem:[%s6136] ss:$4 sm:$0xff] %v6057
        %s6139 = scalar_lea.vmem [#allocation1], 32
        %6140 = vst [vmem:[%s6139] ss:$4 sm:$0xff] %v6070
        %s6142 = scalar_lea.vmem [#allocation1], 33
        %6143 = vst [vmem:[%s6142] ss:$4 sm:$0xff] %v6083
        %s6145 = scalar_lea.vmem [#allocation1], 34
        %6146 = vst [vmem:[%s6145] ss:$4 sm:$0xff] %v6096
        %s6148 = scalar_lea.vmem [#allocation1], 35
        %6149 = vst [vmem:[%s6148] ss:$4 sm:$0xff] %v6109
        %v6150 = vld.sshfl [vmem:[#allocation1] sm:$0xff pattern:$0x73625140]
        %v6151 = vld.sshfl [vmem:[#allocation1 + $0x20] sm:$0xff pattern:$0x73625140]
        %v6170 = vunpack.c.l.b16 %v6111
        %v6171 = vunpack.c.l.b16 %v6112
        %v6172 = vunpack.c.l.b16 %v6113
        %v6173 = vunpack.c.l.b16 %v6114
        %v6174 = vunpack.c.l.b16 %v6115
        %v6175 = vunpack.c.l.b16 %v6116
        %v6176 = vunpack.c.l.b16 %v6117
        %v6177 = vunpack.c.l.b16 %v6118
        %v6178 = vunpack.c.l.b16 %v6119
        %v6179 = vunpack.c.l.b16 %v6120
        %v6180 = vunpack.c.l.b16 %v6121
        %v6181 = vunpack.c.l.b16 %v6122
        %v6182 = vunpack.c.l.b16 %v6123
        %v6183 = vunpack.c.l.b16 %v6124
        %v6184 = vunpack.c.l.b16 %v6125
        %v6185 = vunpack.c.l.b16 %v6126
        %v6186 = vpack.c.b16 %v6171, %v6170
        %v6187 = vpack.c.b16 %v6173, %v6172
        %v6188 = vpack.c.b16 %v6175, %v6174
        %v6189 = vpack.c.b16 %v6177, %v6176
        %v6190 = vpack.c.b16 %v6179, %v6178
        %v6191 = vpack.c.b16 %v6181, %v6180
        %v6192 = vpack.c.b16 %v6183, %v6182
        %v6193 = vpack.c.b16 %v6185, %v6184
        %6202 = vmatpush.bf16.msra.mxu0 %v6193
        %6203 = vmatpush.bf16.msra.mxu0 %v6192
        %6204 = vmatpush.bf16.msra.mxu0 %v6191
        %6205 = vmatpush.bf16.msra.mxu0 %v6190
        %6206 = vmatpush.bf16.msra.mxu0 %v6189
        %6207 = vmatpush.bf16.msra.mxu0 %v6188
        %6208 = vmatpush.bf16.msra.mxu0 %v6187
        %6209 = vmatpush.bf16.msra.mxu0 %v6186
        %6210 = vmatmul.bf16.gmra.mxu0 %v6150
        %v6211 = vpop.f32.mrf.mxu0
        %v6212 = vadd.f32 0.0, %v6211
        %v6213 = vpop.f32.mrf.mxu0
        %v6214 = vadd.f32 0.0, %v6213
        %6215 = vmatmul.bf16.gmra.mxu0 %v6151
        %v6216 = vpop.f32.mrf.mxu0
        %v6217 = vadd.f32 0.0, %v6216
        %v6218 = vpop.f32.mrf.mxu0
        %v6219 = vadd.f32 0.0, %v6218
        %6220 = vdwg.mxu0
        %v6221 = vadd.f32 %v5930, %v6212
        %v6222 = vadd.f32 %v5931, %v6214
        %v6223 = vadd.f32 %v5932, %v6217
        %v6224 = vadd.f32 %v5933, %v6219
        %v6225 = vld [vmem:[%s4] sm:$0x1]
        %v6227 = vperm.slane %v6225, 0
        %v6229 = vadd.f32 %v6221, %v6227
        %v6230 = vadd.f32 %v6222, %v6227
        %v6231 = vadd.f32 %v6223, %v6227
        %v6232 = vadd.f32 %v6224, %v6227
        %v6233 = vmax.f32 %v6229, 0.0
        %v6234 = vmax.f32 %v6230, 0.0
        %v6235 = vmax.f32 %v6231, 0.0
        %v6236 = vmax.f32 %v6232, 0.0
        %v6237 = vadd.f32 %v6233, %v6234
        %v6238 = vrot.slane %v6237, 4
        %v6239 = vadd.f32 %v6237, %v6238
        %v6240 = vrot.slane %v6239, 2
        %v6241 = vadd.f32 %v6239, %v6240
        %v6242 = vrot.slane %v6241, 1
        %v6243 = vadd.f32 %v6241, %v6242
        %v6244 = vadd.f32 %v6235, %v6236
        %v6245 = vrot.slane %v6244, 4
        %v6246 = vadd.f32 %v6244, %v6245
        %v6247 = vrot.slane %v6246, 2
        %v6248 = vadd.f32 %v6246, %v6247
        %v6249 = vrot.slane %v6248, 1
        %v6250 = vadd.f32 %v6248, %v6249
        %v6251 = vmul.f32 %v6243, 0.0625
        %v6252 = vmul.f32 %v6250, 0.0625
        %v6253 = vpack.c.bf16 %v6251, %v6251
        %v6254 = vpack.c.bf16 %v6252, %v6252
        %v6255 = vld [vmem:[%s5] sm:$0xf]
        %v6256 = vld [vmem:[%s5 + $0x4] sm:$0xf]
        %v6257 = vld [vmem:[%s5 + $0x8] sm:$0xf]
        %v6258 = vld [vmem:[%s5 + $0xc] sm:$0xf]
        %v6259 = vld [vmem:[%s5 + $0x10] sm:$0xf]
        %v6260 = vld [vmem:[%s5 + $0x14] sm:$0xf]
        %v6261 = vld [vmem:[%s5 + $0x18] sm:$0xf]
        %v6262 = vld [vmem:[%s5 + $0x1c] sm:$0xf]
        %v6263 = vld [vmem:[%s5 + $0x20] sm:$0xf]
        %v6264 = vld [vmem:[%s5 + $0x24] sm:$0xf]
        %v6265 = vld [vmem:[%s5 + $0x28] sm:$0xf]
        %v6266 = vld [vmem:[%s5 + $0x2c] sm:$0xf]
        %v6267 = vld [vmem:[%s5 + $0x30] sm:$0xf]
        %v6268 = vld [vmem:[%s5 + $0x34] sm:$0xf]
        %v6269 = vld [vmem:[%s5 + $0x38] sm:$0xf]
        %v6270 = vld [vmem:[%s5 + $0x3c] sm:$0xf]
        %v6271 = vld [vmem:[%s6] sm:$0x1]
        %v6273 = vperm.slane %v6271, 0
        %v6277 = vunpack.c.l.b16 %v6253
        %v6278 = vunpack.c.l.b16 %v6254
        %vm6279 = vcmask 1041409
        %v6280 = vsel %vm6279, %v6278, %v6277
        %v6281 = vpack.c.b16 %v6280, %v6280
        %v6299 = vunpack.c.l.b16 %v6255
        %v6300 = vunpack.c.l.b16 %v6256
        %v6301 = vunpack.c.l.b16 %v6257
        %v6302 = vunpack.c.l.b16 %v6258
        %v6303 = vunpack.c.l.b16 %v6259
        %v6304 = vunpack.c.l.b16 %v6260
        %v6305 = vunpack.c.l.b16 %v6261
        %v6306 = vunpack.c.l.b16 %v6262
        %v6307 = vunpack.c.l.b16 %v6263
        %v6308 = vunpack.c.l.b16 %v6264
        %v6309 = vunpack.c.l.b16 %v6265
        %v6310 = vunpack.c.l.b16 %v6266
        %v6311 = vunpack.c.l.b16 %v6267
        %v6312 = vunpack.c.l.b16 %v6268
        %v6313 = vunpack.c.l.b16 %v6269
        %v6314 = vunpack.c.l.b16 %v6270
        %v6315 = vpack.c.b16 %v6300, %v6299
        %v6316 = vpack.c.b16 %v6302, %v6301
        %v6317 = vpack.c.b16 %v6304, %v6303
        %v6318 = vpack.c.b16 %v6306, %v6305
        %v6319 = vpack.c.b16 %v6308, %v6307
        %v6320 = vpack.c.b16 %v6310, %v6309
        %v6321 = vpack.c.b16 %v6312, %v6311
        %v6322 = vpack.c.b16 %v6314, %v6313
        %6331 = vmatpush.bf16.msra.mxu0 %v6322
        %6332 = vmatpush.bf16.msra.mxu0 %v6321
        %6333 = vmatpush.bf16.msra.mxu0 %v6320
        %6334 = vmatpush.bf16.msra.mxu0 %v6319
        %6335 = vmatpush.bf16.msra.mxu0 %v6318
        %6336 = vmatpush.bf16.msra.mxu0 %v6317
        %6337 = vmatpush.bf16.msra.mxu0 %v6316
        %6338 = vmatpush.bf16.msra.mxu0 %v6315
        %6339 = vmatmul.bf16.gmra.mxu0 %v6281
        %v6340 = vpop.f32.mrf.mxu0
        %v6341 = vadd.f32 %v6273, %v6340
        %v6342 = vpop.f32.mrf.mxu0
        %6343 = vdwg.mxu0
        %6344 = vst [vmem:[%s274] sm:$0x3] %v6341
        %s6345 = sand.u32 %s181, 1
        %s6346 = scalar_lea.sflag [#allocation4], %s6345
        %s6347 = sand.u32 %s181, 1
        %s6348 = smul.addr %s6347, 2
        %s6349 = scalar_lea.vmem [#allocation3], %s6348
        // Predicated region
        $region49: #{rsna24_forward.1} parent=47 // pred_check
          %p6350 = pneg %p191
        $region50: #{rsna24_forward.1} parent=47 // pred_check_branch
          %6352 = sbr.rel (%p6350) target = $region52
        $region51: #{rsna24_forward.1} parent=47 // pred_region
          %6354 = vsyncadd %s6346, 0
          %s6355 = smul.addr %s21, 2
          %s6356 = scalar_lea.hbm %s7, %s6355
          %s6358 = sshll.u32 %s6349, 4
          %s6359 = int_to_ptr.vmem [resolvable:$true] %s6358
          %s6360 = sshll.u32 %s6356, 4
          %s6361 = int_to_ptr.hbm [resolvable:$true] %s6360
          %6363 = dma.vmem_to_hbm [thread:$0]  %s6359, 32, %s6361, %s6346
        $region52: #{rsna24_forward.1} parent=47 // pred_fallthru
          _
      $region48: #{rsna24_forward.1} parent=5 // pred_fallthru
        _
      %p6364 = scmp.le.s32.totalorder 2, %s16
      // Predicated region
      $region53: #{rsna24_forward.1} parent=5 // pred_check
        %p6365 = pneg %p6364
      $region54: #{rsna24_forward.1} parent=5 // pred_check_branch
        %6367 = sbr.rel (%p6365) target = $region56
      $region55: #{rsna24_forward.1} parent=5 // pred_region
        %s6368 = ssub.s32 %s16, 2
        // Predicated region
        $region57: #{rsna24_forward.1} parent=55 // pred_check
          %p6369 = pneg %p197
        $region58: #{rsna24_forward.1} parent=55 // pred_check_branch
          %6371 = sbr.rel (%p6369) target = $region60
        $region59: #{rsna24_forward.1} parent=55 // pred_region
          %s6372 = sand.u32 %s182, 1
          %s6373 = scalar_lea.sflag [#allocation4], %s6372
          %s6374 = sand.u32 %s182, 1
          %s6375 = smul.addr %s6374, 2
          %s6376 = scalar_lea.vmem [#allocation3], %s6375
          %6378 = dma.done %s6373, 32
        $region60: #{rsna24_forward.1} parent=55 // pred_fallthru
          _
      $region56: #{rsna24_forward.1} parent=5 // pred_fallthru
        _
    $region6: #{rsna24_forward.1} parent=1 // loop_footer
      %s20 = sadd.s32 1, %s16
    $region7: #{rsna24_forward.1} parent=1 // loop_footer_branch
      %15 = sbr.rel target = $region3
    $region8: #{rsna24_forward.1} parent=1 // loop_exit
      _
    %6379 = vsyncpa [#allocation4], 1
    %s6380 = scalar_lea.sflag [#allocation4], 1
    %6381 = vsyncpa %s6380, 1

</llo_original>
